<compile_context>
chip_gen: v7x
topology: tpu7x:2x2x1
jax: 0.10.0
libtpu: 0.0.40
codegen_flags: <defaults>
</compile_context>

<pallas_src>
import functools

import jax
import jax.numpy as jnp
from jax.experimental import pallas as pl
from jax.experimental.pallas import tpu as pltpu


# ---------------------------------------------------------------------------
# VMEM sizing helpers (generation-aware).
# ---------------------------------------------------------------------------

def _vmem_capacity_bytes():
    try:
        return int(pltpu.get_tpu_info().vmem_capacity_bytes)
    except Exception:
        return 64 * 1024 * 1024  # conservative fallback (v7x-sized)


def _block_vmem_per_row_bytes(w, cin, layers, out_bytes, has_res):
    """Rough per-output-row VMEM bytes for one grid step of a fused block."""
    b = 2 * w * cin * 2                                   # main input (double buffered)
    cout_last = layers[-1][0].shape[-1]
    b += 2 * w * cout_last * out_bytes                    # output (double buffered)
    if has_res:
        b += 2 * w * cout_last * 4                        # residual input (double buffered)
    c = cin
    for (w3, _, _) in layers:
        co = w3.shape[-1]
        b += w * c * 2                                    # assembled strip (bf16)
        b += (w + 2) * c * 2                              # W-padded strip
        b += 3 * w * c * 2                                # hoisted im2col slab
        b += w * co * 4                                   # f32 accumulator
        b += w * co * 2                                   # bf16 next activation
        c = co
    return b


def _block_fixed_vmem_bytes(w, cin, layers):
    nfuse = len(layers)
    b = 2 * 2 * nfuse * w * cin * 2                       # top/bot halos (double buffered)
    for (w3, shift, _) in layers:
        b += 2 * (w3.size * 2 + shift.size * 4)           # weights + shift (double buffered)
    return b


def _choose_tile_rows(h, per_row_bytes, budget_bytes, multiple_of, min_rows=4):
    """Largest divisor of H (multiple of `multiple_of`) fitting the budget,
    avoiding degenerate 1-2 row strips when a slightly bigger one still fits."""
    divs = [d for d in range(1, h + 1) if h % d == 0 and d % multiple_of == 0]
    if not divs:
        divs = [h]
    target = budget_bytes // max(per_row_bytes, 1)
    fits = [d for d in divs if d <= target]
    best = max(fits) if fits else min(divs)
    if best < min(min_rows, h):
        roomy = [d for d in divs
                 if d >= min(min_rows, h)
                 and d * per_row_bytes <= (3 * budget_bytes) // 2]
        if roomy:
            best = min(roomy)
    # TODO(synk): on v7x prefer TH giving an even (N * n_tiles) so the 2-core
    # megacore split stays balanced.
    return best


# ---------------------------------------------------------------------------
# Fused conv3x3 (+shift) (+ReLU) block kernel.
# ---------------------------------------------------------------------------

def _conv_block_kernel(*refs, nfuse, relus, fuse_residual, img_h):
    """One output strip of `nfuse` fused 3x3 'same' convs (no bias) + shift + ReLU.

    refs (in order):
      x_ref    : (1, TH, W, Cin)       bf16  main input strip
      top_ref  : (1, nfuse, W, Cin)    bf16  rows above the strip (clamped at border)
      bot_ref  : (1, nfuse, W, Cin)    bf16  rows below the strip (clamped at border)
      per fused layer l:
        w_ref  : (3, 3*Cin_l, Cout_l)  bf16  kw-fused weights (BN scale folded)
        s_ref  : (1, Cout_l)           f32   folded BN shift
      [x_res_ref : (1, TH, W, Cout)    f32]  residual input (last block only)
      out_ref  : (1, TH, W, Cout)
    """
    x_ref, top_ref, bot_ref = refs[0], refs[1], refs[2]
    ws = refs[3:3 + 2 * nfuse]
    pos = 3 + 2 * nfuse
    if fuse_residual:
        x_res_ref = refs[pos]
        pos += 1
    out_ref = refs[pos]

    th = x_ref.shape[1]
    w_dim = x_ref.shape[2]
    halo = nfuse

    ti = pl.program_id(1)
    n_tiles = pl.num_programs(1)
    row0 = ti * th                          # image row of the first main-strip row

    x_main = x_ref[0]                       # (TH, W, Cin)
    cin = x_main.shape[-1]
    zero_halo = jnp.zeros((halo, w_dim, cin), x_main.dtype)
    top = jnp.where(ti > 0, top_ref[0], zero_halo)            # zero above the image
    bot = jnp.where(ti < n_tiles - 1, bot_ref[0], zero_halo)  # zero below the image

    # `cur` is the layer-l input strip; rows outside the image are exact zeros
    # (== PyTorch's zero padding), so every fused conv sees the correct halo.
    cur = jnp.concatenate([top, x_main, bot], axis=0)         # (TH + 2*halo, W, Cin)

    for l in range(nfuse):
        w_ref = ws[2 * l]
        s_ref = ws[2 * l + 1]
        rows_in = th + 2 * (halo - l)
        rows_out = rows_in - 2
        c_in = cur.shape[-1]
        c_out = w_ref.shape[-1]

        # W zero-pad + kw-fused im2col slab built ONCE per layer (hoisted out of
        # the kh loop; the kh taps below are leading-dim slices only).
        zero_col = jnp.zeros((rows_in, 1, c_in), cur.dtype)
        xpad = jnp.concatenate([zero_col, cur, zero_col], axis=1)      # (rows_in, W+2, C)
        xcat = jnp.concatenate(
            [xpad[:, 0:w_dim, :], xpad[:, 1:w_dim + 1, :], xpad[:, 2:w_dim + 2, :]],
            axis=-1)                                                   # (rows_in, W, 3C)
        # TODO(synk): build the shifted taps with pltpu.roll(+/-1, axis=W) +
        # border masking (XLU slot) once verified not to re-materialize.

        acc = None
        for kh in range(3):
            lhs = xcat[kh:kh + rows_out].reshape(rows_out * w_dim, 3 * c_in)
            part = jnp.dot(lhs, w_ref[kh], preferred_element_type=jnp.float32)
            acc = part if acc is None else acc + part                  # (rows_out*W, Cout) f32

        acc = acc + s_ref[...]                                         # folded BN shift
        if relus[l]:
            acc = jnp.maximum(acc, 0.0)

        if l == nfuse - 1:
            if fuse_residual:
                res = x_res_ref[0].reshape(rows_out * w_dim, c_out).astype(jnp.float32)
                acc = res - acc                                        # x - dncnn(x)
            out_ref[...] = acc.reshape(1, rows_out, w_dim, c_out).astype(out_ref.dtype)
        else:
            nxt = acc.reshape(rows_out, w_dim, c_out)
            # Rows of `nxt` span image rows [row0 - m, row0 + TH + m); rows that
            # fall outside the image are the *zero padding* of this layer's
            # output for the next conv -> force them to zero.
            m = halo - 1 - l
            rid = jax.lax.broadcasted_iota(jnp.int32, (rows_out, 1, 1), 0)
            img_row = row0 - m + rid
            valid = jnp.logical_and(img_row >= 0, img_row < img_h)
            nxt = jnp.where(valid, nxt, 0.0)
            cur = nxt.astype(jnp.bfloat16)


def conv3x3_block(x, layers, *, x_res=None, out_dtype=jnp.bfloat16):
    """Apply len(layers) fused 3x3 'same' convs (BN scale folded) + shift + ReLU.

    x      : (N, H, W, Cin) bf16 activations.
    layers : list of (w3 (3, 3*Cin_l, Cout_l) bf16, shift (1, Cout_l) f32, relu).
    x_res  : optional (N, H, W, Cout_last) f32; if given the kernel writes
             x_res - block(x) (the DnCNN residual) directly.
    """
    n, h, w, cin = x.shape
    nfuse = len(layers)
    assert h % nfuse == 0, "caller must pick a fusion depth dividing H"
    cout = layers[-1][0].shape[-1]
    out_bytes = jnp.dtype(out_dtype).itemsize

    vmem_cap = _vmem_capacity_bytes()
    budget = (vmem_cap * 3) // 8                       # ~24 MiB on v7x, ~48 MiB on v5e/v6e
    vmem_limit = min((vmem_cap * 3) // 4, vmem_cap - 20 * 1024 * 1024)
    vmem_limit = max(vmem_limit, 32 * 1024 * 1024)

    per_row = _block_vmem_per_row_bytes(w, cin, layers, out_bytes, x_res is not None)
    fixed = _block_fixed_vmem_bytes(w, cin, layers)
    th = _choose_tile_rows(h, per_row, max(budget - fixed, per_row), multiple_of=nfuse)
    n_tiles = h // th
    halo = nfuse
    hb = h // halo                                     # halo-sized block count along H

    def main_map(ni, ti):
        return (ni, ti, 0, 0)

    def top_map(ni, ti):      # `halo` rows just above the strip, clamped at the border
        return (ni, jnp.maximum(ti * (th // halo) - 1, 0), 0, 0)

    def bot_map(ni, ti):      # `halo` rows just below the strip, clamped at the border
        return (ni, jnp.minimum((ti + 1) * (th // halo), hb - 1), 0, 0)

    in_specs = [
        pl.BlockSpec((1, th, w, cin), main_map),
        pl.BlockSpec((1, halo, w, cin), top_map),
        pl.BlockSpec((1, halo, w, cin), bot_map),
    ]
    args = [x, x, x]
    relus = []
    for (w3, shift, relu) in layers:
        kdim, cdim = w3.shape[1], w3.shape[2]
        in_specs.append(pl.BlockSpec((3, kdim, cdim), lambda ni, ti: (0, 0, 0)))
        in_specs.append(pl.BlockSpec((1, cdim), lambda ni, ti: (0, 0)))
        args += [w3, shift]
        relus.append(bool(relu))
    if x_res is not None:
        in_specs.append(pl.BlockSpec((1, th, w, cout), main_map))
        args.append(x_res)

    kernel = functools.partial(
        _conv_block_kernel, nfuse=nfuse, relus=tuple(relus),
        fuse_residual=x_res is not None, img_h=h)

    return pl.pallas_call(
        kernel,
        out_shape=jax.ShapeDtypeStruct((n, h, w, cout), out_dtype),
        grid_spec=pltpu.PrefetchScalarGridSpec(
            num_scalar_prefetch=0,
            grid=(n, n_tiles),
            in_specs=in_specs,
            out_specs=pl.BlockSpec((1, th, w, cout), main_map),
        ),
        compiler_params=pltpu.CompilerParams(
            dimension_semantics=("parallel", "parallel"),
            vmem_limit_bytes=int(vmem_limit),
        ),
    )(*args)


# ---------------------------------------------------------------------------
# DnCNN model (inference-mode BN folded, matches the PyTorch module).
# ---------------------------------------------------------------------------

def _rand_conv_oihw(key, cin, cout):
    # PyTorch Conv2d default init: U(-1/sqrt(fan_in), 1/sqrt(fan_in)).
    fan_in = cin * 3 * 3
    bound = float(fan_in) ** -0.5
    return jax.random.uniform(key, (cout, cin, 3, 3), dtype=jnp.float32,
                              minval=-bound, maxval=bound)


def _pack_weight(w_oihw, bn_scale=None):
    # (Cout, Cin, 3, 3) -> (kh, kw, Cin, Cout) -> (3, 3*Cin, Cout); fold BN scale;
    # cast to bf16 for the MXU.
    cout, cin = w_oihw.shape[0], w_oihw.shape[1]
    w = jnp.transpose(w_oihw, (2, 3, 1, 0)).reshape(3, 3 * cin, cout)
    if bn_scale is not None:
        w = w * bn_scale[None, None, :]
    return w.astype(jnp.bfloat16)


class DnCNNPallas:
    """Pallas/JAX reimplementation of the DnCNN forward pass (eval-mode BN)."""

    def __init__(self, channels, num_of_layers=17, key=None, max_fuse=2):
        if key is None:
            key = jax.random.PRNGKey(0)
        features = 64
        eps = 1e-5
        keys = jax.random.split(key, num_of_layers)
        self.max_fuse = max_fuse

        self.layers = []       # (w3 bf16, shift f32 (1,Cout), relu)
        self._ref_params = []  # (w_oihw f32, scale f32, shift f32, relu) for the reference

        # First layer: conv(channels -> features) + ReLU, no BN.
        w = _rand_conv_oihw(keys[0], channels, features)
        self.layers.append((_pack_weight(w), jnp.zeros((1, features), jnp.float32), True))
        self._ref_params.append((w, jnp.ones((features,)), jnp.zeros((features,)), True))

        # Middle layers: conv + BN(eval) + ReLU, with BN folded to scale/shift.
        for li in range(num_of_layers - 2):
            w = _rand_conv_oihw(keys[1 + li], features, features)
            gamma = jnp.ones((features,), jnp.float32)
            beta = jnp.zeros((features,), jnp.float32)
            running_mean = jnp.zeros((features,), jnp.float32)
            running_var = jnp.ones((features,), jnp.float32)
            scale = gamma / jnp.sqrt(running_var + eps)
            shift = beta - running_mean * scale
            self.layers.append((_pack_weight(w, scale), shift[None, :], True))
            self._ref_params.append((w, scale, shift, True))

        # Last layer: conv(features -> channels), no BN, no ReLU (+ fused residual).
        w = _rand_conv_oihw(keys[-1], features, channels)
        self.layers.append((_pack_weight(w), jnp.zeros((1, channels), jnp.float32), False))
        self._ref_params.append((w, jnp.ones((channels,)), jnp.zeros((channels,)), False))

    def _chunks(self, h):
        max_fuse = self.max_fuse
        while max_fuse > 1 and h % max_fuse != 0:
            max_fuse -= 1
        chunks, i = [], 0
        while i < len(self.layers):
            k = min(max_fuse, len(self.layers) - i)
            chunks.append(self.layers[i:i + k])
            i += k
        return chunks

    def __call__(self, x_nchw):
        n, c, h, w = x_nchw.shape
        x_nhwc = jnp.transpose(x_nchw, (0, 2, 3, 1)).astype(jnp.float32)
        act = x_nhwc.astype(jnp.bfloat16)

        chunks = self._chunks(h)
        for ci, chunk in enumerate(chunks):
            if ci == len(chunks) - 1:
                act = conv3x3_block(act, chunk, x_res=x_nhwc, out_dtype=jnp.float32)
            else:
                act = conv3x3_block(act, chunk, out_dtype=jnp.bfloat16)
        return jnp.transpose(act, (0, 3, 1, 2))

    def reference(self, x_nchw):
        """Pure-JAX f32 reference (same eval-mode semantics as the PyTorch module)."""
        x = jnp.transpose(x_nchw, (0, 2, 3, 1)).astype(jnp.float32)
        hcur = x
        for (w_oihw, scale, shift, relu) in self._ref_params:
            w_hwio = jnp.transpose(w_oihw, (2, 3, 1, 0))
            hcur = jax.lax.conv_general_dilated(
                hcur, w_hwio, (1, 1), 'SAME',
                dimension_numbers=('NHWC', 'HWIO', 'NHWC'))
            hcur = hcur * scale[None, None, None, :] + shift[None, None, None, :]
            if relu:
                hcur = jnp.maximum(hcur, 0.0)
        y = x - hcur
        return jnp.transpose(y, (0, 3, 1, 2))


if __name__ == "__main__":
    key = jax.random.PRNGKey(0)
    k_params, k_input = jax.random.split(key)

    N, C, H, W = 2, 4, 16, 16
    num_of_layers = 6  # kept small for a quick run

    model = DnCNNPallas(channels=C, num_of_layers=num_of_layers, key=k_params)
    x = jax.random.normal(k_input, (N, C, H, W), dtype=jnp.float32)

    fwd = jax.jit(model.__call__)
    y = fwd(x)
    jax.block_until_ready(y)
    assert y.shape == (N, C, H, W)

    y_ref = jax.jit(model.reference)(x)
    jax.block_until_ready(y_ref)
    max_err = float(jnp.max(jnp.abs(y - y_ref)))
    assert max_err < 5e-2, f"max abs error vs f32 reference too large: {max_err}"

    print("KERNEL_OK")
</pallas_src>

<mosaic_0001>
module attributes {stable_mosaic.version = 11 : i64} {
  func.func @_conv_block_kernel(%arg0: i32, %arg1: i32, %arg2: memref<1x16x16x4xbf16, #tpu.memory_space<vmem>>, %arg3: memref<1x2x16x4xbf16, #tpu.memory_space<vmem>>, %arg4: memref<1x2x16x4xbf16, #tpu.memory_space<vmem>>, %arg5: memref<3x12x64xbf16, #tpu.memory_space<vmem>>, %arg6: memref<1x64xf32, #tpu.memory_space<vmem>>, %arg7: memref<3x192x64xbf16, #tpu.memory_space<vmem>>, %arg8: memref<1x64xf32, #tpu.memory_space<vmem>>, %arg9: memref<1x16x16x64xbf16, #tpu.memory_space<vmem>>) attributes {dimension_semantics = [#tpu.dimension_semantics<parallel>, #tpu.dimension_semantics<parallel>], iteration_bounds = array<i64: 2, 1>, scalar_prefetch = 0 : i64, scratch_operands = 0 : i64, tpu.core_type = #tpu.core_type<tc>, window_params = [{transform_indices = @transform_0, window_bounds = array<i64: 1, 16, 16, 4>}, {transform_indices = @transform_1, window_bounds = array<i64: 1, 2, 16, 4>}, {transform_indices = @transform_2, window_bounds = array<i64: 1, 2, 16, 4>}, {pipeline_mode = #tpu.pipeline_mode<synchronous>, transform_indices = @transform_3, window_bounds = array<i64: 3, 12, 64>}, {pipeline_mode = #tpu.pipeline_mode<synchronous>, transform_indices = @transform_4, window_bounds = array<i64: 1, 64>}, {pipeline_mode = #tpu.pipeline_mode<synchronous>, transform_indices = @transform_5, window_bounds = array<i64: 3, 192, 64>}, {pipeline_mode = #tpu.pipeline_mode<synchronous>, transform_indices = @transform_6, window_bounds = array<i64: 1, 64>}, {transform_indices = @transform_7, window_bounds = array<i64: 1, 16, 16, 64>}]} {
    %c16_i32 = arith.constant 16 : i32
    %0 = arith.muli %arg1, %c16_i32 : i32
    %c0 = arith.constant 0 : index
    %c0_0 = arith.constant 0 : index
    %c0_1 = arith.constant 0 : index
    %c0_2 = arith.constant 0 : index
    %1 = vector.load %arg2[%c0, %c0_0, %c0_1, %c0_2] : memref<1x16x16x4xbf16, #tpu.memory_space<vmem>>, vector<1x16x16x4xbf16>
    %2 = vector.shape_cast %1 : vector<1x16x16x4xbf16> to vector<16x16x4xbf16>
    %cst = arith.constant 0.000000e+00 : bf16
    %3 = vector.broadcast %cst : bf16 to vector<2x16x4xbf16>
    %c0_i32 = arith.constant 0 : i32
    %4 = arith.cmpi sgt, %arg1, %c0_i32 : i32
    %c0_3 = arith.constant 0 : index
    %c0_4 = arith.constant 0 : index
    %c0_5 = arith.constant 0 : index
    %c0_6 = arith.constant 0 : index
    %5 = vector.load %arg3[%c0_3, %c0_4, %c0_5, %c0_6] : memref<1x2x16x4xbf16, #tpu.memory_space<vmem>>, vector<1x2x16x4xbf16>
    %6 = vector.shape_cast %5 : vector<1x2x16x4xbf16> to vector<2x16x4xbf16>
    %7 = arith.select %4, %6, %3 : vector<2x16x4xbf16>
    %c0_i32_7 = arith.constant 0 : i32
    %8 = arith.cmpi slt, %arg1, %c0_i32_7 : i32
    %c0_8 = arith.constant 0 : index
    %c0_9 = arith.constant 0 : index
    %c0_10 = arith.constant 0 : index
    %c0_11 = arith.constant 0 : index
    %9 = vector.load %arg4[%c0_8, %c0_9, %c0_10, %c0_11] : memref<1x2x16x4xbf16, #tpu.memory_space<vmem>>, vector<1x2x16x4xbf16>
    %10 = vector.shape_cast %9 : vector<1x2x16x4xbf16> to vector<2x16x4xbf16>
    %11 = arith.select %8, %10, %3 : vector<2x16x4xbf16>
    %12 = tpu.concatenate %7, %2, %11 in 0 : vector<2x16x4xbf16>, vector<16x16x4xbf16>, vector<2x16x4xbf16> -> vector<20x16x4xbf16>
    %cst_12 = arith.constant 0.000000e+00 : bf16
    %13 = vector.broadcast %cst_12 : bf16 to vector<20x1x4xbf16>
    %14 = tpu.concatenate %13, %12, %13 in 1 : vector<20x1x4xbf16>, vector<20x16x4xbf16>, vector<20x1x4xbf16> -> vector<20x18x4xbf16>
    %15 = vector.extract_strided_slice %14 {offsets = [0, 0, 0], sizes = [20, 16, 4], strides = [1, 1, 1]} : vector<20x18x4xbf16> to vector<20x16x4xbf16>
    %16 = vector.extract_strided_slice %14 {offsets = [0, 1, 0], sizes = [20, 16, 4], strides = [1, 1, 1]} : vector<20x18x4xbf16> to vector<20x16x4xbf16>
    %17 = vector.extract_strided_slice %14 {offsets = [0, 2, 0], sizes = [20, 16, 4], strides = [1, 1, 1]} : vector<20x18x4xbf16> to vector<20x16x4xbf16>
    %18 = tpu.concatenate %15, %16, %17 in 2 : vector<20x16x4xbf16>, vector<20x16x4xbf16>, vector<20x16x4xbf16> -> vector<20x16x12xbf16>
    %19 = vector.extract_strided_slice %18 {offsets = [0, 0, 0], sizes = [18, 16, 12], strides = [1, 1, 1]} : vector<20x16x12xbf16> to vector<18x16x12xbf16>
    %20 = vector.shape_cast %19 : vector<18x16x12xbf16> to vector<288x12xbf16>
    %c0_13 = arith.constant 0 : index
    %c0_14 = arith.constant 0 : index
    %c0_15 = arith.constant 0 : index
    %21 = vector.load %arg5[%c0_13, %c0_14, %c0_15] : memref<3x12x64xbf16, #tpu.memory_space<vmem>>, vector<1x12x64xbf16>
    %22 = vector.shape_cast %21 : vector<1x12x64xbf16> to vector<12x64xbf16>
    %cst_16 = arith.constant dense<0.000000e+00> : vector<288x64xf32>
    %23 = tpu.matmul %20, %22, %cst_16 {dimension_numbers = #tpu.dot_dimension_numbers<[1], [0], [0], [1], [0, 0, 1, 1], [], []>} : vector<288x12xbf16>, vector<12x64xbf16>, vector<288x64xf32> -> vector<288x64xf32>
    %24 = vector.extract_strided_slice %18 {offsets = [1, 0, 0], sizes = [18, 16, 12], strides = [1, 1, 1]} : vector<20x16x12xbf16> to vector<18x16x12xbf16>
    %25 = vector.shape_cast %24 : vector<18x16x12xbf16> to vector<288x12xbf16>
    %c1 = arith.constant 1 : index
    %c0_17 = arith.constant 0 : index
    %c0_18 = arith.constant 0 : index
    %26 = vector.load %arg5[%c1, %c0_17, %c0_18] : memref<3x12x64xbf16, #tpu.memory_space<vmem>>, vector<1x12x64xbf16>
    %27 = vector.shape_cast %26 : vector<1x12x64xbf16> to vector<12x64xbf16>
    %cst_19 = arith.constant dense<0.000000e+00> : vector<288x64xf32>
    %28 = tpu.matmul %25, %27, %cst_19 {dimension_numbers = #tpu.dot_dimension_numbers<[1], [0], [0], [1], [0, 0, 1, 1], [], []>} : vector<288x12xbf16>, vector<12x64xbf16>, vector<288x64xf32> -> vector<288x64xf32>
    %29 = arith.addf %23, %28 : vector<288x64xf32>
    %30 = vector.extract_strided_slice %18 {offsets = [2, 0, 0], sizes = [18, 16, 12], strides = [1, 1, 1]} : vector<20x16x12xbf16> to vector<18x16x12xbf16>
    %31 = vector.shape_cast %30 : vector<18x16x12xbf16> to vector<288x12xbf16>
    %c2 = arith.constant 2 : index
    %c0_20 = arith.constant 0 : index
    %c0_21 = arith.constant 0 : index
    %32 = vector.load %arg5[%c2, %c0_20, %c0_21] : memref<3x12x64xbf16, #tpu.memory_space<vmem>>, vector<1x12x64xbf16>
    %33 = vector.shape_cast %32 : vector<1x12x64xbf16> to vector<12x64xbf16>
    %cst_22 = arith.constant dense<0.000000e+00> : vector<288x64xf32>
    %34 = tpu.matmul %31, %33, %cst_22 {dimension_numbers = #tpu.dot_dimension_numbers<[1], [0], [0], [1], [0, 0, 1, 1], [], []>} : vector<288x12xbf16>, vector<12x64xbf16>, vector<288x64xf32> -> vector<288x64xf32>
    %35 = arith.addf %29, %34 : vector<288x64xf32>
    %c0_23 = arith.constant 0 : index
    %c0_24 = arith.constant 0 : index
    %36 = vector.load %arg6[%c0_23, %c0_24] : memref<1x64xf32, #tpu.memory_space<vmem>>, vector<1x64xf32>
    %37 = vector.broadcast %36 : vector<1x64xf32> to vector<288x64xf32>
    %38 = arith.addf %35, %37 : vector<288x64xf32>
    %cst_25 = arith.constant 0.000000e+00 : f32
    %39 = vector.broadcast %cst_25 : f32 to vector<288x64xf32>
    %40 = arith.maximumf %38, %39 : vector<288x64xf32>
    %41 = vector.shape_cast %40 : vector<288x64xf32> to vector<18x16x64xf32>
    %42 = tpu.iota {dimensions = array<i32: 0>} : vector<18x1x1xi32>
    %c1_i32 = arith.constant 1 : i32
    %43 = arith.subi %0, %c1_i32 : i32
    %44 = vector.broadcast %43 : i32 to vector<18x1x1xi32>
    %45 = arith.addi %44, %42 : vector<18x1x1xi32>
    %c0_i32_26 = arith.constant 0 : i32
    %46 = vector.broadcast %c0_i32_26 : i32 to vector<18x1x1xi32>
    %47 = arith.cmpi sge, %45, %46 : vector<18x1x1xi32>
    %c16_i32_27 = arith.constant 16 : i32
    %48 = vector.broadcast %c16_i32_27 : i32 to vector<18x1x1xi32>
    %49 = arith.cmpi slt, %45, %48 : vector<18x1x1xi32>
    %50 = arith.andi %47, %49 : vector<18x1x1xi1>
    %cst_28 = arith.constant 0.000000e+00 : f32
    %51 = vector.shape_cast %50 : vector<18x1x1xi1> to vector<18x1x1xi1>
    %52 = vector.broadcast %51 : vector<18x1x1xi1> to vector<18x16x64xi1>
    %53 = vector.broadcast %cst_28 : f32 to vector<18x16x64xf32>
    %54 = arith.select %52, %41, %53 : vector<18x16x64xi1>, vector<18x16x64xf32>
    %55 = arith.truncf %54 : vector<18x16x64xf32> to vector<18x16x64xbf16>
    %cst_29 = arith.constant 0.000000e+00 : bf16
    %56 = vector.broadcast %cst_29 : bf16 to vector<18x1x64xbf16>
    %57 = tpu.concatenate %56, %55, %56 in 1 : vector<18x1x64xbf16>, vector<18x16x64xbf16>, vector<18x1x64xbf16> -> vector<18x18x64xbf16>
    %58 = vector.extract_strided_slice %57 {offsets = [0, 0, 0], sizes = [18, 16, 64], strides = [1, 1, 1]} : vector<18x18x64xbf16> to vector<18x16x64xbf16>
    %59 = vector.extract_strided_slice %57 {offsets = [0, 1, 0], sizes = [18, 16, 64], strides = [1, 1, 1]} : vector<18x18x64xbf16> to vector<18x16x64xbf16>
    %60 = vector.extract_strided_slice %57 {offsets = [0, 2, 0], sizes = [18, 16, 64], strides = [1, 1, 1]} : vector<18x18x64xbf16> to vector<18x16x64xbf16>
    %61 = tpu.concatenate %58, %59, %60 in 2 : vector<18x16x64xbf16>, vector<18x16x64xbf16>, vector<18x16x64xbf16> -> vector<18x16x192xbf16>
    %62 = vector.extract_strided_slice %61 {offsets = [0, 0, 0], sizes = [16, 16, 192], strides = [1, 1, 1]} : vector<18x16x192xbf16> to vector<16x16x192xbf16>
    %63 = vector.shape_cast %62 : vector<16x16x192xbf16> to vector<256x192xbf16>
    %c0_30 = arith.constant 0 : index
    %c0_31 = arith.constant 0 : index
    %c0_32 = arith.constant 0 : index
    %64 = vector.load %arg7[%c0_30, %c0_31, %c0_32] : memref<3x192x64xbf16, #tpu.memory_space<vmem>>, vector<1x192x64xbf16>
    %65 = vector.shape_cast %64 : vector<1x192x64xbf16> to vector<192x64xbf16>
    %cst_33 = arith.constant dense<0.000000e+00> : vector<256x64xf32>
    %66 = tpu.matmul %63, %65, %cst_33 {dimension_numbers = #tpu.dot_dimension_numbers<[1], [0], [0], [1], [0, 0, 1, 1], [], []>} : vector<256x192xbf16>, vector<192x64xbf16>, vector<256x64xf32> -> vector<256x64xf32>
    %67 = vector.extract_strided_slice %61 {offsets = [1, 0, 0], sizes = [16, 16, 192], strides = [1, 1, 1]} : vector<18x16x192xbf16> to vector<16x16x192xbf16>
    %68 = vector.shape_cast %67 : vector<16x16x192xbf16> to vector<256x192xbf16>
    %c1_34 = arith.constant 1 : index
    %c0_35 = arith.constant 0 : index
    %c0_36 = arith.constant 0 : index
    %69 = vector.load %arg7[%c1_34, %c0_35, %c0_36] : memref<3x192x64xbf16, #tpu.memory_space<vmem>>, vector<1x192x64xbf16>
    %70 = vector.shape_cast %69 : vector<1x192x64xbf16> to vector<192x64xbf16>
    %cst_37 = arith.constant dense<0.000000e+00> : vector<256x64xf32>
    %71 = tpu.matmul %68, %70, %cst_37 {dimension_numbers = #tpu.dot_dimension_numbers<[1], [0], [0], [1], [0, 0, 1, 1], [], []>} : vector<256x192xbf16>, vector<192x64xbf16>, vector<256x64xf32> -> vector<256x64xf32>
    %72 = arith.addf %66, %71 : vector<256x64xf32>
    %73 = vector.extract_strided_slice %61 {offsets = [2, 0, 0], sizes = [16, 16, 192], strides = [1, 1, 1]} : vector<18x16x192xbf16> to vector<16x16x192xbf16>
    %74 = vector.shape_cast %73 : vector<16x16x192xbf16> to vector<256x192xbf16>
    %c2_38 = arith.constant 2 : index
    %c0_39 = arith.constant 0 : index
    %c0_40 = arith.constant 0 : index
    %75 = vector.load %arg7[%c2_38, %c0_39, %c0_40] : memref<3x192x64xbf16, #tpu.memory_space<vmem>>, vector<1x192x64xbf16>
    %76 = vector.shape_cast %75 : vector<1x192x64xbf16> to vector<192x64xbf16>
    %cst_41 = arith.constant dense<0.000000e+00> : vector<256x64xf32>
    %77 = tpu.matmul %74, %76, %cst_41 {dimension_numbers = #tpu.dot_dimension_numbers<[1], [0], [0], [1], [0, 0, 1, 1], [], []>} : vector<256x192xbf16>, vector<192x64xbf16>, vector<256x64xf32> -> vector<256x64xf32>
    %78 = arith.addf %72, %77 : vector<256x64xf32>
    %c0_42 = arith.constant 0 : index
    %c0_43 = arith.constant 0 : index
    %79 = vector.load %arg8[%c0_42, %c0_43] : memref<1x64xf32, #tpu.memory_space<vmem>>, vector<1x64xf32>
    %80 = vector.broadcast %79 : vector<1x64xf32> to vector<256x64xf32>
    %81 = arith.addf %78, %80 : vector<256x64xf32>
    %cst_44 = arith.constant 0.000000e+00 : f32
    %82 = vector.broadcast %cst_44 : f32 to vector<256x64xf32>
    %83 = arith.maximumf %81, %82 : vector<256x64xf32>
    %84 = vector.shape_cast %83 : vector<256x64xf32> to vector<1x16x16x64xf32>
    %85 = arith.truncf %84 : vector<1x16x16x64xf32> to vector<1x16x16x64xbf16>
    %c0_45 = arith.constant 0 : index
    %c0_46 = arith.constant 0 : index
    %c0_47 = arith.constant 0 : index
    %c0_48 = arith.constant 0 : index
    %86 = vector.load %arg9[%c0_45, %c0_46, %c0_47, %c0_48] : memref<1x16x16x64xbf16, #tpu.memory_space<vmem>>, vector<1x16x16x64xbf16>
    tpu.vector_store %arg9[%c0_45, %c0_46, %c0_47, %c0_48], %85 {strides = array<i32>} : memref<1x16x16x64xbf16, #tpu.memory_space<vmem>>, vector<1x16x16x64xbf16>,
    return
  }
  func.func @transform_0(%arg0: i32, %arg1: i32) -> (i32, i32, i32, i32) {
    %c0_i32 = arith.constant 0 : i32
    %c0_i32_0 = arith.constant 0 : i32
    %c0_i32_1 = arith.constant 0 : i32
    return %arg0, %arg1, %c0_i32, %c0_i32_0 : i32, i32, i32, i32
  }
  func.func @transform_1(%arg0: i32, %arg1: i32) -> (i32, i32, i32, i32) {
    %c8_i32 = arith.constant 8 : i32
    %0 = arith.muli %arg1, %c8_i32 : i32
    %c1_i32 = arith.constant 1 : i32
    %1 = arith.subi %0, %c1_i32 : i32
    %c0_i32 = arith.constant 0 : i32
    %2 = arith.maxsi %1, %c0_i32 : i32
    %c0_i32_0 = arith.constant 0 : i32
    %c0_i32_1 = arith.constant 0 : i32
    %c0_i32_2 = arith.constant 0 : i32
    return %arg0, %2, %c0_i32_0, %c0_i32_1 : i32, i32, i32, i32
  }
  func.func @transform_2(%arg0: i32, %arg1: i32) -> (i32, i32, i32, i32) {
    %c1_i32 = arith.constant 1 : i32
    %0 = arith.addi %arg1, %c1_i32 : i32
    %c8_i32 = arith.constant 8 : i32
    %1 = arith.muli %0, %c8_i32 : i32
    %c7_i32 = arith.constant 7 : i32
    %2 = arith.minsi %1, %c7_i32 : i32
    %c0_i32 = arith.constant 0 : i32
    %c0_i32_0 = arith.constant 0 : i32
    %c0_i32_1 = arith.constant 0 : i32
    return %arg0, %2, %c0_i32, %c0_i32_0 : i32, i32, i32, i32
  }
  func.func @transform_3(%arg0: i32, %arg1: i32) -> (i32, i32, i32) {
    %c0_i32 = arith.constant 0 : i32
    %c0_i32_0 = arith.constant 0 : i32
    %c0_i32_1 = arith.constant 0 : i32
    %c0_i32_2 = arith.constant 0 : i32
    return %c0_i32, %c0_i32_0, %c0_i32_1 : i32, i32, i32
  }
  func.func @transform_4(%arg0: i32, %arg1: i32) -> (i32, i32) {
    %c0_i32 = arith.constant 0 : i32
    %c0_i32_0 = arith.constant 0 : i32
    %c0_i32_1 = arith.constant 0 : i32
    return %c0_i32, %c0_i32_0 : i32, i32
  }
  func.func @transform_5(%arg0: i32, %arg1: i32) -> (i32, i32, i32) {
    %c0_i32 = arith.constant 0 : i32
    %c0_i32_0 = arith.constant 0 : i32
    %c0_i32_1 = arith.constant 0 : i32
    %c0_i32_2 = arith.constant 0 : i32
    return %c0_i32, %c0_i32_0, %c0_i32_1 : i32, i32, i32
  }
  func.func @transform_6(%arg0: i32, %arg1: i32) -> (i32, i32) {
    %c0_i32 = arith.constant 0 : i32
    %c0_i32_0 = arith.constant 0 : i32
    %c0_i32_1 = arith.constant 0 : i32
    return %c0_i32, %c0_i32_0 : i32, i32
  }
  func.func @transform_7(%arg0: i32, %arg1: i32) -> (i32, i32, i32, i32) {
    %c0_i32 = arith.constant 0 : i32
    %c0_i32_0 = arith.constant 0 : i32
    %c0_i32_1 = arith.constant 0 : i32
    return %arg0, %arg1, %c0_i32, %c0_i32_0 : i32, i32, i32, i32
  }
}

module attributes {stable_mosaic.version = 11 : i64} {
  func.func @_conv_block_kernel(%arg0: i32, %arg1: i32, %arg2: memref<1x16x16x64xbf16, #tpu.memory_space<vmem>>, %arg3: memref<1x2x16x64xbf16, #tpu.memory_space<vmem>>, %arg4: memref<1x2x16x64xbf16, #tpu.memory_space<vmem>>, %arg5: memref<3x192x64xbf16, #tpu.memory_space<vmem>>, %arg6: memref<1x64xf32, #tpu.memory_space<vmem>>, %arg7: memref<3x192x4xbf16, #tpu.memory_space<vmem>>, %arg8: memref<1x4xf32, #tpu.memory_space<vmem>>, %arg9: memref<1x16x16x4xf32, #tpu.memory_space<vmem>>, %arg10: memref<1x16x16x4xf32, #tpu.memory_space<vmem>>) attributes {dimension_semantics = [#tpu.dimension_semantics<parallel>, #tpu.dimension_semantics<parallel>], iteration_bounds = array<i64: 2, 1>, scalar_prefetch = 0 : i64, scratch_operands = 0 : i64, tpu.core_type = #tpu.core_type<tc>, window_params = [{transform_indices = @transform_0, window_bounds = array<i64: 1, 16, 16, 64>}, {transform_indices = @transform_1, window_bounds = array<i64: 1, 2, 16, 64>}, {transform_indices = @transform_2, window_bounds = array<i64: 1, 2, 16, 64>}, {pipeline_mode = #tpu.pipeline_mode<synchronous>, transform_indices = @transform_3, window_bounds = array<i64: 3, 192, 64>}, {pipeline_mode = #tpu.pipeline_mode<synchronous>, transform_indices = @transform_4, window_bounds = array<i64: 1, 64>}, {pipeline_mode = #tpu.pipeline_mode<synchronous>, transform_indices = @transform_5, window_bounds = array<i64: 3, 192, 4>}, {pipeline_mode = #tpu.pipeline_mode<synchronous>, transform_indices = @transform_6, window_bounds = array<i64: 1, 4>}, {transform_indices = @transform_7, window_bounds = array<i64: 1, 16, 16, 4>}, {transform_indices = @transform_8, window_bounds = array<i64: 1, 16, 16, 4>}]} {
    %c16_i32 = arith.constant 16 : i32
    %0 = arith.muli %arg1, %c16_i32 : i32
    %c0 = arith.constant 0 : index
    %c0_0 = arith.constant 0 : index
    %c0_1 = arith.constant 0 : index
    %c0_2 = arith.constant 0 : index
    %1 = vector.load %arg2[%c0, %c0_0, %c0_1, %c0_2] : memref<1x16x16x64xbf16, #tpu.memory_space<vmem>>, vector<1x16x16x64xbf16>
    %2 = vector.shape_cast %1 : vector<1x16x16x64xbf16> to vector<16x16x64xbf16>
    %cst = arith.constant 0.000000e+00 : bf16
    %3 = vector.broadcast %cst : bf16 to vector<2x16x64xbf16>
    %c0_i32 = arith.constant 0 : i32
    %4 = arith.cmpi sgt, %arg1, %c0_i32 : i32
    %c0_3 = arith.constant 0 : index
    %c0_4 = arith.constant 0 : index
    %c0_5 = arith.constant 0 : index
    %c0_6 = arith.constant 0 : index
    %5 = vector.load %arg3[%c0_3, %c0_4, %c0_5, %c0_6] : memref<1x2x16x64xbf16, #tpu.memory_space<vmem>>, vector<1x2x16x64xbf16>
    %6 = vector.shape_cast %5 : vector<1x2x16x64xbf16> to vector<2x16x64xbf16>
    %7 = arith.select %4, %6, %3 : vector<2x16x64xbf16>
    %c0_i32_7 = arith.constant 0 : i32
    %8 = arith.cmpi slt, %arg1, %c0_i32_7 : i32
    %c0_8 = arith.constant 0 : index
    %c0_9 = arith.constant 0 : index
    %c0_10 = arith.constant 0 : index
    %c0_11 = arith.constant 0 : index
    %9 = vector.load %arg4[%c0_8, %c0_9, %c0_10, %c0_11] : memref<1x2x16x64xbf16, #tpu.memory_space<vmem>>, vector<1x2x16x64xbf16>
    %10 = vector.shape_cast %9 : vector<1x2x16x64xbf16> to vector<2x16x64xbf16>
    %11 = arith.select %8, %10, %3 : vector<2x16x64xbf16>
    %12 = tpu.concatenate %7, %2, %11 in 0 : vector<2x16x64xbf16>, vector<16x16x64xbf16>, vector<2x16x64xbf16> -> vector<20x16x64xbf16>
    %cst_12 = arith.constant 0.000000e+00 : bf16
    %13 = vector.broadcast %cst_12 : bf16 to vector<20x1x64xbf16>
    %14 = tpu.concatenate %13, %12, %13 in 1 : vector<20x1x64xbf16>, vector<20x16x64xbf16>, vector<20x1x64xbf16> -> vector<20x18x64xbf16>
    %15 = vector.extract_strided_slice %14 {offsets = [0, 0, 0], sizes = [20, 16, 64], strides = [1, 1, 1]} : vector<20x18x64xbf16> to vector<20x16x64xbf16>
    %16 = vector.extract_strided_slice %14 {offsets = [0, 1, 0], sizes = [20, 16, 64], strides = [1, 1, 1]} : vector<20x18x64xbf16> to vector<20x16x64xbf16>
    %17 = vector.extract_strided_slice %14 {offsets = [0, 2, 0], sizes = [20, 16, 64], strides = [1, 1, 1]} : vector<20x18x64xbf16> to vector<20x16x64xbf16>
    %18 = tpu.concatenate %15, %16, %17 in 2 : vector<20x16x64xbf16>, vector<20x16x64xbf16>, vector<20x16x64xbf16> -> vector<20x16x192xbf16>
    %19 = vector.extract_strided_slice %18 {offsets = [0, 0, 0], sizes = [18, 16, 192], strides = [1, 1, 1]} : vector<20x16x192xbf16> to vector<18x16x192xbf16>
    %20 = vector.shape_cast %19 : vector<18x16x192xbf16> to vector<288x192xbf16>
    %c0_13 = arith.constant 0 : index
    %c0_14 = arith.constant 0 : index
    %c0_15 = arith.constant 0 : index
    %21 = vector.load %arg5[%c0_13, %c0_14, %c0_15] : memref<3x192x64xbf16, #tpu.memory_space<vmem>>, vector<1x192x64xbf16>
    %22 = vector.shape_cast %21 : vector<1x192x64xbf16> to vector<192x64xbf16>
    %cst_16 = arith.constant dense<0.000000e+00> : vector<288x64xf32>
    %23 = tpu.matmul %20, %22, %cst_16 {dimension_numbers = #tpu.dot_dimension_numbers<[1], [0], [0], [1], [0, 0, 1, 1], [], []>} : vector<288x192xbf16>, vector<192x64xbf16>, vector<288x64xf32> -> vector<288x64xf32>
    %24 = vector.extract_strided_slice %18 {offsets = [1, 0, 0], sizes = [18, 16, 192], strides = [1, 1, 1]} : vector<20x16x192xbf16> to vector<18x16x192xbf16>
    %25 = vector.shape_cast %24 : vector<18x16x192xbf16> to vector<288x192xbf16>
    %c1 = arith.constant 1 : index
    %c0_17 = arith.constant 0 : index
    %c0_18 = arith.constant 0 : index
    %26 = vector.load %arg5[%c1, %c0_17, %c0_18] : memref<3x192x64xbf16, #tpu.memory_space<vmem>>, vector<1x192x64xbf16>
    %27 = vector.shape_cast %26 : vector<1x192x64xbf16> to vector<192x64xbf16>
    %cst_19 = arith.constant dense<0.000000e+00> : vector<288x64xf32>
    %28 = tpu.matmul %25, %27, %cst_19 {dimension_numbers = #tpu.dot_dimension_numbers<[1], [0], [0], [1], [0, 0, 1, 1], [], []>} : vector<288x192xbf16>, vector<192x64xbf16>, vector<288x64xf32> -> vector<288x64xf32>
    %29 = arith.addf %23, %28 : vector<288x64xf32>
    %30 = vector.extract_strided_slice %18 {offsets = [2, 0, 0], sizes = [18, 16, 192], strides = [1, 1, 1]} : vector<20x16x192xbf16> to vector<18x16x192xbf16>
    %31 = vector.shape_cast %30 : vector<18x16x192xbf16> to vector<288x192xbf16>
    %c2 = arith.constant 2 : index
    %c0_20 = arith.constant 0 : index
    %c0_21 = arith.constant 0 : index
    %32 = vector.load %arg5[%c2, %c0_20, %c0_21] : memref<3x192x64xbf16, #tpu.memory_space<vmem>>, vector<1x192x64xbf16>
    %33 = vector.shape_cast %32 : vector<1x192x64xbf16> to vector<192x64xbf16>
    %cst_22 = arith.constant dense<0.000000e+00> : vector<288x64xf32>
    %34 = tpu.matmul %31, %33, %cst_22 {dimension_numbers = #tpu.dot_dimension_numbers<[1], [0], [0], [1], [0, 0, 1, 1], [], []>} : vector<288x192xbf16>, vector<192x64xbf16>, vector<288x64xf32> -> vector<288x64xf32>
    %35 = arith.addf %29, %34 : vector<288x64xf32>
    %c0_23 = arith.constant 0 : index
    %c0_24 = arith.constant 0 : index
    %36 = vector.load %arg6[%c0_23, %c0_24] : memref<1x64xf32, #tpu.memory_space<vmem>>, vector<1x64xf32>
    %37 = vector.broadcast %36 : vector<1x64xf32> to vector<288x64xf32>
    %38 = arith.addf %35, %37 : vector<288x64xf32>
    %cst_25 = arith.constant 0.000000e+00 : f32
    %39 = vector.broadcast %cst_25 : f32 to vector<288x64xf32>
    %40 = arith.maximumf %38, %39 : vector<288x64xf32>
    %41 = vector.shape_cast %40 : vector<288x64xf32> to vector<18x16x64xf32>
    %42 = tpu.iota {dimensions = array<i32: 0>} : vector<18x1x1xi32>
    %c1_i32 = arith.constant 1 : i32
    %43 = arith.subi %0, %c1_i32 : i32
    %44 = vector.broadcast %43 : i32 to vector<18x1x1xi32>
    %45 = arith.addi %44, %42 : vector<18x1x1xi32>
    %c0_i32_26 = arith.constant 0 : i32
    %46 = vector.broadcast %c0_i32_26 : i32 to vector<18x1x1xi32>
    %47 = arith.cmpi sge, %45, %46 : vector<18x1x1xi32>
    %c16_i32_27 = arith.constant 16 : i32
    %48 = vector.broadcast %c16_i32_27 : i32 to vector<18x1x1xi32>
    %49 = arith.cmpi slt, %45, %48 : vector<18x1x1xi32>
    %50 = arith.andi %47, %49 : vector<18x1x1xi1>
    %cst_28 = arith.constant 0.000000e+00 : f32
    %51 = vector.shape_cast %50 : vector<18x1x1xi1> to vector<18x1x1xi1>
    %52 = vector.broadcast %51 : vector<18x1x1xi1> to vector<18x16x64xi1>
    %53 = vector.broadcast %cst_28 : f32 to vector<18x16x64xf32>
    %54 = arith.select %52, %41, %53 : vector<18x16x64xi1>, vector<18x16x64xf32>
    %55 = arith.truncf %54 : vector<18x16x64xf32> to vector<18x16x64xbf16>
    %cst_29 = arith.constant 0.000000e+00 : bf16
    %56 = vector.broadcast %cst_29 : bf16 to vector<18x1x64xbf16>
    %57 = tpu.concatenate %56, %55, %56 in 1 : vector<18x1x64xbf16>, vector<18x16x64xbf16>, vector<18x1x64xbf16> -> vector<18x18x64xbf16>
    %58 = vector.extract_strided_slice %57 {offsets = [0, 0, 0], sizes = [18, 16, 64], strides = [1, 1, 1]} : vector<18x18x64xbf16> to vector<18x16x64xbf16>
    %59 = vector.extract_strided_slice %57 {offsets = [0, 1, 0], sizes = [18, 16, 64], strides = [1, 1, 1]} : vector<18x18x64xbf16> to vector<18x16x64xbf16>
    %60 = vector.extract_strided_slice %57 {offsets = [0, 2, 0], sizes = [18, 16, 64], strides = [1, 1, 1]} : vector<18x18x64xbf16> to vector<18x16x64xbf16>
    %61 = tpu.concatenate %58, %59, %60 in 2 : vector<18x16x64xbf16>, vector<18x16x64xbf16>, vector<18x16x64xbf16> -> vector<18x16x192xbf16>
    %62 = vector.extract_strided_slice %61 {offsets = [0, 0, 0], sizes = [16, 16, 192], strides = [1, 1, 1]} : vector<18x16x192xbf16> to vector<16x16x192xbf16>
    %63 = vector.shape_cast %62 : vector<16x16x192xbf16> to vector<256x192xbf16>
    %c0_30 = arith.constant 0 : index
    %c0_31 = arith.constant 0 : index
    %c0_32 = arith.constant 0 : index
    %64 = vector.load %arg7[%c0_30, %c0_31, %c0_32] : memref<3x192x4xbf16, #tpu.memory_space<vmem>>, vector<1x192x4xbf16>
    %65 = vector.shape_cast %64 : vector<1x192x4xbf16> to vector<192x4xbf16>
    %cst_33 = arith.constant dense<0.000000e+00> : vector<256x4xf32>
    %66 = tpu.matmul %63, %65, %cst_33 {dimension_numbers = #tpu.dot_dimension_numbers<[1], [0], [0], [1], [0, 0, 1, 1], [], []>} : vector<256x192xbf16>, vector<192x4xbf16>, vector<256x4xf32> -> vector<256x4xf32>
    %67 = vector.extract_strided_slice %61 {offsets = [1, 0, 0], sizes = [16, 16, 192], strides = [1, 1, 1]} : vector<18x16x192xbf16> to vector<16x16x192xbf16>
    %68 = vector.shape_cast %67 : vector<16x16x192xbf16> to vector<256x192xbf16>
    %c1_34 = arith.constant 1 : index
    %c0_35 = arith.constant 0 : index
    %c0_36 = arith.constant 0 : index
    %69 = vector.load %arg7[%c1_34, %c0_35, %c0_36] : memref<3x192x4xbf16, #tpu.memory_space<vmem>>, vector<1x192x4xbf16>
    %70 = vector.shape_cast %69 : vector<1x192x4xbf16> to vector<192x4xbf16>
    %cst_37 = arith.constant dense<0.000000e+00> : vector<256x4xf32>
    %71 = tpu.matmul %68, %70, %cst_37 {dimension_numbers = #tpu.dot_dimension_numbers<[1], [0], [0], [1], [0, 0, 1, 1], [], []>} : vector<256x192xbf16>, vector<192x4xbf16>, vector<256x4xf32> -> vector<256x4xf32>
    %72 = arith.addf %66, %71 : vector<256x4xf32>
    %73 = vector.extract_strided_slice %61 {offsets = [2, 0, 0], sizes = [16, 16, 192], strides = [1, 1, 1]} : vector<18x16x192xbf16> to vector<16x16x192xbf16>
    %74 = vector.shape_cast %73 : vector<16x16x192xbf16> to vector<256x192xbf16>
    %c2_38 = arith.constant 2 : index
    %c0_39 = arith.constant 0 : index
    %c0_40 = arith.constant 0 : index
    %75 = vector.load %arg7[%c2_38, %c0_39, %c0_40] : memref<3x192x4xbf16, #tpu.memory_space<vmem>>, vector<1x192x4xbf16>
    %76 = vector.shape_cast %75 : vector<1x192x4xbf16> to vector<192x4xbf16>
    %cst_41 = arith.constant dense<0.000000e+00> : vector<256x4xf32>
    %77 = tpu.matmul %74, %76, %cst_41 {dimension_numbers = #tpu.dot_dimension_numbers<[1], [0], [0], [1], [0, 0, 1, 1], [], []>} : vector<256x192xbf16>, vector<192x4xbf16>, vector<256x4xf32> -> vector<256x4xf32>
    %78 = arith.addf %72, %77 : vector<256x4xf32>
    %c0_42 = arith.constant 0 : index
    %c0_43 = arith.constant 0 : index
    %79 = vector.load %arg8[%c0_42, %c0_43] : memref<1x4xf32, #tpu.memory_space<vmem>>, vector<1x4xf32>
    %80 = vector.broadcast %79 : vector<1x4xf32> to vector<256x4xf32>
    %81 = arith.addf %78, %80 : vector<256x4xf32>
    %c0_44 = arith.constant 0 : index
    %c0_45 = arith.constant 0 : index
    %c0_46 = arith.constant 0 : index
    %c0_47 = arith.constant 0 : index
    %82 = vector.load %arg9[%c0_44, %c0_45, %c0_46, %c0_47] : memref<1x16x16x4xf32, #tpu.memory_space<vmem>>, vector<1x16x16x4xf32>
    %83 = vector.shape_cast %82 : vector<1x16x16x4xf32> to vector<16x16x4xf32>
    %84 = vector.shape_cast %83 : vector<16x16x4xf32> to vector<256x4xf32>
    %85 = arith.subf %84, %81 : vector<256x4xf32>
    %86 = vector.shape_cast %85 : vector<256x4xf32> to vector<1x16x16x4xf32>
    %c0_48 = arith.constant 0 : index
    %c0_49 = arith.constant 0 : index
    %c0_50 = arith.constant 0 : index
    %c0_51 = arith.constant 0 : index
    %87 = vector.load %arg10[%c0_48, %c0_49, %c0_50, %c0_51] : memref<1x16x16x4xf32, #tpu.memory_space<vmem>>, vector<1x16x16x4xf32>
    tpu.vector_store %arg10[%c0_48, %c0_49, %c0_50, %c0_51], %86 {strides = array<i32>} : memref<1x16x16x4xf32, #tpu.memory_space<vmem>>, vector<1x16x16x4xf32>,
    return
  }
  func.func @transform_0(%arg0: i32, %arg1: i32) -> (i32, i32, i32, i32) {
    %c0_i32 = arith.constant 0 : i32
    %c0_i32_0 = arith.constant 0 : i32
    %c0_i32_1 = arith.constant 0 : i32
    return %arg0, %arg1, %c0_i32, %c0_i32_0 : i32, i32, i32, i32
  }
  func.func @transform_1(%arg0: i32, %arg1: i32) -> (i32, i32, i32, i32) {
    %c8_i32 = arith.constant 8 : i32
    %0 = arith.muli %arg1, %c8_i32 : i32
    %c1_i32 = arith.constant 1 : i32
    %1 = arith.subi %0, %c1_i32 : i32
    %c0_i32 = arith.constant 0 : i32
    %2 = arith.maxsi %1, %c0_i32 : i32
    %c0_i32_0 = arith.constant 0 : i32
    %c0_i32_1 = arith.constant 0 : i32
    %c0_i32_2 = arith.constant 0 : i32
    return %arg0, %2, %c0_i32_0, %c0_i32_1 : i32, i32, i32, i32
  }
  func.func @transform_2(%arg0: i32, %arg1: i32) -> (i32, i32, i32, i32) {
    %c1_i32 = arith.constant 1 : i32
    %0 = arith.addi %arg1, %c1_i32 : i32
    %c8_i32 = arith.constant 8 : i32
    %1 = arith.muli %0, %c8_i32 : i32
    %c7_i32 = arith.constant 7 : i32
    %2 = arith.minsi %1, %c7_i32 : i32
    %c0_i32 = arith.constant 0 : i32
    %c0_i32_0 = arith.constant 0 : i32
    %c0_i32_1 = arith.constant 0 : i32
    return %arg0, %2, %c0_i32, %c0_i32_0 : i32, i32, i32, i32
  }
  func.func @transform_3(%arg0: i32, %arg1: i32) -> (i32, i32, i32) {
    %c0_i32 = arith.constant 0 : i32
    %c0_i32_0 = arith.constant 0 : i32
    %c0_i32_1 = arith.constant 0 : i32
    %c0_i32_2 = arith.constant 0 : i32
    return %c0_i32, %c0_i32_0, %c0_i32_1 : i32, i32, i32
  }
  func.func @transform_4(%arg0: i32, %arg1: i32) -> (i32, i32) {
    %c0_i32 = arith.constant 0 : i32
    %c0_i32_0 = arith.constant 0 : i32
    %c0_i32_1 = arith.constant 0 : i32
    return %c0_i32, %c0_i32_0 : i32, i32
  }
  func.func @transform_5(%arg0: i32, %arg1: i32) -> (i32, i32, i32) {
    %c0_i32 = arith.constant 0 : i32
    %c0_i32_0 = arith.constant 0 : i32
    %c0_i32_1 = arith.constant 0 : i32
    %c0_i32_2 = arith.constant 0 : i32
    return %c0_i32, %c0_i32_0, %c0_i32_1 : i32, i32, i32
  }
  func.func @transform_6(%arg0: i32, %arg1: i32) -> (i32, i32) {
    %c0_i32 = arith.constant 0 : i32
    %c0_i32_0 = arith.constant 0 : i32
    %c0_i32_1 = arith.constant 0 : i32
    return %c0_i32, %c0_i32_0 : i32, i32
  }
  func.func @transform_7(%arg0: i32, %arg1: i32) -> (i32, i32, i32, i32) {
    %c0_i32 = arith.constant 0 : i32
    %c0_i32_0 = arith.constant 0 : i32
    %c0_i32_1 = arith.constant 0 : i32
    return %arg0, %arg1, %c0_i32, %c0_i32_0 : i32, i32, i32, i32
  }
  func.func @transform_8(%arg0: i32, %arg1: i32) -> (i32, i32, i32, i32) {
    %c0_i32 = arith.constant 0 : i32
    %c0_i32_0 = arith.constant 0 : i32
    %c0_i32_1 = arith.constant 0 : i32
    return %arg0, %arg1, %c0_i32, %c0_i32_0 : i32, i32, i32, i32
  }
}

module attributes {stable_mosaic.version = 11 : i64} {
  func.func @_conv_block_kernel(%arg0: i32, %arg1: i32, %arg2: memref<1x16x16x64xbf16, #tpu.memory_space<vmem>>, %arg3: memref<1x2x16x64xbf16, #tpu.memory_space<vmem>>, %arg4: memref<1x2x16x64xbf16, #tpu.memory_space<vmem>>, %arg5: memref<3x192x64xbf16, #tpu.memory_space<vmem>>, %arg6: memref<1x64xf32, #tpu.memory_space<vmem>>, %arg7: memref<3x192x64xbf16, #tpu.memory_space<vmem>>, %arg8: memref<1x64xf32, #tpu.memory_space<vmem>>, %arg9: memref<1x16x16x64xbf16, #tpu.memory_space<vmem>>) attributes {dimension_semantics = [#tpu.dimension_semantics<parallel>, #tpu.dimension_semantics<parallel>], iteration_bounds = array<i64: 2, 1>, scalar_prefetch = 0 : i64, scratch_operands = 0 : i64, tpu.core_type = #tpu.core_type<tc>, window_params = [{transform_indices = @transform_0, window_bounds = array<i64: 1, 16, 16, 64>}, {transform_indices = @transform_1, window_bounds = array<i64: 1, 2, 16, 64>}, {transform_indices = @transform_2, window_bounds = array<i64: 1, 2, 16, 64>}, {pipeline_mode = #tpu.pipeline_mode<synchronous>, transform_indices = @transform_3, window_bounds = array<i64: 3, 192, 64>}, {pipeline_mode = #tpu.pipeline_mode<synchronous>, transform_indices = @transform_4, window_bounds = array<i64: 1, 64>}, {pipeline_mode = #tpu.pipeline_mode<synchronous>, transform_indices = @transform_5, window_bounds = array<i64: 3, 192, 64>}, {pipeline_mode = #tpu.pipeline_mode<synchronous>, transform_indices = @transform_6, window_bounds = array<i64: 1, 64>}, {transform_indices = @transform_7, window_bounds = array<i64: 1, 16, 16, 64>}]} {
    %c16_i32 = arith.constant 16 : i32
    %0 = arith.muli %arg1, %c16_i32 : i32
    %c0 = arith.constant 0 : index
    %c0_0 = arith.constant 0 : index
    %c0_1 = arith.constant 0 : index
    %c0_2 = arith.constant 0 : index
    %1 = vector.load %arg2[%c0, %c0_0, %c0_1, %c0_2] : memref<1x16x16x64xbf16, #tpu.memory_space<vmem>>, vector<1x16x16x64xbf16>
    %2 = vector.shape_cast %1 : vector<1x16x16x64xbf16> to vector<16x16x64xbf16>
    %cst = arith.constant 0.000000e+00 : bf16
    %3 = vector.broadcast %cst : bf16 to vector<2x16x64xbf16>
    %c0_i32 = arith.constant 0 : i32
    %4 = arith.cmpi sgt, %arg1, %c0_i32 : i32
    %c0_3 = arith.constant 0 : index
    %c0_4 = arith.constant 0 : index
    %c0_5 = arith.constant 0 : index
    %c0_6 = arith.constant 0 : index
    %5 = vector.load %arg3[%c0_3, %c0_4, %c0_5, %c0_6] : memref<1x2x16x64xbf16, #tpu.memory_space<vmem>>, vector<1x2x16x64xbf16>
    %6 = vector.shape_cast %5 : vector<1x2x16x64xbf16> to vector<2x16x64xbf16>
    %7 = arith.select %4, %6, %3 : vector<2x16x64xbf16>
    %c0_i32_7 = arith.constant 0 : i32
    %8 = arith.cmpi slt, %arg1, %c0_i32_7 : i32
    %c0_8 = arith.constant 0 : index
    %c0_9 = arith.constant 0 : index
    %c0_10 = arith.constant 0 : index
    %c0_11 = arith.constant 0 : index
    %9 = vector.load %arg4[%c0_8, %c0_9, %c0_10, %c0_11] : memref<1x2x16x64xbf16, #tpu.memory_space<vmem>>, vector<1x2x16x64xbf16>
    %10 = vector.shape_cast %9 : vector<1x2x16x64xbf16> to vector<2x16x64xbf16>
    %11 = arith.select %8, %10, %3 : vector<2x16x64xbf16>
    %12 = tpu.concatenate %7, %2, %11 in 0 : vector<2x16x64xbf16>, vector<16x16x64xbf16>, vector<2x16x64xbf16> -> vector<20x16x64xbf16>
    %cst_12 = arith.constant 0.000000e+00 : bf16
    %13 = vector.broadcast %cst_12 : bf16 to vector<20x1x64xbf16>
    %14 = tpu.concatenate %13, %12, %13 in 1 : vector<20x1x64xbf16>, vector<20x16x64xbf16>, vector<20x1x64xbf16> -> vector<20x18x64xbf16>
    %15 = vector.extract_strided_slice %14 {offsets = [0, 0, 0], sizes = [20, 16, 64], strides = [1, 1, 1]} : vector<20x18x64xbf16> to vector<20x16x64xbf16>
    %16 = vector.extract_strided_slice %14 {offsets = [0, 1, 0], sizes = [20, 16, 64], strides = [1, 1, 1]} : vector<20x18x64xbf16> to vector<20x16x64xbf16>
    %17 = vector.extract_strided_slice %14 {offsets = [0, 2, 0], sizes = [20, 16, 64], strides = [1, 1, 1]} : vector<20x18x64xbf16> to vector<20x16x64xbf16>
    %18 = tpu.concatenate %15, %16, %17 in 2 : vector<20x16x64xbf16>, vector<20x16x64xbf16>, vector<20x16x64xbf16> -> vector<20x16x192xbf16>
    %19 = vector.extract_strided_slice %18 {offsets = [0, 0, 0], sizes = [18, 16, 192], strides = [1, 1, 1]} : vector<20x16x192xbf16> to vector<18x16x192xbf16>
    %20 = vector.shape_cast %19 : vector<18x16x192xbf16> to vector<288x192xbf16>
    %c0_13 = arith.constant 0 : index
    %c0_14 = arith.constant 0 : index
    %c0_15 = arith.constant 0 : index
    %21 = vector.load %arg5[%c0_13, %c0_14, %c0_15] : memref<3x192x64xbf16, #tpu.memory_space<vmem>>, vector<1x192x64xbf16>
    %22 = vector.shape_cast %21 : vector<1x192x64xbf16> to vector<192x64xbf16>
    %cst_16 = arith.constant dense<0.000000e+00> : vector<288x64xf32>
    %23 = tpu.matmul %20, %22, %cst_16 {dimension_numbers = #tpu.dot_dimension_numbers<[1], [0], [0], [1], [0, 0, 1, 1], [], []>} : vector<288x192xbf16>, vector<192x64xbf16>, vector<288x64xf32> -> vector<288x64xf32>
    %24 = vector.extract_strided_slice %18 {offsets = [1, 0, 0], sizes = [18, 16, 192], strides = [1, 1, 1]} : vector<20x16x192xbf16> to vector<18x16x192xbf16>
    %25 = vector.shape_cast %24 : vector<18x16x192xbf16> to vector<288x192xbf16>
    %c1 = arith.constant 1 : index
    %c0_17 = arith.constant 0 : index
    %c0_18 = arith.constant 0 : index
    %26 = vector.load %arg5[%c1, %c0_17, %c0_18] : memref<3x192x64xbf16, #tpu.memory_space<vmem>>, vector<1x192x64xbf16>
    %27 = vector.shape_cast %26 : vector<1x192x64xbf16> to vector<192x64xbf16>
    %cst_19 = arith.constant dense<0.000000e+00> : vector<288x64xf32>
    %28 = tpu.matmul %25, %27, %cst_19 {dimension_numbers = #tpu.dot_dimension_numbers<[1], [0], [0], [1], [0, 0, 1, 1], [], []>} : vector<288x192xbf16>, vector<192x64xbf16>, vector<288x64xf32> -> vector<288x64xf32>
    %29 = arith.addf %23, %28 : vector<288x64xf32>
    %30 = vector.extract_strided_slice %18 {offsets = [2, 0, 0], sizes = [18, 16, 192], strides = [1, 1, 1]} : vector<20x16x192xbf16> to vector<18x16x192xbf16>
    %31 = vector.shape_cast %30 : vector<18x16x192xbf16> to vector<288x192xbf16>
    %c2 = arith.constant 2 : index
    %c0_20 = arith.constant 0 : index
    %c0_21 = arith.constant 0 : index
    %32 = vector.load %arg5[%c2, %c0_20, %c0_21] : memref<3x192x64xbf16, #tpu.memory_space<vmem>>, vector<1x192x64xbf16>
    %33 = vector.shape_cast %32 : vector<1x192x64xbf16> to vector<192x64xbf16>
    %cst_22 = arith.constant dense<0.000000e+00> : vector<288x64xf32>
    %34 = tpu.matmul %31, %33, %cst_22 {dimension_numbers = #tpu.dot_dimension_numbers<[1], [0], [0], [1], [0, 0, 1, 1], [], []>} : vector<288x192xbf16>, vector<192x64xbf16>, vector<288x64xf32> -> vector<288x64xf32>
    %35 = arith.addf %29, %34 : vector<288x64xf32>
    %c0_23 = arith.constant 0 : index
    %c0_24 = arith.constant 0 : index
    %36 = vector.load %arg6[%c0_23, %c0_24] : memref<1x64xf32, #tpu.memory_space<vmem>>, vector<1x64xf32>
    %37 = vector.broadcast %36 : vector<1x64xf32> to vector<288x64xf32>
    %38 = arith.addf %35, %37 : vector<288x64xf32>
    %cst_25 = arith.constant 0.000000e+00 : f32
    %39 = vector.broadcast %cst_25 : f32 to vector<288x64xf32>
    %40 = arith.maximumf %38, %39 : vector<288x64xf32>
    %41 = vector.shape_cast %40 : vector<288x64xf32> to vector<18x16x64xf32>
    %42 = tpu.iota {dimensions = array<i32: 0>} : vector<18x1x1xi32>
    %c1_i32 = arith.constant 1 : i32
    %43 = arith.subi %0, %c1_i32 : i32
    %44 = vector.broadcast %43 : i32 to vector<18x1x1xi32>
    %45 = arith.addi %44, %42 : vector<18x1x1xi32>
    %c0_i32_26 = arith.constant 0 : i32
    %46 = vector.broadcast %c0_i32_26 : i32 to vector<18x1x1xi32>
    %47 = arith.cmpi sge, %45, %46 : vector<18x1x1xi32>
    %c16_i32_27 = arith.constant 16 : i32
    %48 = vector.broadcast %c16_i32_27 : i32 to vector<18x1x1xi32>
    %49 = arith.cmpi slt, %45, %48 : vector<18x1x1xi32>
    %50 = arith.andi %47, %49 : vector<18x1x1xi1>
    %cst_28 = arith.constant 0.000000e+00 : f32
    %51 = vector.shape_cast %50 : vector<18x1x1xi1> to vector<18x1x1xi1>
    %52 = vector.broadcast %51 : vector<18x1x1xi1> to vector<18x16x64xi1>
    %53 = vector.broadcast %cst_28 : f32 to vector<18x16x64xf32>
    %54 = arith.select %52, %41, %53 : vector<18x16x64xi1>, vector<18x16x64xf32>
    %55 = arith.truncf %54 : vector<18x16x64xf32> to vector<18x16x64xbf16>
    %cst_29 = arith.constant 0.000000e+00 : bf16
    %56 = vector.broadcast %cst_29 : bf16 to vector<18x1x64xbf16>
    %57 = tpu.concatenate %56, %55, %56 in 1 : vector<18x1x64xbf16>, vector<18x16x64xbf16>, vector<18x1x64xbf16> -> vector<18x18x64xbf16>
    %58 = vector.extract_strided_slice %57 {offsets = [0, 0, 0], sizes = [18, 16, 64], strides = [1, 1, 1]} : vector<18x18x64xbf16> to vector<18x16x64xbf16>
    %59 = vector.extract_strided_slice %57 {offsets = [0, 1, 0], sizes = [18, 16, 64], strides = [1, 1, 1]} : vector<18x18x64xbf16> to vector<18x16x64xbf16>
    %60 = vector.extract_strided_slice %57 {offsets = [0, 2, 0], sizes = [18, 16, 64], strides = [1, 1, 1]} : vector<18x18x64xbf16> to vector<18x16x64xbf16>
    %61 = tpu.concatenate %58, %59, %60 in 2 : vector<18x16x64xbf16>, vector<18x16x64xbf16>, vector<18x16x64xbf16> -> vector<18x16x192xbf16>
    %62 = vector.extract_strided_slice %61 {offsets = [0, 0, 0], sizes = [16, 16, 192], strides = [1, 1, 1]} : vector<18x16x192xbf16> to vector<16x16x192xbf16>
    %63 = vector.shape_cast %62 : vector<16x16x192xbf16> to vector<256x192xbf16>
    %c0_30 = arith.constant 0 : index
    %c0_31 = arith.constant 0 : index
    %c0_32 = arith.constant 0 : index
    %64 = vector.load %arg7[%c0_30, %c0_31, %c0_32] : memref<3x192x64xbf16, #tpu.memory_space<vmem>>, vector<1x192x64xbf16>
    %65 = vector.shape_cast %64 : vector<1x192x64xbf16> to vector<192x64xbf16>
    %cst_33 = arith.constant dense<0.000000e+00> : vector<256x64xf32>
    %66 = tpu.matmul %63, %65, %cst_33 {dimension_numbers = #tpu.dot_dimension_numbers<[1], [0], [0], [1], [0, 0, 1, 1], [], []>} : vector<256x192xbf16>, vector<192x64xbf16>, vector<256x64xf32> -> vector<256x64xf32>
    %67 = vector.extract_strided_slice %61 {offsets = [1, 0, 0], sizes = [16, 16, 192], strides = [1, 1, 1]} : vector<18x16x192xbf16> to vector<16x16x192xbf16>
    %68 = vector.shape_cast %67 : vector<16x16x192xbf16> to vector<256x192xbf16>
    %c1_34 = arith.constant 1 : index
    %c0_35 = arith.constant 0 : index
    %c0_36 = arith.constant 0 : index
    %69 = vector.load %arg7[%c1_34, %c0_35, %c0_36] : memref<3x192x64xbf16, #tpu.memory_space<vmem>>, vector<1x192x64xbf16>
    %70 = vector.shape_cast %69 : vector<1x192x64xbf16> to vector<192x64xbf16>
    %cst_37 = arith.constant dense<0.000000e+00> : vector<256x64xf32>
    %71 = tpu.matmul %68, %70, %cst_37 {dimension_numbers = #tpu.dot_dimension_numbers<[1], [0], [0], [1], [0, 0, 1, 1], [], []>} : vector<256x192xbf16>, vector<192x64xbf16>, vector<256x64xf32> -> vector<256x64xf32>
    %72 = arith.addf %66, %71 : vector<256x64xf32>
    %73 = vector.extract_strided_slice %61 {offsets = [2, 0, 0], sizes = [16, 16, 192], strides = [1, 1, 1]} : vector<18x16x192xbf16> to vector<16x16x192xbf16>
    %74 = vector.shape_cast %73 : vector<16x16x192xbf16> to vector<256x192xbf16>
    %c2_38 = arith.constant 2 : index
    %c0_39 = arith.constant 0 : index
    %c0_40 = arith.constant 0 : index
    %75 = vector.load %arg7[%c2_38, %c0_39, %c0_40] : memref<3x192x64xbf16, #tpu.memory_space<vmem>>, vector<1x192x64xbf16>
    %76 = vector.shape_cast %75 : vector<1x192x64xbf16> to vector<192x64xbf16>
    %cst_41 = arith.constant dense<0.000000e+00> : vector<256x64xf32>
    %77 = tpu.matmul %74, %76, %cst_41 {dimension_numbers = #tpu.dot_dimension_numbers<[1], [0], [0], [1], [0, 0, 1, 1], [], []>} : vector<256x192xbf16>, vector<192x64xbf16>, vector<256x64xf32> -> vector<256x64xf32>
    %78 = arith.addf %72, %77 : vector<256x64xf32>
    %c0_42 = arith.constant 0 : index
    %c0_43 = arith.constant 0 : index
    %79 = vector.load %arg8[%c0_42, %c0_43] : memref<1x64xf32, #tpu.memory_space<vmem>>, vector<1x64xf32>
    %80 = vector.broadcast %79 : vector<1x64xf32> to vector<256x64xf32>
    %81 = arith.addf %78, %80 : vector<256x64xf32>
    %cst_44 = arith.constant 0.000000e+00 : f32
    %82 = vector.broadcast %cst_44 : f32 to vector<256x64xf32>
    %83 = arith.maximumf %81, %82 : vector<256x64xf32>
    %84 = vector.shape_cast %83 : vector<256x64xf32> to vector<1x16x16x64xf32>
    %85 = arith.truncf %84 : vector<1x16x16x64xf32> to vector<1x16x16x64xbf16>
    %c0_45 = arith.constant 0 : index
    %c0_46 = arith.constant 0 : index
    %c0_47 = arith.constant 0 : index
    %c0_48 = arith.constant 0 : index
    %86 = vector.load %arg9[%c0_45, %c0_46, %c0_47, %c0_48] : memref<1x16x16x64xbf16, #tpu.memory_space<vmem>>, vector<1x16x16x64xbf16>
    tpu.vector_store %arg9[%c0_45, %c0_46, %c0_47, %c0_48], %85 {strides = array<i32>} : memref<1x16x16x64xbf16, #tpu.memory_space<vmem>>, vector<1x16x16x64xbf16>,
    return
  }
  func.func @transform_0(%arg0: i32, %arg1: i32) -> (i32, i32, i32, i32) {
    %c0_i32 = arith.constant 0 : i32
    %c0_i32_0 = arith.constant 0 : i32
    %c0_i32_1 = arith.constant 0 : i32
    return %arg0, %arg1, %c0_i32, %c0_i32_0 : i32, i32, i32, i32
  }
  func.func @transform_1(%arg0: i32, %arg1: i32) -> (i32, i32, i32, i32) {
    %c8_i32 = arith.constant 8 : i32
    %0 = arith.muli %arg1, %c8_i32 : i32
    %c1_i32 = arith.constant 1 : i32
    %1 = arith.subi %0, %c1_i32 : i32
    %c0_i32 = arith.constant 0 : i32
    %2 = arith.maxsi %1, %c0_i32 : i32
    %c0_i32_0 = arith.constant 0 : i32
    %c0_i32_1 = arith.constant 0 : i32
    %c0_i32_2 = arith.constant 0 : i32
    return %arg0, %2, %c0_i32_0, %c0_i32_1 : i32, i32, i32, i32
  }
  func.func @transform_2(%arg0: i32, %arg1: i32) -> (i32, i32, i32, i32) {
    %c1_i32 = arith.constant 1 : i32
    %0 = arith.addi %arg1, %c1_i32 : i32
    %c8_i32 = arith.constant 8 : i32
    %1 = arith.muli %0, %c8_i32 : i32
    %c7_i32 = arith.constant 7 : i32
    %2 = arith.minsi %1, %c7_i32 : i32
    %c0_i32 = arith.constant 0 : i32
    %c0_i32_0 = arith.constant 0 : i32
    %c0_i32_1 = arith.constant 0 : i32
    return %arg0, %2, %c0_i32, %c0_i32_0 : i32, i32, i32, i32
  }
  func.func @transform_3(%arg0: i32, %arg1: i32) -> (i32, i32, i32) {
    %c0_i32 = arith.constant 0 : i32
    %c0_i32_0 = arith.constant 0 : i32
    %c0_i32_1 = arith.constant 0 : i32
    %c0_i32_2 = arith.constant 0 : i32
    return %c0_i32, %c0_i32_0, %c0_i32_1 : i32, i32, i32
  }
  func.func @transform_4(%arg0: i32, %arg1: i32) -> (i32, i32) {
    %c0_i32 = arith.constant 0 : i32
    %c0_i32_0 = arith.constant 0 : i32
    %c0_i32_1 = arith.constant 0 : i32
    return %c0_i32, %c0_i32_0 : i32, i32
  }
  func.func @transform_5(%arg0: i32, %arg1: i32) -> (i32, i32, i32) {
    %c0_i32 = arith.constant 0 : i32
    %c0_i32_0 = arith.constant 0 : i32
    %c0_i32_1 = arith.constant 0 : i32
    %c0_i32_2 = arith.constant 0 : i32
    return %c0_i32, %c0_i32_0, %c0_i32_1 : i32, i32, i32
  }
  func.func @transform_6(%arg0: i32, %arg1: i32) -> (i32, i32) {
    %c0_i32 = arith.constant 0 : i32
    %c0_i32_0 = arith.constant 0 : i32
    %c0_i32_1 = arith.constant 0 : i32
    return %c0_i32, %c0_i32_0 : i32, i32
  }
  func.func @transform_7(%arg0: i32, %arg1: i32) -> (i32, i32, i32, i32) {
    %c0_i32 = arith.constant 0 : i32
    %c0_i32_0 = arith.constant 0 : i32
    %c0_i32_1 = arith.constant 0 : i32
    return %arg0, %arg1, %c0_i32, %c0_i32_0 : i32, i32, i32, i32
  }
}

</mosaic_0001>

<llo_original>
// kernel: a_call__.5
$region0: #{a_call__.5}
  #allocation0 [shape = 'u32[]', space=smem, size = 0x4, offset = 0x4, fixed_abs, tag = 'smem constant byte address 0x4 - core index']
  #allocation1 [shape = 'u32[144,128]{1,0:T(1,128)}', space=vmem, size = 0x12000, scoped, tag = 'internal scratch']
  %s0 = inlined_call_operand.vmem [shape: bf16[2,16,16,64], index: 0, kind: input, shape index: {}, may-alias: {0,1,2}]
  %s1 = inlined_call_operand.vmem [shape: bf16[2,16,16,64], index: 1, kind: input, shape index: {}, may-alias: {0,1,2}]
  %s2 = inlined_call_operand.vmem [shape: bf16[2,16,16,64], index: 2, kind: input, shape index: {}, may-alias: {0,1,2}]
  %s3 = inlined_call_operand.vmem [shape: bf16[3,192,64], index: 3, kind: input, shape index: {}]
  %s4 = inlined_call_operand.vmem [shape: f32[1,64], index: 4, kind: input, shape index: {}]
  %s5 = inlined_call_operand.vmem [shape: bf16[3,192,4], index: 5, kind: input, shape index: {}]
  %s6 = inlined_call_operand.vmem [shape: f32[1,4], index: 6, kind: input, shape index: {}]
  %s7 = inlined_call_operand.vmem [shape: f32[2,16,16,4], index: 7, kind: input, shape index: {}]
  %s8 = inlined_call_operand.vmem [shape: f32[2,16,16,4], index: 8, kind: output, shape index: {}]
  %s9 = sld [smem:[#allocation0]]
  $region65: #{a_call__.5} parent=0
    _
  %s11 = ssub.s32 1, %s9
  %s12 = scalar_select 0, %s11, %s9
  loop: start=0, step=1, limit=4
  $region2: #{a_call__.5} parent=0 // loop_pre_header
    _
  $region3: #{a_call__.5} parent=0 // loop_header
    %s14 = sphi 0, %s18
    %p15 = scmp.ge.s32.totalorder %s14, 4
    %s21 = sphi 0, %s33
    %s22 = sphi 0, %s29
    %s23 = sphi 0, %s21
    %s24 = sphi 0, %s22
    %s25 = sphi 0, %s23
    %s26 = sphi 0, %s24
    %s38 = sphi 0, %s40
    %s41 = sphi 0, %s38
    %s42 = sphi 0, %s41
    %s58 = sphi 0, %s42
    %s74 = sphi 0, %s76
    %s77 = sphi 0, %s74
    %s78 = sphi 0, %s77
    %s94 = sphi 0, %s78
    %s110 = sphi 0, %s112
    %s113 = sphi 0, %s110
    %s114 = sphi 0, %s113
    %s130 = sphi 0, %s114
    %s134 = sphi 0, %s134
    %s136 = sphi 0, %s134
    %s137 = sphi 0, %s136
    %s151 = sphi 0, %s137
    %s155 = sphi 0, %s155
    %s157 = sphi 0, %s155
    %s158 = sphi 0, %s157
    %s172 = sphi 0, %s158
    %s176 = sphi 0, %s176
    %s178 = sphi 0, %s176
    %s179 = sphi 0, %s178
    %s193 = sphi 0, %s179
    %s197 = sphi 0, %s197
    %s199 = sphi 0, %s197
    %s200 = sphi 0, %s199
    %s214 = sphi 0, %s200
    %s222 = sphi 0, %s224
    %s225 = sphi 0, %s222
    %s226 = sphi 0, %s225
    %s242 = sphi 0, %s226
    %s250 = sphi 0, %s252
    %s253 = sphi 0, %s250
    %s254 = sphi 0, %s253
    %s270 = sphi 0, %s254
  $region4: #{a_call__.5} parent=0 // loop_header_branch
    %17 = sbr.rel (%p15) target = $region8
  $region5: #{a_call__.5} parent=0 // loop_body
    %s19 = ssub.s32 %s14, 1
    %s20 = ssub.s32 %s14, 2
    %s27 = sadd.s32 1, %s22
    %p28 = scmp.ge.s32.totalorder %s27, 1
    %s29 = scalar_select %p28, 0, %s27
    %s30 = sadd.s32 1, %s21
    %s31 = scalar_select %p28, %s30, %s21
    %p32 = scmp.ge.s32.totalorder %s31, 2
    %s33 = scalar_select %p32, 0, %s31
    %s34 = ssub.s32 %s21, %s33
    %s35 = ssub.s32 %s22, %s29
    %s36 = sor.u32 %s34, %s35
    %p37 = scmp.eq.s32.totalorder %s36, 0
    %s39 = sadd.s32 %s38, 1
    %s40 = scalar_select %p37, %s38, %s39
    %p43 = pneg %p37
    %p44 = scmp.eq.s32.totalorder %s14, 1
    %p45 = por %p43, %p44
    %p46 = scmp.ne.s32.totalorder %s38, %s41
    %p47 = scmp.eq.s32.totalorder %s14, 0
    %p48 = por %p46, %p47
    %p49 = scmp.ne.s32.totalorder %s38, %s41
    %p50 = scmp.eq.s32.totalorder %s19, 1
    %p51 = por %p49, %p50
    %p52 = scmp.ne.s32.totalorder %s41, %s42
    %p53 = scmp.eq.s32.totalorder %s19, 0
    %p54 = por %p52, %p53
    %p55 = scmp.ne.s32.totalorder %s41, %s42
    %p56 = scmp.eq.s32.totalorder %s20, 1
    %p57 = por %p55, %p56
    %p59 = scmp.ne.s32.totalorder %s42, %s58
    %p60 = scmp.eq.s32.totalorder %s20, 0
    %p61 = por %p59, %p60
    %s62 = smul.u32 %s22, 8
    %s63 = ssub.s32 %s62, 1
    %p64 = scmp.gt.s32.totalorder %s63, 0
    %s65 = scalar_select %p64, %s63, 0
    %s66 = smul.u32 %s29, 8
    %s67 = ssub.s32 %s66, 1
    %p68 = scmp.gt.s32.totalorder %s67, 0
    %s69 = scalar_select %p68, %s67, 0
    %s70 = ssub.s32 %s21, %s33
    %s71 = ssub.s32 %s65, %s69
    %s72 = sor.u32 %s70, %s71
    %p73 = scmp.eq.s32.totalorder %s72, 0
    %s75 = sadd.s32 %s74, 1
    %s76 = scalar_select %p73, %s74, %s75
    %p79 = pneg %p73
    %p80 = scmp.eq.s32.totalorder %s14, 1
    %p81 = por %p79, %p80
    %p82 = scmp.ne.s32.totalorder %s74, %s77
    %p83 = scmp.eq.s32.totalorder %s14, 0
    %p84 = por %p82, %p83
    %p85 = scmp.ne.s32.totalorder %s74, %s77
    %p86 = scmp.eq.s32.totalorder %s19, 1
    %p87 = por %p85, %p86
    %p88 = scmp.ne.s32.totalorder %s77, %s78
    %p89 = scmp.eq.s32.totalorder %s19, 0
    %p90 = por %p88, %p89
    %p91 = scmp.ne.s32.totalorder %s77, %s78
    %p92 = scmp.eq.s32.totalorder %s20, 1
    %p93 = por %p91, %p92
    %p95 = scmp.ne.s32.totalorder %s78, %s94
    %p96 = scmp.eq.s32.totalorder %s20, 0
    %p97 = por %p95, %p96
    %s98 = sadd.s32 %s22, 1
    %s99 = smul.u32 %s98, 8
    %p100 = scmp.lt.s32.totalorder %s99, 7
    %s101 = scalar_select %p100, %s99, 7
    %s102 = sadd.s32 %s29, 1
    %s103 = smul.u32 %s102, 8
    %p104 = scmp.lt.s32.totalorder %s103, 7
    %s105 = scalar_select %p104, %s103, 7
    %s106 = ssub.s32 %s21, %s33
    %s107 = ssub.s32 %s101, %s105
    %s108 = sor.u32 %s106, %s107
    %p109 = scmp.eq.s32.totalorder %s108, 0
    %s111 = sadd.s32 %s110, 1
    %s112 = scalar_select %p109, %s110, %s111
    %p115 = pneg %p109
    %p116 = scmp.eq.s32.totalorder %s14, 1
    %p117 = por %p115, %p116
    %p118 = scmp.ne.s32.totalorder %s110, %s113
    %p119 = scmp.eq.s32.totalorder %s14, 0
    %p120 = por %p118, %p119
    %p121 = scmp.ne.s32.totalorder %s110, %s113
    %p122 = scmp.eq.s32.totalorder %s19, 1
    %p123 = por %p121, %p122
    %p124 = scmp.ne.s32.totalorder %s113, %s114
    %p125 = scmp.eq.s32.totalorder %s19, 0
    %p126 = por %p124, %p125
    %p127 = scmp.ne.s32.totalorder %s113, %s114
    %p128 = scmp.eq.s32.totalorder %s20, 1
    %p129 = por %p127, %p128
    %p131 = scmp.ne.s32.totalorder %s114, %s130
    %p132 = scmp.eq.s32.totalorder %s20, 0
    %p133 = por %p131, %p132
    %s135 = sadd.s32 %s134, 1
    %p138 = scmp.eq.s32.totalorder %s14, 1
    %p139 = scmp.ne.s32.totalorder %s134, %s136
    %p140 = scmp.eq.s32.totalorder %s14, 0
    %p141 = por %p139, %p140
    %p142 = scmp.ne.s32.totalorder %s134, %s136
    %p143 = scmp.eq.s32.totalorder %s19, 1
    %p144 = por %p142, %p143
    %p145 = scmp.ne.s32.totalorder %s136, %s137
    %p146 = scmp.eq.s32.totalorder %s19, 0
    %p147 = por %p145, %p146
    %p148 = scmp.ne.s32.totalorder %s136, %s137
    %p149 = scmp.eq.s32.totalorder %s20, 1
    %p150 = por %p148, %p149
    %p152 = scmp.ne.s32.totalorder %s137, %s151
    %p153 = scmp.eq.s32.totalorder %s20, 0
    %p154 = por %p152, %p153
    %s156 = sadd.s32 %s155, 1
    %p159 = scmp.eq.s32.totalorder %s14, 1
    %p160 = scmp.ne.s32.totalorder %s155, %s157
    %p161 = scmp.eq.s32.totalorder %s14, 0
    %p162 = por %p160, %p161
    %p163 = scmp.ne.s32.totalorder %s155, %s157
    %p164 = scmp.eq.s32.totalorder %s19, 1
    %p165 = por %p163, %p164
    %p166 = scmp.ne.s32.totalorder %s157, %s158
    %p167 = scmp.eq.s32.totalorder %s19, 0
    %p168 = por %p166, %p167
    %p169 = scmp.ne.s32.totalorder %s157, %s158
    %p170 = scmp.eq.s32.totalorder %s20, 1
    %p171 = por %p169, %p170
    %p173 = scmp.ne.s32.totalorder %s158, %s172
    %p174 = scmp.eq.s32.totalorder %s20, 0
    %p175 = por %p173, %p174
    %s177 = sadd.s32 %s176, 1
    %p180 = scmp.eq.s32.totalorder %s14, 1
    %p181 = scmp.ne.s32.totalorder %s176, %s178
    %p182 = scmp.eq.s32.totalorder %s14, 0
    %p183 = por %p181, %p182
    %p184 = scmp.ne.s32.totalorder %s176, %s178
    %p185 = scmp.eq.s32.totalorder %s19, 1
    %p186 = por %p184, %p185
    %p187 = scmp.ne.s32.totalorder %s178, %s179
    %p188 = scmp.eq.s32.totalorder %s19, 0
    %p189 = por %p187, %p188
    %p190 = scmp.ne.s32.totalorder %s178, %s179
    %p191 = scmp.eq.s32.totalorder %s20, 1
    %p192 = por %p190, %p191
    %p194 = scmp.ne.s32.totalorder %s179, %s193
    %p195 = scmp.eq.s32.totalorder %s20, 0
    %p196 = por %p194, %p195
    %s198 = sadd.s32 %s197, 1
    %p201 = scmp.eq.s32.totalorder %s14, 1
    %p202 = scmp.ne.s32.totalorder %s197, %s199
    %p203 = scmp.eq.s32.totalorder %s14, 0
    %p204 = por %p202, %p203
    %p205 = scmp.ne.s32.totalorder %s197, %s199
    %p206 = scmp.eq.s32.totalorder %s19, 1
    %p207 = por %p205, %p206
    %p208 = scmp.ne.s32.totalorder %s199, %s200
    %p209 = scmp.eq.s32.totalorder %s19, 0
    %p210 = por %p208, %p209
    %p211 = scmp.ne.s32.totalorder %s199, %s200
    %p212 = scmp.eq.s32.totalorder %s20, 1
    %p213 = por %p211, %p212
    %p215 = scmp.ne.s32.totalorder %s200, %s214
    %p216 = scmp.eq.s32.totalorder %s20, 0
    %p217 = por %p215, %p216
    %s218 = ssub.s32 %s21, %s33
    %s219 = ssub.s32 %s22, %s29
    %s220 = sor.u32 %s218, %s219
    %p221 = scmp.eq.s32.totalorder %s220, 0
    %s223 = sadd.s32 %s222, 1
    %s224 = scalar_select %p221, %s222, %s223
    %p227 = pneg %p221
    %p228 = scmp.eq.s32.totalorder %s14, 1
    %p229 = por %p227, %p228
    %p230 = scmp.ne.s32.totalorder %s222, %s225
    %p231 = scmp.eq.s32.totalorder %s14, 0
    %p232 = por %p230, %p231
    %p233 = scmp.ne.s32.totalorder %s222, %s225
    %p234 = scmp.eq.s32.totalorder %s19, 1
    %p235 = por %p233, %p234
    %p236 = scmp.ne.s32.totalorder %s225, %s226
    %p237 = scmp.eq.s32.totalorder %s19, 0
    %p238 = por %p236, %p237
    %p239 = scmp.ne.s32.totalorder %s225, %s226
    %p240 = scmp.eq.s32.totalorder %s20, 1
    %p241 = por %p239, %p240
    %p243 = scmp.ne.s32.totalorder %s226, %s242
    %p244 = scmp.eq.s32.totalorder %s20, 0
    %p245 = por %p243, %p244
    %s246 = ssub.s32 %s21, %s33
    %s247 = ssub.s32 %s22, %s29
    %s248 = sor.u32 %s246, %s247
    %p249 = scmp.eq.s32.totalorder %s248, 0
    %s251 = sadd.s32 %s250, 1
    %s252 = scalar_select %p249, %s250, %s251
    %p255 = pneg %p249
    %p256 = scmp.eq.s32.totalorder %s14, 1
    %p257 = por %p255, %p256
    %p258 = scmp.ne.s32.totalorder %s250, %s253
    %p259 = scmp.eq.s32.totalorder %s14, 0
    %p260 = por %p258, %p259
    %p261 = scmp.ne.s32.totalorder %s250, %s253
    %p262 = scmp.eq.s32.totalorder %s19, 1
    %p263 = por %p261, %p262
    %p264 = scmp.ne.s32.totalorder %s253, %s254
    %p265 = scmp.eq.s32.totalorder %s19, 0
    %p266 = por %p264, %p265
    %p267 = scmp.ne.s32.totalorder %s253, %s254
    %p268 = scmp.eq.s32.totalorder %s20, 1
    %p269 = por %p267, %p268
    %p271 = scmp.ne.s32.totalorder %s254, %s270
    %p272 = scmp.eq.s32.totalorder %s20, 0
    %p273 = por %p271, %p272
    %p274 = scmp.le.s32.totalorder 1, %s14
    %p275 = scmp.lt.s32.totalorder %s14, 3
    %p276 = pnand %p274, %p275
    %p277 = pneg %p276
    // Predicated region
    $region9: #{a_call__.5} parent=5 // pred_check
      _
    $region10: #{a_call__.5} parent=5 // pred_check_branch
      %279 = sbr.rel (%p276) target = $region12
    $region11: #{a_call__.5} parent=5 // pred_region
      %s280 = ssub.s32 %s14, 1
      // Predicated region
      $region13: #{a_call__.5} parent=11 // pred_check
        %p281 = pneg %p147
      $region14: #{a_call__.5} parent=11 // pred_check_branch
        %283 = sbr.rel (%p281) target = $region16
      $region15: #{a_call__.5} parent=11 // pred_region
        _
      $region16: #{a_call__.5} parent=11 // pred_fallthru
        _
      // Predicated region
      $region17: #{a_call__.5} parent=11 // pred_check
        %p284 = pneg %p168
      $region18: #{a_call__.5} parent=11 // pred_check_branch
        %286 = sbr.rel (%p284) target = $region20
      $region19: #{a_call__.5} parent=11 // pred_region
        _
      $region20: #{a_call__.5} parent=11 // pred_fallthru
        _
      // Predicated region
      $region21: #{a_call__.5} parent=11 // pred_check
        %p287 = pneg %p189
      $region22: #{a_call__.5} parent=11 // pred_check_branch
        %289 = sbr.rel (%p287) target = $region24
      $region23: #{a_call__.5} parent=11 // pred_region
        _
      $region24: #{a_call__.5} parent=11 // pred_fallthru
        _
      // Predicated region
      $region25: #{a_call__.5} parent=11 // pred_check
        %p290 = pneg %p210
      $region26: #{a_call__.5} parent=11 // pred_check_branch
        %292 = sbr.rel (%p290) target = $region28
      $region27: #{a_call__.5} parent=11 // pred_region
        _
      $region28: #{a_call__.5} parent=11 // pred_fallthru
        _
    $region12: #{a_call__.5} parent=5 // pred_fallthru
      _
    %p293 = scmp.lt.s32.totalorder %s14, 2
    // Predicated region
    $region29: #{a_call__.5} parent=5 // pred_check
      %p294 = pneg %p293
    $region30: #{a_call__.5} parent=5 // pred_check_branch
      %296 = sbr.rel (%p294) target = $region32
    $region31: #{a_call__.5} parent=5 // pred_region
      // Predicated region
      $region33: #{a_call__.5} parent=31 // pred_check
        %p297 = pneg %p48
      $region34: #{a_call__.5} parent=31 // pred_check_branch
        %299 = sbr.rel (%p297) target = $region36
      $region35: #{a_call__.5} parent=31 // pred_region
        %s300 = smul.u32 16, %s22
        %p301 = scmp.lt.s32.totalorder %s21, 1
        %s302 = scalar_select %p301, %s21, 1
        %p303 = scmp.lt.s32.totalorder %s300, 15
        %s304 = scalar_select %p303, %s300, 15
        %s305 = smul.addr %s304, 2
        %s306 = smul.addr %s302, 32
        %s307 = sadd.s32 %s305, %s306
        %s308 = smul.addr %s307, 4
        %s309 = scalar_lea.vmem %s0, %s308
        %s310 = smul.u32 16, %s22
      $region36: #{a_call__.5} parent=31 // pred_fallthru
        _
      // Predicated region
      $region37: #{a_call__.5} parent=31 // pred_check
        %p311 = pneg %p84
      $region38: #{a_call__.5} parent=31 // pred_check_branch
        %313 = sbr.rel (%p311) target = $region40
      $region39: #{a_call__.5} parent=31 // pred_region
        %s314 = smul.u32 %s22, 8
        %s315 = ssub.s32 %s314, 1
        %p316 = scmp.gt.s32.totalorder %s315, 0
        %s317 = scalar_select %p316, %s315, 0
        %s318 = smul.u32 2, %s317
        %p319 = scmp.lt.s32.totalorder %s21, 1
        %s320 = scalar_select %p319, %s21, 1
        %p321 = scmp.lt.s32.totalorder %s318, 15
        %s322 = scalar_select %p321, %s318, 15
        %s323 = smul.addr %s322, 2
        %s324 = smul.addr %s320, 32
        %s325 = sadd.s32 %s323, %s324
        %s326 = smul.addr %s325, 4
        %s327 = scalar_lea.vmem %s1, %s326
        %s328 = smul.u32 %s22, 8
        %s329 = ssub.s32 %s328, 1
        %p330 = scmp.gt.s32.totalorder %s329, 0
        %s331 = scalar_select %p330, %s329, 0
        %s332 = smul.u32 2, %s331
      $region40: #{a_call__.5} parent=31 // pred_fallthru
        _
      // Predicated region
      $region41: #{a_call__.5} parent=31 // pred_check
        %p333 = pneg %p120
      $region42: #{a_call__.5} parent=31 // pred_check_branch
        %335 = sbr.rel (%p333) target = $region44
      $region43: #{a_call__.5} parent=31 // pred_region
        %s336 = sadd.s32 %s22, 1
        %s337 = smul.u32 %s336, 8
        %p338 = scmp.lt.s32.totalorder %s337, 7
        %s339 = scalar_select %p338, %s337, 7
        %s340 = smul.u32 2, %s339
        %p341 = scmp.lt.s32.totalorder %s21, 1
        %s342 = scalar_select %p341, %s21, 1
        %p343 = scmp.lt.s32.totalorder %s340, 15
        %s344 = scalar_select %p343, %s340, 15
        %s345 = smul.addr %s344, 2
        %s346 = smul.addr %s342, 32
        %s347 = sadd.s32 %s345, %s346
        %s348 = smul.addr %s347, 4
        %s349 = scalar_lea.vmem %s2, %s348
        %s350 = sadd.s32 %s22, 1
        %s351 = smul.u32 %s350, 8
        %p352 = scmp.lt.s32.totalorder %s351, 7
        %s353 = scalar_select %p352, %s351, 7
        %s354 = smul.u32 2, %s353
      $region44: #{a_call__.5} parent=31 // pred_fallthru
        _
      // Predicated region
      $region45: #{a_call__.5} parent=31 // pred_check
        %p355 = pneg %p232
      $region46: #{a_call__.5} parent=31 // pred_check_branch
        %357 = sbr.rel (%p355) target = $region48
      $region47: #{a_call__.5} parent=31 // pred_region
        %s358 = smul.u32 16, %s22
        %p359 = scmp.lt.s32.totalorder %s21, 1
        %s360 = scalar_select %p359, %s21, 1
        %p361 = scmp.lt.s32.totalorder %s358, 15
        %s362 = scalar_select %p361, %s358, 15
        %s363 = smul.addr %s362, 2
        %s364 = smul.addr %s360, 32
        %s365 = sadd.s32 %s363, %s364
        %s366 = smul.addr %s365, 8
        %s367 = scalar_lea.vmem %s7, %s366
        %s368 = smul.u32 16, %s22
      $region48: #{a_call__.5} parent=31 // pred_fallthru
        _
    $region32: #{a_call__.5} parent=5 // pred_fallthru
      _
    %p369 = scmp.le.s32.totalorder 1, %s14
    %p370 = scmp.lt.s32.totalorder %s14, 3
    %p371 = pnand %p369, %p370
    %p372 = pneg %p371
    // Predicated region
    $region49: #{a_call__.5} parent=5 // pred_check
      _
    $region50: #{a_call__.5} parent=5 // pred_check_branch
      %374 = sbr.rel (%p371) target = $region52
    $region51: #{a_call__.5} parent=5 // pred_region
      %s375 = ssub.s32 %s14, 1
      %s376 = smul.u32 16, %s24
      %p377 = scmp.lt.s32.totalorder %s23, 1
      %s378 = scalar_select %p377, %s23, 1
      %p379 = scmp.lt.s32.totalorder %s376, 15
      %s380 = scalar_select %p379, %s376, 15
      %s381 = smul.addr %s380, 2
      %s382 = smul.addr %s378, 32
      %s383 = sadd.s32 %s381, %s382
      %s384 = smul.addr %s383, 4
      %s385 = scalar_lea.vmem %s0, %s384
      %p386 = pneg %p54
      %p387 = pneg %p51
      %s388 = smul.u32 %s24, 8
      %s389 = ssub.s32 %s388, 1
      %p390 = scmp.gt.s32.totalorder %s389, 0
      %s391 = scalar_select %p390, %s389, 0
      %s392 = smul.u32 2, %s391
      %p393 = scmp.lt.s32.totalorder %s23, 1
      %s394 = scalar_select %p393, %s23, 1
      %p395 = scmp.lt.s32.totalorder %s392, 15
      %s396 = scalar_select %p395, %s392, 15
      %s397 = smul.addr %s396, 2
      %s398 = smul.addr %s394, 32
      %s399 = sadd.s32 %s397, %s398
      %s400 = smul.addr %s399, 4
      %s401 = scalar_lea.vmem %s1, %s400
      %p402 = pneg %p90
      %p403 = pneg %p87
      %s404 = sadd.s32 %s24, 1
      %s405 = smul.u32 %s404, 8
      %p406 = scmp.lt.s32.totalorder %s405, 7
      %s407 = scalar_select %p406, %s405, 7
      %s408 = smul.u32 2, %s407
      %p409 = scmp.lt.s32.totalorder %s23, 1
      %s410 = scalar_select %p409, %s23, 1
      %p411 = scmp.lt.s32.totalorder %s408, 15
      %s412 = scalar_select %p411, %s408, 15
      %s413 = smul.addr %s412, 2
      %s414 = smul.addr %s410, 32
      %s415 = sadd.s32 %s413, %s414
      %s416 = smul.addr %s415, 4
      %s417 = scalar_lea.vmem %s2, %s416
      %p418 = pneg %p126
      %p419 = pneg %p123
      %p420 = pneg %p147
      %p421 = pneg %p144
      %p422 = pneg %p168
      %p423 = pneg %p165
      %p424 = pneg %p189
      %p425 = pneg %p186
      %p426 = pneg %p210
      %p427 = pneg %p207
      %s428 = smul.u32 16, %s24
      %p429 = scmp.lt.s32.totalorder %s23, 1
      %s430 = scalar_select %p429, %s23, 1
      %p431 = scmp.lt.s32.totalorder %s428, 15
      %s432 = scalar_select %p431, %s428, 15
      %s433 = smul.addr %s432, 2
      %s434 = smul.addr %s430, 32
      %s435 = sadd.s32 %s433, %s434
      %s436 = smul.addr %s435, 8
      %s437 = scalar_lea.vmem %s7, %s436
      %p438 = pneg %p238
      %p439 = pneg %p235
      %p440 = pneg %p266
      %p441 = pneg %p263
      %s442 = smul.u32 16, %s24
      %p443 = scmp.lt.s32.totalorder %s23, 1
      %s444 = scalar_select %p443, %s23, 1
      %p445 = scmp.lt.s32.totalorder %s442, 15
      %s446 = scalar_select %p445, %s442, 15
      %s447 = smul.addr %s446, 2
      %s448 = smul.addr %s444, 32
      %s449 = sadd.s32 %s447, %s448
      %s450 = smul.addr %s449, 8
      %s451 = scalar_lea.vmem %s8, %s450
      %s452 = smul.u32 16, %s24
      %p453 = scmp.lt.s32.totalorder %s23, 1
      %s454 = scalar_select %p453, %s23, 1
      %p455 = scmp.lt.s32.totalorder %s452, 15
      %s456 = scalar_select %p455, %s452, 15
      %s457 = smul.addr %s456, 2
      %s458 = smul.addr %s454, 32
      %s459 = sadd.s32 %s457, %s458
      %s460 = smul.addr %s459, 4
      %s461 = scalar_lea.vmem %s0, %s460
      %s462 = smul.u32 16, %s24
      %s463 = smul.u32 %s24, 8
      %s464 = ssub.s32 %s463, 1
      %p465 = scmp.gt.s32.totalorder %s464, 0
      %s466 = scalar_select %p465, %s464, 0
      %s467 = smul.u32 2, %s466
      %p468 = scmp.lt.s32.totalorder %s23, 1
      %s469 = scalar_select %p468, %s23, 1
      %p470 = scmp.lt.s32.totalorder %s467, 15
      %s471 = scalar_select %p470, %s467, 15
      %s472 = smul.addr %s471, 2
      %s473 = smul.addr %s469, 32
      %s474 = sadd.s32 %s472, %s473
      %s475 = smul.addr %s474, 4
      %s476 = scalar_lea.vmem %s1, %s475
      %s477 = smul.u32 %s24, 8
      %s478 = ssub.s32 %s477, 1
      %p479 = scmp.gt.s32.totalorder %s478, 0
      %s480 = scalar_select %p479, %s478, 0
      %s481 = smul.u32 2, %s480
      %s482 = sadd.s32 %s24, 1
      %s483 = smul.u32 %s482, 8
      %p484 = scmp.lt.s32.totalorder %s483, 7
      %s485 = scalar_select %p484, %s483, 7
      %s486 = smul.u32 2, %s485
      %p487 = scmp.lt.s32.totalorder %s23, 1
      %s488 = scalar_select %p487, %s23, 1
      %p489 = scmp.lt.s32.totalorder %s486, 15
      %s490 = scalar_select %p489, %s486, 15
      %s491 = smul.addr %s490, 2
      %s492 = smul.addr %s488, 32
      %s493 = sadd.s32 %s491, %s492
      %s494 = smul.addr %s493, 4
      %s495 = scalar_lea.vmem %s2, %s494
      %s496 = sadd.s32 %s24, 1
      %s497 = smul.u32 %s496, 8
      %p498 = scmp.lt.s32.totalorder %s497, 7
      %s499 = scalar_select %p498, %s497, 7
      %s500 = smul.u32 2, %s499
      %s501 = smul.u32 16, %s24
      %p502 = scmp.lt.s32.totalorder %s23, 1
      %s503 = scalar_select %p502, %s23, 1
      %p504 = scmp.lt.s32.totalorder %s501, 15
      %s505 = scalar_select %p504, %s501, 15
      %s506 = smul.addr %s505, 2
      %s507 = smul.addr %s503, 32
      %s508 = sadd.s32 %s506, %s507
      %s509 = smul.addr %s508, 8
      %s510 = scalar_lea.vmem %s7, %s509
      %s511 = smul.u32 16, %s24
      %s512 = smul.u32 16, %s24
      %p513 = scmp.lt.s32.totalorder %s23, 1
      %s514 = scalar_select %p513, %s23, 1
      %p515 = scmp.lt.s32.totalorder %s512, 15
      %s516 = scalar_select %p515, %s512, 15
      %s517 = smul.addr %s516, 2
      %s518 = smul.addr %s514, 32
      %s519 = sadd.s32 %s517, %s518
      %s520 = smul.addr %s519, 8
      %s521 = scalar_lea.vmem %s8, %s520
      %s522 = smul.u32 16, %s24
      %s524 = smul.u32 %s24, 16
      %v525 = vld [vmem:[%s461] sm:$0xf]
      %v526 = vld [vmem:[%s461 + $0x4] sm:$0xf]
      %v527 = vld [vmem:[%s461 + $0x8] sm:$0xf]
      %v528 = vld [vmem:[%s461 + $0xc] sm:$0xf]
      %v529 = vld [vmem:[%s461 + $0x10] sm:$0xf]
      %v530 = vld [vmem:[%s461 + $0x14] sm:$0xf]
      %v531 = vld [vmem:[%s461 + $0x18] sm:$0xf]
      %v532 = vld [vmem:[%s461 + $0x1c] sm:$0xf]
      %v533 = vld [vmem:[%s461 + $0x20] sm:$0xf]
      %v534 = vld [vmem:[%s461 + $0x24] sm:$0xf]
      %v535 = vld [vmem:[%s461 + $0x28] sm:$0xf]
      %v536 = vld [vmem:[%s461 + $0x2c] sm:$0xf]
      %v537 = vld [vmem:[%s461 + $0x30] sm:$0xf]
      %v538 = vld [vmem:[%s461 + $0x34] sm:$0xf]
      %v539 = vld [vmem:[%s461 + $0x38] sm:$0xf]
      %v540 = vld [vmem:[%s461 + $0x3c] sm:$0xf]
      %v541 = vld [vmem:[%s461 + $0x40] sm:$0xf]
      %v542 = vld [vmem:[%s461 + $0x44] sm:$0xf]
      %v543 = vld [vmem:[%s461 + $0x48] sm:$0xf]
      %v544 = vld [vmem:[%s461 + $0x4c] sm:$0xf]
      %v545 = vld [vmem:[%s461 + $0x50] sm:$0xf]
      %v546 = vld [vmem:[%s461 + $0x54] sm:$0xf]
      %v547 = vld [vmem:[%s461 + $0x58] sm:$0xf]
      %v548 = vld [vmem:[%s461 + $0x5c] sm:$0xf]
      %v549 = vld [vmem:[%s461 + $0x60] sm:$0xf]
      %v550 = vld [vmem:[%s461 + $0x64] sm:$0xf]
      %v551 = vld [vmem:[%s461 + $0x68] sm:$0xf]
      %v552 = vld [vmem:[%s461 + $0x6c] sm:$0xf]
      %v553 = vld [vmem:[%s461 + $0x70] sm:$0xf]
      %v554 = vld [vmem:[%s461 + $0x74] sm:$0xf]
      %v555 = vld [vmem:[%s461 + $0x78] sm:$0xf]
      %v556 = vld [vmem:[%s461 + $0x7c] sm:$0xf]
      %p557 = scmp.gt.s32.totalorder %s24, 0
      %v558 = vld [vmem:[%s476] sm:$0xf]
      %v559 = vld [vmem:[%s476 + $0x4] sm:$0xf]
      %v560 = vld [vmem:[%s476 + $0x8] sm:$0xf]
      %v561 = vld [vmem:[%s476 + $0xc] sm:$0xf]
      %s562 = scalar_select %p557, 1, 0
      %v563 = vstv %s562
      %vm564 = vcmp.eq.s32.totalorder %v563, 1
      %v565 = vsel %vm564, %v558, 0
      %v566 = vsel %vm564, %v559, 0
      %v567 = vsel %vm564, %v560, 0
      %v568 = vsel %vm564, %v561, 0
      %p569 = scmp.lt.s32.totalorder %s24, 0
      %v570 = vld [vmem:[%s495] sm:$0xf]
      %v571 = vld [vmem:[%s495 + $0x4] sm:$0xf]
      %v572 = vld [vmem:[%s495 + $0x8] sm:$0xf]
      %v573 = vld [vmem:[%s495 + $0xc] sm:$0xf]
      %s574 = scalar_select %p569, 1, 0
      %v575 = vstv %s574
      %vm576 = vcmp.eq.s32.totalorder %v575, 1
      %v577 = vsel %vm576, %v570, 0
      %v578 = vsel %vm576, %v571, 0
      %v579 = vsel %vm576, %v572, 0
      %v580 = vsel %vm576, %v573, 0
      %v621 = vunpack.c.l.b16 %v565
      %v622 = vunpack.c.l.b16 %v566
      %v623 = vunpack.c.l.b16 %v567
      %v624 = vunpack.c.l.b16 %v568
      %v625 = vunpack.c.l.b16 %v525
      %v626 = vunpack.c.l.b16 %v526
      %v627 = vunpack.c.l.b16 %v527
      %v628 = vunpack.c.l.b16 %v528
      %v629 = vunpack.c.l.b16 %v529
      %v630 = vunpack.c.l.b16 %v530
      %v631 = vunpack.c.l.b16 %v531
      %v632 = vunpack.c.l.b16 %v532
      %v633 = vunpack.c.l.b16 %v533
      %v634 = vunpack.c.l.b16 %v534
      %v635 = vunpack.c.l.b16 %v535
      %v636 = vunpack.c.l.b16 %v536
      %v637 = vunpack.c.l.b16 %v537
      %v638 = vunpack.c.l.b16 %v538
      %v639 = vunpack.c.l.b16 %v539
      %v640 = vunpack.c.l.b16 %v540
      %v641 = vunpack.c.l.b16 %v541
      %v642 = vunpack.c.l.b16 %v542
      %v643 = vunpack.c.l.b16 %v543
      %v644 = vunpack.c.l.b16 %v544
      %v645 = vunpack.c.l.b16 %v545
      %v646 = vunpack.c.l.b16 %v546
      %v647 = vunpack.c.l.b16 %v547
      %v648 = vunpack.c.l.b16 %v548
      %v649 = vunpack.c.l.b16 %v549
      %v650 = vunpack.c.l.b16 %v550
      %v651 = vunpack.c.l.b16 %v551
      %v652 = vunpack.c.l.b16 %v552
      %v653 = vunpack.c.l.b16 %v553
      %v654 = vunpack.c.l.b16 %v554
      %v655 = vunpack.c.l.b16 %v555
      %v656 = vunpack.c.l.b16 %v556
      %v657 = vunpack.c.l.b16 %v577
      %v658 = vunpack.c.l.b16 %v578
      %v659 = vunpack.c.l.b16 %v579
      %v660 = vunpack.c.l.b16 %v580
      %v661 = vpack.c.b16 %v622, %v621
      %v662 = vpack.c.b16 %v624, %v623
      %v663 = vpack.c.b16 %v626, %v625
      %v664 = vpack.c.b16 %v628, %v627
      %v665 = vpack.c.b16 %v630, %v629
      %v666 = vpack.c.b16 %v632, %v631
      %v667 = vpack.c.b16 %v634, %v633
      %v668 = vpack.c.b16 %v636, %v635
      %v669 = vpack.c.b16 %v638, %v637
      %v670 = vpack.c.b16 %v640, %v639
      %v671 = vpack.c.b16 %v642, %v641
      %v672 = vpack.c.b16 %v644, %v643
      %v673 = vpack.c.b16 %v646, %v645
      %v674 = vpack.c.b16 %v648, %v647
      %v675 = vpack.c.b16 %v650, %v649
      %v676 = vpack.c.b16 %v652, %v651
      %v677 = vpack.c.b16 %v654, %v653
      %v678 = vpack.c.b16 %v656, %v655
      %v679 = vpack.c.b16 %v658, %v657
      %v680 = vpack.c.b16 %v660, %v659
      %v682 = vshrl.u32 %v661, 16
      %v684 = vrot.slane %v682, 7
      %v685 = vshll.u32 %v661, 16
      %v687 = vor.u32 %v684, %v685
      %v689 = vshrl.u32 %v662, 16
      %v691 = vrot.slane %v689, 7
      %v692 = vshll.u32 %v662, 16
      %v694 = vor.u32 %v691, %v692
      %v696 = vshrl.u32 %v663, 16
      %v698 = vrot.slane %v696, 7
      %v699 = vshll.u32 %v663, 16
      %v701 = vor.u32 %v698, %v699
      %v703 = vshrl.u32 %v664, 16
      %v705 = vrot.slane %v703, 7
      %v706 = vshll.u32 %v664, 16
      %v708 = vor.u32 %v705, %v706
      %v710 = vshrl.u32 %v665, 16
      %v712 = vrot.slane %v710, 7
      %v713 = vshll.u32 %v665, 16
      %v715 = vor.u32 %v712, %v713
      %v717 = vshrl.u32 %v666, 16
      %v719 = vrot.slane %v717, 7
      %v720 = vshll.u32 %v666, 16
      %v722 = vor.u32 %v719, %v720
      %v724 = vshrl.u32 %v667, 16
      %v726 = vrot.slane %v724, 7
      %v727 = vshll.u32 %v667, 16
      %v729 = vor.u32 %v726, %v727
      %v731 = vshrl.u32 %v668, 16
      %v733 = vrot.slane %v731, 7
      %v734 = vshll.u32 %v668, 16
      %v736 = vor.u32 %v733, %v734
      %v738 = vshrl.u32 %v669, 16
      %v740 = vrot.slane %v738, 7
      %v741 = vshll.u32 %v669, 16
      %v743 = vor.u32 %v740, %v741
      %v745 = vshrl.u32 %v670, 16
      %v747 = vrot.slane %v745, 7
      %v748 = vshll.u32 %v670, 16
      %v750 = vor.u32 %v747, %v748
      %v752 = vshrl.u32 %v671, 16
      %v754 = vrot.slane %v752, 7
      %v755 = vshll.u32 %v671, 16
      %v757 = vor.u32 %v754, %v755
      %v759 = vshrl.u32 %v672, 16
      %v761 = vrot.slane %v759, 7
      %v762 = vshll.u32 %v672, 16
      %v764 = vor.u32 %v761, %v762
      %v766 = vshrl.u32 %v673, 16
      %v768 = vrot.slane %v766, 7
      %v769 = vshll.u32 %v673, 16
      %v771 = vor.u32 %v768, %v769
      %v773 = vshrl.u32 %v674, 16
      %v775 = vrot.slane %v773, 7
      %v776 = vshll.u32 %v674, 16
      %v778 = vor.u32 %v775, %v776
      %v780 = vshrl.u32 %v675, 16
      %v782 = vrot.slane %v780, 7
      %v783 = vshll.u32 %v675, 16
      %v785 = vor.u32 %v782, %v783
      %v787 = vshrl.u32 %v676, 16
      %v789 = vrot.slane %v787, 7
      %v790 = vshll.u32 %v676, 16
      %v792 = vor.u32 %v789, %v790
      %v794 = vshrl.u32 %v677, 16
      %v796 = vrot.slane %v794, 7
      %v797 = vshll.u32 %v677, 16
      %v799 = vor.u32 %v796, %v797
      %v801 = vshrl.u32 %v678, 16
      %v803 = vrot.slane %v801, 7
      %v804 = vshll.u32 %v678, 16
      %v806 = vor.u32 %v803, %v804
      %v808 = vshrl.u32 %v679, 16
      %v810 = vrot.slane %v808, 7
      %v811 = vshll.u32 %v679, 16
      %v813 = vor.u32 %v810, %v811
      %v815 = vshrl.u32 %v680, 16
      %v817 = vrot.slane %v815, 7
      %v818 = vshll.u32 %v680, 16
      %v820 = vor.u32 %v817, %v818
      %vm861 = vcmask 1040384
      %vm862 = vsmask.f32 256
      %vm863 = vmand %vm861, %vm862
      %v864 = vsel %vm863, 0, %v687
      %v865 = vsel %vm863, 0, %v694
      %v866 = vsel %vm863, 0, %v701
      %v867 = vsel %vm863, 0, %v708
      %v868 = vsel %vm863, 0, %v715
      %v869 = vsel %vm863, 0, %v722
      %v870 = vsel %vm863, 0, %v729
      %v871 = vsel %vm863, 0, %v736
      %v872 = vsel %vm863, 0, %v743
      %v873 = vsel %vm863, 0, %v750
      %v874 = vsel %vm863, 0, %v757
      %v875 = vsel %vm863, 0, %v764
      %v876 = vsel %vm863, 0, %v771
      %v877 = vsel %vm863, 0, %v778
      %v878 = vsel %vm863, 0, %v785
      %v879 = vsel %vm863, 0, %v792
      %v880 = vsel %vm863, 0, %v799
      %v881 = vsel %vm863, 0, %v806
      %v882 = vsel %vm863, 0, %v813
      %v883 = vsel %vm863, 0, %v820
      %v884 = vsel %vm863, %v684, 0
      %v885 = vsel %vm863, %v691, 0
      %v886 = vsel %vm863, %v698, 0
      %v887 = vsel %vm863, %v705, 0
      %v888 = vsel %vm863, %v712, 0
      %v889 = vsel %vm863, %v719, 0
      %v890 = vsel %vm863, %v726, 0
      %v891 = vsel %vm863, %v733, 0
      %v892 = vsel %vm863, %v740, 0
      %v893 = vsel %vm863, %v747, 0
      %v894 = vsel %vm863, %v754, 0
      %v895 = vsel %vm863, %v761, 0
      %v896 = vsel %vm863, %v768, 0
      %v897 = vsel %vm863, %v775, 0
      %v898 = vsel %vm863, %v782, 0
      %v899 = vsel %vm863, %v789, 0
      %v900 = vsel %vm863, %v796, 0
      %v901 = vsel %vm863, %v803, 0
      %v902 = vsel %vm863, %v810, 0
      %v903 = vsel %vm863, %v817, 0
      %vm904 = vsmask.f32 7424
      %v906 = vshrl.u32 %v864, 16
      %v908 = vshll.u32 %v864, 16
      %v910 = vrot.slane %v908, 1
      %v911 = vor.u32 %v906, %v910
      %v913 = vshll.u32 %v884, 16
      %v915 = vrot.slane %v913, 1
      %v916 = vsel %vm904, %v911, %v915
      %v918 = vshrl.u32 %v865, 16
      %v920 = vshll.u32 %v865, 16
      %v922 = vrot.slane %v920, 1
      %v923 = vor.u32 %v918, %v922
      %v925 = vshll.u32 %v885, 16
      %v927 = vrot.slane %v925, 1
      %v928 = vsel %vm904, %v923, %v927
      %v930 = vshrl.u32 %v866, 16
      %v932 = vshll.u32 %v866, 16
      %v934 = vrot.slane %v932, 1
      %v935 = vor.u32 %v930, %v934
      %v937 = vshll.u32 %v886, 16
      %v939 = vrot.slane %v937, 1
      %v940 = vsel %vm904, %v935, %v939
      %v942 = vshrl.u32 %v867, 16
      %v944 = vshll.u32 %v867, 16
      %v946 = vrot.slane %v944, 1
      %v947 = vor.u32 %v942, %v946
      %v949 = vshll.u32 %v887, 16
      %v951 = vrot.slane %v949, 1
      %v952 = vsel %vm904, %v947, %v951
      %v954 = vshrl.u32 %v868, 16
      %v956 = vshll.u32 %v868, 16
      %v958 = vrot.slane %v956, 1
      %v959 = vor.u32 %v954, %v958
      %v961 = vshll.u32 %v888, 16
      %v963 = vrot.slane %v961, 1
      %v964 = vsel %vm904, %v959, %v963
      %v966 = vshrl.u32 %v869, 16
      %v968 = vshll.u32 %v869, 16
      %v970 = vrot.slane %v968, 1
      %v971 = vor.u32 %v966, %v970
      %v973 = vshll.u32 %v889, 16
      %v975 = vrot.slane %v973, 1
      %v976 = vsel %vm904, %v971, %v975
      %v978 = vshrl.u32 %v870, 16
      %v980 = vshll.u32 %v870, 16
      %v982 = vrot.slane %v980, 1
      %v983 = vor.u32 %v978, %v982
      %v985 = vshll.u32 %v890, 16
      %v987 = vrot.slane %v985, 1
      %v988 = vsel %vm904, %v983, %v987
      %v990 = vshrl.u32 %v871, 16
      %v992 = vshll.u32 %v871, 16
      %v994 = vrot.slane %v992, 1
      %v995 = vor.u32 %v990, %v994
      %v997 = vshll.u32 %v891, 16
      %v999 = vrot.slane %v997, 1
      %v1000 = vsel %vm904, %v995, %v999
      %v1002 = vshrl.u32 %v872, 16
      %v1004 = vshll.u32 %v872, 16
      %v1006 = vrot.slane %v1004, 1
      %v1007 = vor.u32 %v1002, %v1006
      %v1009 = vshll.u32 %v892, 16
      %v1011 = vrot.slane %v1009, 1
      %v1012 = vsel %vm904, %v1007, %v1011
      %v1014 = vshrl.u32 %v873, 16
      %v1016 = vshll.u32 %v873, 16
      %v1018 = vrot.slane %v1016, 1
      %v1019 = vor.u32 %v1014, %v1018
      %v1021 = vshll.u32 %v893, 16
      %v1023 = vrot.slane %v1021, 1
      %v1024 = vsel %vm904, %v1019, %v1023
      %v1026 = vshrl.u32 %v874, 16
      %v1028 = vshll.u32 %v874, 16
      %v1030 = vrot.slane %v1028, 1
      %v1031 = vor.u32 %v1026, %v1030
      %v1033 = vshll.u32 %v894, 16
      %v1035 = vrot.slane %v1033, 1
      %v1036 = vsel %vm904, %v1031, %v1035
      %v1038 = vshrl.u32 %v875, 16
      %v1040 = vshll.u32 %v875, 16
      %v1042 = vrot.slane %v1040, 1
      %v1043 = vor.u32 %v1038, %v1042
      %v1045 = vshll.u32 %v895, 16
      %v1047 = vrot.slane %v1045, 1
      %v1048 = vsel %vm904, %v1043, %v1047
      %v1050 = vshrl.u32 %v876, 16
      %v1052 = vshll.u32 %v876, 16
      %v1054 = vrot.slane %v1052, 1
      %v1055 = vor.u32 %v1050, %v1054
      %v1057 = vshll.u32 %v896, 16
      %v1059 = vrot.slane %v1057, 1
      %v1060 = vsel %vm904, %v1055, %v1059
      %v1062 = vshrl.u32 %v877, 16
      %v1064 = vshll.u32 %v877, 16
      %v1066 = vrot.slane %v1064, 1
      %v1067 = vor.u32 %v1062, %v1066
      %v1069 = vshll.u32 %v897, 16
      %v1071 = vrot.slane %v1069, 1
      %v1072 = vsel %vm904, %v1067, %v1071
      %v1074 = vshrl.u32 %v878, 16
      %v1076 = vshll.u32 %v878, 16
      %v1078 = vrot.slane %v1076, 1
      %v1079 = vor.u32 %v1074, %v1078
      %v1081 = vshll.u32 %v898, 16
      %v1083 = vrot.slane %v1081, 1
      %v1084 = vsel %vm904, %v1079, %v1083
      %v1086 = vshrl.u32 %v879, 16
      %v1088 = vshll.u32 %v879, 16
      %v1090 = vrot.slane %v1088, 1
      %v1091 = vor.u32 %v1086, %v1090
      %v1093 = vshll.u32 %v899, 16
      %v1095 = vrot.slane %v1093, 1
      %v1096 = vsel %vm904, %v1091, %v1095
      %v1098 = vshrl.u32 %v880, 16
      %v1100 = vshll.u32 %v880, 16
      %v1102 = vrot.slane %v1100, 1
      %v1103 = vor.u32 %v1098, %v1102
      %v1105 = vshll.u32 %v900, 16
      %v1107 = vrot.slane %v1105, 1
      %v1108 = vsel %vm904, %v1103, %v1107
      %v1110 = vshrl.u32 %v881, 16
      %v1112 = vshll.u32 %v881, 16
      %v1114 = vrot.slane %v1112, 1
      %v1115 = vor.u32 %v1110, %v1114
      %v1117 = vshll.u32 %v901, 16
      %v1119 = vrot.slane %v1117, 1
      %v1120 = vsel %vm904, %v1115, %v1119
      %v1122 = vshrl.u32 %v882, 16
      %v1124 = vshll.u32 %v882, 16
      %v1126 = vrot.slane %v1124, 1
      %v1127 = vor.u32 %v1122, %v1126
      %v1129 = vshll.u32 %v902, 16
      %v1131 = vrot.slane %v1129, 1
      %v1132 = vsel %vm904, %v1127, %v1131
      %v1134 = vshrl.u32 %v883, 16
      %v1136 = vshll.u32 %v883, 16
      %v1138 = vrot.slane %v1136, 1
      %v1139 = vor.u32 %v1134, %v1138
      %v1141 = vshll.u32 %v903, 16
      %v1143 = vrot.slane %v1141, 1
      %v1144 = vsel %vm904, %v1139, %v1143
      %1145 = vrot.lane.b32.xlu0 %v916, 64
      %v1146 = vpop.permute.xlu0 %1145
      %1147 = vrot.lane.b32.xlu0 %v928, 64
      %v1148 = vpop.permute.xlu0 %1147
      %1149 = vrot.lane.b32.xlu0 %v940, 64
      %v1150 = vpop.permute.xlu0 %1149
      %1151 = vrot.lane.b32.xlu0 %v952, 64
      %v1152 = vpop.permute.xlu0 %1151
      %1153 = vrot.lane.b32.xlu0 %v964, 64
      %v1154 = vpop.permute.xlu0 %1153
      %1155 = vrot.lane.b32.xlu0 %v976, 64
      %v1156 = vpop.permute.xlu0 %1155
      %1157 = vrot.lane.b32.xlu0 %v988, 64
      %v1158 = vpop.permute.xlu0 %1157
      %1159 = vrot.lane.b32.xlu0 %v1000, 64
      %v1160 = vpop.permute.xlu0 %1159
      %1161 = vrot.lane.b32.xlu0 %v1012, 64
      %v1162 = vpop.permute.xlu0 %1161
      %1163 = vrot.lane.b32.xlu0 %v1024, 64
      %v1164 = vpop.permute.xlu0 %1163
      %1165 = vrot.lane.b32.xlu0 %v1036, 64
      %v1166 = vpop.permute.xlu0 %1165
      %1167 = vrot.lane.b32.xlu0 %v1048, 64
      %v1168 = vpop.permute.xlu0 %1167
      %1169 = vrot.lane.b32.xlu0 %v1060, 64
      %v1170 = vpop.permute.xlu0 %1169
      %1171 = vrot.lane.b32.xlu0 %v1072, 64
      %v1172 = vpop.permute.xlu0 %1171
      %1173 = vrot.lane.b32.xlu0 %v1084, 64
      %v1174 = vpop.permute.xlu0 %1173
      %1175 = vrot.lane.b32.xlu0 %v1096, 64
      %v1176 = vpop.permute.xlu0 %1175
      %1177 = vrot.lane.b32.xlu0 %v1108, 64
      %v1178 = vpop.permute.xlu0 %1177
      %1179 = vrot.lane.b32.xlu0 %v1120, 64
      %v1180 = vpop.permute.xlu0 %1179
      %1181 = vrot.lane.b32.xlu0 %v1132, 64
      %v1182 = vpop.permute.xlu0 %1181
      %1183 = vrot.lane.b32.xlu0 %v1144, 64
      %v1184 = vpop.permute.xlu0 %1183
      %vm1225 = vcmask 1046528
      %v1226 = vrot.slane %v864, 1
      %v1227 = vrot.slane %v884, 1
      %v1228 = vsel %vm1225, %v1226, %v1227
      %v1229 = vrot.slane %v865, 1
      %v1230 = vrot.slane %v885, 1
      %v1231 = vsel %vm1225, %v1229, %v1230
      %v1232 = vrot.slane %v866, 1
      %v1233 = vrot.slane %v886, 1
      %v1234 = vsel %vm1225, %v1232, %v1233
      %v1235 = vrot.slane %v867, 1
      %v1236 = vrot.slane %v887, 1
      %v1237 = vsel %vm1225, %v1235, %v1236
      %v1238 = vrot.slane %v868, 1
      %v1239 = vrot.slane %v888, 1
      %v1240 = vsel %vm1225, %v1238, %v1239
      %v1241 = vrot.slane %v869, 1
      %v1242 = vrot.slane %v889, 1
      %v1243 = vsel %vm1225, %v1241, %v1242
      %v1244 = vrot.slane %v870, 1
      %v1245 = vrot.slane %v890, 1
      %v1246 = vsel %vm1225, %v1244, %v1245
      %v1247 = vrot.slane %v871, 1
      %v1248 = vrot.slane %v891, 1
      %v1249 = vsel %vm1225, %v1247, %v1248
      %v1250 = vrot.slane %v872, 1
      %v1251 = vrot.slane %v892, 1
      %v1252 = vsel %vm1225, %v1250, %v1251
      %v1253 = vrot.slane %v873, 1
      %v1254 = vrot.slane %v893, 1
      %v1255 = vsel %vm1225, %v1253, %v1254
      %v1256 = vrot.slane %v874, 1
      %v1257 = vrot.slane %v894, 1
      %v1258 = vsel %vm1225, %v1256, %v1257
      %v1259 = vrot.slane %v875, 1
      %v1260 = vrot.slane %v895, 1
      %v1261 = vsel %vm1225, %v1259, %v1260
      %v1262 = vrot.slane %v876, 1
      %v1263 = vrot.slane %v896, 1
      %v1264 = vsel %vm1225, %v1262, %v1263
      %v1265 = vrot.slane %v877, 1
      %v1266 = vrot.slane %v897, 1
      %v1267 = vsel %vm1225, %v1265, %v1266
      %v1268 = vrot.slane %v878, 1
      %v1269 = vrot.slane %v898, 1
      %v1270 = vsel %vm1225, %v1268, %v1269
      %v1271 = vrot.slane %v879, 1
      %v1272 = vrot.slane %v899, 1
      %v1273 = vsel %vm1225, %v1271, %v1272
      %v1274 = vrot.slane %v880, 1
      %v1275 = vrot.slane %v900, 1
      %v1276 = vsel %vm1225, %v1274, %v1275
      %v1277 = vrot.slane %v881, 1
      %v1278 = vrot.slane %v901, 1
      %v1279 = vsel %vm1225, %v1277, %v1278
      %v1280 = vrot.slane %v882, 1
      %v1281 = vrot.slane %v902, 1
      %v1282 = vsel %vm1225, %v1280, %v1281
      %v1283 = vrot.slane %v883, 1
      %v1284 = vrot.slane %v903, 1
      %v1285 = vsel %vm1225, %v1283, %v1284
      %vm1286 = vcmask 523264
      %v1288 = vsel %vm1286, %v864, %v1146
      %v1291 = vsel %vm1286, %v865, %v1148
      %v1294 = vsel %vm1286, %v866, %v1150
      %v1297 = vsel %vm1286, %v867, %v1152
      %v1300 = vsel %vm1286, %v868, %v1154
      %v1303 = vsel %vm1286, %v869, %v1156
      %v1306 = vsel %vm1286, %v870, %v1158
      %v1309 = vsel %vm1286, %v871, %v1160
      %v1312 = vsel %vm1286, %v872, %v1162
      %v1315 = vsel %vm1286, %v873, %v1164
      %v1318 = vsel %vm1286, %v874, %v1166
      %v1321 = vsel %vm1286, %v875, %v1168
      %v1324 = vsel %vm1286, %v876, %v1170
      %v1327 = vsel %vm1286, %v877, %v1172
      %v1330 = vsel %vm1286, %v878, %v1174
      %v1333 = vsel %vm1286, %v879, %v1176
      %v1336 = vsel %vm1286, %v880, %v1178
      %v1339 = vsel %vm1286, %v881, %v1180
      %v1342 = vsel %vm1286, %v882, %v1182
      %v1345 = vsel %vm1286, %v883, %v1184
      %v1347 = vld [vmem:[%s3] sm:$0xf]
      %v1348 = vld [vmem:[%s3 + $0x4] sm:$0xf]
      %v1349 = vld [vmem:[%s3 + $0x8] sm:$0xf]
      %v1350 = vld [vmem:[%s3 + $0xc] sm:$0xf]
      %v1351 = vld [vmem:[%s3 + $0x10] sm:$0xf]
      %v1352 = vld [vmem:[%s3 + $0x14] sm:$0xf]
      %v1353 = vld [vmem:[%s3 + $0x18] sm:$0xf]
      %v1354 = vld [vmem:[%s3 + $0x1c] sm:$0xf]
      %v1355 = vld [vmem:[%s3 + $0x20] sm:$0xf]
      %v1356 = vld [vmem:[%s3 + $0x24] sm:$0xf]
      %v1357 = vld [vmem:[%s3 + $0x28] sm:$0xf]
      %v1358 = vld [vmem:[%s3 + $0x2c] sm:$0xf]
      %v1359 = vld [vmem:[%s3 + $0x30] sm:$0xf]
      %v1360 = vld [vmem:[%s3 + $0x34] sm:$0xf]
      %v1361 = vld [vmem:[%s3 + $0x38] sm:$0xf]
      %v1362 = vld [vmem:[%s3 + $0x3c] sm:$0xf]
      %v1363 = vld [vmem:[%s3 + $0x40] sm:$0xf]
      %v1364 = vld [vmem:[%s3 + $0x44] sm:$0xf]
      %v1365 = vld [vmem:[%s3 + $0x48] sm:$0xf]
      %v1366 = vld [vmem:[%s3 + $0x4c] sm:$0xf]
      %v1367 = vld [vmem:[%s3 + $0x50] sm:$0xf]
      %v1368 = vld [vmem:[%s3 + $0x54] sm:$0xf]
      %v1369 = vld [vmem:[%s3 + $0x58] sm:$0xf]
      %v1370 = vld [vmem:[%s3 + $0x5c] sm:$0xf]
      %s1371 = scalar_lea.vmem %s3, 96
      %v1372 = vld [vmem:[%s1371] sm:$0xf]
      %v1373 = vld [vmem:[%s1371 + $0x4] sm:$0xf]
      %v1374 = vld [vmem:[%s1371 + $0x8] sm:$0xf]
      %v1375 = vld [vmem:[%s1371 + $0xc] sm:$0xf]
      %v1376 = vld [vmem:[%s1371 + $0x10] sm:$0xf]
      %v1377 = vld [vmem:[%s1371 + $0x14] sm:$0xf]
      %v1378 = vld [vmem:[%s1371 + $0x18] sm:$0xf]
      %v1379 = vld [vmem:[%s1371 + $0x1c] sm:$0xf]
      %v1380 = vld [vmem:[%s1371 + $0x20] sm:$0xf]
      %v1381 = vld [vmem:[%s1371 + $0x24] sm:$0xf]
      %v1382 = vld [vmem:[%s1371 + $0x28] sm:$0xf]
      %v1383 = vld [vmem:[%s1371 + $0x2c] sm:$0xf]
      %v1384 = vld [vmem:[%s1371 + $0x30] sm:$0xf]
      %v1385 = vld [vmem:[%s1371 + $0x34] sm:$0xf]
      %v1386 = vld [vmem:[%s1371 + $0x38] sm:$0xf]
      %v1387 = vld [vmem:[%s1371 + $0x3c] sm:$0xf]
      %v1388 = vld [vmem:[%s1371 + $0x40] sm:$0xf]
      %v1389 = vld [vmem:[%s1371 + $0x44] sm:$0xf]
      %v1390 = vld [vmem:[%s1371 + $0x48] sm:$0xf]
      %v1391 = vld [vmem:[%s1371 + $0x4c] sm:$0xf]
      %v1392 = vld [vmem:[%s1371 + $0x50] sm:$0xf]
      %v1393 = vld [vmem:[%s1371 + $0x54] sm:$0xf]
      %v1394 = vld [vmem:[%s1371 + $0x58] sm:$0xf]
      %v1395 = vld [vmem:[%s1371 + $0x5c] sm:$0xf]
      %v1420 = vunpack.c.l.b16 %v1372
      %v1421 = vunpack.c.l.b16 %v1373
      %v1422 = vunpack.c.l.b16 %v1374
      %v1423 = vunpack.c.l.b16 %v1375
      %v1424 = vunpack.c.l.b16 %v1376
      %v1425 = vunpack.c.l.b16 %v1377
      %v1426 = vunpack.c.l.b16 %v1378
      %v1427 = vunpack.c.l.b16 %v1379
      %v1428 = vunpack.c.l.b16 %v1380
      %v1429 = vunpack.c.l.b16 %v1381
      %v1430 = vunpack.c.l.b16 %v1382
      %v1431 = vunpack.c.l.b16 %v1383
      %v1432 = vunpack.c.l.b16 %v1384
      %v1433 = vunpack.c.l.b16 %v1385
      %v1434 = vunpack.c.l.b16 %v1386
      %v1435 = vunpack.c.l.b16 %v1387
      %v1436 = vunpack.c.l.b16 %v1388
      %v1437 = vunpack.c.l.b16 %v1389
      %v1438 = vunpack.c.l.b16 %v1390
      %v1439 = vunpack.c.l.b16 %v1391
      %v1440 = vunpack.c.l.b16 %v1392
      %v1441 = vunpack.c.l.b16 %v1393
      %v1442 = vunpack.c.l.b16 %v1394
      %v1443 = vunpack.c.l.b16 %v1395
      %v1444 = vpack.c.b16 %v1421, %v1420
      %v1445 = vpack.c.b16 %v1423, %v1422
      %v1446 = vpack.c.b16 %v1425, %v1424
      %v1447 = vpack.c.b16 %v1427, %v1426
      %v1448 = vpack.c.b16 %v1429, %v1428
      %v1449 = vpack.c.b16 %v1431, %v1430
      %v1450 = vpack.c.b16 %v1433, %v1432
      %v1451 = vpack.c.b16 %v1435, %v1434
      %v1452 = vpack.c.b16 %v1437, %v1436
      %v1453 = vpack.c.b16 %v1439, %v1438
      %v1454 = vpack.c.b16 %v1441, %v1440
      %v1455 = vpack.c.b16 %v1443, %v1442
      %v1469 = vsel %vm1286, %v1231, 0
      %v1472 = vsel %vm1286, %v1234, 0
      %v1475 = vsel %vm1286, %v1237, 0
      %v1478 = vsel %vm1286, %v1240, 0
      %v1481 = vsel %vm1286, %v1243, 0
      %v1484 = vsel %vm1286, %v1246, 0
      %v1487 = vsel %vm1286, %v1249, 0
      %v1490 = vsel %vm1286, %v1252, 0
      %v1493 = vsel %vm1286, %v1255, 0
      %v1496 = vsel %vm1286, %v1258, 0
      %v1499 = vsel %vm1286, %v1261, 0
      %v1502 = vsel %vm1286, %v1264, 0
      %v1505 = vsel %vm1286, %v1267, 0
      %v1508 = vsel %vm1286, %v1270, 0
      %v1511 = vsel %vm1286, %v1273, 0
      %v1514 = vsel %vm1286, %v1276, 0
      %v1517 = vsel %vm1286, %v1279, 0
      %v1520 = vsel %vm1286, %v1282, 0
      %1522 = vmatprep.subr.bf16.mxu0 0
      %1523 = vmatpush1.bf16.msra.mxu0 %v1444
      %1524 = vmatprep.subr.bf16.mxu0 0
      %1525 = vmatpush1.bf16.msra.mxu0 %v1445
      %1526 = vmatprep.subr.bf16.mxu0 0
      %1527 = vmatpush1.bf16.msra.mxu0 %v1446
      %1528 = vmatprep.subr.bf16.mxu0 0
      %1529 = vmatpush1.bf16.msra.mxu0 %v1447
      %1530 = vmatprep.subr.bf16.mxu0 0
      %1531 = vmatpush1.bf16.msra.mxu0 %v1448
      %1532 = vmatprep.subr.bf16.mxu0 0
      %1533 = vmatpush1.bf16.msra.mxu0 %v1449
      %1534 = vmatprep.subr.bf16.mxu0 0
      %1535 = vmatpush1.bf16.msra.mxu0 %v1450
      %1536 = vmatprep.subr.bf16.mxu0 0
      %1537 = vmatpush1.bf16.msra.mxu0 %v1451
      %1538 = vmatprep.subr.bf16.mxu0 0
      %1539 = vmatpush1.bf16.msra.mxu0 %v1452
      %1540 = vmatprep.subr.bf16.mxu0 0
      %1541 = vmatpush1.bf16.msra.mxu0 %v1453
      %1542 = vmatprep.subr.bf16.mxu0 0
      %1543 = vmatpush1.bf16.msra.mxu0 %v1454
      %1544 = vmatprep.subr.bf16.mxu0 0
      %1545 = vmatpush1.bf16.msra.mxu0 %v1455
      %1546 = vmatprep.subr.bf16.mxu0 0
      %1547 = vmatpush1.bf16.msra.mxu0 0
      %1548 = vmatprep.subr.bf16.mxu0 0
      %1549 = vmatpush1.bf16.msra.mxu0 0
      %1550 = vmatprep.subr.bf16.mxu0 0
      %1551 = vmatpush1.bf16.msra.mxu0 0
      %1552 = vmatprep.subr.bf16.mxu0 0
      %1553 = vmatpush1.bf16.msra.mxu0 0
      %1554 = vmatprep.mubr.bf16.mxu0 %v1469
      %1555 = vmatmul.mubr.bf16.gmra.mrb[0].mxu0 %v1291
      %v1556 = vpop.f32.mrb[0].mxu0
      %v1557 = vadd.f32 0.0, %v1556
      %v1558 = vpop.f32.mrb[0].mxu0
      %v1559 = vpop.f32.mrb[0].mxu0
      %v1560 = vadd.f32 0.0, %v1559
      %v1561 = vpop.f32.mrb[0].mxu0
      %1562 = vmatprep.mubr.bf16.mxu0 %v1472
      %1563 = vmatmul.mubr.bf16.gmra.mrb[0].mxu0 %v1294
      %v1564 = vpop.f32.mrb[0].mxu0
      %v1565 = vadd.f32 0.0, %v1564
      %v1566 = vpop.f32.mrb[0].mxu0
      %v1567 = vpop.f32.mrb[0].mxu0
      %v1568 = vadd.f32 0.0, %v1567
      %v1569 = vpop.f32.mrb[0].mxu0
      %1570 = vmatprep.mubr.bf16.mxu0 %v1475
      %1571 = vmatmul.mubr.bf16.gmra.mrb[0].mxu0 %v1297
      %v1572 = vpop.f32.mrb[0].mxu0
      %v1573 = vadd.f32 0.0, %v1572
      %v1574 = vpop.f32.mrb[0].mxu0
      %v1575 = vpop.f32.mrb[0].mxu0
      %v1576 = vadd.f32 0.0, %v1575
      %v1577 = vpop.f32.mrb[0].mxu0
      %1578 = vmatprep.mubr.bf16.mxu0 %v1478
      %1579 = vmatmul.mubr.bf16.gmra.mrb[0].mxu0 %v1300
      %v1580 = vpop.f32.mrb[0].mxu0
      %v1581 = vadd.f32 0.0, %v1580
      %v1582 = vpop.f32.mrb[0].mxu0
      %v1583 = vpop.f32.mrb[0].mxu0
      %v1584 = vadd.f32 0.0, %v1583
      %v1585 = vpop.f32.mrb[0].mxu0
      %1586 = vmatprep.mubr.bf16.mxu0 %v1481
      %1587 = vmatmul.mubr.bf16.gmra.mrb[0].mxu0 %v1303
      %v1588 = vpop.f32.mrb[0].mxu0
      %v1589 = vadd.f32 0.0, %v1588
      %v1590 = vpop.f32.mrb[0].mxu0
      %v1591 = vpop.f32.mrb[0].mxu0
      %v1592 = vadd.f32 0.0, %v1591
      %v1593 = vpop.f32.mrb[0].mxu0
      %1594 = vmatprep.mubr.bf16.mxu0 %v1484
      %1595 = vmatmul.mubr.bf16.gmra.mrb[0].mxu0 %v1306
      %v1596 = vpop.f32.mrb[0].mxu0
      %v1597 = vadd.f32 0.0, %v1596
      %v1598 = vpop.f32.mrb[0].mxu0
      %v1599 = vpop.f32.mrb[0].mxu0
      %v1600 = vadd.f32 0.0, %v1599
      %v1601 = vpop.f32.mrb[0].mxu0
      %1602 = vmatprep.mubr.bf16.mxu0 %v1487
      %1603 = vmatmul.mubr.bf16.gmra.mrb[0].mxu0 %v1309
      %v1604 = vpop.f32.mrb[0].mxu0
      %v1605 = vadd.f32 0.0, %v1604
      %v1606 = vpop.f32.mrb[0].mxu0
      %v1607 = vpop.f32.mrb[0].mxu0
      %v1608 = vadd.f32 0.0, %v1607
      %v1609 = vpop.f32.mrb[0].mxu0
      %1610 = vmatprep.mubr.bf16.mxu0 %v1490
      %1611 = vmatmul.mubr.bf16.gmra.mrb[0].mxu0 %v1312
      %v1612 = vpop.f32.mrb[0].mxu0
      %v1613 = vadd.f32 0.0, %v1612
      %v1614 = vpop.f32.mrb[0].mxu0
      %v1615 = vpop.f32.mrb[0].mxu0
      %v1616 = vadd.f32 0.0, %v1615
      %v1617 = vpop.f32.mrb[0].mxu0
      %1618 = vmatprep.mubr.bf16.mxu0 %v1493
      %1619 = vmatmul.mubr.bf16.gmra.mrb[0].mxu0 %v1315
      %v1620 = vpop.f32.mrb[0].mxu0
      %v1621 = vadd.f32 0.0, %v1620
      %v1622 = vpop.f32.mrb[0].mxu0
      %v1623 = vpop.f32.mrb[0].mxu0
      %v1624 = vadd.f32 0.0, %v1623
      %v1625 = vpop.f32.mrb[0].mxu0
      %1626 = vmatprep.mubr.bf16.mxu0 %v1496
      %1627 = vmatmul.mubr.bf16.gmra.mrb[0].mxu0 %v1318
      %v1628 = vpop.f32.mrb[0].mxu0
      %v1629 = vadd.f32 0.0, %v1628
      %v1630 = vpop.f32.mrb[0].mxu0
      %v1631 = vpop.f32.mrb[0].mxu0
      %v1632 = vadd.f32 0.0, %v1631
      %v1633 = vpop.f32.mrb[0].mxu0
      %1634 = vmatprep.mubr.bf16.mxu0 %v1499
      %1635 = vmatmul.mubr.bf16.gmra.mrb[0].mxu0 %v1321
      %v1636 = vpop.f32.mrb[0].mxu0
      %v1637 = vadd.f32 0.0, %v1636
      %v1638 = vpop.f32.mrb[0].mxu0
      %v1639 = vpop.f32.mrb[0].mxu0
      %v1640 = vadd.f32 0.0, %v1639
      %v1641 = vpop.f32.mrb[0].mxu0
      %1642 = vmatprep.mubr.bf16.mxu0 %v1502
      %1643 = vmatmul.mubr.bf16.gmra.mrb[0].mxu0 %v1324
      %v1644 = vpop.f32.mrb[0].mxu0
      %v1645 = vadd.f32 0.0, %v1644
      %v1646 = vpop.f32.mrb[0].mxu0
      %v1647 = vpop.f32.mrb[0].mxu0
      %v1648 = vadd.f32 0.0, %v1647
      %v1649 = vpop.f32.mrb[0].mxu0
      %1650 = vmatprep.mubr.bf16.mxu0 %v1505
      %1651 = vmatmul.mubr.bf16.gmra.mrb[0].mxu0 %v1327
      %v1652 = vpop.f32.mrb[0].mxu0
      %v1653 = vadd.f32 0.0, %v1652
      %v1654 = vpop.f32.mrb[0].mxu0
      %v1655 = vpop.f32.mrb[0].mxu0
      %v1656 = vadd.f32 0.0, %v1655
      %v1657 = vpop.f32.mrb[0].mxu0
      %1658 = vmatprep.mubr.bf16.mxu0 %v1508
      %1659 = vmatmul.mubr.bf16.gmra.mrb[0].mxu0 %v1330
      %v1660 = vpop.f32.mrb[0].mxu0
      %v1661 = vadd.f32 0.0, %v1660
      %v1662 = vpop.f32.mrb[0].mxu0
      %v1663 = vpop.f32.mrb[0].mxu0
      %v1664 = vadd.f32 0.0, %v1663
      %v1665 = vpop.f32.mrb[0].mxu0
      %1666 = vmatprep.mubr.bf16.mxu0 %v1511
      %1667 = vmatmul.mubr.bf16.gmra.mrb[0].mxu0 %v1333
      %v1668 = vpop.f32.mrb[0].mxu0
      %v1669 = vadd.f32 0.0, %v1668
      %v1670 = vpop.f32.mrb[0].mxu0
      %v1671 = vpop.f32.mrb[0].mxu0
      %v1672 = vadd.f32 0.0, %v1671
      %v1673 = vpop.f32.mrb[0].mxu0
      %1674 = vmatprep.mubr.bf16.mxu0 %v1514
      %1675 = vmatmul.mubr.bf16.gmra.mrb[0].mxu0 %v1336
      %v1676 = vpop.f32.mrb[0].mxu0
      %v1677 = vadd.f32 0.0, %v1676
      %v1678 = vpop.f32.mrb[0].mxu0
      %v1679 = vpop.f32.mrb[0].mxu0
      %v1680 = vadd.f32 0.0, %v1679
      %v1681 = vpop.f32.mrb[0].mxu0
      %1682 = vmatprep.mubr.bf16.mxu0 %v1517
      %1683 = vmatmul.mubr.bf16.gmra.mrb[0].mxu0 %v1339
      %v1684 = vpop.f32.mrb[0].mxu0
      %v1685 = vadd.f32 0.0, %v1684
      %v1686 = vpop.f32.mrb[0].mxu0
      %v1687 = vpop.f32.mrb[0].mxu0
      %v1688 = vadd.f32 0.0, %v1687
      %v1689 = vpop.f32.mrb[0].mxu0
      %1690 = vmatprep.mubr.bf16.mxu0 %v1520
      %1691 = vmatmul.mubr.bf16.gmra.mrb[0].mxu0 %v1342
      %v1692 = vpop.f32.mrb[0].mxu0
      %v1693 = vadd.f32 0.0, %v1692
      %v1694 = vpop.f32.mrb[0].mxu0
      %v1695 = vpop.f32.mrb[0].mxu0
      %v1696 = vadd.f32 0.0, %v1695
      %v1697 = vpop.f32.mrb[0].mxu0
      %1698 = vdwg.mxu0
      %v1723 = vunpack.c.l.b16 %v1347
      %v1724 = vunpack.c.l.b16 %v1348
      %v1725 = vunpack.c.l.b16 %v1349
      %v1726 = vunpack.c.l.b16 %v1350
      %v1727 = vunpack.c.l.b16 %v1351
      %v1728 = vunpack.c.l.b16 %v1352
      %v1729 = vunpack.c.l.b16 %v1353
      %v1730 = vunpack.c.l.b16 %v1354
      %v1731 = vunpack.c.l.b16 %v1355
      %v1732 = vunpack.c.l.b16 %v1356
      %v1733 = vunpack.c.l.b16 %v1357
      %v1734 = vunpack.c.l.b16 %v1358
      %v1735 = vunpack.c.l.b16 %v1359
      %v1736 = vunpack.c.l.b16 %v1360
      %v1737 = vunpack.c.l.b16 %v1361
      %v1738 = vunpack.c.l.b16 %v1362
      %v1739 = vunpack.c.l.b16 %v1363
      %v1740 = vunpack.c.l.b16 %v1364
      %v1741 = vunpack.c.l.b16 %v1365
      %v1742 = vunpack.c.l.b16 %v1366
      %v1743 = vunpack.c.l.b16 %v1367
      %v1744 = vunpack.c.l.b16 %v1368
      %v1745 = vunpack.c.l.b16 %v1369
      %v1746 = vunpack.c.l.b16 %v1370
      %v1747 = vpack.c.b16 %v1724, %v1723
      %v1748 = vpack.c.b16 %v1726, %v1725
      %v1749 = vpack.c.b16 %v1728, %v1727
      %v1750 = vpack.c.b16 %v1730, %v1729
      %v1751 = vpack.c.b16 %v1732, %v1731
      %v1752 = vpack.c.b16 %v1734, %v1733
      %v1753 = vpack.c.b16 %v1736, %v1735
      %v1754 = vpack.c.b16 %v1738, %v1737
      %v1755 = vpack.c.b16 %v1740, %v1739
      %v1756 = vpack.c.b16 %v1742, %v1741
      %v1757 = vpack.c.b16 %v1744, %v1743
      %v1758 = vpack.c.b16 %v1746, %v1745
      %v1772 = vsel %vm1286, %v1228, 0
      %1774 = vmatprep.subr.bf16.mxu0 0
      %1775 = vmatpush1.bf16.msra.mxu0 %v1747
      %1776 = vmatprep.subr.bf16.mxu0 0
      %1777 = vmatpush1.bf16.msra.mxu0 %v1748
      %1778 = vmatprep.subr.bf16.mxu0 0
      %1779 = vmatpush1.bf16.msra.mxu0 %v1749
      %1780 = vmatprep.subr.bf16.mxu0 0
      %1781 = vmatpush1.bf16.msra.mxu0 %v1750
      %1782 = vmatprep.subr.bf16.mxu0 0
      %1783 = vmatpush1.bf16.msra.mxu0 %v1751
      %1784 = vmatprep.subr.bf16.mxu0 0
      %1785 = vmatpush1.bf16.msra.mxu0 %v1752
      %1786 = vmatprep.subr.bf16.mxu0 0
      %1787 = vmatpush1.bf16.msra.mxu0 %v1753
      %1788 = vmatprep.subr.bf16.mxu0 0
      %1789 = vmatpush1.bf16.msra.mxu0 %v1754
      %1790 = vmatprep.subr.bf16.mxu0 0
      %1791 = vmatpush1.bf16.msra.mxu0 %v1755
      %1792 = vmatprep.subr.bf16.mxu0 0
      %1793 = vmatpush1.bf16.msra.mxu0 %v1756
      %1794 = vmatprep.subr.bf16.mxu0 0
      %1795 = vmatpush1.bf16.msra.mxu0 %v1757
      %1796 = vmatprep.subr.bf16.mxu0 0
      %1797 = vmatpush1.bf16.msra.mxu0 %v1758
      %1798 = vmatprep.subr.bf16.mxu0 0
      %1799 = vmatpush1.bf16.msra.mxu0 0
      %1800 = vmatprep.subr.bf16.mxu0 0
      %1801 = vmatpush1.bf16.msra.mxu0 0
      %1802 = vmatprep.subr.bf16.mxu0 0
      %1803 = vmatpush1.bf16.msra.mxu0 0
      %1804 = vmatprep.subr.bf16.mxu0 0
      %1805 = vmatpush1.bf16.msra.mxu0 0
      %1806 = vmatprep.mubr.bf16.mxu0 %v1772
      %1807 = vmatmul.mubr.bf16.gmra.mrb[0].mxu0 %v1288
      %v1808 = vpop.f32.mrb[0].mxu0
      %v1809 = vadd.f32 %v1557, %v1808
      %v1810 = vpop.f32.mrb[0].mxu0
      %v1811 = vpop.f32.mrb[0].mxu0
      %v1812 = vadd.f32 %v1560, %v1811
      %v1813 = vpop.f32.mrb[0].mxu0
      %1814 = vmatprep.mubr.bf16.mxu0 %v1469
      %1815 = vmatmul.mubr.bf16.gmra.mrb[0].mxu0 %v1291
      %v1816 = vpop.f32.mrb[0].mxu0
      %v1817 = vadd.f32 %v1565, %v1816
      %v1818 = vpop.f32.mrb[0].mxu0
      %v1819 = vpop.f32.mrb[0].mxu0
      %v1820 = vadd.f32 %v1568, %v1819
      %v1821 = vpop.f32.mrb[0].mxu0
      %1822 = vmatprep.mubr.bf16.mxu0 %v1472
      %1823 = vmatmul.mubr.bf16.gmra.mrb[0].mxu0 %v1294
      %v1824 = vpop.f32.mrb[0].mxu0
      %v1825 = vadd.f32 %v1573, %v1824
      %v1826 = vpop.f32.mrb[0].mxu0
      %v1827 = vpop.f32.mrb[0].mxu0
      %v1828 = vadd.f32 %v1576, %v1827
      %v1829 = vpop.f32.mrb[0].mxu0
      %1830 = vmatprep.mubr.bf16.mxu0 %v1475
      %1831 = vmatmul.mubr.bf16.gmra.mrb[0].mxu0 %v1297
      %v1832 = vpop.f32.mrb[0].mxu0
      %v1833 = vadd.f32 %v1581, %v1832
      %v1834 = vpop.f32.mrb[0].mxu0
      %v1835 = vpop.f32.mrb[0].mxu0
      %v1836 = vadd.f32 %v1584, %v1835
      %v1837 = vpop.f32.mrb[0].mxu0
      %1838 = vmatprep.mubr.bf16.mxu0 %v1478
      %1839 = vmatmul.mubr.bf16.gmra.mrb[0].mxu0 %v1300
      %v1840 = vpop.f32.mrb[0].mxu0
      %v1841 = vadd.f32 %v1589, %v1840
      %v1842 = vpop.f32.mrb[0].mxu0
      %v1843 = vpop.f32.mrb[0].mxu0
      %v1844 = vadd.f32 %v1592, %v1843
      %v1845 = vpop.f32.mrb[0].mxu0
      %1846 = vmatprep.mubr.bf16.mxu0 %v1481
      %1847 = vmatmul.mubr.bf16.gmra.mrb[0].mxu0 %v1303
      %v1848 = vpop.f32.mrb[0].mxu0
      %v1849 = vadd.f32 %v1597, %v1848
      %v1850 = vpop.f32.mrb[0].mxu0
      %v1851 = vpop.f32.mrb[0].mxu0
      %v1852 = vadd.f32 %v1600, %v1851
      %v1853 = vpop.f32.mrb[0].mxu0
      %1854 = vmatprep.mubr.bf16.mxu0 %v1484
      %1855 = vmatmul.mubr.bf16.gmra.mrb[0].mxu0 %v1306
      %v1856 = vpop.f32.mrb[0].mxu0
      %v1857 = vadd.f32 %v1605, %v1856
      %v1858 = vpop.f32.mrb[0].mxu0
      %v1859 = vpop.f32.mrb[0].mxu0
      %v1860 = vadd.f32 %v1608, %v1859
      %v1861 = vpop.f32.mrb[0].mxu0
      %1862 = vmatprep.mubr.bf16.mxu0 %v1487
      %1863 = vmatmul.mubr.bf16.gmra.mrb[0].mxu0 %v1309
      %v1864 = vpop.f32.mrb[0].mxu0
      %v1865 = vadd.f32 %v1613, %v1864
      %v1866 = vpop.f32.mrb[0].mxu0
      %v1867 = vpop.f32.mrb[0].mxu0
      %v1868 = vadd.f32 %v1616, %v1867
      %v1869 = vpop.f32.mrb[0].mxu0
      %1870 = vmatprep.mubr.bf16.mxu0 %v1490
      %1871 = vmatmul.mubr.bf16.gmra.mrb[0].mxu0 %v1312
      %v1872 = vpop.f32.mrb[0].mxu0
      %v1873 = vadd.f32 %v1621, %v1872
      %v1874 = vpop.f32.mrb[0].mxu0
      %v1875 = vpop.f32.mrb[0].mxu0
      %v1876 = vadd.f32 %v1624, %v1875
      %v1877 = vpop.f32.mrb[0].mxu0
      %1878 = vmatprep.mubr.bf16.mxu0 %v1493
      %1879 = vmatmul.mubr.bf16.gmra.mrb[0].mxu0 %v1315
      %v1880 = vpop.f32.mrb[0].mxu0
      %v1881 = vadd.f32 %v1629, %v1880
      %v1882 = vpop.f32.mrb[0].mxu0
      %v1883 = vpop.f32.mrb[0].mxu0
      %v1884 = vadd.f32 %v1632, %v1883
      %v1885 = vpop.f32.mrb[0].mxu0
      %1886 = vmatprep.mubr.bf16.mxu0 %v1496
      %1887 = vmatmul.mubr.bf16.gmra.mrb[0].mxu0 %v1318
      %v1888 = vpop.f32.mrb[0].mxu0
      %v1889 = vadd.f32 %v1637, %v1888
      %v1890 = vpop.f32.mrb[0].mxu0
      %v1891 = vpop.f32.mrb[0].mxu0
      %v1892 = vadd.f32 %v1640, %v1891
      %v1893 = vpop.f32.mrb[0].mxu0
      %1894 = vmatprep.mubr.bf16.mxu0 %v1499
      %1895 = vmatmul.mubr.bf16.gmra.mrb[0].mxu0 %v1321
      %v1896 = vpop.f32.mrb[0].mxu0
      %v1897 = vadd.f32 %v1645, %v1896
      %v1898 = vpop.f32.mrb[0].mxu0
      %v1899 = vpop.f32.mrb[0].mxu0
      %v1900 = vadd.f32 %v1648, %v1899
      %v1901 = vpop.f32.mrb[0].mxu0
      %1902 = vmatprep.mubr.bf16.mxu0 %v1502
      %1903 = vmatmul.mubr.bf16.gmra.mrb[0].mxu0 %v1324
      %v1904 = vpop.f32.mrb[0].mxu0
      %v1905 = vadd.f32 %v1653, %v1904
      %v1906 = vpop.f32.mrb[0].mxu0
      %v1907 = vpop.f32.mrb[0].mxu0
      %v1908 = vadd.f32 %v1656, %v1907
      %v1909 = vpop.f32.mrb[0].mxu0
      %1910 = vmatprep.mubr.bf16.mxu0 %v1505
      %1911 = vmatmul.mubr.bf16.gmra.mrb[0].mxu0 %v1327
      %v1912 = vpop.f32.mrb[0].mxu0
      %v1913 = vadd.f32 %v1661, %v1912
      %v1914 = vpop.f32.mrb[0].mxu0
      %v1915 = vpop.f32.mrb[0].mxu0
      %v1916 = vadd.f32 %v1664, %v1915
      %v1917 = vpop.f32.mrb[0].mxu0
      %1918 = vmatprep.mubr.bf16.mxu0 %v1508
      %1919 = vmatmul.mubr.bf16.gmra.mrb[0].mxu0 %v1330
      %v1920 = vpop.f32.mrb[0].mxu0
      %v1921 = vadd.f32 %v1669, %v1920
      %v1922 = vpop.f32.mrb[0].mxu0
      %v1923 = vpop.f32.mrb[0].mxu0
      %v1924 = vadd.f32 %v1672, %v1923
      %v1925 = vpop.f32.mrb[0].mxu0
      %1926 = vmatprep.mubr.bf16.mxu0 %v1511
      %1927 = vmatmul.mubr.bf16.gmra.mrb[0].mxu0 %v1333
      %v1928 = vpop.f32.mrb[0].mxu0
      %v1929 = vadd.f32 %v1677, %v1928
      %v1930 = vpop.f32.mrb[0].mxu0
      %v1931 = vpop.f32.mrb[0].mxu0
      %v1932 = vadd.f32 %v1680, %v1931
      %v1933 = vpop.f32.mrb[0].mxu0
      %1934 = vmatprep.mubr.bf16.mxu0 %v1514
      %1935 = vmatmul.mubr.bf16.gmra.mrb[0].mxu0 %v1336
      %v1936 = vpop.f32.mrb[0].mxu0
      %v1937 = vadd.f32 %v1685, %v1936
      %v1938 = vpop.f32.mrb[0].mxu0
      %v1939 = vpop.f32.mrb[0].mxu0
      %v1940 = vadd.f32 %v1688, %v1939
      %v1941 = vpop.f32.mrb[0].mxu0
      %1942 = vmatprep.mubr.bf16.mxu0 %v1517
      %1943 = vmatmul.mubr.bf16.gmra.mrb[0].mxu0 %v1339
      %v1944 = vpop.f32.mrb[0].mxu0
      %v1945 = vadd.f32 %v1693, %v1944
      %v1946 = vpop.f32.mrb[0].mxu0
      %v1947 = vpop.f32.mrb[0].mxu0
      %v1948 = vadd.f32 %v1696, %v1947
      %v1949 = vpop.f32.mrb[0].mxu0
      %1950 = vdwg.mxu0
      %s1951 = scalar_lea.vmem %s3, 192
      %v1952 = vld [vmem:[%s1951] sm:$0xf]
      %v1953 = vld [vmem:[%s1951 + $0x4] sm:$0xf]
      %v1954 = vld [vmem:[%s1951 + $0x8] sm:$0xf]
      %v1955 = vld [vmem:[%s1951 + $0xc] sm:$0xf]
      %v1956 = vld [vmem:[%s1951 + $0x10] sm:$0xf]
      %v1957 = vld [vmem:[%s1951 + $0x14] sm:$0xf]
      %v1958 = vld [vmem:[%s1951 + $0x18] sm:$0xf]
      %v1959 = vld [vmem:[%s1951 + $0x1c] sm:$0xf]
      %v1960 = vld [vmem:[%s1951 + $0x20] sm:$0xf]
      %v1961 = vld [vmem:[%s1951 + $0x24] sm:$0xf]
      %v1962 = vld [vmem:[%s1951 + $0x28] sm:$0xf]
      %v1963 = vld [vmem:[%s1951 + $0x2c] sm:$0xf]
      %v1964 = vld [vmem:[%s1951 + $0x30] sm:$0xf]
      %v1965 = vld [vmem:[%s1951 + $0x34] sm:$0xf]
      %v1966 = vld [vmem:[%s1951 + $0x38] sm:$0xf]
      %v1967 = vld [vmem:[%s1951 + $0x3c] sm:$0xf]
      %v1968 = vld [vmem:[%s1951 + $0x40] sm:$0xf]
      %v1969 = vld [vmem:[%s1951 + $0x44] sm:$0xf]
      %v1970 = vld [vmem:[%s1951 + $0x48] sm:$0xf]
      %v1971 = vld [vmem:[%s1951 + $0x4c] sm:$0xf]
      %v1972 = vld [vmem:[%s1951 + $0x50] sm:$0xf]
      %v1973 = vld [vmem:[%s1951 + $0x54] sm:$0xf]
      %v1974 = vld [vmem:[%s1951 + $0x58] sm:$0xf]
      %v1975 = vld [vmem:[%s1951 + $0x5c] sm:$0xf]
      %v2000 = vunpack.c.l.b16 %v1952
      %v2001 = vunpack.c.l.b16 %v1953
      %v2002 = vunpack.c.l.b16 %v1954
      %v2003 = vunpack.c.l.b16 %v1955
      %v2004 = vunpack.c.l.b16 %v1956
      %v2005 = vunpack.c.l.b16 %v1957
      %v2006 = vunpack.c.l.b16 %v1958
      %v2007 = vunpack.c.l.b16 %v1959
      %v2008 = vunpack.c.l.b16 %v1960
      %v2009 = vunpack.c.l.b16 %v1961
      %v2010 = vunpack.c.l.b16 %v1962
      %v2011 = vunpack.c.l.b16 %v1963
      %v2012 = vunpack.c.l.b16 %v1964
      %v2013 = vunpack.c.l.b16 %v1965
      %v2014 = vunpack.c.l.b16 %v1966
      %v2015 = vunpack.c.l.b16 %v1967
      %v2016 = vunpack.c.l.b16 %v1968
      %v2017 = vunpack.c.l.b16 %v1969
      %v2018 = vunpack.c.l.b16 %v1970
      %v2019 = vunpack.c.l.b16 %v1971
      %v2020 = vunpack.c.l.b16 %v1972
      %v2021 = vunpack.c.l.b16 %v1973
      %v2022 = vunpack.c.l.b16 %v1974
      %v2023 = vunpack.c.l.b16 %v1975
      %v2024 = vpack.c.b16 %v2001, %v2000
      %v2025 = vpack.c.b16 %v2003, %v2002
      %v2026 = vpack.c.b16 %v2005, %v2004
      %v2027 = vpack.c.b16 %v2007, %v2006
      %v2028 = vpack.c.b16 %v2009, %v2008
      %v2029 = vpack.c.b16 %v2011, %v2010
      %v2030 = vpack.c.b16 %v2013, %v2012
      %v2031 = vpack.c.b16 %v2015, %v2014
      %v2032 = vpack.c.b16 %v2017, %v2016
      %v2033 = vpack.c.b16 %v2019, %v2018
      %v2034 = vpack.c.b16 %v2021, %v2020
      %v2035 = vpack.c.b16 %v2023, %v2022
      %v2049 = vsel %vm1286, %v1285, 0
      %2051 = vmatprep.subr.bf16.mxu0 0
      %2052 = vmatpush1.bf16.msra.mxu0 %v2024
      %2053 = vmatprep.subr.bf16.mxu0 0
      %2054 = vmatpush1.bf16.msra.mxu0 %v2025
      %2055 = vmatprep.subr.bf16.mxu0 0
      %2056 = vmatpush1.bf16.msra.mxu0 %v2026
      %2057 = vmatprep.subr.bf16.mxu0 0
      %2058 = vmatpush1.bf16.msra.mxu0 %v2027
      %2059 = vmatprep.subr.bf16.mxu0 0
      %2060 = vmatpush1.bf16.msra.mxu0 %v2028
      %2061 = vmatprep.subr.bf16.mxu0 0
      %2062 = vmatpush1.bf16.msra.mxu0 %v2029
      %2063 = vmatprep.subr.bf16.mxu0 0
      %2064 = vmatpush1.bf16.msra.mxu0 %v2030
      %2065 = vmatprep.subr.bf16.mxu0 0
      %2066 = vmatpush1.bf16.msra.mxu0 %v2031
      %2067 = vmatprep.subr.bf16.mxu0 0
      %2068 = vmatpush1.bf16.msra.mxu0 %v2032
      %2069 = vmatprep.subr.bf16.mxu0 0
      %2070 = vmatpush1.bf16.msra.mxu0 %v2033
      %2071 = vmatprep.subr.bf16.mxu0 0
      %2072 = vmatpush1.bf16.msra.mxu0 %v2034
      %2073 = vmatprep.subr.bf16.mxu0 0
      %2074 = vmatpush1.bf16.msra.mxu0 %v2035
      %2075 = vmatprep.subr.bf16.mxu0 0
      %2076 = vmatpush1.bf16.msra.mxu0 0
      %2077 = vmatprep.subr.bf16.mxu0 0
      %2078 = vmatpush1.bf16.msra.mxu0 0
      %2079 = vmatprep.subr.bf16.mxu0 0
      %2080 = vmatpush1.bf16.msra.mxu0 0
      %2081 = vmatprep.subr.bf16.mxu0 0
      %2082 = vmatpush1.bf16.msra.mxu0 0
      %2083 = vmatprep.mubr.bf16.mxu0 %v1472
      %2084 = vmatmul.mubr.bf16.gmra.mrb[0].mxu0 %v1294
      %v2085 = vpop.f32.mrb[0].mxu0
      %v2086 = vadd.f32 0.0, %v2085
      %v2087 = vpop.f32.mrb[0].mxu0
      %v2088 = vpop.f32.mrb[0].mxu0
      %v2089 = vadd.f32 0.0, %v2088
      %v2090 = vpop.f32.mrb[0].mxu0
      %2091 = vmatprep.mubr.bf16.mxu0 %v1475
      %2092 = vmatmul.mubr.bf16.gmra.mrb[0].mxu0 %v1297
      %v2093 = vpop.f32.mrb[0].mxu0
      %v2094 = vadd.f32 0.0, %v2093
      %v2095 = vpop.f32.mrb[0].mxu0
      %v2096 = vpop.f32.mrb[0].mxu0
      %v2097 = vadd.f32 0.0, %v2096
      %v2098 = vpop.f32.mrb[0].mxu0
      %2099 = vmatprep.mubr.bf16.mxu0 %v1478
      %2100 = vmatmul.mubr.bf16.gmra.mrb[0].mxu0 %v1300
      %v2101 = vpop.f32.mrb[0].mxu0
      %v2102 = vadd.f32 0.0, %v2101
      %v2103 = vpop.f32.mrb[0].mxu0
      %v2104 = vpop.f32.mrb[0].mxu0
      %v2105 = vadd.f32 0.0, %v2104
      %v2106 = vpop.f32.mrb[0].mxu0
      %2107 = vmatprep.mubr.bf16.mxu0 %v1481
      %2108 = vmatmul.mubr.bf16.gmra.mrb[0].mxu0 %v1303
      %v2109 = vpop.f32.mrb[0].mxu0
      %v2110 = vadd.f32 0.0, %v2109
      %v2111 = vpop.f32.mrb[0].mxu0
      %v2112 = vpop.f32.mrb[0].mxu0
      %v2113 = vadd.f32 0.0, %v2112
      %v2114 = vpop.f32.mrb[0].mxu0
      %2115 = vmatprep.mubr.bf16.mxu0 %v1484
      %2116 = vmatmul.mubr.bf16.gmra.mrb[0].mxu0 %v1306
      %v2117 = vpop.f32.mrb[0].mxu0
      %v2118 = vadd.f32 0.0, %v2117
      %v2119 = vpop.f32.mrb[0].mxu0
      %v2120 = vpop.f32.mrb[0].mxu0
      %v2121 = vadd.f32 0.0, %v2120
      %v2122 = vpop.f32.mrb[0].mxu0
      %2123 = vmatprep.mubr.bf16.mxu0 %v1487
      %2124 = vmatmul.mubr.bf16.gmra.mrb[0].mxu0 %v1309
      %v2125 = vpop.f32.mrb[0].mxu0
      %v2126 = vadd.f32 0.0, %v2125
      %v2127 = vpop.f32.mrb[0].mxu0
      %v2128 = vpop.f32.mrb[0].mxu0
      %v2129 = vadd.f32 0.0, %v2128
      %v2130 = vpop.f32.mrb[0].mxu0
      %2131 = vmatprep.mubr.bf16.mxu0 %v1490
      %2132 = vmatmul.mubr.bf16.gmra.mrb[0].mxu0 %v1312
      %v2133 = vpop.f32.mrb[0].mxu0
      %v2134 = vadd.f32 0.0, %v2133
      %v2135 = vpop.f32.mrb[0].mxu0
      %v2136 = vpop.f32.mrb[0].mxu0
      %v2137 = vadd.f32 0.0, %v2136
      %v2138 = vpop.f32.mrb[0].mxu0
      %2139 = vmatprep.mubr.bf16.mxu0 %v1493
      %2140 = vmatmul.mubr.bf16.gmra.mrb[0].mxu0 %v1315
      %v2141 = vpop.f32.mrb[0].mxu0
      %v2142 = vadd.f32 0.0, %v2141
      %v2143 = vpop.f32.mrb[0].mxu0
      %v2144 = vpop.f32.mrb[0].mxu0
      %v2145 = vadd.f32 0.0, %v2144
      %v2146 = vpop.f32.mrb[0].mxu0
      %2147 = vmatprep.mubr.bf16.mxu0 %v1496
      %2148 = vmatmul.mubr.bf16.gmra.mrb[0].mxu0 %v1318
      %v2149 = vpop.f32.mrb[0].mxu0
      %v2150 = vadd.f32 0.0, %v2149
      %v2151 = vpop.f32.mrb[0].mxu0
      %v2152 = vpop.f32.mrb[0].mxu0
      %v2153 = vadd.f32 0.0, %v2152
      %v2154 = vpop.f32.mrb[0].mxu0
      %2155 = vmatprep.mubr.bf16.mxu0 %v1499
      %2156 = vmatmul.mubr.bf16.gmra.mrb[0].mxu0 %v1321
      %v2157 = vpop.f32.mrb[0].mxu0
      %v2158 = vadd.f32 0.0, %v2157
      %v2159 = vpop.f32.mrb[0].mxu0
      %v2160 = vpop.f32.mrb[0].mxu0
      %v2161 = vadd.f32 0.0, %v2160
      %v2162 = vpop.f32.mrb[0].mxu0
      %2163 = vmatprep.mubr.bf16.mxu0 %v1502
      %2164 = vmatmul.mubr.bf16.gmra.mrb[0].mxu0 %v1324
      %v2165 = vpop.f32.mrb[0].mxu0
      %v2166 = vadd.f32 0.0, %v2165
      %v2167 = vpop.f32.mrb[0].mxu0
      %v2168 = vpop.f32.mrb[0].mxu0
      %v2169 = vadd.f32 0.0, %v2168
      %v2170 = vpop.f32.mrb[0].mxu0
      %2171 = vmatprep.mubr.bf16.mxu0 %v1505
      %2172 = vmatmul.mubr.bf16.gmra.mrb[0].mxu0 %v1327
      %v2173 = vpop.f32.mrb[0].mxu0
      %v2174 = vadd.f32 0.0, %v2173
      %v2175 = vpop.f32.mrb[0].mxu0
      %v2176 = vpop.f32.mrb[0].mxu0
      %v2177 = vadd.f32 0.0, %v2176
      %v2178 = vpop.f32.mrb[0].mxu0
      %2179 = vmatprep.mubr.bf16.mxu0 %v1508
      %2180 = vmatmul.mubr.bf16.gmra.mrb[0].mxu0 %v1330
      %v2181 = vpop.f32.mrb[0].mxu0
      %v2182 = vadd.f32 0.0, %v2181
      %v2183 = vpop.f32.mrb[0].mxu0
      %v2184 = vpop.f32.mrb[0].mxu0
      %v2185 = vadd.f32 0.0, %v2184
      %v2186 = vpop.f32.mrb[0].mxu0
      %2187 = vmatprep.mubr.bf16.mxu0 %v1511
      %2188 = vmatmul.mubr.bf16.gmra.mrb[0].mxu0 %v1333
      %v2189 = vpop.f32.mrb[0].mxu0
      %v2190 = vadd.f32 0.0, %v2189
      %v2191 = vpop.f32.mrb[0].mxu0
      %v2192 = vpop.f32.mrb[0].mxu0
      %v2193 = vadd.f32 0.0, %v2192
      %v2194 = vpop.f32.mrb[0].mxu0
      %2195 = vmatprep.mubr.bf16.mxu0 %v1514
      %2196 = vmatmul.mubr.bf16.gmra.mrb[0].mxu0 %v1336
      %v2197 = vpop.f32.mrb[0].mxu0
      %v2198 = vadd.f32 0.0, %v2197
      %v2199 = vpop.f32.mrb[0].mxu0
      %v2200 = vpop.f32.mrb[0].mxu0
      %v2201 = vadd.f32 0.0, %v2200
      %v2202 = vpop.f32.mrb[0].mxu0
      %2203 = vmatprep.mubr.bf16.mxu0 %v1517
      %2204 = vmatmul.mubr.bf16.gmra.mrb[0].mxu0 %v1339
      %v2205 = vpop.f32.mrb[0].mxu0
      %v2206 = vadd.f32 0.0, %v2205
      %v2207 = vpop.f32.mrb[0].mxu0
      %v2208 = vpop.f32.mrb[0].mxu0
      %v2209 = vadd.f32 0.0, %v2208
      %v2210 = vpop.f32.mrb[0].mxu0
      %2211 = vmatprep.mubr.bf16.mxu0 %v1520
      %2212 = vmatmul.mubr.bf16.gmra.mrb[0].mxu0 %v1342
      %v2213 = vpop.f32.mrb[0].mxu0
      %v2214 = vadd.f32 0.0, %v2213
      %v2215 = vpop.f32.mrb[0].mxu0
      %v2216 = vpop.f32.mrb[0].mxu0
      %v2217 = vadd.f32 0.0, %v2216
      %v2218 = vpop.f32.mrb[0].mxu0
      %2219 = vmatprep.mubr.bf16.mxu0 %v2049
      %2220 = vmatmul.mubr.bf16.gmra.mrb[0].mxu0 %v1345
      %v2221 = vpop.f32.mrb[0].mxu0
      %v2222 = vadd.f32 0.0, %v2221
      %v2223 = vpop.f32.mrb[0].mxu0
      %v2224 = vpop.f32.mrb[0].mxu0
      %v2225 = vadd.f32 0.0, %v2224
      %v2226 = vpop.f32.mrb[0].mxu0
      %2227 = vdwg.mxu0
      %v2228 = vadd.f32 %v1809, %v2086
      %v2229 = vadd.f32 %v1812, %v2089
      %v2230 = vadd.f32 %v1817, %v2094
      %v2231 = vadd.f32 %v1820, %v2097
      %v2232 = vadd.f32 %v1825, %v2102
      %v2233 = vadd.f32 %v1828, %v2105
      %v2234 = vadd.f32 %v1833, %v2110
      %v2235 = vadd.f32 %v1836, %v2113
      %v2236 = vadd.f32 %v1841, %v2118
      %v2237 = vadd.f32 %v1844, %v2121
      %v2238 = vadd.f32 %v1849, %v2126
      %v2239 = vadd.f32 %v1852, %v2129
      %v2240 = vadd.f32 %v1857, %v2134
      %v2241 = vadd.f32 %v1860, %v2137
      %v2242 = vadd.f32 %v1865, %v2142
      %v2243 = vadd.f32 %v1868, %v2145
      %v2244 = vadd.f32 %v1873, %v2150
      %v2245 = vadd.f32 %v1876, %v2153
      %v2246 = vadd.f32 %v1881, %v2158
      %v2247 = vadd.f32 %v1884, %v2161
      %v2248 = vadd.f32 %v1889, %v2166
      %v2249 = vadd.f32 %v1892, %v2169
      %v2250 = vadd.f32 %v1897, %v2174
      %v2251 = vadd.f32 %v1900, %v2177
      %v2252 = vadd.f32 %v1905, %v2182
      %v2253 = vadd.f32 %v1908, %v2185
      %v2254 = vadd.f32 %v1913, %v2190
      %v2255 = vadd.f32 %v1916, %v2193
      %v2256 = vadd.f32 %v1921, %v2198
      %v2257 = vadd.f32 %v1924, %v2201
      %v2258 = vadd.f32 %v1929, %v2206
      %v2259 = vadd.f32 %v1932, %v2209
      %v2260 = vadd.f32 %v1937, %v2214
      %v2261 = vadd.f32 %v1940, %v2217
      %v2262 = vadd.f32 %v1945, %v2222
      %v2263 = vadd.f32 %v1948, %v2225
      %v2264 = vld [vmem:[%s4] sm:$0x1]
      %v2266 = vlaneseq
      %v2267 = vshrl.u32 %v2266, 7
      %v2268 = vsub.s32 0, %v2267
      %v2269 = vrot.slane %v2264, %v2268
      %v2271 = vadd.f32 %v2228, %v2269
      %v2272 = vadd.f32 %v2229, %v2269
      %v2273 = vadd.f32 %v2230, %v2269
      %v2274 = vadd.f32 %v2231, %v2269
      %v2275 = vadd.f32 %v2232, %v2269
      %v2276 = vadd.f32 %v2233, %v2269
      %v2277 = vadd.f32 %v2234, %v2269
      %v2278 = vadd.f32 %v2235, %v2269
      %v2279 = vadd.f32 %v2236, %v2269
      %v2280 = vadd.f32 %v2237, %v2269
      %v2281 = vadd.f32 %v2238, %v2269
      %v2282 = vadd.f32 %v2239, %v2269
      %v2283 = vadd.f32 %v2240, %v2269
      %v2284 = vadd.f32 %v2241, %v2269
      %v2285 = vadd.f32 %v2242, %v2269
      %v2286 = vadd.f32 %v2243, %v2269
      %v2287 = vadd.f32 %v2244, %v2269
      %v2288 = vadd.f32 %v2245, %v2269
      %v2289 = vadd.f32 %v2246, %v2269
      %v2290 = vadd.f32 %v2247, %v2269
      %v2291 = vadd.f32 %v2248, %v2269
      %v2292 = vadd.f32 %v2249, %v2269
      %v2293 = vadd.f32 %v2250, %v2269
      %v2294 = vadd.f32 %v2251, %v2269
      %v2295 = vadd.f32 %v2252, %v2269
      %v2296 = vadd.f32 %v2253, %v2269
      %v2297 = vadd.f32 %v2254, %v2269
      %v2298 = vadd.f32 %v2255, %v2269
      %v2299 = vadd.f32 %v2256, %v2269
      %v2300 = vadd.f32 %v2257, %v2269
      %v2301 = vadd.f32 %v2258, %v2269
      %v2302 = vadd.f32 %v2259, %v2269
      %v2303 = vadd.f32 %v2260, %v2269
      %v2304 = vadd.f32 %v2261, %v2269
      %v2305 = vadd.f32 %v2262, %v2269
      %v2306 = vadd.f32 %v2263, %v2269
      %v2307 = vmax.f32 %v2271, 0.0
      %v2308 = vmax.f32 %v2272, 0.0
      %v2309 = vmax.f32 %v2273, 0.0
      %v2310 = vmax.f32 %v2274, 0.0
      %v2311 = vmax.f32 %v2275, 0.0
      %v2312 = vmax.f32 %v2276, 0.0
      %v2313 = vmax.f32 %v2277, 0.0
      %v2314 = vmax.f32 %v2278, 0.0
      %v2315 = vmax.f32 %v2279, 0.0
      %v2316 = vmax.f32 %v2280, 0.0
      %v2317 = vmax.f32 %v2281, 0.0
      %v2318 = vmax.f32 %v2282, 0.0
      %v2319 = vmax.f32 %v2283, 0.0
      %v2320 = vmax.f32 %v2284, 0.0
      %v2321 = vmax.f32 %v2285, 0.0
      %v2322 = vmax.f32 %v2286, 0.0
      %v2323 = vmax.f32 %v2287, 0.0
      %v2324 = vmax.f32 %v2288, 0.0
      %v2325 = vmax.f32 %v2289, 0.0
      %v2326 = vmax.f32 %v2290, 0.0
      %v2327 = vmax.f32 %v2291, 0.0
      %v2328 = vmax.f32 %v2292, 0.0
      %v2329 = vmax.f32 %v2293, 0.0
      %v2330 = vmax.f32 %v2294, 0.0
      %v2331 = vmax.f32 %v2295, 0.0
      %v2332 = vmax.f32 %v2296, 0.0
      %v2333 = vmax.f32 %v2297, 0.0
      %v2334 = vmax.f32 %v2298, 0.0
      %v2335 = vmax.f32 %v2299, 0.0
      %v2336 = vmax.f32 %v2300, 0.0
      %v2337 = vmax.f32 %v2301, 0.0
      %v2338 = vmax.f32 %v2302, 0.0
      %v2339 = vmax.f32 %v2303, 0.0
      %v2340 = vmax.f32 %v2304, 0.0
      %v2341 = vmax.f32 %v2305, 0.0
      %v2342 = vmax.f32 %v2306, 0.0
      %s2343 = ssub.s32 %s524, 1
      %v2344 = vstv %s2343
      %v2345 = vadd.s32 %v2344, 1
      %v2346 = vadd.s32 %v2344, 2
      %v2347 = vadd.s32 %v2344, 3
      %v2348 = vadd.s32 %v2344, 4
      %v2349 = vadd.s32 %v2344, 5
      %v2350 = vadd.s32 %v2344, 6
      %v2351 = vadd.s32 %v2344, 7
      %v2352 = vadd.s32 %v2344, 8
      %v2353 = vadd.s32 %v2344, 9
      %v2354 = vadd.s32 %v2344, 10
      %v2355 = vadd.s32 %v2344, 11
      %v2356 = vadd.s32 %v2344, 12
      %v2357 = vadd.s32 %v2344, 13
      %v2358 = vadd.s32 %v2344, 14
      %v2359 = vadd.s32 %v2344, 15
      %v2360 = vadd.s32 %v2344, 16
      %v2361 = vadd.s32 %v2344, 17
      %vm2362 = vcmp.ge.s32.totalorder %v2344, 0
      %vm2363 = vcmp.ge.s32.totalorder %v2345, 0
      %vm2364 = vcmp.ge.s32.totalorder %v2346, 0
      %vm2365 = vcmp.ge.s32.totalorder %v2347, 0
      %vm2366 = vcmp.ge.s32.totalorder %v2348, 0
      %vm2367 = vcmp.ge.s32.totalorder %v2349, 0
      %vm2368 = vcmp.ge.s32.totalorder %v2350, 0
      %vm2369 = vcmp.ge.s32.totalorder %v2351, 0
      %vm2370 = vcmp.ge.s32.totalorder %v2352, 0
      %vm2371 = vcmp.ge.s32.totalorder %v2353, 0
      %vm2372 = vcmp.ge.s32.totalorder %v2354, 0
      %vm2373 = vcmp.ge.s32.totalorder %v2355, 0
      %vm2374 = vcmp.ge.s32.totalorder %v2356, 0
      %vm2375 = vcmp.ge.s32.totalorder %v2357, 0
      %vm2376 = vcmp.ge.s32.totalorder %v2358, 0
      %vm2377 = vcmp.ge.s32.totalorder %v2359, 0
      %vm2378 = vcmp.ge.s32.totalorder %v2360, 0
      %vm2379 = vcmp.ge.s32.totalorder %v2361, 0
      %vm2380 = vcmp.lt.s32.totalorder %v2344, 16
      %vm2381 = vcmp.lt.s32.totalorder %v2345, 16
      %vm2382 = vcmp.lt.s32.totalorder %v2346, 16
      %vm2383 = vcmp.lt.s32.totalorder %v2347, 16
      %vm2384 = vcmp.lt.s32.totalorder %v2348, 16
      %vm2385 = vcmp.lt.s32.totalorder %v2349, 16
      %vm2386 = vcmp.lt.s32.totalorder %v2350, 16
      %vm2387 = vcmp.lt.s32.totalorder %v2351, 16
      %vm2388 = vcmp.lt.s32.totalorder %v2352, 16
      %vm2389 = vcmp.lt.s32.totalorder %v2353, 16
      %vm2390 = vcmp.lt.s32.totalorder %v2354, 16
      %vm2391 = vcmp.lt.s32.totalorder %v2355, 16
      %vm2392 = vcmp.lt.s32.totalorder %v2356, 16
      %vm2393 = vcmp.lt.s32.totalorder %v2357, 16
      %vm2394 = vcmp.lt.s32.totalorder %v2358, 16
      %vm2395 = vcmp.lt.s32.totalorder %v2359, 16
      %vm2396 = vcmp.lt.s32.totalorder %v2360, 16
      %vm2397 = vcmp.lt.s32.totalorder %v2361, 16
      %vm2398 = vmand %vm2362, %vm2380
      %vm2399 = vmand %vm2363, %vm2381
      %vm2400 = vmand %vm2364, %vm2382
      %vm2401 = vmand %vm2365, %vm2383
      %vm2402 = vmand %vm2366, %vm2384
      %vm2403 = vmand %vm2367, %vm2385
      %vm2404 = vmand %vm2368, %vm2386
      %vm2405 = vmand %vm2369, %vm2387
      %vm2406 = vmand %vm2370, %vm2388
      %vm2407 = vmand %vm2371, %vm2389
      %vm2408 = vmand %vm2372, %vm2390
      %vm2409 = vmand %vm2373, %vm2391
      %vm2410 = vmand %vm2374, %vm2392
      %vm2411 = vmand %vm2375, %vm2393
      %vm2412 = vmand %vm2376, %vm2394
      %vm2413 = vmand %vm2377, %vm2395
      %vm2414 = vmand %vm2378, %vm2396
      %vm2415 = vmand %vm2379, %vm2397
      %v2416 = vsel %vm2398, 1, 0
      %v2417 = vsel %vm2399, 1, 0
      %v2418 = vsel %vm2400, 1, 0
      %v2419 = vsel %vm2401, 1, 0
      %v2420 = vsel %vm2402, 1, 0
      %v2421 = vsel %vm2403, 1, 0
      %v2422 = vsel %vm2404, 1, 0
      %v2423 = vsel %vm2405, 1, 0
      %v2424 = vsel %vm2406, 1, 0
      %v2425 = vsel %vm2407, 1, 0
      %v2426 = vsel %vm2408, 1, 0
      %v2427 = vsel %vm2409, 1, 0
      %v2428 = vsel %vm2410, 1, 0
      %v2429 = vsel %vm2411, 1, 0
      %v2430 = vsel %vm2412, 1, 0
      %v2431 = vsel %vm2413, 1, 0
      %v2432 = vsel %vm2414, 1, 0
      %v2433 = vsel %vm2415, 1, 0
      %vm2434 = vcmp.eq.s32.totalorder %v2416, 1
      %vm2435 = vcmp.eq.s32.totalorder %v2417, 1
      %vm2436 = vcmp.eq.s32.totalorder %v2418, 1
      %vm2437 = vcmp.eq.s32.totalorder %v2419, 1
      %vm2438 = vcmp.eq.s32.totalorder %v2420, 1
      %vm2439 = vcmp.eq.s32.totalorder %v2421, 1
      %vm2440 = vcmp.eq.s32.totalorder %v2422, 1
      %vm2441 = vcmp.eq.s32.totalorder %v2423, 1
      %vm2442 = vcmp.eq.s32.totalorder %v2424, 1
      %vm2443 = vcmp.eq.s32.totalorder %v2425, 1
      %vm2444 = vcmp.eq.s32.totalorder %v2426, 1
      %vm2445 = vcmp.eq.s32.totalorder %v2427, 1
      %vm2446 = vcmp.eq.s32.totalorder %v2428, 1
      %vm2447 = vcmp.eq.s32.totalorder %v2429, 1
      %vm2448 = vcmp.eq.s32.totalorder %v2430, 1
      %vm2449 = vcmp.eq.s32.totalorder %v2431, 1
      %vm2450 = vcmp.eq.s32.totalorder %v2432, 1
      %vm2451 = vcmp.eq.s32.totalorder %v2433, 1
      %v2452 = vsel %vm2434, %v2307, 0.0
      %v2453 = vsel %vm2434, %v2308, 0.0
      %v2454 = vsel %vm2435, %v2309, 0.0
      %v2455 = vsel %vm2435, %v2310, 0.0
      %v2456 = vsel %vm2436, %v2311, 0.0
      %v2457 = vsel %vm2436, %v2312, 0.0
      %v2458 = vsel %vm2437, %v2313, 0.0
      %v2459 = vsel %vm2437, %v2314, 0.0
      %v2460 = vsel %vm2438, %v2315, 0.0
      %v2461 = vsel %vm2438, %v2316, 0.0
      %v2462 = vsel %vm2439, %v2317, 0.0
      %v2463 = vsel %vm2439, %v2318, 0.0
      %v2464 = vsel %vm2440, %v2319, 0.0
      %v2465 = vsel %vm2440, %v2320, 0.0
      %v2466 = vsel %vm2441, %v2321, 0.0
      %v2467 = vsel %vm2441, %v2322, 0.0
      %v2468 = vsel %vm2442, %v2323, 0.0
      %v2469 = vsel %vm2442, %v2324, 0.0
      %v2470 = vsel %vm2443, %v2325, 0.0
      %v2471 = vsel %vm2443, %v2326, 0.0
      %v2472 = vsel %vm2444, %v2327, 0.0
      %v2473 = vsel %vm2444, %v2328, 0.0
      %v2474 = vsel %vm2445, %v2329, 0.0
      %v2475 = vsel %vm2445, %v2330, 0.0
      %v2476 = vsel %vm2446, %v2331, 0.0
      %v2477 = vsel %vm2446, %v2332, 0.0
      %v2478 = vsel %vm2447, %v2333, 0.0
      %v2479 = vsel %vm2447, %v2334, 0.0
      %v2480 = vsel %vm2448, %v2335, 0.0
      %v2481 = vsel %vm2448, %v2336, 0.0
      %v2482 = vsel %vm2449, %v2337, 0.0
      %v2483 = vsel %vm2449, %v2338, 0.0
      %v2484 = vsel %vm2450, %v2339, 0.0
      %v2485 = vsel %vm2450, %v2340, 0.0
      %v2486 = vsel %vm2451, %v2341, 0.0
      %v2487 = vsel %vm2451, %v2342, 0.0
      %v2488 = vpack.c.bf16 %v2453, %v2452
      %v2489 = vpack.c.bf16 %v2455, %v2454
      %v2490 = vpack.c.bf16 %v2457, %v2456
      %v2491 = vpack.c.bf16 %v2459, %v2458
      %v2492 = vpack.c.bf16 %v2461, %v2460
      %v2493 = vpack.c.bf16 %v2463, %v2462
      %v2494 = vpack.c.bf16 %v2465, %v2464
      %v2495 = vpack.c.bf16 %v2467, %v2466
      %v2496 = vpack.c.bf16 %v2469, %v2468
      %v2497 = vpack.c.bf16 %v2471, %v2470
      %v2498 = vpack.c.bf16 %v2473, %v2472
      %v2499 = vpack.c.bf16 %v2475, %v2474
      %v2500 = vpack.c.bf16 %v2477, %v2476
      %v2501 = vpack.c.bf16 %v2479, %v2478
      %v2502 = vpack.c.bf16 %v2481, %v2480
      %v2503 = vpack.c.bf16 %v2483, %v2482
      %v2504 = vpack.c.bf16 %v2485, %v2484
      %v2505 = vpack.c.bf16 %v2487, %v2486
      %v2507 = vshrl.u32 %v2488, 16
      %v2509 = vrot.slane %v2507, 7
      %v2510 = vshll.u32 %v2488, 16
      %v2512 = vor.u32 %v2509, %v2510
      %v2514 = vshrl.u32 %v2489, 16
      %v2516 = vrot.slane %v2514, 7
      %v2517 = vshll.u32 %v2489, 16
      %v2519 = vor.u32 %v2516, %v2517
      %v2521 = vshrl.u32 %v2490, 16
      %v2523 = vrot.slane %v2521, 7
      %v2524 = vshll.u32 %v2490, 16
      %v2526 = vor.u32 %v2523, %v2524
      %v2528 = vshrl.u32 %v2491, 16
      %v2530 = vrot.slane %v2528, 7
      %v2531 = vshll.u32 %v2491, 16
      %v2533 = vor.u32 %v2530, %v2531
      %v2535 = vshrl.u32 %v2492, 16
      %v2537 = vrot.slane %v2535, 7
      %v2538 = vshll.u32 %v2492, 16
      %v2540 = vor.u32 %v2537, %v2538
      %v2542 = vshrl.u32 %v2493, 16
      %v2544 = vrot.slane %v2542, 7
      %v2545 = vshll.u32 %v2493, 16
      %v2547 = vor.u32 %v2544, %v2545
      %v2549 = vshrl.u32 %v2494, 16
      %v2551 = vrot.slane %v2549, 7
      %v2552 = vshll.u32 %v2494, 16
      %v2554 = vor.u32 %v2551, %v2552
      %v2556 = vshrl.u32 %v2495, 16
      %v2558 = vrot.slane %v2556, 7
      %v2559 = vshll.u32 %v2495, 16
      %v2561 = vor.u32 %v2558, %v2559
      %v2563 = vshrl.u32 %v2496, 16
      %v2565 = vrot.slane %v2563, 7
      %v2566 = vshll.u32 %v2496, 16
      %v2568 = vor.u32 %v2565, %v2566
      %v2570 = vshrl.u32 %v2497, 16
      %v2572 = vrot.slane %v2570, 7
      %v2573 = vshll.u32 %v2497, 16
      %v2575 = vor.u32 %v2572, %v2573
      %v2577 = vshrl.u32 %v2498, 16
      %v2579 = vrot.slane %v2577, 7
      %v2580 = vshll.u32 %v2498, 16
      %v2582 = vor.u32 %v2579, %v2580
      %v2584 = vshrl.u32 %v2499, 16
      %v2586 = vrot.slane %v2584, 7
      %v2587 = vshll.u32 %v2499, 16
      %v2589 = vor.u32 %v2586, %v2587
      %v2591 = vshrl.u32 %v2500, 16
      %v2593 = vrot.slane %v2591, 7
      %v2594 = vshll.u32 %v2500, 16
      %v2596 = vor.u32 %v2593, %v2594
      %v2598 = vshrl.u32 %v2501, 16
      %v2600 = vrot.slane %v2598, 7
      %v2601 = vshll.u32 %v2501, 16
      %v2603 = vor.u32 %v2600, %v2601
      %v2605 = vshrl.u32 %v2502, 16
      %v2607 = vrot.slane %v2605, 7
      %v2608 = vshll.u32 %v2502, 16
      %v2610 = vor.u32 %v2607, %v2608
      %v2612 = vshrl.u32 %v2503, 16
      %v2614 = vrot.slane %v2612, 7
      %v2615 = vshll.u32 %v2503, 16
      %v2617 = vor.u32 %v2614, %v2615
      %v2619 = vshrl.u32 %v2504, 16
      %v2621 = vrot.slane %v2619, 7
      %v2622 = vshll.u32 %v2504, 16
      %v2624 = vor.u32 %v2621, %v2622
      %v2626 = vshrl.u32 %v2505, 16
      %v2628 = vrot.slane %v2626, 7
      %v2629 = vshll.u32 %v2505, 16
      %v2631 = vor.u32 %v2628, %v2629
      %v2668 = vsel %vm863, 0, %v2512
      %v2669 = vsel %vm863, 0, %v2519
      %v2670 = vsel %vm863, 0, %v2526
      %v2671 = vsel %vm863, 0, %v2533
      %v2672 = vsel %vm863, 0, %v2540
      %v2673 = vsel %vm863, 0, %v2547
      %v2674 = vsel %vm863, 0, %v2554
      %v2675 = vsel %vm863, 0, %v2561
      %v2676 = vsel %vm863, 0, %v2568
      %v2677 = vsel %vm863, 0, %v2575
      %v2678 = vsel %vm863, 0, %v2582
      %v2679 = vsel %vm863, 0, %v2589
      %v2680 = vsel %vm863, 0, %v2596
      %v2681 = vsel %vm863, 0, %v2603
      %v2682 = vsel %vm863, 0, %v2610
      %v2683 = vsel %vm863, 0, %v2617
      %v2684 = vsel %vm863, 0, %v2624
      %v2685 = vsel %vm863, 0, %v2631
      %v2686 = vsel %vm863, %v2509, 0
      %v2687 = vsel %vm863, %v2516, 0
      %v2688 = vsel %vm863, %v2523, 0
      %v2689 = vsel %vm863, %v2530, 0
      %v2690 = vsel %vm863, %v2537, 0
      %v2691 = vsel %vm863, %v2544, 0
      %v2692 = vsel %vm863, %v2551, 0
      %v2693 = vsel %vm863, %v2558, 0
      %v2694 = vsel %vm863, %v2565, 0
      %v2695 = vsel %vm863, %v2572, 0
      %v2696 = vsel %vm863, %v2579, 0
      %v2697 = vsel %vm863, %v2586, 0
      %v2698 = vsel %vm863, %v2593, 0
      %v2699 = vsel %vm863, %v2600, 0
      %v2700 = vsel %vm863, %v2607, 0
      %v2701 = vsel %vm863, %v2614, 0
      %v2702 = vsel %vm863, %v2621, 0
      %v2703 = vsel %vm863, %v2628, 0
      %v2705 = vshrl.u32 %v2668, 16
      %v2707 = vshll.u32 %v2668, 16
      %v2709 = vrot.slane %v2707, 1
      %v2710 = vor.u32 %v2705, %v2709
      %v2712 = vshll.u32 %v2686, 16
      %v2714 = vrot.slane %v2712, 1
      %v2715 = vsel %vm904, %v2710, %v2714
      %v2717 = vshrl.u32 %v2669, 16
      %v2719 = vshll.u32 %v2669, 16
      %v2721 = vrot.slane %v2719, 1
      %v2722 = vor.u32 %v2717, %v2721
      %v2724 = vshll.u32 %v2687, 16
      %v2726 = vrot.slane %v2724, 1
      %v2727 = vsel %vm904, %v2722, %v2726
      %v2729 = vshrl.u32 %v2670, 16
      %v2731 = vshll.u32 %v2670, 16
      %v2733 = vrot.slane %v2731, 1
      %v2734 = vor.u32 %v2729, %v2733
      %v2736 = vshll.u32 %v2688, 16
      %v2738 = vrot.slane %v2736, 1
      %v2739 = vsel %vm904, %v2734, %v2738
      %v2741 = vshrl.u32 %v2671, 16
      %v2743 = vshll.u32 %v2671, 16
      %v2745 = vrot.slane %v2743, 1
      %v2746 = vor.u32 %v2741, %v2745
      %v2748 = vshll.u32 %v2689, 16
      %v2750 = vrot.slane %v2748, 1
      %v2751 = vsel %vm904, %v2746, %v2750
      %v2753 = vshrl.u32 %v2672, 16
      %v2755 = vshll.u32 %v2672, 16
      %v2757 = vrot.slane %v2755, 1
      %v2758 = vor.u32 %v2753, %v2757
      %v2760 = vshll.u32 %v2690, 16
      %v2762 = vrot.slane %v2760, 1
      %v2763 = vsel %vm904, %v2758, %v2762
      %v2765 = vshrl.u32 %v2673, 16
      %v2767 = vshll.u32 %v2673, 16
      %v2769 = vrot.slane %v2767, 1
      %v2770 = vor.u32 %v2765, %v2769
      %v2772 = vshll.u32 %v2691, 16
      %v2774 = vrot.slane %v2772, 1
      %v2775 = vsel %vm904, %v2770, %v2774
      %v2777 = vshrl.u32 %v2674, 16
      %v2779 = vshll.u32 %v2674, 16
      %v2781 = vrot.slane %v2779, 1
      %v2782 = vor.u32 %v2777, %v2781
      %v2784 = vshll.u32 %v2692, 16
      %v2786 = vrot.slane %v2784, 1
      %v2787 = vsel %vm904, %v2782, %v2786
      %v2789 = vshrl.u32 %v2675, 16
      %v2791 = vshll.u32 %v2675, 16
      %v2793 = vrot.slane %v2791, 1
      %v2794 = vor.u32 %v2789, %v2793
      %v2796 = vshll.u32 %v2693, 16
      %v2798 = vrot.slane %v2796, 1
      %v2799 = vsel %vm904, %v2794, %v2798
      %v2801 = vshrl.u32 %v2676, 16
      %v2803 = vshll.u32 %v2676, 16
      %v2805 = vrot.slane %v2803, 1
      %v2806 = vor.u32 %v2801, %v2805
      %v2808 = vshll.u32 %v2694, 16
      %v2810 = vrot.slane %v2808, 1
      %v2811 = vsel %vm904, %v2806, %v2810
      %v2813 = vshrl.u32 %v2677, 16
      %v2815 = vshll.u32 %v2677, 16
      %v2817 = vrot.slane %v2815, 1
      %v2818 = vor.u32 %v2813, %v2817
      %v2820 = vshll.u32 %v2695, 16
      %v2822 = vrot.slane %v2820, 1
      %v2823 = vsel %vm904, %v2818, %v2822
      %v2825 = vshrl.u32 %v2678, 16
      %v2827 = vshll.u32 %v2678, 16
      %v2829 = vrot.slane %v2827, 1
      %v2830 = vor.u32 %v2825, %v2829
      %v2832 = vshll.u32 %v2696, 16
      %v2834 = vrot.slane %v2832, 1
      %v2835 = vsel %vm904, %v2830, %v2834
      %v2837 = vshrl.u32 %v2679, 16
      %v2839 = vshll.u32 %v2679, 16
      %v2841 = vrot.slane %v2839, 1
      %v2842 = vor.u32 %v2837, %v2841
      %v2844 = vshll.u32 %v2697, 16
      %v2846 = vrot.slane %v2844, 1
      %v2847 = vsel %vm904, %v2842, %v2846
      %v2849 = vshrl.u32 %v2680, 16
      %v2851 = vshll.u32 %v2680, 16
      %v2853 = vrot.slane %v2851, 1
      %v2854 = vor.u32 %v2849, %v2853
      %v2856 = vshll.u32 %v2698, 16
      %v2858 = vrot.slane %v2856, 1
      %v2859 = vsel %vm904, %v2854, %v2858
      %v2861 = vshrl.u32 %v2681, 16
      %v2863 = vshll.u32 %v2681, 16
      %v2865 = vrot.slane %v2863, 1
      %v2866 = vor.u32 %v2861, %v2865
      %v2868 = vshll.u32 %v2699, 16
      %v2870 = vrot.slane %v2868, 1
      %v2871 = vsel %vm904, %v2866, %v2870
      %v2873 = vshrl.u32 %v2682, 16
      %v2875 = vshll.u32 %v2682, 16
      %v2877 = vrot.slane %v2875, 1
      %v2878 = vor.u32 %v2873, %v2877
      %v2880 = vshll.u32 %v2700, 16
      %v2882 = vrot.slane %v2880, 1
      %v2883 = vsel %vm904, %v2878, %v2882
      %v2885 = vshrl.u32 %v2683, 16
      %v2887 = vshll.u32 %v2683, 16
      %v2889 = vrot.slane %v2887, 1
      %v2890 = vor.u32 %v2885, %v2889
      %v2892 = vshll.u32 %v2701, 16
      %v2894 = vrot.slane %v2892, 1
      %v2895 = vsel %vm904, %v2890, %v2894
      %v2897 = vshrl.u32 %v2684, 16
      %v2899 = vshll.u32 %v2684, 16
      %v2901 = vrot.slane %v2899, 1
      %v2902 = vor.u32 %v2897, %v2901
      %v2904 = vshll.u32 %v2702, 16
      %v2906 = vrot.slane %v2904, 1
      %v2907 = vsel %vm904, %v2902, %v2906
      %v2909 = vshrl.u32 %v2685, 16
      %v2911 = vshll.u32 %v2685, 16
      %v2913 = vrot.slane %v2911, 1
      %v2914 = vor.u32 %v2909, %v2913
      %v2916 = vshll.u32 %v2703, 16
      %v2918 = vrot.slane %v2916, 1
      %v2919 = vsel %vm904, %v2914, %v2918
      %2920 = vrot.lane.b32.xlu0 %v2715, 64
      %v2921 = vpop.permute.xlu0 %2920
      %2922 = vrot.lane.b32.xlu0 %v2727, 64
      %v2923 = vpop.permute.xlu0 %2922
      %2924 = vrot.lane.b32.xlu0 %v2739, 64
      %v2925 = vpop.permute.xlu0 %2924
      %2926 = vrot.lane.b32.xlu0 %v2751, 64
      %v2927 = vpop.permute.xlu0 %2926
      %2928 = vrot.lane.b32.xlu0 %v2763, 64
      %v2929 = vpop.permute.xlu0 %2928
      %2930 = vrot.lane.b32.xlu0 %v2775, 64
      %v2931 = vpop.permute.xlu0 %2930
      %2932 = vrot.lane.b32.xlu0 %v2787, 64
      %v2933 = vpop.permute.xlu0 %2932
      %2934 = vrot.lane.b32.xlu0 %v2799, 64
      %v2935 = vpop.permute.xlu0 %2934
      %2936 = vrot.lane.b32.xlu0 %v2811, 64
      %v2937 = vpop.permute.xlu0 %2936
      %2938 = vrot.lane.b32.xlu0 %v2823, 64
      %v2939 = vpop.permute.xlu0 %2938
      %2940 = vrot.lane.b32.xlu0 %v2835, 64
      %v2941 = vpop.permute.xlu0 %2940
      %2942 = vrot.lane.b32.xlu0 %v2847, 64
      %v2943 = vpop.permute.xlu0 %2942
      %2944 = vrot.lane.b32.xlu0 %v2859, 64
      %v2945 = vpop.permute.xlu0 %2944
      %2946 = vrot.lane.b32.xlu0 %v2871, 64
      %v2947 = vpop.permute.xlu0 %2946
      %2948 = vrot.lane.b32.xlu0 %v2883, 64
      %v2949 = vpop.permute.xlu0 %2948
      %2950 = vrot.lane.b32.xlu0 %v2895, 64
      %v2951 = vpop.permute.xlu0 %2950
      %2952 = vrot.lane.b32.xlu0 %v2907, 64
      %v2953 = vpop.permute.xlu0 %2952
      %2954 = vrot.lane.b32.xlu0 %v2919, 64
      %v2955 = vpop.permute.xlu0 %2954
      %v2992 = vrot.slane %v2668, 1
      %v2993 = vrot.slane %v2686, 1
      %v2994 = vsel %vm1225, %v2992, %v2993
      %v2995 = vrot.slane %v2669, 1
      %v2996 = vrot.slane %v2687, 1
      %v2997 = vsel %vm1225, %v2995, %v2996
      %v2998 = vrot.slane %v2670, 1
      %v2999 = vrot.slane %v2688, 1
      %v3000 = vsel %vm1225, %v2998, %v2999
      %v3001 = vrot.slane %v2671, 1
      %v3002 = vrot.slane %v2689, 1
      %v3003 = vsel %vm1225, %v3001, %v3002
      %v3004 = vrot.slane %v2672, 1
      %v3005 = vrot.slane %v2690, 1
      %v3006 = vsel %vm1225, %v3004, %v3005
      %v3007 = vrot.slane %v2673, 1
      %v3008 = vrot.slane %v2691, 1
      %v3009 = vsel %vm1225, %v3007, %v3008
      %v3010 = vrot.slane %v2674, 1
      %v3011 = vrot.slane %v2692, 1
      %v3012 = vsel %vm1225, %v3010, %v3011
      %v3013 = vrot.slane %v2675, 1
      %v3014 = vrot.slane %v2693, 1
      %v3015 = vsel %vm1225, %v3013, %v3014
      %v3016 = vrot.slane %v2676, 1
      %v3017 = vrot.slane %v2694, 1
      %v3018 = vsel %vm1225, %v3016, %v3017
      %v3019 = vrot.slane %v2677, 1
      %v3020 = vrot.slane %v2695, 1
      %v3021 = vsel %vm1225, %v3019, %v3020
      %v3022 = vrot.slane %v2678, 1
      %v3023 = vrot.slane %v2696, 1
      %v3024 = vsel %vm1225, %v3022, %v3023
      %v3025 = vrot.slane %v2679, 1
      %v3026 = vrot.slane %v2697, 1
      %v3027 = vsel %vm1225, %v3025, %v3026
      %v3028 = vrot.slane %v2680, 1
      %v3029 = vrot.slane %v2698, 1
      %v3030 = vsel %vm1225, %v3028, %v3029
      %v3031 = vrot.slane %v2681, 1
      %v3032 = vrot.slane %v2699, 1
      %v3033 = vsel %vm1225, %v3031, %v3032
      %v3034 = vrot.slane %v2682, 1
      %v3035 = vrot.slane %v2700, 1
      %v3036 = vsel %vm1225, %v3034, %v3035
      %v3037 = vrot.slane %v2683, 1
      %v3038 = vrot.slane %v2701, 1
      %v3039 = vsel %vm1225, %v3037, %v3038
      %v3040 = vrot.slane %v2684, 1
      %v3041 = vrot.slane %v2702, 1
      %v3042 = vsel %vm1225, %v3040, %v3041
      %v3043 = vrot.slane %v2685, 1
      %v3044 = vrot.slane %v2703, 1
      %v3045 = vsel %vm1225, %v3043, %v3044
      %v3047 = vsel %vm1286, %v2668, %v2921
      %v3050 = vsel %vm1286, %v2669, %v2923
      %v3053 = vsel %vm1286, %v2670, %v2925
      %v3056 = vsel %vm1286, %v2671, %v2927
      %v3059 = vsel %vm1286, %v2672, %v2929
      %v3062 = vsel %vm1286, %v2673, %v2931
      %v3065 = vsel %vm1286, %v2674, %v2933
      %v3068 = vsel %vm1286, %v2675, %v2935
      %v3071 = vsel %vm1286, %v2676, %v2937
      %v3074 = vsel %vm1286, %v2677, %v2939
      %v3077 = vsel %vm1286, %v2678, %v2941
      %v3080 = vsel %vm1286, %v2679, %v2943
      %v3083 = vsel %vm1286, %v2680, %v2945
      %v3086 = vsel %vm1286, %v2681, %v2947
      %v3089 = vsel %vm1286, %v2682, %v2949
      %v3092 = vsel %vm1286, %v2683, %v2951
      %v3095 = vsel %vm1286, %v2684, %v2953
      %v3098 = vsel %vm1286, %v2685, %v2955
      %v3100 = vld [vmem:[%s5] sm:$0xf]
      %v3101 = vld [vmem:[%s5 + $0x4] sm:$0xf]
      %v3102 = vld [vmem:[%s5 + $0x8] sm:$0xf]
      %v3103 = vld [vmem:[%s5 + $0xc] sm:$0xf]
      %v3104 = vld [vmem:[%s5 + $0x10] sm:$0xf]
      %v3105 = vld [vmem:[%s5 + $0x14] sm:$0xf]
      %v3106 = vld [vmem:[%s5 + $0x18] sm:$0xf]
      %v3107 = vld [vmem:[%s5 + $0x1c] sm:$0xf]
      %v3108 = vld [vmem:[%s5 + $0x20] sm:$0xf]
      %v3109 = vld [vmem:[%s5 + $0x24] sm:$0xf]
      %v3110 = vld [vmem:[%s5 + $0x28] sm:$0xf]
      %v3111 = vld [vmem:[%s5 + $0x2c] sm:$0xf]
      %v3112 = vld [vmem:[%s5 + $0x30] sm:$0xf]
      %v3113 = vld [vmem:[%s5 + $0x34] sm:$0xf]
      %v3114 = vld [vmem:[%s5 + $0x38] sm:$0xf]
      %v3115 = vld [vmem:[%s5 + $0x3c] sm:$0xf]
      %v3116 = vld [vmem:[%s5 + $0x40] sm:$0xf]
      %v3117 = vld [vmem:[%s5 + $0x44] sm:$0xf]
      %v3118 = vld [vmem:[%s5 + $0x48] sm:$0xf]
      %v3119 = vld [vmem:[%s5 + $0x4c] sm:$0xf]
      %v3120 = vld [vmem:[%s5 + $0x50] sm:$0xf]
      %v3121 = vld [vmem:[%s5 + $0x54] sm:$0xf]
      %v3122 = vld [vmem:[%s5 + $0x58] sm:$0xf]
      %v3123 = vld [vmem:[%s5 + $0x5c] sm:$0xf]
      %s3124 = scalar_lea.vmem %s5, 96
      %v3125 = vld [vmem:[%s3124] sm:$0xf]
      %v3126 = vld [vmem:[%s3124 + $0x4] sm:$0xf]
      %v3127 = vld [vmem:[%s3124 + $0x8] sm:$0xf]
      %v3128 = vld [vmem:[%s3124 + $0xc] sm:$0xf]
      %v3129 = vld [vmem:[%s3124 + $0x10] sm:$0xf]
      %v3130 = vld [vmem:[%s3124 + $0x14] sm:$0xf]
      %v3131 = vld [vmem:[%s3124 + $0x18] sm:$0xf]
      %v3132 = vld [vmem:[%s3124 + $0x1c] sm:$0xf]
      %v3133 = vld [vmem:[%s3124 + $0x20] sm:$0xf]
      %v3134 = vld [vmem:[%s3124 + $0x24] sm:$0xf]
      %v3135 = vld [vmem:[%s3124 + $0x28] sm:$0xf]
      %v3136 = vld [vmem:[%s3124 + $0x2c] sm:$0xf]
      %v3137 = vld [vmem:[%s3124 + $0x30] sm:$0xf]
      %v3138 = vld [vmem:[%s3124 + $0x34] sm:$0xf]
      %v3139 = vld [vmem:[%s3124 + $0x38] sm:$0xf]
      %v3140 = vld [vmem:[%s3124 + $0x3c] sm:$0xf]
      %v3141 = vld [vmem:[%s3124 + $0x40] sm:$0xf]
      %v3142 = vld [vmem:[%s3124 + $0x44] sm:$0xf]
      %v3143 = vld [vmem:[%s3124 + $0x48] sm:$0xf]
      %v3144 = vld [vmem:[%s3124 + $0x4c] sm:$0xf]
      %v3145 = vld [vmem:[%s3124 + $0x50] sm:$0xf]
      %v3146 = vld [vmem:[%s3124 + $0x54] sm:$0xf]
      %v3147 = vld [vmem:[%s3124 + $0x58] sm:$0xf]
      %v3148 = vld [vmem:[%s3124 + $0x5c] sm:$0xf]
      %v3173 = vunpack.c.l.b16 %v3125
      %v3174 = vunpack.c.l.b16 %v3126
      %v3175 = vunpack.c.l.b16 %v3127
      %v3176 = vunpack.c.l.b16 %v3128
      %v3177 = vunpack.c.l.b16 %v3129
      %v3178 = vunpack.c.l.b16 %v3130
      %v3179 = vunpack.c.l.b16 %v3131
      %v3180 = vunpack.c.l.b16 %v3132
      %v3181 = vunpack.c.l.b16 %v3133
      %v3182 = vunpack.c.l.b16 %v3134
      %v3183 = vunpack.c.l.b16 %v3135
      %v3184 = vunpack.c.l.b16 %v3136
      %v3185 = vunpack.c.l.b16 %v3137
      %v3186 = vunpack.c.l.b16 %v3138
      %v3187 = vunpack.c.l.b16 %v3139
      %v3188 = vunpack.c.l.b16 %v3140
      %v3189 = vunpack.c.l.b16 %v3141
      %v3190 = vunpack.c.l.b16 %v3142
      %v3191 = vunpack.c.l.b16 %v3143
      %v3192 = vunpack.c.l.b16 %v3144
      %v3193 = vunpack.c.l.b16 %v3145
      %v3194 = vunpack.c.l.b16 %v3146
      %v3195 = vunpack.c.l.b16 %v3147
      %v3196 = vunpack.c.l.b16 %v3148
      %v3197 = vpack.c.b16 %v3174, %v3173
      %v3198 = vpack.c.b16 %v3176, %v3175
      %v3199 = vpack.c.b16 %v3178, %v3177
      %v3200 = vpack.c.b16 %v3180, %v3179
      %v3201 = vpack.c.b16 %v3182, %v3181
      %v3202 = vpack.c.b16 %v3184, %v3183
      %v3203 = vpack.c.b16 %v3186, %v3185
      %v3204 = vpack.c.b16 %v3188, %v3187
      %v3205 = vpack.c.b16 %v3190, %v3189
      %v3206 = vpack.c.b16 %v3192, %v3191
      %v3207 = vpack.c.b16 %v3194, %v3193
      %v3208 = vpack.c.b16 %v3196, %v3195
      %v3222 = vsel %vm1286, %v2997, 0
      %v3225 = vsel %vm1286, %v3000, 0
      %v3228 = vsel %vm1286, %v3003, 0
      %v3231 = vsel %vm1286, %v3006, 0
      %v3234 = vsel %vm1286, %v3009, 0
      %v3237 = vsel %vm1286, %v3012, 0
      %v3240 = vsel %vm1286, %v3015, 0
      %v3243 = vsel %vm1286, %v3018, 0
      %v3246 = vsel %vm1286, %v3021, 0
      %v3249 = vsel %vm1286, %v3024, 0
      %v3252 = vsel %vm1286, %v3027, 0
      %v3255 = vsel %vm1286, %v3030, 0
      %v3258 = vsel %vm1286, %v3033, 0
      %v3261 = vsel %vm1286, %v3036, 0
      %v3264 = vsel %vm1286, %v3039, 0
      %v3267 = vsel %vm1286, %v3042, 0
      %3269 = vmatprep.subr.bf16.mxu0 0
      %3270 = vmatpush1.bf16.msra.mxu0 %v3197
      %3271 = vmatprep.subr.bf16.mxu0 0
      %3272 = vmatpush1.bf16.msra.mxu0 %v3198
      %3273 = vmatprep.subr.bf16.mxu0 0
      %3274 = vmatpush1.bf16.msra.mxu0 %v3199
      %3275 = vmatprep.subr.bf16.mxu0 0
      %3276 = vmatpush1.bf16.msra.mxu0 %v3200
      %3277 = vmatprep.subr.bf16.mxu0 0
      %3278 = vmatpush1.bf16.msra.mxu0 %v3201
      %3279 = vmatprep.subr.bf16.mxu0 0
      %3280 = vmatpush1.bf16.msra.mxu0 %v3202
      %3281 = vmatprep.subr.bf16.mxu0 0
      %3282 = vmatpush1.bf16.msra.mxu0 %v3203
      %3283 = vmatprep.subr.bf16.mxu0 0
      %3284 = vmatpush1.bf16.msra.mxu0 %v3204
      %3285 = vmatprep.subr.bf16.mxu0 0
      %3286 = vmatpush1.bf16.msra.mxu0 %v3205
      %3287 = vmatprep.subr.bf16.mxu0 0
      %3288 = vmatpush1.bf16.msra.mxu0 %v3206
      %3289 = vmatprep.subr.bf16.mxu0 0
      %3290 = vmatpush1.bf16.msra.mxu0 %v3207
      %3291 = vmatprep.subr.bf16.mxu0 0
      %3292 = vmatpush1.bf16.msra.mxu0 %v3208
      %3293 = vmatprep.subr.bf16.mxu0 0
      %3294 = vmatpush1.bf16.msra.mxu0 0
      %3295 = vmatprep.subr.bf16.mxu0 0
      %3296 = vmatpush1.bf16.msra.mxu0 0
      %3297 = vmatprep.subr.bf16.mxu0 0
      %3298 = vmatpush1.bf16.msra.mxu0 0
      %3299 = vmatprep.subr.bf16.mxu0 0
      %3300 = vmatpush1.bf16.msra.mxu0 0
      %3301 = vmatprep.mubr.bf16.mxu0 %v3222
      %3302 = vmatmul.mubr.bf16.gmra.mrb[0].mxu0 %v3050
      %v3303 = vpop.f32.mrb[0].mxu0
      %v3304 = vadd.f32 0.0, %v3303
      %v3305 = vpop.f32.mrb[0].mxu0
      %v3306 = vpop.f32.mrb[0].mxu0
      %v3307 = vadd.f32 0.0, %v3306
      %v3308 = vpop.f32.mrb[0].mxu0
      %3309 = vmatprep.mubr.bf16.mxu0 %v3225
      %3310 = vmatmul.mubr.bf16.gmra.mrb[0].mxu0 %v3053
      %v3311 = vpop.f32.mrb[0].mxu0
      %v3312 = vadd.f32 0.0, %v3311
      %v3313 = vpop.f32.mrb[0].mxu0
      %v3314 = vpop.f32.mrb[0].mxu0
      %v3315 = vadd.f32 0.0, %v3314
      %v3316 = vpop.f32.mrb[0].mxu0
      %3317 = vmatprep.mubr.bf16.mxu0 %v3228
      %3318 = vmatmul.mubr.bf16.gmra.mrb[0].mxu0 %v3056
      %v3319 = vpop.f32.mrb[0].mxu0
      %v3320 = vadd.f32 0.0, %v3319
      %v3321 = vpop.f32.mrb[0].mxu0
      %v3322 = vpop.f32.mrb[0].mxu0
      %v3323 = vadd.f32 0.0, %v3322
      %v3324 = vpop.f32.mrb[0].mxu0
      %3325 = vmatprep.mubr.bf16.mxu0 %v3231
      %3326 = vmatmul.mubr.bf16.gmra.mrb[0].mxu0 %v3059
      %v3327 = vpop.f32.mrb[0].mxu0
      %v3328 = vadd.f32 0.0, %v3327
      %v3329 = vpop.f32.mrb[0].mxu0
      %v3330 = vpop.f32.mrb[0].mxu0
      %v3331 = vadd.f32 0.0, %v3330
      %v3332 = vpop.f32.mrb[0].mxu0
      %3333 = vmatprep.mubr.bf16.mxu0 %v3234
      %3334 = vmatmul.mubr.bf16.gmra.mrb[0].mxu0 %v3062
      %v3335 = vpop.f32.mrb[0].mxu0
      %v3336 = vadd.f32 0.0, %v3335
      %v3337 = vpop.f32.mrb[0].mxu0
      %v3338 = vpop.f32.mrb[0].mxu0
      %v3339 = vadd.f32 0.0, %v3338
      %v3340 = vpop.f32.mrb[0].mxu0
      %3341 = vmatprep.mubr.bf16.mxu0 %v3237
      %3342 = vmatmul.mubr.bf16.gmra.mrb[0].mxu0 %v3065
      %v3343 = vpop.f32.mrb[0].mxu0
      %v3344 = vadd.f32 0.0, %v3343
      %v3345 = vpop.f32.mrb[0].mxu0
      %v3346 = vpop.f32.mrb[0].mxu0
      %v3347 = vadd.f32 0.0, %v3346
      %v3348 = vpop.f32.mrb[0].mxu0
      %3349 = vmatprep.mubr.bf16.mxu0 %v3240
      %3350 = vmatmul.mubr.bf16.gmra.mrb[0].mxu0 %v3068
      %v3351 = vpop.f32.mrb[0].mxu0
      %v3352 = vadd.f32 0.0, %v3351
      %v3353 = vpop.f32.mrb[0].mxu0
      %v3354 = vpop.f32.mrb[0].mxu0
      %v3355 = vadd.f32 0.0, %v3354
      %v3356 = vpop.f32.mrb[0].mxu0
      %3357 = vmatprep.mubr.bf16.mxu0 %v3243
      %3358 = vmatmul.mubr.bf16.gmra.mrb[0].mxu0 %v3071
      %v3359 = vpop.f32.mrb[0].mxu0
      %v3360 = vadd.f32 0.0, %v3359
      %v3361 = vpop.f32.mrb[0].mxu0
      %v3362 = vpop.f32.mrb[0].mxu0
      %v3363 = vadd.f32 0.0, %v3362
      %v3364 = vpop.f32.mrb[0].mxu0
      %3365 = vmatprep.mubr.bf16.mxu0 %v3246
      %3366 = vmatmul.mubr.bf16.gmra.mrb[0].mxu0 %v3074
      %v3367 = vpop.f32.mrb[0].mxu0
      %v3368 = vadd.f32 0.0, %v3367
      %v3369 = vpop.f32.mrb[0].mxu0
      %v3370 = vpop.f32.mrb[0].mxu0
      %v3371 = vadd.f32 0.0, %v3370
      %v3372 = vpop.f32.mrb[0].mxu0
      %3373 = vmatprep.mubr.bf16.mxu0 %v3249
      %3374 = vmatmul.mubr.bf16.gmra.mrb[0].mxu0 %v3077
      %v3375 = vpop.f32.mrb[0].mxu0
      %v3376 = vadd.f32 0.0, %v3375
      %v3377 = vpop.f32.mrb[0].mxu0
      %v3378 = vpop.f32.mrb[0].mxu0
      %v3379 = vadd.f32 0.0, %v3378
      %v3380 = vpop.f32.mrb[0].mxu0
      %3381 = vmatprep.mubr.bf16.mxu0 %v3252
      %3382 = vmatmul.mubr.bf16.gmra.mrb[0].mxu0 %v3080
      %v3383 = vpop.f32.mrb[0].mxu0
      %v3384 = vadd.f32 0.0, %v3383
      %v3385 = vpop.f32.mrb[0].mxu0
      %v3386 = vpop.f32.mrb[0].mxu0
      %v3387 = vadd.f32 0.0, %v3386
      %v3388 = vpop.f32.mrb[0].mxu0
      %3389 = vmatprep.mubr.bf16.mxu0 %v3255
      %3390 = vmatmul.mubr.bf16.gmra.mrb[0].mxu0 %v3083
      %v3391 = vpop.f32.mrb[0].mxu0
      %v3392 = vadd.f32 0.0, %v3391
      %v3393 = vpop.f32.mrb[0].mxu0
      %v3394 = vpop.f32.mrb[0].mxu0
      %v3395 = vadd.f32 0.0, %v3394
      %v3396 = vpop.f32.mrb[0].mxu0
      %3397 = vmatprep.mubr.bf16.mxu0 %v3258
      %3398 = vmatmul.mubr.bf16.gmra.mrb[0].mxu0 %v3086
      %v3399 = vpop.f32.mrb[0].mxu0
      %v3400 = vadd.f32 0.0, %v3399
      %v3401 = vpop.f32.mrb[0].mxu0
      %v3402 = vpop.f32.mrb[0].mxu0
      %v3403 = vadd.f32 0.0, %v3402
      %v3404 = vpop.f32.mrb[0].mxu0
      %3405 = vmatprep.mubr.bf16.mxu0 %v3261
      %3406 = vmatmul.mubr.bf16.gmra.mrb[0].mxu0 %v3089
      %v3407 = vpop.f32.mrb[0].mxu0
      %v3408 = vadd.f32 0.0, %v3407
      %v3409 = vpop.f32.mrb[0].mxu0
      %v3410 = vpop.f32.mrb[0].mxu0
      %v3411 = vadd.f32 0.0, %v3410
      %v3412 = vpop.f32.mrb[0].mxu0
      %3413 = vmatprep.mubr.bf16.mxu0 %v3264
      %3414 = vmatmul.mubr.bf16.gmra.mrb[0].mxu0 %v3092
      %v3415 = vpop.f32.mrb[0].mxu0
      %v3416 = vadd.f32 0.0, %v3415
      %v3417 = vpop.f32.mrb[0].mxu0
      %v3418 = vpop.f32.mrb[0].mxu0
      %v3419 = vadd.f32 0.0, %v3418
      %v3420 = vpop.f32.mrb[0].mxu0
      %3421 = vmatprep.mubr.bf16.mxu0 %v3267
      %3422 = vmatmul.mubr.bf16.gmra.mrb[0].mxu0 %v3095
      %v3423 = vpop.f32.mrb[0].mxu0
      %v3424 = vadd.f32 0.0, %v3423
      %v3425 = vpop.f32.mrb[0].mxu0
      %v3426 = vpop.f32.mrb[0].mxu0
      %v3427 = vadd.f32 0.0, %v3426
      %v3428 = vpop.f32.mrb[0].mxu0
      %3429 = vdwg.mxu0
      %v3454 = vunpack.c.l.b16 %v3100
      %v3455 = vunpack.c.l.b16 %v3101
      %v3456 = vunpack.c.l.b16 %v3102
      %v3457 = vunpack.c.l.b16 %v3103
      %v3458 = vunpack.c.l.b16 %v3104
      %v3459 = vunpack.c.l.b16 %v3105
      %v3460 = vunpack.c.l.b16 %v3106
      %v3461 = vunpack.c.l.b16 %v3107
      %v3462 = vunpack.c.l.b16 %v3108
      %v3463 = vunpack.c.l.b16 %v3109
      %v3464 = vunpack.c.l.b16 %v3110
      %v3465 = vunpack.c.l.b16 %v3111
      %v3466 = vunpack.c.l.b16 %v3112
      %v3467 = vunpack.c.l.b16 %v3113
      %v3468 = vunpack.c.l.b16 %v3114
      %v3469 = vunpack.c.l.b16 %v3115
      %v3470 = vunpack.c.l.b16 %v3116
      %v3471 = vunpack.c.l.b16 %v3117
      %v3472 = vunpack.c.l.b16 %v3118
      %v3473 = vunpack.c.l.b16 %v3119
      %v3474 = vunpack.c.l.b16 %v3120
      %v3475 = vunpack.c.l.b16 %v3121
      %v3476 = vunpack.c.l.b16 %v3122
      %v3477 = vunpack.c.l.b16 %v3123
      %v3478 = vpack.c.b16 %v3455, %v3454
      %v3479 = vpack.c.b16 %v3457, %v3456
      %v3480 = vpack.c.b16 %v3459, %v3458
      %v3481 = vpack.c.b16 %v3461, %v3460
      %v3482 = vpack.c.b16 %v3463, %v3462
      %v3483 = vpack.c.b16 %v3465, %v3464
      %v3484 = vpack.c.b16 %v3467, %v3466
      %v3485 = vpack.c.b16 %v3469, %v3468
      %v3486 = vpack.c.b16 %v3471, %v3470
      %v3487 = vpack.c.b16 %v3473, %v3472
      %v3488 = vpack.c.b16 %v3475, %v3474
      %v3489 = vpack.c.b16 %v3477, %v3476
      %v3503 = vsel %vm1286, %v2994, 0
      %3505 = vmatprep.subr.bf16.mxu0 0
      %3506 = vmatpush1.bf16.msra.mxu0 %v3478
      %3507 = vmatprep.subr.bf16.mxu0 0
      %3508 = vmatpush1.bf16.msra.mxu0 %v3479
      %3509 = vmatprep.subr.bf16.mxu0 0
      %3510 = vmatpush1.bf16.msra.mxu0 %v3480
      %3511 = vmatprep.subr.bf16.mxu0 0
      %3512 = vmatpush1.bf16.msra.mxu0 %v3481
      %3513 = vmatprep.subr.bf16.mxu0 0
      %3514 = vmatpush1.bf16.msra.mxu0 %v3482
      %3515 = vmatprep.subr.bf16.mxu0 0
      %3516 = vmatpush1.bf16.msra.mxu0 %v3483
      %3517 = vmatprep.subr.bf16.mxu0 0
      %3518 = vmatpush1.bf16.msra.mxu0 %v3484
      %3519 = vmatprep.subr.bf16.mxu0 0
      %3520 = vmatpush1.bf16.msra.mxu0 %v3485
      %3521 = vmatprep.subr.bf16.mxu0 0
      %3522 = vmatpush1.bf16.msra.mxu0 %v3486
      %3523 = vmatprep.subr.bf16.mxu0 0
      %3524 = vmatpush1.bf16.msra.mxu0 %v3487
      %3525 = vmatprep.subr.bf16.mxu0 0
      %3526 = vmatpush1.bf16.msra.mxu0 %v3488
      %3527 = vmatprep.subr.bf16.mxu0 0
      %3528 = vmatpush1.bf16.msra.mxu0 %v3489
      %3529 = vmatprep.subr.bf16.mxu0 0
      %3530 = vmatpush1.bf16.msra.mxu0 0
      %3531 = vmatprep.subr.bf16.mxu0 0
      %3532 = vmatpush1.bf16.msra.mxu0 0
      %3533 = vmatprep.subr.bf16.mxu0 0
      %3534 = vmatpush1.bf16.msra.mxu0 0
      %3535 = vmatprep.subr.bf16.mxu0 0
      %3536 = vmatpush1.bf16.msra.mxu0 0
      %3537 = vmatprep.mubr.bf16.mxu0 %v3503
      %3538 = vmatmul.mubr.bf16.gmra.mrb[0].mxu0 %v3047
      %v3539 = vpop.f32.mrb[0].mxu0
      %v3540 = vadd.f32 %v3304, %v3539
      %v3541 = vpop.f32.mrb[0].mxu0
      %v3542 = vpop.f32.mrb[0].mxu0
      %v3543 = vadd.f32 %v3307, %v3542
      %v3544 = vpop.f32.mrb[0].mxu0
      %3545 = vmatprep.mubr.bf16.mxu0 %v3222
      %3546 = vmatmul.mubr.bf16.gmra.mrb[0].mxu0 %v3050
      %v3547 = vpop.f32.mrb[0].mxu0
      %v3548 = vadd.f32 %v3312, %v3547
      %v3549 = vpop.f32.mrb[0].mxu0
      %v3550 = vpop.f32.mrb[0].mxu0
      %v3551 = vadd.f32 %v3315, %v3550
      %v3552 = vpop.f32.mrb[0].mxu0
      %3553 = vmatprep.mubr.bf16.mxu0 %v3225
      %3554 = vmatmul.mubr.bf16.gmra.mrb[0].mxu0 %v3053
      %v3555 = vpop.f32.mrb[0].mxu0
      %v3556 = vadd.f32 %v3320, %v3555
      %v3557 = vpop.f32.mrb[0].mxu0
      %v3558 = vpop.f32.mrb[0].mxu0
      %v3559 = vadd.f32 %v3323, %v3558
      %v3560 = vpop.f32.mrb[0].mxu0
      %3561 = vmatprep.mubr.bf16.mxu0 %v3228
      %3562 = vmatmul.mubr.bf16.gmra.mrb[0].mxu0 %v3056
      %v3563 = vpop.f32.mrb[0].mxu0
      %v3564 = vadd.f32 %v3328, %v3563
      %v3565 = vpop.f32.mrb[0].mxu0
      %v3566 = vpop.f32.mrb[0].mxu0
      %v3567 = vadd.f32 %v3331, %v3566
      %v3568 = vpop.f32.mrb[0].mxu0
      %3569 = vmatprep.mubr.bf16.mxu0 %v3231
      %3570 = vmatmul.mubr.bf16.gmra.mrb[0].mxu0 %v3059
      %v3571 = vpop.f32.mrb[0].mxu0
      %v3572 = vadd.f32 %v3336, %v3571
      %v3573 = vpop.f32.mrb[0].mxu0
      %v3574 = vpop.f32.mrb[0].mxu0
      %v3575 = vadd.f32 %v3339, %v3574
      %v3576 = vpop.f32.mrb[0].mxu0
      %3577 = vmatprep.mubr.bf16.mxu0 %v3234
      %3578 = vmatmul.mubr.bf16.gmra.mrb[0].mxu0 %v3062
      %v3579 = vpop.f32.mrb[0].mxu0
      %v3580 = vadd.f32 %v3344, %v3579
      %v3581 = vpop.f32.mrb[0].mxu0
      %v3582 = vpop.f32.mrb[0].mxu0
      %v3583 = vadd.f32 %v3347, %v3582
      %v3584 = vpop.f32.mrb[0].mxu0
      %3585 = vmatprep.mubr.bf16.mxu0 %v3237
      %3586 = vmatmul.mubr.bf16.gmra.mrb[0].mxu0 %v3065
      %v3587 = vpop.f32.mrb[0].mxu0
      %v3588 = vadd.f32 %v3352, %v3587
      %v3589 = vpop.f32.mrb[0].mxu0
      %v3590 = vpop.f32.mrb[0].mxu0
      %v3591 = vadd.f32 %v3355, %v3590
      %v3592 = vpop.f32.mrb[0].mxu0
      %3593 = vmatprep.mubr.bf16.mxu0 %v3240
      %3594 = vmatmul.mubr.bf16.gmra.mrb[0].mxu0 %v3068
      %v3595 = vpop.f32.mrb[0].mxu0
      %v3596 = vadd.f32 %v3360, %v3595
      %v3597 = vpop.f32.mrb[0].mxu0
      %v3598 = vpop.f32.mrb[0].mxu0
      %v3599 = vadd.f32 %v3363, %v3598
      %v3600 = vpop.f32.mrb[0].mxu0
      %3601 = vmatprep.mubr.bf16.mxu0 %v3243
      %3602 = vmatmul.mubr.bf16.gmra.mrb[0].mxu0 %v3071
      %v3603 = vpop.f32.mrb[0].mxu0
      %v3604 = vadd.f32 %v3368, %v3603
      %v3605 = vpop.f32.mrb[0].mxu0
      %v3606 = vpop.f32.mrb[0].mxu0
      %v3607 = vadd.f32 %v3371, %v3606
      %v3608 = vpop.f32.mrb[0].mxu0
      %3609 = vmatprep.mubr.bf16.mxu0 %v3246
      %3610 = vmatmul.mubr.bf16.gmra.mrb[0].mxu0 %v3074
      %v3611 = vpop.f32.mrb[0].mxu0
      %v3612 = vadd.f32 %v3376, %v3611
      %v3613 = vpop.f32.mrb[0].mxu0
      %v3614 = vpop.f32.mrb[0].mxu0
      %v3615 = vadd.f32 %v3379, %v3614
      %v3616 = vpop.f32.mrb[0].mxu0
      %3617 = vmatprep.mubr.bf16.mxu0 %v3249
      %3618 = vmatmul.mubr.bf16.gmra.mrb[0].mxu0 %v3077
      %v3619 = vpop.f32.mrb[0].mxu0
      %v3620 = vadd.f32 %v3384, %v3619
      %v3621 = vpop.f32.mrb[0].mxu0
      %v3622 = vpop.f32.mrb[0].mxu0
      %v3623 = vadd.f32 %v3387, %v3622
      %v3624 = vpop.f32.mrb[0].mxu0
      %3625 = vmatprep.mubr.bf16.mxu0 %v3252
      %3626 = vmatmul.mubr.bf16.gmra.mrb[0].mxu0 %v3080
      %v3627 = vpop.f32.mrb[0].mxu0
      %v3628 = vadd.f32 %v3392, %v3627
      %v3629 = vpop.f32.mrb[0].mxu0
      %v3630 = vpop.f32.mrb[0].mxu0
      %v3631 = vadd.f32 %v3395, %v3630
      %v3632 = vpop.f32.mrb[0].mxu0
      %3633 = vmatprep.mubr.bf16.mxu0 %v3255
      %3634 = vmatmul.mubr.bf16.gmra.mrb[0].mxu0 %v3083
      %v3635 = vpop.f32.mrb[0].mxu0
      %v3636 = vadd.f32 %v3400, %v3635
      %v3637 = vpop.f32.mrb[0].mxu0
      %v3638 = vpop.f32.mrb[0].mxu0
      %v3639 = vadd.f32 %v3403, %v3638
      %v3640 = vpop.f32.mrb[0].mxu0
      %3641 = vmatprep.mubr.bf16.mxu0 %v3258
      %3642 = vmatmul.mubr.bf16.gmra.mrb[0].mxu0 %v3086
      %v3643 = vpop.f32.mrb[0].mxu0
      %v3644 = vadd.f32 %v3408, %v3643
      %v3645 = vpop.f32.mrb[0].mxu0
      %v3646 = vpop.f32.mrb[0].mxu0
      %v3647 = vadd.f32 %v3411, %v3646
      %v3648 = vpop.f32.mrb[0].mxu0
      %3649 = vmatprep.mubr.bf16.mxu0 %v3261
      %3650 = vmatmul.mubr.bf16.gmra.mrb[0].mxu0 %v3089
      %v3651 = vpop.f32.mrb[0].mxu0
      %v3652 = vadd.f32 %v3416, %v3651
      %v3653 = vpop.f32.mrb[0].mxu0
      %v3654 = vpop.f32.mrb[0].mxu0
      %v3655 = vadd.f32 %v3419, %v3654
      %v3656 = vpop.f32.mrb[0].mxu0
      %3657 = vmatprep.mubr.bf16.mxu0 %v3264
      %3658 = vmatmul.mubr.bf16.gmra.mrb[0].mxu0 %v3092
      %v3659 = vpop.f32.mrb[0].mxu0
      %v3660 = vadd.f32 %v3424, %v3659
      %v3661 = vpop.f32.mrb[0].mxu0
      %v3662 = vpop.f32.mrb[0].mxu0
      %v3663 = vadd.f32 %v3427, %v3662
      %v3664 = vpop.f32.mrb[0].mxu0
      %3665 = vdwg.mxu0
      %s3666 = scalar_lea.vmem %s5, 192
      %v3667 = vld [vmem:[%s3666] sm:$0xf]
      %v3668 = vld [vmem:[%s3666 + $0x4] sm:$0xf]
      %v3669 = vld [vmem:[%s3666 + $0x8] sm:$0xf]
      %v3670 = vld [vmem:[%s3666 + $0xc] sm:$0xf]
      %v3671 = vld [vmem:[%s3666 + $0x10] sm:$0xf]
      %v3672 = vld [vmem:[%s3666 + $0x14] sm:$0xf]
      %v3673 = vld [vmem:[%s3666 + $0x18] sm:$0xf]
      %v3674 = vld [vmem:[%s3666 + $0x1c] sm:$0xf]
      %v3675 = vld [vmem:[%s3666 + $0x20] sm:$0xf]
      %v3676 = vld [vmem:[%s3666 + $0x24] sm:$0xf]
      %v3677 = vld [vmem:[%s3666 + $0x28] sm:$0xf]
      %v3678 = vld [vmem:[%s3666 + $0x2c] sm:$0xf]
      %v3679 = vld [vmem:[%s3666 + $0x30] sm:$0xf]
      %v3680 = vld [vmem:[%s3666 + $0x34] sm:$0xf]
      %v3681 = vld [vmem:[%s3666 + $0x38] sm:$0xf]
      %v3682 = vld [vmem:[%s3666 + $0x3c] sm:$0xf]
      %v3683 = vld [vmem:[%s3666 + $0x40] sm:$0xf]
      %v3684 = vld [vmem:[%s3666 + $0x44] sm:$0xf]
      %v3685 = vld [vmem:[%s3666 + $0x48] sm:$0xf]
      %v3686 = vld [vmem:[%s3666 + $0x4c] sm:$0xf]
      %v3687 = vld [vmem:[%s3666 + $0x50] sm:$0xf]
      %v3688 = vld [vmem:[%s3666 + $0x54] sm:$0xf]
      %v3689 = vld [vmem:[%s3666 + $0x58] sm:$0xf]
      %v3690 = vld [vmem:[%s3666 + $0x5c] sm:$0xf]
      %v3715 = vunpack.c.l.b16 %v3667
      %v3716 = vunpack.c.l.b16 %v3668
      %v3717 = vunpack.c.l.b16 %v3669
      %v3718 = vunpack.c.l.b16 %v3670
      %v3719 = vunpack.c.l.b16 %v3671
      %v3720 = vunpack.c.l.b16 %v3672
      %v3721 = vunpack.c.l.b16 %v3673
      %v3722 = vunpack.c.l.b16 %v3674
      %v3723 = vunpack.c.l.b16 %v3675
      %v3724 = vunpack.c.l.b16 %v3676
      %v3725 = vunpack.c.l.b16 %v3677
      %v3726 = vunpack.c.l.b16 %v3678
      %v3727 = vunpack.c.l.b16 %v3679
      %v3728 = vunpack.c.l.b16 %v3680
      %v3729 = vunpack.c.l.b16 %v3681
      %v3730 = vunpack.c.l.b16 %v3682
      %v3731 = vunpack.c.l.b16 %v3683
      %v3732 = vunpack.c.l.b16 %v3684
      %v3733 = vunpack.c.l.b16 %v3685
      %v3734 = vunpack.c.l.b16 %v3686
      %v3735 = vunpack.c.l.b16 %v3687
      %v3736 = vunpack.c.l.b16 %v3688
      %v3737 = vunpack.c.l.b16 %v3689
      %v3738 = vunpack.c.l.b16 %v3690
      %v3739 = vpack.c.b16 %v3716, %v3715
      %v3740 = vpack.c.b16 %v3718, %v3717
      %v3741 = vpack.c.b16 %v3720, %v3719
      %v3742 = vpack.c.b16 %v3722, %v3721
      %v3743 = vpack.c.b16 %v3724, %v3723
      %v3744 = vpack.c.b16 %v3726, %v3725
      %v3745 = vpack.c.b16 %v3728, %v3727
      %v3746 = vpack.c.b16 %v3730, %v3729
      %v3747 = vpack.c.b16 %v3732, %v3731
      %v3748 = vpack.c.b16 %v3734, %v3733
      %v3749 = vpack.c.b16 %v3736, %v3735
      %v3750 = vpack.c.b16 %v3738, %v3737
      %v3764 = vsel %vm1286, %v3045, 0
      %3766 = vmatprep.subr.bf16.mxu0 0
      %3767 = vmatpush1.bf16.msra.mxu0 %v3739
      %3768 = vmatprep.subr.bf16.mxu0 0
      %3769 = vmatpush1.bf16.msra.mxu0 %v3740
      %3770 = vmatprep.subr.bf16.mxu0 0
      %3771 = vmatpush1.bf16.msra.mxu0 %v3741
      %3772 = vmatprep.subr.bf16.mxu0 0
      %3773 = vmatpush1.bf16.msra.mxu0 %v3742
      %3774 = vmatprep.subr.bf16.mxu0 0
      %3775 = vmatpush1.bf16.msra.mxu0 %v3743
      %3776 = vmatprep.subr.bf16.mxu0 0
      %3777 = vmatpush1.bf16.msra.mxu0 %v3744
      %3778 = vmatprep.subr.bf16.mxu0 0
      %3779 = vmatpush1.bf16.msra.mxu0 %v3745
      %3780 = vmatprep.subr.bf16.mxu0 0
      %3781 = vmatpush1.bf16.msra.mxu0 %v3746
      %3782 = vmatprep.subr.bf16.mxu0 0
      %3783 = vmatpush1.bf16.msra.mxu0 %v3747
      %3784 = vmatprep.subr.bf16.mxu0 0
      %3785 = vmatpush1.bf16.msra.mxu0 %v3748
      %3786 = vmatprep.subr.bf16.mxu0 0
      %3787 = vmatpush1.bf16.msra.mxu0 %v3749
      %3788 = vmatprep.subr.bf16.mxu0 0
      %3789 = vmatpush1.bf16.msra.mxu0 %v3750
      %3790 = vmatprep.subr.bf16.mxu0 0
      %3791 = vmatpush1.bf16.msra.mxu0 0
      %3792 = vmatprep.subr.bf16.mxu0 0
      %3793 = vmatpush1.bf16.msra.mxu0 0
      %3794 = vmatprep.subr.bf16.mxu0 0
      %3795 = vmatpush1.bf16.msra.mxu0 0
      %3796 = vmatprep.subr.bf16.mxu0 0
      %3797 = vmatpush1.bf16.msra.mxu0 0
      %3798 = vmatprep.mubr.bf16.mxu0 %v3225
      %3799 = vmatmul.mubr.bf16.gmra.mrb[0].mxu0 %v3053
      %v3800 = vpop.f32.mrb[0].mxu0
      %v3801 = vadd.f32 0.0, %v3800
      %v3802 = vpop.f32.mrb[0].mxu0
      %v3803 = vpop.f32.mrb[0].mxu0
      %v3804 = vadd.f32 0.0, %v3803
      %v3805 = vpop.f32.mrb[0].mxu0
      %3806 = vmatprep.mubr.bf16.mxu0 %v3228
      %3807 = vmatmul.mubr.bf16.gmra.mrb[0].mxu0 %v3056
      %v3808 = vpop.f32.mrb[0].mxu0
      %v3809 = vadd.f32 0.0, %v3808
      %v3810 = vpop.f32.mrb[0].mxu0
      %v3811 = vpop.f32.mrb[0].mxu0
      %v3812 = vadd.f32 0.0, %v3811
      %v3813 = vpop.f32.mrb[0].mxu0
      %3814 = vmatprep.mubr.bf16.mxu0 %v3231
      %3815 = vmatmul.mubr.bf16.gmra.mrb[0].mxu0 %v3059
      %v3816 = vpop.f32.mrb[0].mxu0
      %v3817 = vadd.f32 0.0, %v3816
      %v3818 = vpop.f32.mrb[0].mxu0
      %v3819 = vpop.f32.mrb[0].mxu0
      %v3820 = vadd.f32 0.0, %v3819
      %v3821 = vpop.f32.mrb[0].mxu0
      %3822 = vmatprep.mubr.bf16.mxu0 %v3234
      %3823 = vmatmul.mubr.bf16.gmra.mrb[0].mxu0 %v3062
      %v3824 = vpop.f32.mrb[0].mxu0
      %v3825 = vadd.f32 0.0, %v3824
      %v3826 = vpop.f32.mrb[0].mxu0
      %v3827 = vpop.f32.mrb[0].mxu0
      %v3828 = vadd.f32 0.0, %v3827
      %v3829 = vpop.f32.mrb[0].mxu0
      %3830 = vmatprep.mubr.bf16.mxu0 %v3237
      %3831 = vmatmul.mubr.bf16.gmra.mrb[0].mxu0 %v3065
      %v3832 = vpop.f32.mrb[0].mxu0
      %v3833 = vadd.f32 0.0, %v3832
      %v3834 = vpop.f32.mrb[0].mxu0
      %v3835 = vpop.f32.mrb[0].mxu0
      %v3836 = vadd.f32 0.0, %v3835
      %v3837 = vpop.f32.mrb[0].mxu0
      %3838 = vmatprep.mubr.bf16.mxu0 %v3240
      %3839 = vmatmul.mubr.bf16.gmra.mrb[0].mxu0 %v3068
      %v3840 = vpop.f32.mrb[0].mxu0
      %v3841 = vadd.f32 0.0, %v3840
      %v3842 = vpop.f32.mrb[0].mxu0
      %v3843 = vpop.f32.mrb[0].mxu0
      %v3844 = vadd.f32 0.0, %v3843
      %v3845 = vpop.f32.mrb[0].mxu0
      %3846 = vmatprep.mubr.bf16.mxu0 %v3243
      %3847 = vmatmul.mubr.bf16.gmra.mrb[0].mxu0 %v3071
      %v3848 = vpop.f32.mrb[0].mxu0
      %v3849 = vadd.f32 0.0, %v3848
      %v3850 = vpop.f32.mrb[0].mxu0
      %v3851 = vpop.f32.mrb[0].mxu0
      %v3852 = vadd.f32 0.0, %v3851
      %v3853 = vpop.f32.mrb[0].mxu0
      %3854 = vmatprep.mubr.bf16.mxu0 %v3246
      %3855 = vmatmul.mubr.bf16.gmra.mrb[0].mxu0 %v3074
      %v3856 = vpop.f32.mrb[0].mxu0
      %v3857 = vadd.f32 0.0, %v3856
      %v3858 = vpop.f32.mrb[0].mxu0
      %v3859 = vpop.f32.mrb[0].mxu0
      %v3860 = vadd.f32 0.0, %v3859
      %v3861 = vpop.f32.mrb[0].mxu0
      %3862 = vmatprep.mubr.bf16.mxu0 %v3249
      %3863 = vmatmul.mubr.bf16.gmra.mrb[0].mxu0 %v3077
      %v3864 = vpop.f32.mrb[0].mxu0
      %v3865 = vadd.f32 0.0, %v3864
      %v3866 = vpop.f32.mrb[0].mxu0
      %v3867 = vpop.f32.mrb[0].mxu0
      %v3868 = vadd.f32 0.0, %v3867
      %v3869 = vpop.f32.mrb[0].mxu0
      %3870 = vmatprep.mubr.bf16.mxu0 %v3252
      %3871 = vmatmul.mubr.bf16.gmra.mrb[0].mxu0 %v3080
      %v3872 = vpop.f32.mrb[0].mxu0
      %v3873 = vadd.f32 0.0, %v3872
      %v3874 = vpop.f32.mrb[0].mxu0
      %v3875 = vpop.f32.mrb[0].mxu0
      %v3876 = vadd.f32 0.0, %v3875
      %v3877 = vpop.f32.mrb[0].mxu0
      %3878 = vmatprep.mubr.bf16.mxu0 %v3255
      %3879 = vmatmul.mubr.bf16.gmra.mrb[0].mxu0 %v3083
      %v3880 = vpop.f32.mrb[0].mxu0
      %v3881 = vadd.f32 0.0, %v3880
      %v3882 = vpop.f32.mrb[0].mxu0
      %v3883 = vpop.f32.mrb[0].mxu0
      %v3884 = vadd.f32 0.0, %v3883
      %v3885 = vpop.f32.mrb[0].mxu0
      %3886 = vmatprep.mubr.bf16.mxu0 %v3258
      %3887 = vmatmul.mubr.bf16.gmra.mrb[0].mxu0 %v3086
      %v3888 = vpop.f32.mrb[0].mxu0
      %v3889 = vadd.f32 0.0, %v3888
      %v3890 = vpop.f32.mrb[0].mxu0
      %v3891 = vpop.f32.mrb[0].mxu0
      %v3892 = vadd.f32 0.0, %v3891
      %v3893 = vpop.f32.mrb[0].mxu0
      %3894 = vmatprep.mubr.bf16.mxu0 %v3261
      %3895 = vmatmul.mubr.bf16.gmra.mrb[0].mxu0 %v3089
      %v3896 = vpop.f32.mrb[0].mxu0
      %v3897 = vadd.f32 0.0, %v3896
      %v3898 = vpop.f32.mrb[0].mxu0
      %v3899 = vpop.f32.mrb[0].mxu0
      %v3900 = vadd.f32 0.0, %v3899
      %v3901 = vpop.f32.mrb[0].mxu0
      %3902 = vmatprep.mubr.bf16.mxu0 %v3264
      %3903 = vmatmul.mubr.bf16.gmra.mrb[0].mxu0 %v3092
      %v3904 = vpop.f32.mrb[0].mxu0
      %v3905 = vadd.f32 0.0, %v3904
      %v3906 = vpop.f32.mrb[0].mxu0
      %v3907 = vpop.f32.mrb[0].mxu0
      %v3908 = vadd.f32 0.0, %v3907
      %v3909 = vpop.f32.mrb[0].mxu0
      %3910 = vmatprep.mubr.bf16.mxu0 %v3267
      %3911 = vmatmul.mubr.bf16.gmra.mrb[0].mxu0 %v3095
      %v3912 = vpop.f32.mrb[0].mxu0
      %v3913 = vadd.f32 0.0, %v3912
      %v3914 = vpop.f32.mrb[0].mxu0
      %v3915 = vpop.f32.mrb[0].mxu0
      %v3916 = vadd.f32 0.0, %v3915
      %v3917 = vpop.f32.mrb[0].mxu0
      %3918 = vmatprep.mubr.bf16.mxu0 %v3764
      %3919 = vmatmul.mubr.bf16.gmra.mrb[0].mxu0 %v3098
      %v3920 = vpop.f32.mrb[0].mxu0
      %v3921 = vadd.f32 0.0, %v3920
      %v3922 = vpop.f32.mrb[0].mxu0
      %v3923 = vpop.f32.mrb[0].mxu0
      %v3924 = vadd.f32 0.0, %v3923
      %v3925 = vpop.f32.mrb[0].mxu0
      %3926 = vdwg.mxu0
      %v3927 = vadd.f32 %v3540, %v3801
      %v3928 = vadd.f32 %v3543, %v3804
      %v3929 = vadd.f32 %v3548, %v3809
      %v3930 = vadd.f32 %v3551, %v3812
      %v3931 = vadd.f32 %v3556, %v3817
      %v3932 = vadd.f32 %v3559, %v3820
      %v3933 = vadd.f32 %v3564, %v3825
      %v3934 = vadd.f32 %v3567, %v3828
      %v3935 = vadd.f32 %v3572, %v3833
      %v3936 = vadd.f32 %v3575, %v3836
      %v3937 = vadd.f32 %v3580, %v3841
      %v3938 = vadd.f32 %v3583, %v3844
      %v3939 = vadd.f32 %v3588, %v3849
      %v3940 = vadd.f32 %v3591, %v3852
      %v3941 = vadd.f32 %v3596, %v3857
      %v3942 = vadd.f32 %v3599, %v3860
      %v3943 = vadd.f32 %v3604, %v3865
      %v3944 = vadd.f32 %v3607, %v3868
      %v3945 = vadd.f32 %v3612, %v3873
      %v3946 = vadd.f32 %v3615, %v3876
      %v3947 = vadd.f32 %v3620, %v3881
      %v3948 = vadd.f32 %v3623, %v3884
      %v3949 = vadd.f32 %v3628, %v3889
      %v3950 = vadd.f32 %v3631, %v3892
      %v3951 = vadd.f32 %v3636, %v3897
      %v3952 = vadd.f32 %v3639, %v3900
      %v3953 = vadd.f32 %v3644, %v3905
      %v3954 = vadd.f32 %v3647, %v3908
      %v3955 = vadd.f32 %v3652, %v3913
      %v3956 = vadd.f32 %v3655, %v3916
      %v3957 = vadd.f32 %v3660, %v3921
      %v3958 = vadd.f32 %v3663, %v3924
      %v3959 = vld [vmem:[%s6] sm:$0x1]
      %v3961 = vlaneseq
      %v3962 = vshrl.u32 %v3961, 7
      %v3963 = vsub.s32 0, %v3962
      %v3964 = vrot.slane %v3959, %v3963
      %v3966 = vadd.f32 %v3927, %v3964
      %v3967 = vadd.f32 %v3928, %v3964
      %v3968 = vadd.f32 %v3929, %v3964
      %v3969 = vadd.f32 %v3930, %v3964
      %v3970 = vadd.f32 %v3931, %v3964
      %v3971 = vadd.f32 %v3932, %v3964
      %v3972 = vadd.f32 %v3933, %v3964
      %v3973 = vadd.f32 %v3934, %v3964
      %v3974 = vadd.f32 %v3935, %v3964
      %v3975 = vadd.f32 %v3936, %v3964
      %v3976 = vadd.f32 %v3937, %v3964
      %v3977 = vadd.f32 %v3938, %v3964
      %v3978 = vadd.f32 %v3939, %v3964
      %v3979 = vadd.f32 %v3940, %v3964
      %v3980 = vadd.f32 %v3941, %v3964
      %v3981 = vadd.f32 %v3942, %v3964
      %v3982 = vadd.f32 %v3943, %v3964
      %v3983 = vadd.f32 %v3944, %v3964
      %v3984 = vadd.f32 %v3945, %v3964
      %v3985 = vadd.f32 %v3946, %v3964
      %v3986 = vadd.f32 %v3947, %v3964
      %v3987 = vadd.f32 %v3948, %v3964
      %v3988 = vadd.f32 %v3949, %v3964
      %v3989 = vadd.f32 %v3950, %v3964
      %v3990 = vadd.f32 %v3951, %v3964
      %v3991 = vadd.f32 %v3952, %v3964
      %v3992 = vadd.f32 %v3953, %v3964
      %v3993 = vadd.f32 %v3954, %v3964
      %v3994 = vadd.f32 %v3955, %v3964
      %v3995 = vadd.f32 %v3956, %v3964
      %v3996 = vadd.f32 %v3957, %v3964
      %v3997 = vadd.f32 %v3958, %v3964
      %v3998 = vld [vmem:[%s510] sm:$0xff]
      %v3999 = vld [vmem:[%s510 + $0x8] sm:$0xff]
      %v4000 = vld [vmem:[%s510 + $0x10] sm:$0xff]
      %v4001 = vld [vmem:[%s510 + $0x18] sm:$0xff]
      %v4002 = vld [vmem:[%s510 + $0x20] sm:$0xff]
      %v4003 = vld [vmem:[%s510 + $0x28] sm:$0xff]
      %v4004 = vld [vmem:[%s510 + $0x30] sm:$0xff]
      %v4005 = vld [vmem:[%s510 + $0x38] sm:$0xff]
      %v4006 = vld [vmem:[%s510 + $0x40] sm:$0xff]
      %v4007 = vld [vmem:[%s510 + $0x48] sm:$0xff]
      %v4008 = vld [vmem:[%s510 + $0x50] sm:$0xff]
      %v4009 = vld [vmem:[%s510 + $0x58] sm:$0xff]
      %v4010 = vld [vmem:[%s510 + $0x60] sm:$0xff]
      %v4011 = vld [vmem:[%s510 + $0x68] sm:$0xff]
      %v4012 = vld [vmem:[%s510 + $0x70] sm:$0xff]
      %v4013 = vld [vmem:[%s510 + $0x78] sm:$0xff]
      %v4014 = vld [vmem:[%s510 + $0x80] sm:$0xff]
      %v4015 = vld [vmem:[%s510 + $0x88] sm:$0xff]
      %v4016 = vld [vmem:[%s510 + $0x90] sm:$0xff]
      %v4017 = vld [vmem:[%s510 + $0x98] sm:$0xff]
      %v4018 = vld [vmem:[%s510 + $0xa0] sm:$0xff]
      %v4019 = vld [vmem:[%s510 + $0xa8] sm:$0xff]
      %v4020 = vld [vmem:[%s510 + $0xb0] sm:$0xff]
      %v4021 = vld [vmem:[%s510 + $0xb8] sm:$0xff]
      %v4022 = vld [vmem:[%s510 + $0xc0] sm:$0xff]
      %v4023 = vld [vmem:[%s510 + $0xc8] sm:$0xff]
      %v4024 = vld [vmem:[%s510 + $0xd0] sm:$0xff]
      %v4025 = vld [vmem:[%s510 + $0xd8] sm:$0xff]
      %v4026 = vld [vmem:[%s510 + $0xe0] sm:$0xff]
      %v4027 = vld [vmem:[%s510 + $0xe8] sm:$0xff]
      %v4028 = vld [vmem:[%s510 + $0xf0] sm:$0xff]
      %v4029 = vld [vmem:[%s510 + $0xf8] sm:$0xff]
      %v4030 = vsub.f32 %v3998, %v3966
      %v4031 = vsub.f32 %v3999, %v3967
      %v4032 = vsub.f32 %v4000, %v3968
      %v4033 = vsub.f32 %v4001, %v3969
      %v4034 = vsub.f32 %v4002, %v3970
      %v4035 = vsub.f32 %v4003, %v3971
      %v4036 = vsub.f32 %v4004, %v3972
      %v4037 = vsub.f32 %v4005, %v3973
      %v4038 = vsub.f32 %v4006, %v3974
      %v4039 = vsub.f32 %v4007, %v3975
      %v4040 = vsub.f32 %v4008, %v3976
      %v4041 = vsub.f32 %v4009, %v3977
      %v4042 = vsub.f32 %v4010, %v3978
      %v4043 = vsub.f32 %v4011, %v3979
      %v4044 = vsub.f32 %v4012, %v3980
      %v4045 = vsub.f32 %v4013, %v3981
      %v4046 = vsub.f32 %v4014, %v3982
      %v4047 = vsub.f32 %v4015, %v3983
      %v4048 = vsub.f32 %v4016, %v3984
      %v4049 = vsub.f32 %v4017, %v3985
      %v4050 = vsub.f32 %v4018, %v3986
      %v4051 = vsub.f32 %v4019, %v3987
      %v4052 = vsub.f32 %v4020, %v3988
      %v4053 = vsub.f32 %v4021, %v3989
      %v4054 = vsub.f32 %v4022, %v3990
      %v4055 = vsub.f32 %v4023, %v3991
      %v4056 = vsub.f32 %v4024, %v3992
      %v4057 = vsub.f32 %v4025, %v3993
      %v4058 = vsub.f32 %v4026, %v3994
      %v4059 = vsub.f32 %v4027, %v3995
      %v4060 = vsub.f32 %v4028, %v3996
      %v4061 = vsub.f32 %v4029, %v3997
      %vm4062 = vcmask 31744
      %4063 = vst.msk [vmem:[%s521] sm:$0xff] %vm4062, %v4030
      %4064 = vst.msk [vmem:[%s521 + $0x8] sm:$0xff] %vm4062, %v4031
      %4065 = vst.msk [vmem:[%s521 + $0x10] sm:$0xff] %vm4062, %v4032
      %4066 = vst.msk [vmem:[%s521 + $0x18] sm:$0xff] %vm4062, %v4033
      %4067 = vst.msk [vmem:[%s521 + $0x20] sm:$0xff] %vm4062, %v4034
      %4068 = vst.msk [vmem:[%s521 + $0x28] sm:$0xff] %vm4062, %v4035
      %4069 = vst.msk [vmem:[%s521 + $0x30] sm:$0xff] %vm4062, %v4036
      %4070 = vst.msk [vmem:[%s521 + $0x38] sm:$0xff] %vm4062, %v4037
      %4071 = vst.msk [vmem:[%s521 + $0x40] sm:$0xff] %vm4062, %v4038
      %4072 = vst.msk [vmem:[%s521 + $0x48] sm:$0xff] %vm4062, %v4039
      %4073 = vst.msk [vmem:[%s521 + $0x50] sm:$0xff] %vm4062, %v4040
      %4074 = vst.msk [vmem:[%s521 + $0x58] sm:$0xff] %vm4062, %v4041
      %4075 = vst.msk [vmem:[%s521 + $0x60] sm:$0xff] %vm4062, %v4042
      %4076 = vst.msk [vmem:[%s521 + $0x68] sm:$0xff] %vm4062, %v4043
      %4077 = vst.msk [vmem:[%s521 + $0x70] sm:$0xff] %vm4062, %v4044
      %4078 = vst.msk [vmem:[%s521 + $0x78] sm:$0xff] %vm4062, %v4045
      %4079 = vst.msk [vmem:[%s521 + $0x80] sm:$0xff] %vm4062, %v4046
      %4080 = vst.msk [vmem:[%s521 + $0x88] sm:$0xff] %vm4062, %v4047
      %4081 = vst.msk [vmem:[%s521 + $0x90] sm:$0xff] %vm4062, %v4048
      %4082 = vst.msk [vmem:[%s521 + $0x98] sm:$0xff] %vm4062, %v4049
      %4083 = vst.msk [vmem:[%s521 + $0xa0] sm:$0xff] %vm4062, %v4050
      %4084 = vst.msk [vmem:[%s521 + $0xa8] sm:$0xff] %vm4062, %v4051
      %4085 = vst.msk [vmem:[%s521 + $0xb0] sm:$0xff] %vm4062, %v4052
      %4086 = vst.msk [vmem:[%s521 + $0xb8] sm:$0xff] %vm4062, %v4053
      %4087 = vst.msk [vmem:[%s521 + $0xc0] sm:$0xff] %vm4062, %v4054
      %4088 = vst.msk [vmem:[%s521 + $0xc8] sm:$0xff] %vm4062, %v4055
      %4089 = vst.msk [vmem:[%s521 + $0xd0] sm:$0xff] %vm4062, %v4056
      %4090 = vst.msk [vmem:[%s521 + $0xd8] sm:$0xff] %vm4062, %v4057
      %4091 = vst.msk [vmem:[%s521 + $0xe0] sm:$0xff] %vm4062, %v4058
      %4092 = vst.msk [vmem:[%s521 + $0xe8] sm:$0xff] %vm4062, %v4059
      %4093 = vst.msk [vmem:[%s521 + $0xf0] sm:$0xff] %vm4062, %v4060
      %4094 = vst.msk [vmem:[%s521 + $0xf8] sm:$0xff] %vm4062, %v4061
      %s4095 = smul.u32 16, %s24
      %p4096 = scmp.lt.s32.totalorder %s23, 1
      %s4097 = scalar_select %p4096, %s23, 1
      %p4098 = scmp.lt.s32.totalorder %s4095, 15
      %s4099 = scalar_select %p4098, %s4095, 15
      %s4100 = smul.addr %s4099, 2
      %s4101 = smul.addr %s4097, 32
      %s4102 = sadd.s32 %s4100, %s4101
      %s4103 = smul.addr %s4102, 8
      %s4104 = scalar_lea.vmem %s8, %s4103
      // Predicated region
      $region53: #{a_call__.5} parent=51 // pred_check
        %p4105 = pneg %p263
      $region54: #{a_call__.5} parent=51 // pred_check_branch
        %4107 = sbr.rel (%p4105) target = $region56
      $region55: #{a_call__.5} parent=51 // pred_region
        %s4108 = smul.u32 16, %s24
      $region56: #{a_call__.5} parent=51 // pred_fallthru
        _
    $region52: #{a_call__.5} parent=5 // pred_fallthru
      _
    %p4109 = scmp.le.s32.totalorder 2, %s14
    // Predicated region
    $region57: #{a_call__.5} parent=5 // pred_check
      %p4110 = pneg %p4109
    $region58: #{a_call__.5} parent=5 // pred_check_branch
      %4112 = sbr.rel (%p4110) target = $region60
    $region59: #{a_call__.5} parent=5 // pred_region
      %s4113 = ssub.s32 %s14, 2
      // Predicated region
      $region61: #{a_call__.5} parent=59 // pred_check
        %p4114 = pneg %p269
      $region62: #{a_call__.5} parent=59 // pred_check_branch
        %4116 = sbr.rel (%p4114) target = $region64
      $region63: #{a_call__.5} parent=59 // pred_region
        %s4117 = smul.u32 16, %s26
        %p4118 = scmp.lt.s32.totalorder %s25, 1
        %s4119 = scalar_select %p4118, %s25, 1
        %p4120 = scmp.lt.s32.totalorder %s4117, 15
        %s4121 = scalar_select %p4120, %s4117, 15
        %s4122 = smul.addr %s4121, 2
        %s4123 = smul.addr %s4119, 32
        %s4124 = sadd.s32 %s4122, %s4123
        %s4125 = smul.addr %s4124, 8
        %s4126 = scalar_lea.vmem %s8, %s4125
      $region64: #{a_call__.5} parent=59 // pred_fallthru
        _
    $region60: #{a_call__.5} parent=5 // pred_fallthru
      _
  $region6: #{a_call__.5} parent=0 // loop_footer
    %s18 = sadd.s32 1, %s14
  $region7: #{a_call__.5} parent=0 // loop_footer_branch
    %13 = sbr.rel target = $region3
  $region8: #{a_call__.5} parent=0 // loop_exit
    _

// kernel: a_call__.3
$region0: #{a_call__.3}
  #allocation0 [shape = 'u32[]', space=smem, size = 0x4, offset = 0x4, fixed_abs, tag = 'smem constant byte address 0x4 - core index']
  #allocation1 [shape = 'u32[144,128]{1,0:T(1,128)}', space=vmem, size = 0x12000, scoped, tag = 'internal scratch']
  %s0 = inlined_call_operand.vmem [shape: bf16[2,16,16,4], index: 0, kind: input, shape index: {}, may-alias: {0,1,2}]
  %s1 = inlined_call_operand.vmem [shape: bf16[2,16,16,4], index: 1, kind: input, shape index: {}, may-alias: {0,1,2}]
  %s2 = inlined_call_operand.vmem [shape: bf16[2,16,16,4], index: 2, kind: input, shape index: {}, may-alias: {0,1,2}]
  %s3 = inlined_call_operand.vmem [shape: bf16[3,12,64], index: 3, kind: input, shape index: {}]
  %s4 = inlined_call_operand.vmem [shape: f32[1,64], index: 4, kind: input, shape index: {}, may-alias: {4,6}]
  %s5 = inlined_call_operand.vmem [shape: bf16[3,192,64], index: 5, kind: input, shape index: {}]
  %s6 = inlined_call_operand.vmem [shape: f32[1,64], index: 6, kind: input, shape index: {}, may-alias: {4,6}]
  %s7 = inlined_call_operand.vmem [shape: bf16[2,16,16,64], index: 7, kind: output, shape index: {}]
  %s8 = sld [smem:[#allocation0]]
  $region61: #{a_call__.3} parent=0
    _
  %s10 = ssub.s32 1, %s8
  %s11 = scalar_select 0, %s10, %s8
  loop: start=0, step=1, limit=4
  $region2: #{a_call__.3} parent=0 // loop_pre_header
    _
  $region3: #{a_call__.3} parent=0 // loop_header
    %s13 = sphi 0, %s17
    %p14 = scmp.ge.s32.totalorder %s13, 4
    %s20 = sphi 0, %s32
    %s21 = sphi 0, %s28
    %s22 = sphi 0, %s20
    %s23 = sphi 0, %s21
    %s24 = sphi 0, %s22
    %s25 = sphi 0, %s23
    %s37 = sphi 0, %s39
    %s40 = sphi 0, %s37
    %s41 = sphi 0, %s40
    %s57 = sphi 0, %s41
    %s73 = sphi 0, %s75
    %s76 = sphi 0, %s73
    %s77 = sphi 0, %s76
    %s93 = sphi 0, %s77
    %s109 = sphi 0, %s111
    %s112 = sphi 0, %s109
    %s113 = sphi 0, %s112
    %s129 = sphi 0, %s113
    %s133 = sphi 0, %s133
    %s135 = sphi 0, %s133
    %s136 = sphi 0, %s135
    %s150 = sphi 0, %s136
    %s154 = sphi 0, %s154
    %s156 = sphi 0, %s154
    %s157 = sphi 0, %s156
    %s171 = sphi 0, %s157
    %s175 = sphi 0, %s175
    %s177 = sphi 0, %s175
    %s178 = sphi 0, %s177
    %s192 = sphi 0, %s178
    %s196 = sphi 0, %s196
    %s198 = sphi 0, %s196
    %s199 = sphi 0, %s198
    %s213 = sphi 0, %s199
    %s221 = sphi 0, %s223
    %s224 = sphi 0, %s221
    %s225 = sphi 0, %s224
    %s241 = sphi 0, %s225
  $region4: #{a_call__.3} parent=0 // loop_header_branch
    %16 = sbr.rel (%p14) target = $region8
  $region5: #{a_call__.3} parent=0 // loop_body
    %s18 = ssub.s32 %s13, 1
    %s19 = ssub.s32 %s13, 2
    %s26 = sadd.s32 1, %s21
    %p27 = scmp.ge.s32.totalorder %s26, 1
    %s28 = scalar_select %p27, 0, %s26
    %s29 = sadd.s32 1, %s20
    %s30 = scalar_select %p27, %s29, %s20
    %p31 = scmp.ge.s32.totalorder %s30, 2
    %s32 = scalar_select %p31, 0, %s30
    %s33 = ssub.s32 %s20, %s32
    %s34 = ssub.s32 %s21, %s28
    %s35 = sor.u32 %s33, %s34
    %p36 = scmp.eq.s32.totalorder %s35, 0
    %s38 = sadd.s32 %s37, 1
    %s39 = scalar_select %p36, %s37, %s38
    %p42 = pneg %p36
    %p43 = scmp.eq.s32.totalorder %s13, 1
    %p44 = por %p42, %p43
    %p45 = scmp.ne.s32.totalorder %s37, %s40
    %p46 = scmp.eq.s32.totalorder %s13, 0
    %p47 = por %p45, %p46
    %p48 = scmp.ne.s32.totalorder %s37, %s40
    %p49 = scmp.eq.s32.totalorder %s18, 1
    %p50 = por %p48, %p49
    %p51 = scmp.ne.s32.totalorder %s40, %s41
    %p52 = scmp.eq.s32.totalorder %s18, 0
    %p53 = por %p51, %p52
    %p54 = scmp.ne.s32.totalorder %s40, %s41
    %p55 = scmp.eq.s32.totalorder %s19, 1
    %p56 = por %p54, %p55
    %p58 = scmp.ne.s32.totalorder %s41, %s57
    %p59 = scmp.eq.s32.totalorder %s19, 0
    %p60 = por %p58, %p59
    %s61 = smul.u32 %s21, 8
    %s62 = ssub.s32 %s61, 1
    %p63 = scmp.gt.s32.totalorder %s62, 0
    %s64 = scalar_select %p63, %s62, 0
    %s65 = smul.u32 %s28, 8
    %s66 = ssub.s32 %s65, 1
    %p67 = scmp.gt.s32.totalorder %s66, 0
    %s68 = scalar_select %p67, %s66, 0
    %s69 = ssub.s32 %s20, %s32
    %s70 = ssub.s32 %s64, %s68
    %s71 = sor.u32 %s69, %s70
    %p72 = scmp.eq.s32.totalorder %s71, 0
    %s74 = sadd.s32 %s73, 1
    %s75 = scalar_select %p72, %s73, %s74
    %p78 = pneg %p72
    %p79 = scmp.eq.s32.totalorder %s13, 1
    %p80 = por %p78, %p79
    %p81 = scmp.ne.s32.totalorder %s73, %s76
    %p82 = scmp.eq.s32.totalorder %s13, 0
    %p83 = por %p81, %p82
    %p84 = scmp.ne.s32.totalorder %s73, %s76
    %p85 = scmp.eq.s32.totalorder %s18, 1
    %p86 = por %p84, %p85
    %p87 = scmp.ne.s32.totalorder %s76, %s77
    %p88 = scmp.eq.s32.totalorder %s18, 0
    %p89 = por %p87, %p88
    %p90 = scmp.ne.s32.totalorder %s76, %s77
    %p91 = scmp.eq.s32.totalorder %s19, 1
    %p92 = por %p90, %p91
    %p94 = scmp.ne.s32.totalorder %s77, %s93
    %p95 = scmp.eq.s32.totalorder %s19, 0
    %p96 = por %p94, %p95
    %s97 = sadd.s32 %s21, 1
    %s98 = smul.u32 %s97, 8
    %p99 = scmp.lt.s32.totalorder %s98, 7
    %s100 = scalar_select %p99, %s98, 7
    %s101 = sadd.s32 %s28, 1
    %s102 = smul.u32 %s101, 8
    %p103 = scmp.lt.s32.totalorder %s102, 7
    %s104 = scalar_select %p103, %s102, 7
    %s105 = ssub.s32 %s20, %s32
    %s106 = ssub.s32 %s100, %s104
    %s107 = sor.u32 %s105, %s106
    %p108 = scmp.eq.s32.totalorder %s107, 0
    %s110 = sadd.s32 %s109, 1
    %s111 = scalar_select %p108, %s109, %s110
    %p114 = pneg %p108
    %p115 = scmp.eq.s32.totalorder %s13, 1
    %p116 = por %p114, %p115
    %p117 = scmp.ne.s32.totalorder %s109, %s112
    %p118 = scmp.eq.s32.totalorder %s13, 0
    %p119 = por %p117, %p118
    %p120 = scmp.ne.s32.totalorder %s109, %s112
    %p121 = scmp.eq.s32.totalorder %s18, 1
    %p122 = por %p120, %p121
    %p123 = scmp.ne.s32.totalorder %s112, %s113
    %p124 = scmp.eq.s32.totalorder %s18, 0
    %p125 = por %p123, %p124
    %p126 = scmp.ne.s32.totalorder %s112, %s113
    %p127 = scmp.eq.s32.totalorder %s19, 1
    %p128 = por %p126, %p127
    %p130 = scmp.ne.s32.totalorder %s113, %s129
    %p131 = scmp.eq.s32.totalorder %s19, 0
    %p132 = por %p130, %p131
    %s134 = sadd.s32 %s133, 1
    %p137 = scmp.eq.s32.totalorder %s13, 1
    %p138 = scmp.ne.s32.totalorder %s133, %s135
    %p139 = scmp.eq.s32.totalorder %s13, 0
    %p140 = por %p138, %p139
    %p141 = scmp.ne.s32.totalorder %s133, %s135
    %p142 = scmp.eq.s32.totalorder %s18, 1
    %p143 = por %p141, %p142
    %p144 = scmp.ne.s32.totalorder %s135, %s136
    %p145 = scmp.eq.s32.totalorder %s18, 0
    %p146 = por %p144, %p145
    %p147 = scmp.ne.s32.totalorder %s135, %s136
    %p148 = scmp.eq.s32.totalorder %s19, 1
    %p149 = por %p147, %p148
    %p151 = scmp.ne.s32.totalorder %s136, %s150
    %p152 = scmp.eq.s32.totalorder %s19, 0
    %p153 = por %p151, %p152
    %s155 = sadd.s32 %s154, 1
    %p158 = scmp.eq.s32.totalorder %s13, 1
    %p159 = scmp.ne.s32.totalorder %s154, %s156
    %p160 = scmp.eq.s32.totalorder %s13, 0
    %p161 = por %p159, %p160
    %p162 = scmp.ne.s32.totalorder %s154, %s156
    %p163 = scmp.eq.s32.totalorder %s18, 1
    %p164 = por %p162, %p163
    %p165 = scmp.ne.s32.totalorder %s156, %s157
    %p166 = scmp.eq.s32.totalorder %s18, 0
    %p167 = por %p165, %p166
    %p168 = scmp.ne.s32.totalorder %s156, %s157
    %p169 = scmp.eq.s32.totalorder %s19, 1
    %p170 = por %p168, %p169
    %p172 = scmp.ne.s32.totalorder %s157, %s171
    %p173 = scmp.eq.s32.totalorder %s19, 0
    %p174 = por %p172, %p173
    %s176 = sadd.s32 %s175, 1
    %p179 = scmp.eq.s32.totalorder %s13, 1
    %p180 = scmp.ne.s32.totalorder %s175, %s177
    %p181 = scmp.eq.s32.totalorder %s13, 0
    %p182 = por %p180, %p181
    %p183 = scmp.ne.s32.totalorder %s175, %s177
    %p184 = scmp.eq.s32.totalorder %s18, 1
    %p185 = por %p183, %p184
    %p186 = scmp.ne.s32.totalorder %s177, %s178
    %p187 = scmp.eq.s32.totalorder %s18, 0
    %p188 = por %p186, %p187
    %p189 = scmp.ne.s32.totalorder %s177, %s178
    %p190 = scmp.eq.s32.totalorder %s19, 1
    %p191 = por %p189, %p190
    %p193 = scmp.ne.s32.totalorder %s178, %s192
    %p194 = scmp.eq.s32.totalorder %s19, 0
    %p195 = por %p193, %p194
    %s197 = sadd.s32 %s196, 1
    %p200 = scmp.eq.s32.totalorder %s13, 1
    %p201 = scmp.ne.s32.totalorder %s196, %s198
    %p202 = scmp.eq.s32.totalorder %s13, 0
    %p203 = por %p201, %p202
    %p204 = scmp.ne.s32.totalorder %s196, %s198
    %p205 = scmp.eq.s32.totalorder %s18, 1
    %p206 = por %p204, %p205
    %p207 = scmp.ne.s32.totalorder %s198, %s199
    %p208 = scmp.eq.s32.totalorder %s18, 0
    %p209 = por %p207, %p208
    %p210 = scmp.ne.s32.totalorder %s198, %s199
    %p211 = scmp.eq.s32.totalorder %s19, 1
    %p212 = por %p210, %p211
    %p214 = scmp.ne.s32.totalorder %s199, %s213
    %p215 = scmp.eq.s32.totalorder %s19, 0
    %p216 = por %p214, %p215
    %s217 = ssub.s32 %s20, %s32
    %s218 = ssub.s32 %s21, %s28
    %s219 = sor.u32 %s217, %s218
    %p220 = scmp.eq.s32.totalorder %s219, 0
    %s222 = sadd.s32 %s221, 1
    %s223 = scalar_select %p220, %s221, %s222
    %p226 = pneg %p220
    %p227 = scmp.eq.s32.totalorder %s13, 1
    %p228 = por %p226, %p227
    %p229 = scmp.ne.s32.totalorder %s221, %s224
    %p230 = scmp.eq.s32.totalorder %s13, 0
    %p231 = por %p229, %p230
    %p232 = scmp.ne.s32.totalorder %s221, %s224
    %p233 = scmp.eq.s32.totalorder %s18, 1
    %p234 = por %p232, %p233
    %p235 = scmp.ne.s32.totalorder %s224, %s225
    %p236 = scmp.eq.s32.totalorder %s18, 0
    %p237 = por %p235, %p236
    %p238 = scmp.ne.s32.totalorder %s224, %s225
    %p239 = scmp.eq.s32.totalorder %s19, 1
    %p240 = por %p238, %p239
    %p242 = scmp.ne.s32.totalorder %s225, %s241
    %p243 = scmp.eq.s32.totalorder %s19, 0
    %p244 = por %p242, %p243
    %p245 = scmp.le.s32.totalorder 1, %s13
    %p246 = scmp.lt.s32.totalorder %s13, 3
    %p247 = pnand %p245, %p246
    %p248 = pneg %p247
    // Predicated region
    $region9: #{a_call__.3} parent=5 // pred_check
      _
    $region10: #{a_call__.3} parent=5 // pred_check_branch
      %250 = sbr.rel (%p247) target = $region12
    $region11: #{a_call__.3} parent=5 // pred_region
      %s251 = ssub.s32 %s13, 1
      // Predicated region
      $region13: #{a_call__.3} parent=11 // pred_check
        %p252 = pneg %p146
      $region14: #{a_call__.3} parent=11 // pred_check_branch
        %254 = sbr.rel (%p252) target = $region16
      $region15: #{a_call__.3} parent=11 // pred_region
        _
      $region16: #{a_call__.3} parent=11 // pred_fallthru
        _
      // Predicated region
      $region17: #{a_call__.3} parent=11 // pred_check
        %p255 = pneg %p167
      $region18: #{a_call__.3} parent=11 // pred_check_branch
        %257 = sbr.rel (%p255) target = $region20
      $region19: #{a_call__.3} parent=11 // pred_region
        _
      $region20: #{a_call__.3} parent=11 // pred_fallthru
        _
      // Predicated region
      $region21: #{a_call__.3} parent=11 // pred_check
        %p258 = pneg %p188
      $region22: #{a_call__.3} parent=11 // pred_check_branch
        %260 = sbr.rel (%p258) target = $region24
      $region23: #{a_call__.3} parent=11 // pred_region
        _
      $region24: #{a_call__.3} parent=11 // pred_fallthru
        _
      // Predicated region
      $region25: #{a_call__.3} parent=11 // pred_check
        %p261 = pneg %p209
      $region26: #{a_call__.3} parent=11 // pred_check_branch
        %263 = sbr.rel (%p261) target = $region28
      $region27: #{a_call__.3} parent=11 // pred_region
        _
      $region28: #{a_call__.3} parent=11 // pred_fallthru
        _
    $region12: #{a_call__.3} parent=5 // pred_fallthru
      _
    %p264 = scmp.lt.s32.totalorder %s13, 2
    // Predicated region
    $region29: #{a_call__.3} parent=5 // pred_check
      %p265 = pneg %p264
    $region30: #{a_call__.3} parent=5 // pred_check_branch
      %267 = sbr.rel (%p265) target = $region32
    $region31: #{a_call__.3} parent=5 // pred_region
      // Predicated region
      $region33: #{a_call__.3} parent=31 // pred_check
        %p268 = pneg %p47
      $region34: #{a_call__.3} parent=31 // pred_check_branch
        %270 = sbr.rel (%p268) target = $region36
      $region35: #{a_call__.3} parent=31 // pred_region
        %s271 = smul.u32 16, %s21
        %p272 = scmp.lt.s32.totalorder %s20, 1
        %s273 = scalar_select %p272, %s20, 1
        %p274 = scmp.lt.s32.totalorder %s271, 15
        %s275 = scalar_select %p274, %s271, 15
        %s276 = smul.addr %s275, 2
        %s277 = smul.addr %s273, 32
        %s278 = sadd.s32 %s276, %s277
        %s279 = smul.addr %s278, 4
        %s280 = scalar_lea.vmem %s0, %s279
        %s281 = smul.u32 16, %s21
      $region36: #{a_call__.3} parent=31 // pred_fallthru
        _
      // Predicated region
      $region37: #{a_call__.3} parent=31 // pred_check
        %p282 = pneg %p83
      $region38: #{a_call__.3} parent=31 // pred_check_branch
        %284 = sbr.rel (%p282) target = $region40
      $region39: #{a_call__.3} parent=31 // pred_region
        %s285 = smul.u32 %s21, 8
        %s286 = ssub.s32 %s285, 1
        %p287 = scmp.gt.s32.totalorder %s286, 0
        %s288 = scalar_select %p287, %s286, 0
        %s289 = smul.u32 2, %s288
        %p290 = scmp.lt.s32.totalorder %s20, 1
        %s291 = scalar_select %p290, %s20, 1
        %p292 = scmp.lt.s32.totalorder %s289, 15
        %s293 = scalar_select %p292, %s289, 15
        %s294 = smul.addr %s293, 2
        %s295 = smul.addr %s291, 32
        %s296 = sadd.s32 %s294, %s295
        %s297 = smul.addr %s296, 4
        %s298 = scalar_lea.vmem %s1, %s297
        %s299 = smul.u32 %s21, 8
        %s300 = ssub.s32 %s299, 1
        %p301 = scmp.gt.s32.totalorder %s300, 0
        %s302 = scalar_select %p301, %s300, 0
        %s303 = smul.u32 2, %s302
      $region40: #{a_call__.3} parent=31 // pred_fallthru
        _
      // Predicated region
      $region41: #{a_call__.3} parent=31 // pred_check
        %p304 = pneg %p119
      $region42: #{a_call__.3} parent=31 // pred_check_branch
        %306 = sbr.rel (%p304) target = $region44
      $region43: #{a_call__.3} parent=31 // pred_region
        %s307 = sadd.s32 %s21, 1
        %s308 = smul.u32 %s307, 8
        %p309 = scmp.lt.s32.totalorder %s308, 7
        %s310 = scalar_select %p309, %s308, 7
        %s311 = smul.u32 2, %s310
        %p312 = scmp.lt.s32.totalorder %s20, 1
        %s313 = scalar_select %p312, %s20, 1
        %p314 = scmp.lt.s32.totalorder %s311, 15
        %s315 = scalar_select %p314, %s311, 15
        %s316 = smul.addr %s315, 2
        %s317 = smul.addr %s313, 32
        %s318 = sadd.s32 %s316, %s317
        %s319 = smul.addr %s318, 4
        %s320 = scalar_lea.vmem %s2, %s319
        %s321 = sadd.s32 %s21, 1
        %s322 = smul.u32 %s321, 8
        %p323 = scmp.lt.s32.totalorder %s322, 7
        %s324 = scalar_select %p323, %s322, 7
        %s325 = smul.u32 2, %s324
      $region44: #{a_call__.3} parent=31 // pred_fallthru
        _
    $region32: #{a_call__.3} parent=5 // pred_fallthru
      _
    %p326 = scmp.le.s32.totalorder 1, %s13
    %p327 = scmp.lt.s32.totalorder %s13, 3
    %p328 = pnand %p326, %p327
    %p329 = pneg %p328
    // Predicated region
    $region45: #{a_call__.3} parent=5 // pred_check
      _
    $region46: #{a_call__.3} parent=5 // pred_check_branch
      %331 = sbr.rel (%p328) target = $region48
    $region47: #{a_call__.3} parent=5 // pred_region
      %s332 = ssub.s32 %s13, 1
      %s333 = smul.u32 16, %s23
      %p334 = scmp.lt.s32.totalorder %s22, 1
      %s335 = scalar_select %p334, %s22, 1
      %p336 = scmp.lt.s32.totalorder %s333, 15
      %s337 = scalar_select %p336, %s333, 15
      %s338 = smul.addr %s337, 2
      %s339 = smul.addr %s335, 32
      %s340 = sadd.s32 %s338, %s339
      %s341 = smul.addr %s340, 4
      %s342 = scalar_lea.vmem %s0, %s341
      %p343 = pneg %p53
      %p344 = pneg %p50
      %s345 = smul.u32 %s23, 8
      %s346 = ssub.s32 %s345, 1
      %p347 = scmp.gt.s32.totalorder %s346, 0
      %s348 = scalar_select %p347, %s346, 0
      %s349 = smul.u32 2, %s348
      %p350 = scmp.lt.s32.totalorder %s22, 1
      %s351 = scalar_select %p350, %s22, 1
      %p352 = scmp.lt.s32.totalorder %s349, 15
      %s353 = scalar_select %p352, %s349, 15
      %s354 = smul.addr %s353, 2
      %s355 = smul.addr %s351, 32
      %s356 = sadd.s32 %s354, %s355
      %s357 = smul.addr %s356, 4
      %s358 = scalar_lea.vmem %s1, %s357
      %p359 = pneg %p89
      %p360 = pneg %p86
      %s361 = sadd.s32 %s23, 1
      %s362 = smul.u32 %s361, 8
      %p363 = scmp.lt.s32.totalorder %s362, 7
      %s364 = scalar_select %p363, %s362, 7
      %s365 = smul.u32 2, %s364
      %p366 = scmp.lt.s32.totalorder %s22, 1
      %s367 = scalar_select %p366, %s22, 1
      %p368 = scmp.lt.s32.totalorder %s365, 15
      %s369 = scalar_select %p368, %s365, 15
      %s370 = smul.addr %s369, 2
      %s371 = smul.addr %s367, 32
      %s372 = sadd.s32 %s370, %s371
      %s373 = smul.addr %s372, 4
      %s374 = scalar_lea.vmem %s2, %s373
      %p375 = pneg %p125
      %p376 = pneg %p122
      %p377 = pneg %p146
      %p378 = pneg %p143
      %p379 = pneg %p167
      %p380 = pneg %p164
      %p381 = pneg %p188
      %p382 = pneg %p185
      %p383 = pneg %p209
      %p384 = pneg %p206
      %p385 = pneg %p237
      %p386 = pneg %p234
      %s387 = smul.u32 16, %s23
      %p388 = scmp.lt.s32.totalorder %s22, 1
      %s389 = scalar_select %p388, %s22, 1
      %p390 = scmp.lt.s32.totalorder %s387, 15
      %s391 = scalar_select %p390, %s387, 15
      %s392 = smul.addr %s391, 2
      %s393 = smul.addr %s389, 32
      %s394 = sadd.s32 %s392, %s393
      %s395 = smul.addr %s394, 4
      %s396 = scalar_lea.vmem %s7, %s395
      %s397 = smul.u32 16, %s23
      %p398 = scmp.lt.s32.totalorder %s22, 1
      %s399 = scalar_select %p398, %s22, 1
      %p400 = scmp.lt.s32.totalorder %s397, 15
      %s401 = scalar_select %p400, %s397, 15
      %s402 = smul.addr %s401, 2
      %s403 = smul.addr %s399, 32
      %s404 = sadd.s32 %s402, %s403
      %s405 = smul.addr %s404, 4
      %s406 = scalar_lea.vmem %s0, %s405
      %s407 = smul.u32 16, %s23
      %s408 = smul.u32 %s23, 8
      %s409 = ssub.s32 %s408, 1
      %p410 = scmp.gt.s32.totalorder %s409, 0
      %s411 = scalar_select %p410, %s409, 0
      %s412 = smul.u32 2, %s411
      %p413 = scmp.lt.s32.totalorder %s22, 1
      %s414 = scalar_select %p413, %s22, 1
      %p415 = scmp.lt.s32.totalorder %s412, 15
      %s416 = scalar_select %p415, %s412, 15
      %s417 = smul.addr %s416, 2
      %s418 = smul.addr %s414, 32
      %s419 = sadd.s32 %s417, %s418
      %s420 = smul.addr %s419, 4
      %s421 = scalar_lea.vmem %s1, %s420
      %s422 = smul.u32 %s23, 8
      %s423 = ssub.s32 %s422, 1
      %p424 = scmp.gt.s32.totalorder %s423, 0
      %s425 = scalar_select %p424, %s423, 0
      %s426 = smul.u32 2, %s425
      %s427 = sadd.s32 %s23, 1
      %s428 = smul.u32 %s427, 8
      %p429 = scmp.lt.s32.totalorder %s428, 7
      %s430 = scalar_select %p429, %s428, 7
      %s431 = smul.u32 2, %s430
      %p432 = scmp.lt.s32.totalorder %s22, 1
      %s433 = scalar_select %p432, %s22, 1
      %p434 = scmp.lt.s32.totalorder %s431, 15
      %s435 = scalar_select %p434, %s431, 15
      %s436 = smul.addr %s435, 2
      %s437 = smul.addr %s433, 32
      %s438 = sadd.s32 %s436, %s437
      %s439 = smul.addr %s438, 4
      %s440 = scalar_lea.vmem %s2, %s439
      %s441 = sadd.s32 %s23, 1
      %s442 = smul.u32 %s441, 8
      %p443 = scmp.lt.s32.totalorder %s442, 7
      %s444 = scalar_select %p443, %s442, 7
      %s445 = smul.u32 2, %s444
      %s446 = smul.u32 16, %s23
      %p447 = scmp.lt.s32.totalorder %s22, 1
      %s448 = scalar_select %p447, %s22, 1
      %p449 = scmp.lt.s32.totalorder %s446, 15
      %s450 = scalar_select %p449, %s446, 15
      %s451 = smul.addr %s450, 2
      %s452 = smul.addr %s448, 32
      %s453 = sadd.s32 %s451, %s452
      %s454 = smul.addr %s453, 4
      %s455 = scalar_lea.vmem %s7, %s454
      %s456 = smul.u32 16, %s23
      %s458 = smul.u32 %s23, 16
      %v459 = vld [vmem:[%s406] sm:$0xf]
      %v460 = vld [vmem:[%s406 + $0x4] sm:$0xf]
      %v461 = vld [vmem:[%s406 + $0x8] sm:$0xf]
      %v462 = vld [vmem:[%s406 + $0xc] sm:$0xf]
      %v463 = vld [vmem:[%s406 + $0x10] sm:$0xf]
      %v464 = vld [vmem:[%s406 + $0x14] sm:$0xf]
      %v465 = vld [vmem:[%s406 + $0x18] sm:$0xf]
      %v466 = vld [vmem:[%s406 + $0x1c] sm:$0xf]
      %v467 = vld [vmem:[%s406 + $0x20] sm:$0xf]
      %v468 = vld [vmem:[%s406 + $0x24] sm:$0xf]
      %v469 = vld [vmem:[%s406 + $0x28] sm:$0xf]
      %v470 = vld [vmem:[%s406 + $0x2c] sm:$0xf]
      %v471 = vld [vmem:[%s406 + $0x30] sm:$0xf]
      %v472 = vld [vmem:[%s406 + $0x34] sm:$0xf]
      %v473 = vld [vmem:[%s406 + $0x38] sm:$0xf]
      %v474 = vld [vmem:[%s406 + $0x3c] sm:$0xf]
      %v475 = vld [vmem:[%s406 + $0x40] sm:$0xf]
      %v476 = vld [vmem:[%s406 + $0x44] sm:$0xf]
      %v477 = vld [vmem:[%s406 + $0x48] sm:$0xf]
      %v478 = vld [vmem:[%s406 + $0x4c] sm:$0xf]
      %v479 = vld [vmem:[%s406 + $0x50] sm:$0xf]
      %v480 = vld [vmem:[%s406 + $0x54] sm:$0xf]
      %v481 = vld [vmem:[%s406 + $0x58] sm:$0xf]
      %v482 = vld [vmem:[%s406 + $0x5c] sm:$0xf]
      %v483 = vld [vmem:[%s406 + $0x60] sm:$0xf]
      %v484 = vld [vmem:[%s406 + $0x64] sm:$0xf]
      %v485 = vld [vmem:[%s406 + $0x68] sm:$0xf]
      %v486 = vld [vmem:[%s406 + $0x6c] sm:$0xf]
      %v487 = vld [vmem:[%s406 + $0x70] sm:$0xf]
      %v488 = vld [vmem:[%s406 + $0x74] sm:$0xf]
      %v489 = vld [vmem:[%s406 + $0x78] sm:$0xf]
      %v490 = vld [vmem:[%s406 + $0x7c] sm:$0xf]
      %p491 = scmp.gt.s32.totalorder %s23, 0
      %v492 = vld [vmem:[%s421] sm:$0xf]
      %v493 = vld [vmem:[%s421 + $0x4] sm:$0xf]
      %v494 = vld [vmem:[%s421 + $0x8] sm:$0xf]
      %v495 = vld [vmem:[%s421 + $0xc] sm:$0xf]
      %s496 = scalar_select %p491, 1, 0
      %v497 = vstv %s496
      %vm498 = vcmp.eq.s32.totalorder %v497, 1
      %v499 = vsel %vm498, %v492, 0
      %v500 = vsel %vm498, %v493, 0
      %v501 = vsel %vm498, %v494, 0
      %v502 = vsel %vm498, %v495, 0
      %p503 = scmp.lt.s32.totalorder %s23, 0
      %v504 = vld [vmem:[%s440] sm:$0xf]
      %v505 = vld [vmem:[%s440 + $0x4] sm:$0xf]
      %v506 = vld [vmem:[%s440 + $0x8] sm:$0xf]
      %v507 = vld [vmem:[%s440 + $0xc] sm:$0xf]
      %s508 = scalar_select %p503, 1, 0
      %v509 = vstv %s508
      %vm510 = vcmp.eq.s32.totalorder %v509, 1
      %v511 = vsel %vm510, %v504, 0
      %v512 = vsel %vm510, %v505, 0
      %v513 = vsel %vm510, %v506, 0
      %v514 = vsel %vm510, %v507, 0
      %v555 = vunpack.c.l.b16 %v499
      %v556 = vunpack.c.l.b16 %v500
      %v557 = vunpack.c.l.b16 %v501
      %v558 = vunpack.c.l.b16 %v502
      %v559 = vunpack.c.l.b16 %v459
      %v560 = vunpack.c.l.b16 %v460
      %v561 = vunpack.c.l.b16 %v461
      %v562 = vunpack.c.l.b16 %v462
      %v563 = vunpack.c.l.b16 %v463
      %v564 = vunpack.c.l.b16 %v464
      %v565 = vunpack.c.l.b16 %v465
      %v566 = vunpack.c.l.b16 %v466
      %v567 = vunpack.c.l.b16 %v467
      %v568 = vunpack.c.l.b16 %v468
      %v569 = vunpack.c.l.b16 %v469
      %v570 = vunpack.c.l.b16 %v470
      %v571 = vunpack.c.l.b16 %v471
      %v572 = vunpack.c.l.b16 %v472
      %v573 = vunpack.c.l.b16 %v473
      %v574 = vunpack.c.l.b16 %v474
      %v575 = vunpack.c.l.b16 %v475
      %v576 = vunpack.c.l.b16 %v476
      %v577 = vunpack.c.l.b16 %v477
      %v578 = vunpack.c.l.b16 %v478
      %v579 = vunpack.c.l.b16 %v479
      %v580 = vunpack.c.l.b16 %v480
      %v581 = vunpack.c.l.b16 %v481
      %v582 = vunpack.c.l.b16 %v482
      %v583 = vunpack.c.l.b16 %v483
      %v584 = vunpack.c.l.b16 %v484
      %v585 = vunpack.c.l.b16 %v485
      %v586 = vunpack.c.l.b16 %v486
      %v587 = vunpack.c.l.b16 %v487
      %v588 = vunpack.c.l.b16 %v488
      %v589 = vunpack.c.l.b16 %v489
      %v590 = vunpack.c.l.b16 %v490
      %v591 = vunpack.c.l.b16 %v511
      %v592 = vunpack.c.l.b16 %v512
      %v593 = vunpack.c.l.b16 %v513
      %v594 = vunpack.c.l.b16 %v514
      %v595 = vpack.c.b16 %v556, %v555
      %v596 = vpack.c.b16 %v558, %v557
      %v597 = vpack.c.b16 %v560, %v559
      %v598 = vpack.c.b16 %v562, %v561
      %v599 = vpack.c.b16 %v564, %v563
      %v600 = vpack.c.b16 %v566, %v565
      %v601 = vpack.c.b16 %v568, %v567
      %v602 = vpack.c.b16 %v570, %v569
      %v603 = vpack.c.b16 %v572, %v571
      %v604 = vpack.c.b16 %v574, %v573
      %v605 = vpack.c.b16 %v576, %v575
      %v606 = vpack.c.b16 %v578, %v577
      %v607 = vpack.c.b16 %v580, %v579
      %v608 = vpack.c.b16 %v582, %v581
      %v609 = vpack.c.b16 %v584, %v583
      %v610 = vpack.c.b16 %v586, %v585
      %v611 = vpack.c.b16 %v588, %v587
      %v612 = vpack.c.b16 %v590, %v589
      %v613 = vpack.c.b16 %v592, %v591
      %v614 = vpack.c.b16 %v594, %v593
      %v616 = vshrl.u32 %v595, 16
      %v618 = vrot.slane %v616, 7
      %v619 = vshll.u32 %v595, 16
      %v621 = vor.u32 %v618, %v619
      %v623 = vshrl.u32 %v596, 16
      %v625 = vrot.slane %v623, 7
      %v626 = vshll.u32 %v596, 16
      %v628 = vor.u32 %v625, %v626
      %v630 = vshrl.u32 %v597, 16
      %v632 = vrot.slane %v630, 7
      %v633 = vshll.u32 %v597, 16
      %v635 = vor.u32 %v632, %v633
      %v637 = vshrl.u32 %v598, 16
      %v639 = vrot.slane %v637, 7
      %v640 = vshll.u32 %v598, 16
      %v642 = vor.u32 %v639, %v640
      %v644 = vshrl.u32 %v599, 16
      %v646 = vrot.slane %v644, 7
      %v647 = vshll.u32 %v599, 16
      %v649 = vor.u32 %v646, %v647
      %v651 = vshrl.u32 %v600, 16
      %v653 = vrot.slane %v651, 7
      %v654 = vshll.u32 %v600, 16
      %v656 = vor.u32 %v653, %v654
      %v658 = vshrl.u32 %v601, 16
      %v660 = vrot.slane %v658, 7
      %v661 = vshll.u32 %v601, 16
      %v663 = vor.u32 %v660, %v661
      %v665 = vshrl.u32 %v602, 16
      %v667 = vrot.slane %v665, 7
      %v668 = vshll.u32 %v602, 16
      %v670 = vor.u32 %v667, %v668
      %v672 = vshrl.u32 %v603, 16
      %v674 = vrot.slane %v672, 7
      %v675 = vshll.u32 %v603, 16
      %v677 = vor.u32 %v674, %v675
      %v679 = vshrl.u32 %v604, 16
      %v681 = vrot.slane %v679, 7
      %v682 = vshll.u32 %v604, 16
      %v684 = vor.u32 %v681, %v682
      %v686 = vshrl.u32 %v605, 16
      %v688 = vrot.slane %v686, 7
      %v689 = vshll.u32 %v605, 16
      %v691 = vor.u32 %v688, %v689
      %v693 = vshrl.u32 %v606, 16
      %v695 = vrot.slane %v693, 7
      %v696 = vshll.u32 %v606, 16
      %v698 = vor.u32 %v695, %v696
      %v700 = vshrl.u32 %v607, 16
      %v702 = vrot.slane %v700, 7
      %v703 = vshll.u32 %v607, 16
      %v705 = vor.u32 %v702, %v703
      %v707 = vshrl.u32 %v608, 16
      %v709 = vrot.slane %v707, 7
      %v710 = vshll.u32 %v608, 16
      %v712 = vor.u32 %v709, %v710
      %v714 = vshrl.u32 %v609, 16
      %v716 = vrot.slane %v714, 7
      %v717 = vshll.u32 %v609, 16
      %v719 = vor.u32 %v716, %v717
      %v721 = vshrl.u32 %v610, 16
      %v723 = vrot.slane %v721, 7
      %v724 = vshll.u32 %v610, 16
      %v726 = vor.u32 %v723, %v724
      %v728 = vshrl.u32 %v611, 16
      %v730 = vrot.slane %v728, 7
      %v731 = vshll.u32 %v611, 16
      %v733 = vor.u32 %v730, %v731
      %v735 = vshrl.u32 %v612, 16
      %v737 = vrot.slane %v735, 7
      %v738 = vshll.u32 %v612, 16
      %v740 = vor.u32 %v737, %v738
      %v742 = vshrl.u32 %v613, 16
      %v744 = vrot.slane %v742, 7
      %v745 = vshll.u32 %v613, 16
      %v747 = vor.u32 %v744, %v745
      %v749 = vshrl.u32 %v614, 16
      %v751 = vrot.slane %v749, 7
      %v752 = vshll.u32 %v614, 16
      %v754 = vor.u32 %v751, %v752
      %vm795 = vcmask 1040384
      %vm796 = vsmask.f32 256
      %vm797 = vmand %vm795, %vm796
      %v798 = vsel %vm797, 0, %v621
      %v799 = vsel %vm797, 0, %v628
      %v800 = vsel %vm797, 0, %v635
      %v801 = vsel %vm797, 0, %v642
      %v802 = vsel %vm797, 0, %v649
      %v803 = vsel %vm797, 0, %v656
      %v804 = vsel %vm797, 0, %v663
      %v805 = vsel %vm797, 0, %v670
      %v806 = vsel %vm797, 0, %v677
      %v807 = vsel %vm797, 0, %v684
      %v808 = vsel %vm797, 0, %v691
      %v809 = vsel %vm797, 0, %v698
      %v810 = vsel %vm797, 0, %v705
      %v811 = vsel %vm797, 0, %v712
      %v812 = vsel %vm797, 0, %v719
      %v813 = vsel %vm797, 0, %v726
      %v814 = vsel %vm797, 0, %v733
      %v815 = vsel %vm797, 0, %v740
      %v816 = vsel %vm797, 0, %v747
      %v817 = vsel %vm797, 0, %v754
      %v818 = vsel %vm797, %v618, 0
      %v819 = vsel %vm797, %v625, 0
      %v820 = vsel %vm797, %v632, 0
      %v821 = vsel %vm797, %v639, 0
      %v822 = vsel %vm797, %v646, 0
      %v823 = vsel %vm797, %v653, 0
      %v824 = vsel %vm797, %v660, 0
      %v825 = vsel %vm797, %v667, 0
      %v826 = vsel %vm797, %v674, 0
      %v827 = vsel %vm797, %v681, 0
      %v828 = vsel %vm797, %v688, 0
      %v829 = vsel %vm797, %v695, 0
      %v830 = vsel %vm797, %v702, 0
      %v831 = vsel %vm797, %v709, 0
      %v832 = vsel %vm797, %v716, 0
      %v833 = vsel %vm797, %v723, 0
      %v834 = vsel %vm797, %v730, 0
      %v835 = vsel %vm797, %v737, 0
      %v836 = vsel %vm797, %v744, 0
      %v837 = vsel %vm797, %v751, 0
      %vm838 = vsmask.f32 7424
      %v840 = vshrl.u32 %v798, 16
      %v842 = vshll.u32 %v798, 16
      %v844 = vrot.slane %v842, 1
      %v845 = vor.u32 %v840, %v844
      %v847 = vshll.u32 %v818, 16
      %v849 = vrot.slane %v847, 1
      %v850 = vsel %vm838, %v845, %v849
      %v852 = vshrl.u32 %v799, 16
      %v854 = vshll.u32 %v799, 16
      %v856 = vrot.slane %v854, 1
      %v857 = vor.u32 %v852, %v856
      %v859 = vshll.u32 %v819, 16
      %v861 = vrot.slane %v859, 1
      %v862 = vsel %vm838, %v857, %v861
      %v864 = vshrl.u32 %v800, 16
      %v866 = vshll.u32 %v800, 16
      %v868 = vrot.slane %v866, 1
      %v869 = vor.u32 %v864, %v868
      %v871 = vshll.u32 %v820, 16
      %v873 = vrot.slane %v871, 1
      %v874 = vsel %vm838, %v869, %v873
      %v876 = vshrl.u32 %v801, 16
      %v878 = vshll.u32 %v801, 16
      %v880 = vrot.slane %v878, 1
      %v881 = vor.u32 %v876, %v880
      %v883 = vshll.u32 %v821, 16
      %v885 = vrot.slane %v883, 1
      %v886 = vsel %vm838, %v881, %v885
      %v888 = vshrl.u32 %v802, 16
      %v890 = vshll.u32 %v802, 16
      %v892 = vrot.slane %v890, 1
      %v893 = vor.u32 %v888, %v892
      %v895 = vshll.u32 %v822, 16
      %v897 = vrot.slane %v895, 1
      %v898 = vsel %vm838, %v893, %v897
      %v900 = vshrl.u32 %v803, 16
      %v902 = vshll.u32 %v803, 16
      %v904 = vrot.slane %v902, 1
      %v905 = vor.u32 %v900, %v904
      %v907 = vshll.u32 %v823, 16
      %v909 = vrot.slane %v907, 1
      %v910 = vsel %vm838, %v905, %v909
      %v912 = vshrl.u32 %v804, 16
      %v914 = vshll.u32 %v804, 16
      %v916 = vrot.slane %v914, 1
      %v917 = vor.u32 %v912, %v916
      %v919 = vshll.u32 %v824, 16
      %v921 = vrot.slane %v919, 1
      %v922 = vsel %vm838, %v917, %v921
      %v924 = vshrl.u32 %v805, 16
      %v926 = vshll.u32 %v805, 16
      %v928 = vrot.slane %v926, 1
      %v929 = vor.u32 %v924, %v928
      %v931 = vshll.u32 %v825, 16
      %v933 = vrot.slane %v931, 1
      %v934 = vsel %vm838, %v929, %v933
      %v936 = vshrl.u32 %v806, 16
      %v938 = vshll.u32 %v806, 16
      %v940 = vrot.slane %v938, 1
      %v941 = vor.u32 %v936, %v940
      %v943 = vshll.u32 %v826, 16
      %v945 = vrot.slane %v943, 1
      %v946 = vsel %vm838, %v941, %v945
      %v948 = vshrl.u32 %v807, 16
      %v950 = vshll.u32 %v807, 16
      %v952 = vrot.slane %v950, 1
      %v953 = vor.u32 %v948, %v952
      %v955 = vshll.u32 %v827, 16
      %v957 = vrot.slane %v955, 1
      %v958 = vsel %vm838, %v953, %v957
      %v960 = vshrl.u32 %v808, 16
      %v962 = vshll.u32 %v808, 16
      %v964 = vrot.slane %v962, 1
      %v965 = vor.u32 %v960, %v964
      %v967 = vshll.u32 %v828, 16
      %v969 = vrot.slane %v967, 1
      %v970 = vsel %vm838, %v965, %v969
      %v972 = vshrl.u32 %v809, 16
      %v974 = vshll.u32 %v809, 16
      %v976 = vrot.slane %v974, 1
      %v977 = vor.u32 %v972, %v976
      %v979 = vshll.u32 %v829, 16
      %v981 = vrot.slane %v979, 1
      %v982 = vsel %vm838, %v977, %v981
      %v984 = vshrl.u32 %v810, 16
      %v986 = vshll.u32 %v810, 16
      %v988 = vrot.slane %v986, 1
      %v989 = vor.u32 %v984, %v988
      %v991 = vshll.u32 %v830, 16
      %v993 = vrot.slane %v991, 1
      %v994 = vsel %vm838, %v989, %v993
      %v996 = vshrl.u32 %v811, 16
      %v998 = vshll.u32 %v811, 16
      %v1000 = vrot.slane %v998, 1
      %v1001 = vor.u32 %v996, %v1000
      %v1003 = vshll.u32 %v831, 16
      %v1005 = vrot.slane %v1003, 1
      %v1006 = vsel %vm838, %v1001, %v1005
      %v1008 = vshrl.u32 %v812, 16
      %v1010 = vshll.u32 %v812, 16
      %v1012 = vrot.slane %v1010, 1
      %v1013 = vor.u32 %v1008, %v1012
      %v1015 = vshll.u32 %v832, 16
      %v1017 = vrot.slane %v1015, 1
      %v1018 = vsel %vm838, %v1013, %v1017
      %v1020 = vshrl.u32 %v813, 16
      %v1022 = vshll.u32 %v813, 16
      %v1024 = vrot.slane %v1022, 1
      %v1025 = vor.u32 %v1020, %v1024
      %v1027 = vshll.u32 %v833, 16
      %v1029 = vrot.slane %v1027, 1
      %v1030 = vsel %vm838, %v1025, %v1029
      %v1032 = vshrl.u32 %v814, 16
      %v1034 = vshll.u32 %v814, 16
      %v1036 = vrot.slane %v1034, 1
      %v1037 = vor.u32 %v1032, %v1036
      %v1039 = vshll.u32 %v834, 16
      %v1041 = vrot.slane %v1039, 1
      %v1042 = vsel %vm838, %v1037, %v1041
      %v1044 = vshrl.u32 %v815, 16
      %v1046 = vshll.u32 %v815, 16
      %v1048 = vrot.slane %v1046, 1
      %v1049 = vor.u32 %v1044, %v1048
      %v1051 = vshll.u32 %v835, 16
      %v1053 = vrot.slane %v1051, 1
      %v1054 = vsel %vm838, %v1049, %v1053
      %v1056 = vshrl.u32 %v816, 16
      %v1058 = vshll.u32 %v816, 16
      %v1060 = vrot.slane %v1058, 1
      %v1061 = vor.u32 %v1056, %v1060
      %v1063 = vshll.u32 %v836, 16
      %v1065 = vrot.slane %v1063, 1
      %v1066 = vsel %vm838, %v1061, %v1065
      %v1068 = vshrl.u32 %v817, 16
      %v1070 = vshll.u32 %v817, 16
      %v1072 = vrot.slane %v1070, 1
      %v1073 = vor.u32 %v1068, %v1072
      %v1075 = vshll.u32 %v837, 16
      %v1077 = vrot.slane %v1075, 1
      %v1078 = vsel %vm838, %v1073, %v1077
      %1079 = vrot.lane.b32.xlu0 %v850, 4
      %v1080 = vpop.permute.xlu0 %1079
      %1081 = vrot.lane.b32.xlu0 %v862, 4
      %v1082 = vpop.permute.xlu0 %1081
      %1083 = vrot.lane.b32.xlu0 %v874, 4
      %v1084 = vpop.permute.xlu0 %1083
      %1085 = vrot.lane.b32.xlu0 %v886, 4
      %v1086 = vpop.permute.xlu0 %1085
      %1087 = vrot.lane.b32.xlu0 %v898, 4
      %v1088 = vpop.permute.xlu0 %1087
      %1089 = vrot.lane.b32.xlu0 %v910, 4
      %v1090 = vpop.permute.xlu0 %1089
      %1091 = vrot.lane.b32.xlu0 %v922, 4
      %v1092 = vpop.permute.xlu0 %1091
      %1093 = vrot.lane.b32.xlu0 %v934, 4
      %v1094 = vpop.permute.xlu0 %1093
      %1095 = vrot.lane.b32.xlu0 %v946, 4
      %v1096 = vpop.permute.xlu0 %1095
      %1097 = vrot.lane.b32.xlu0 %v958, 4
      %v1098 = vpop.permute.xlu0 %1097
      %1099 = vrot.lane.b32.xlu0 %v970, 4
      %v1100 = vpop.permute.xlu0 %1099
      %1101 = vrot.lane.b32.xlu0 %v982, 4
      %v1102 = vpop.permute.xlu0 %1101
      %1103 = vrot.lane.b32.xlu0 %v994, 4
      %v1104 = vpop.permute.xlu0 %1103
      %1105 = vrot.lane.b32.xlu0 %v1006, 4
      %v1106 = vpop.permute.xlu0 %1105
      %1107 = vrot.lane.b32.xlu0 %v1018, 4
      %v1108 = vpop.permute.xlu0 %1107
      %1109 = vrot.lane.b32.xlu0 %v1030, 4
      %v1110 = vpop.permute.xlu0 %1109
      %1111 = vrot.lane.b32.xlu0 %v1042, 4
      %v1112 = vpop.permute.xlu0 %1111
      %1113 = vrot.lane.b32.xlu0 %v1054, 4
      %v1114 = vpop.permute.xlu0 %1113
      %1115 = vrot.lane.b32.xlu0 %v1066, 4
      %v1116 = vpop.permute.xlu0 %1115
      %1117 = vrot.lane.b32.xlu0 %v1078, 4
      %v1118 = vpop.permute.xlu0 %1117
      %vm1159 = vcmask 1046528
      %v1160 = vrot.slane %v798, 1
      %v1161 = vrot.slane %v818, 1
      %v1162 = vsel %vm1159, %v1160, %v1161
      %v1163 = vrot.slane %v799, 1
      %v1164 = vrot.slane %v819, 1
      %v1165 = vsel %vm1159, %v1163, %v1164
      %v1166 = vrot.slane %v800, 1
      %v1167 = vrot.slane %v820, 1
      %v1168 = vsel %vm1159, %v1166, %v1167
      %v1169 = vrot.slane %v801, 1
      %v1170 = vrot.slane %v821, 1
      %v1171 = vsel %vm1159, %v1169, %v1170
      %v1172 = vrot.slane %v802, 1
      %v1173 = vrot.slane %v822, 1
      %v1174 = vsel %vm1159, %v1172, %v1173
      %v1175 = vrot.slane %v803, 1
      %v1176 = vrot.slane %v823, 1
      %v1177 = vsel %vm1159, %v1175, %v1176
      %v1178 = vrot.slane %v804, 1
      %v1179 = vrot.slane %v824, 1
      %v1180 = vsel %vm1159, %v1178, %v1179
      %v1181 = vrot.slane %v805, 1
      %v1182 = vrot.slane %v825, 1
      %v1183 = vsel %vm1159, %v1181, %v1182
      %v1184 = vrot.slane %v806, 1
      %v1185 = vrot.slane %v826, 1
      %v1186 = vsel %vm1159, %v1184, %v1185
      %v1187 = vrot.slane %v807, 1
      %v1188 = vrot.slane %v827, 1
      %v1189 = vsel %vm1159, %v1187, %v1188
      %v1190 = vrot.slane %v808, 1
      %v1191 = vrot.slane %v828, 1
      %v1192 = vsel %vm1159, %v1190, %v1191
      %v1193 = vrot.slane %v809, 1
      %v1194 = vrot.slane %v829, 1
      %v1195 = vsel %vm1159, %v1193, %v1194
      %v1196 = vrot.slane %v810, 1
      %v1197 = vrot.slane %v830, 1
      %v1198 = vsel %vm1159, %v1196, %v1197
      %v1199 = vrot.slane %v811, 1
      %v1200 = vrot.slane %v831, 1
      %v1201 = vsel %vm1159, %v1199, %v1200
      %v1202 = vrot.slane %v812, 1
      %v1203 = vrot.slane %v832, 1
      %v1204 = vsel %vm1159, %v1202, %v1203
      %v1205 = vrot.slane %v813, 1
      %v1206 = vrot.slane %v833, 1
      %v1207 = vsel %vm1159, %v1205, %v1206
      %v1208 = vrot.slane %v814, 1
      %v1209 = vrot.slane %v834, 1
      %v1210 = vsel %vm1159, %v1208, %v1209
      %v1211 = vrot.slane %v815, 1
      %v1212 = vrot.slane %v835, 1
      %v1213 = vsel %vm1159, %v1211, %v1212
      %v1214 = vrot.slane %v816, 1
      %v1215 = vrot.slane %v836, 1
      %v1216 = vsel %vm1159, %v1214, %v1215
      %v1217 = vrot.slane %v817, 1
      %v1218 = vrot.slane %v837, 1
      %v1219 = vsel %vm1159, %v1217, %v1218
      %1220 = vrot.lane.b32.xlu0 %v1162, 8
      %v1221 = vpop.permute.xlu0 %1220
      %1222 = vrot.lane.b32.xlu0 %v1165, 8
      %v1223 = vpop.permute.xlu0 %1222
      %1224 = vrot.lane.b32.xlu0 %v1168, 8
      %v1225 = vpop.permute.xlu0 %1224
      %1226 = vrot.lane.b32.xlu0 %v1171, 8
      %v1227 = vpop.permute.xlu0 %1226
      %1228 = vrot.lane.b32.xlu0 %v1174, 8
      %v1229 = vpop.permute.xlu0 %1228
      %1230 = vrot.lane.b32.xlu0 %v1177, 8
      %v1231 = vpop.permute.xlu0 %1230
      %1232 = vrot.lane.b32.xlu0 %v1180, 8
      %v1233 = vpop.permute.xlu0 %1232
      %1234 = vrot.lane.b32.xlu0 %v1183, 8
      %v1235 = vpop.permute.xlu0 %1234
      %1236 = vrot.lane.b32.xlu0 %v1186, 8
      %v1237 = vpop.permute.xlu0 %1236
      %1238 = vrot.lane.b32.xlu0 %v1189, 8
      %v1239 = vpop.permute.xlu0 %1238
      %1240 = vrot.lane.b32.xlu0 %v1192, 8
      %v1241 = vpop.permute.xlu0 %1240
      %1242 = vrot.lane.b32.xlu0 %v1195, 8
      %v1243 = vpop.permute.xlu0 %1242
      %1244 = vrot.lane.b32.xlu0 %v1198, 8
      %v1245 = vpop.permute.xlu0 %1244
      %1246 = vrot.lane.b32.xlu0 %v1201, 8
      %v1247 = vpop.permute.xlu0 %1246
      %1248 = vrot.lane.b32.xlu0 %v1204, 8
      %v1249 = vpop.permute.xlu0 %1248
      %1250 = vrot.lane.b32.xlu0 %v1207, 8
      %v1251 = vpop.permute.xlu0 %1250
      %1252 = vrot.lane.b32.xlu0 %v1210, 8
      %v1253 = vpop.permute.xlu0 %1252
      %1254 = vrot.lane.b32.xlu0 %v1213, 8
      %v1255 = vpop.permute.xlu0 %1254
      %1256 = vrot.lane.b32.xlu0 %v1216, 8
      %v1257 = vpop.permute.xlu0 %1256
      %1258 = vrot.lane.b32.xlu0 %v1219, 8
      %v1259 = vpop.permute.xlu0 %1258
      %vm1260 = vcmask 31744
      %v1262 = vsel %vm1260, %v798, %v1080
      %v1264 = vsel %vm1260, %v799, %v1082
      %v1266 = vsel %vm1260, %v800, %v1084
      %v1268 = vsel %vm1260, %v801, %v1086
      %v1270 = vsel %vm1260, %v802, %v1088
      %v1272 = vsel %vm1260, %v803, %v1090
      %v1274 = vsel %vm1260, %v804, %v1092
      %v1276 = vsel %vm1260, %v805, %v1094
      %v1278 = vsel %vm1260, %v806, %v1096
      %v1280 = vsel %vm1260, %v807, %v1098
      %v1282 = vsel %vm1260, %v808, %v1100
      %v1284 = vsel %vm1260, %v809, %v1102
      %v1286 = vsel %vm1260, %v810, %v1104
      %v1288 = vsel %vm1260, %v811, %v1106
      %v1290 = vsel %vm1260, %v812, %v1108
      %v1292 = vsel %vm1260, %v813, %v1110
      %v1294 = vsel %vm1260, %v814, %v1112
      %v1296 = vsel %vm1260, %v815, %v1114
      %v1298 = vsel %vm1260, %v816, %v1116
      %v1300 = vsel %vm1260, %v817, %v1118
      %vm1301 = vcmask 64512
      %v1303 = vsel %vm1301, %v1262, %v1221
      %v1305 = vsel %vm1301, %v1264, %v1223
      %v1307 = vsel %vm1301, %v1266, %v1225
      %v1309 = vsel %vm1301, %v1268, %v1227
      %v1311 = vsel %vm1301, %v1270, %v1229
      %v1313 = vsel %vm1301, %v1272, %v1231
      %v1315 = vsel %vm1301, %v1274, %v1233
      %v1317 = vsel %vm1301, %v1276, %v1235
      %v1319 = vsel %vm1301, %v1278, %v1237
      %v1321 = vsel %vm1301, %v1280, %v1239
      %v1323 = vsel %vm1301, %v1282, %v1241
      %v1325 = vsel %vm1301, %v1284, %v1243
      %v1327 = vsel %vm1301, %v1286, %v1245
      %v1329 = vsel %vm1301, %v1288, %v1247
      %v1331 = vsel %vm1301, %v1290, %v1249
      %v1333 = vsel %vm1301, %v1292, %v1251
      %v1335 = vsel %vm1301, %v1294, %v1253
      %v1337 = vsel %vm1301, %v1296, %v1255
      %v1339 = vsel %vm1301, %v1298, %v1257
      %v1341 = vsel %vm1301, %v1300, %v1259
      %v1342 = vld [vmem:[%s3] sm:$0xf]
      %v1343 = vld [vmem:[%s3 + $0x4] sm:$0x3]
      %s1344 = scalar_lea.vmem %s3, 8
      %v1345 = vld [vmem:[%s1344] sm:$0xf]
      %v1346 = vld [vmem:[%s1344 + $0x4] sm:$0x3]
      %v1349 = vunpack.c.l.b16 %v1345
      %v1350 = vunpack.c.l.b16 %v1346
      %v1351 = vpack.c.b16 %v1350, %v1349
      %vm1352 = vcmask 97280
      %v1353 = vsel %vm1352, %v1305, 0
      %v1355 = vsel %vm1352, %v1307, 0
      %v1357 = vsel %vm1352, %v1309, 0
      %v1359 = vsel %vm1352, %v1311, 0
      %v1361 = vsel %vm1352, %v1313, 0
      %v1363 = vsel %vm1352, %v1315, 0
      %v1365 = vsel %vm1352, %v1317, 0
      %v1367 = vsel %vm1352, %v1319, 0
      %v1369 = vsel %vm1352, %v1321, 0
      %v1371 = vsel %vm1352, %v1323, 0
      %v1373 = vsel %vm1352, %v1325, 0
      %v1375 = vsel %vm1352, %v1327, 0
      %v1377 = vsel %vm1352, %v1329, 0
      %v1379 = vsel %vm1352, %v1331, 0
      %v1381 = vsel %vm1352, %v1333, 0
      %v1383 = vsel %vm1352, %v1335, 0
      %v1385 = vsel %vm1352, %v1337, 0
      %v1387 = vsel %vm1352, %v1339, 0
      %vm1389 = vcmask 1045504
      %v1391 = vsel %vm1389, %v1351, 0
      %1393 = vmatprep.subr.bf16.mxu0 0
      %1394 = vmatpush1.bf16.msra.mxu0 %v1391
      %1395 = vmatprep.subr.bf16.mxu0 0
      %1396 = vmatpush1.bf16.msra.mxu0 0
      %1397 = vmatprep.subr.bf16.mxu0 0
      %1398 = vmatpush1.bf16.msra.mxu0 0
      %1399 = vmatprep.subr.bf16.mxu0 0
      %1400 = vmatpush1.bf16.msra.mxu0 0
      %1401 = vmatprep.subr.bf16.mxu0 0
      %1402 = vmatpush1.bf16.msra.mxu0 0
      %1403 = vmatprep.subr.bf16.mxu0 0
      %1404 = vmatpush1.bf16.msra.mxu0 0
      %1405 = vmatprep.subr.bf16.mxu0 0
      %1406 = vmatpush1.bf16.msra.mxu0 0
      %1407 = vmatprep.subr.bf16.mxu0 0
      %1408 = vmatpush1.bf16.msra.mxu0 0
      %1409 = vmatprep.subr.bf16.mxu0 0
      %1410 = vmatpush1.bf16.msra.mxu0 0
      %1411 = vmatprep.subr.bf16.mxu0 0
      %1412 = vmatpush1.bf16.msra.mxu0 0
      %1413 = vmatprep.subr.bf16.mxu0 0
      %1414 = vmatpush1.bf16.msra.mxu0 0
      %1415 = vmatprep.subr.bf16.mxu0 0
      %1416 = vmatpush1.bf16.msra.mxu0 0
      %1417 = vmatprep.subr.bf16.mxu0 0
      %1418 = vmatpush1.bf16.msra.mxu0 0
      %1419 = vmatprep.subr.bf16.mxu0 0
      %1420 = vmatpush1.bf16.msra.mxu0 0
      %1421 = vmatprep.subr.bf16.mxu0 0
      %1422 = vmatpush1.bf16.msra.mxu0 0
      %1423 = vmatprep.subr.bf16.mxu0 0
      %1424 = vmatpush1.bf16.msra.mxu0 0
      %1425 = vmatprep.mubr.bf16.mxu0 0
      %1426 = vmatmul.mubr.bf16.gmra.mrb[0].mxu0 %v1353
      %v1427 = vpop.f32.mrb[0].mxu0
      %v1428 = vadd.f32 0.0, %v1427
      %v1429 = vpop.f32.mrb[0].mxu0
      %v1430 = vpop.f32.mrb[0].mxu0
      %v1431 = vadd.f32 0.0, %v1430
      %v1432 = vpop.f32.mrb[0].mxu0
      %1433 = vmatprep.mubr.bf16.mxu0 0
      %1434 = vmatmul.mubr.bf16.gmra.mrb[0].mxu0 %v1355
      %v1435 = vpop.f32.mrb[0].mxu0
      %v1436 = vadd.f32 0.0, %v1435
      %v1437 = vpop.f32.mrb[0].mxu0
      %v1438 = vpop.f32.mrb[0].mxu0
      %v1439 = vadd.f32 0.0, %v1438
      %v1440 = vpop.f32.mrb[0].mxu0
      %1441 = vmatprep.mubr.bf16.mxu0 0
      %1442 = vmatmul.mubr.bf16.gmra.mrb[0].mxu0 %v1357
      %v1443 = vpop.f32.mrb[0].mxu0
      %v1444 = vadd.f32 0.0, %v1443
      %v1445 = vpop.f32.mrb[0].mxu0
      %v1446 = vpop.f32.mrb[0].mxu0
      %v1447 = vadd.f32 0.0, %v1446
      %v1448 = vpop.f32.mrb[0].mxu0
      %1449 = vmatprep.mubr.bf16.mxu0 0
      %1450 = vmatmul.mubr.bf16.gmra.mrb[0].mxu0 %v1359
      %v1451 = vpop.f32.mrb[0].mxu0
      %v1452 = vadd.f32 0.0, %v1451
      %v1453 = vpop.f32.mrb[0].mxu0
      %v1454 = vpop.f32.mrb[0].mxu0
      %v1455 = vadd.f32 0.0, %v1454
      %v1456 = vpop.f32.mrb[0].mxu0
      %1457 = vmatprep.mubr.bf16.mxu0 0
      %1458 = vmatmul.mubr.bf16.gmra.mrb[0].mxu0 %v1361
      %v1459 = vpop.f32.mrb[0].mxu0
      %v1460 = vadd.f32 0.0, %v1459
      %v1461 = vpop.f32.mrb[0].mxu0
      %v1462 = vpop.f32.mrb[0].mxu0
      %v1463 = vadd.f32 0.0, %v1462
      %v1464 = vpop.f32.mrb[0].mxu0
      %1465 = vmatprep.mubr.bf16.mxu0 0
      %1466 = vmatmul.mubr.bf16.gmra.mrb[0].mxu0 %v1363
      %v1467 = vpop.f32.mrb[0].mxu0
      %v1468 = vadd.f32 0.0, %v1467
      %v1469 = vpop.f32.mrb[0].mxu0
      %v1470 = vpop.f32.mrb[0].mxu0
      %v1471 = vadd.f32 0.0, %v1470
      %v1472 = vpop.f32.mrb[0].mxu0
      %1473 = vmatprep.mubr.bf16.mxu0 0
      %1474 = vmatmul.mubr.bf16.gmra.mrb[0].mxu0 %v1365
      %v1475 = vpop.f32.mrb[0].mxu0
      %v1476 = vadd.f32 0.0, %v1475
      %v1477 = vpop.f32.mrb[0].mxu0
      %v1478 = vpop.f32.mrb[0].mxu0
      %v1479 = vadd.f32 0.0, %v1478
      %v1480 = vpop.f32.mrb[0].mxu0
      %1481 = vmatprep.mubr.bf16.mxu0 0
      %1482 = vmatmul.mubr.bf16.gmra.mrb[0].mxu0 %v1367
      %v1483 = vpop.f32.mrb[0].mxu0
      %v1484 = vadd.f32 0.0, %v1483
      %v1485 = vpop.f32.mrb[0].mxu0
      %v1486 = vpop.f32.mrb[0].mxu0
      %v1487 = vadd.f32 0.0, %v1486
      %v1488 = vpop.f32.mrb[0].mxu0
      %1489 = vmatprep.mubr.bf16.mxu0 0
      %1490 = vmatmul.mubr.bf16.gmra.mrb[0].mxu0 %v1369
      %v1491 = vpop.f32.mrb[0].mxu0
      %v1492 = vadd.f32 0.0, %v1491
      %v1493 = vpop.f32.mrb[0].mxu0
      %v1494 = vpop.f32.mrb[0].mxu0
      %v1495 = vadd.f32 0.0, %v1494
      %v1496 = vpop.f32.mrb[0].mxu0
      %1497 = vmatprep.mubr.bf16.mxu0 0
      %1498 = vmatmul.mubr.bf16.gmra.mrb[0].mxu0 %v1371
      %v1499 = vpop.f32.mrb[0].mxu0
      %v1500 = vadd.f32 0.0, %v1499
      %v1501 = vpop.f32.mrb[0].mxu0
      %v1502 = vpop.f32.mrb[0].mxu0
      %v1503 = vadd.f32 0.0, %v1502
      %v1504 = vpop.f32.mrb[0].mxu0
      %1505 = vmatprep.mubr.bf16.mxu0 0
      %1506 = vmatmul.mubr.bf16.gmra.mrb[0].mxu0 %v1373
      %v1507 = vpop.f32.mrb[0].mxu0
      %v1508 = vadd.f32 0.0, %v1507
      %v1509 = vpop.f32.mrb[0].mxu0
      %v1510 = vpop.f32.mrb[0].mxu0
      %v1511 = vadd.f32 0.0, %v1510
      %v1512 = vpop.f32.mrb[0].mxu0
      %1513 = vmatprep.mubr.bf16.mxu0 0
      %1514 = vmatmul.mubr.bf16.gmra.mrb[0].mxu0 %v1375
      %v1515 = vpop.f32.mrb[0].mxu0
      %v1516 = vadd.f32 0.0, %v1515
      %v1517 = vpop.f32.mrb[0].mxu0
      %v1518 = vpop.f32.mrb[0].mxu0
      %v1519 = vadd.f32 0.0, %v1518
      %v1520 = vpop.f32.mrb[0].mxu0
      %1521 = vmatprep.mubr.bf16.mxu0 0
      %1522 = vmatmul.mubr.bf16.gmra.mrb[0].mxu0 %v1377
      %v1523 = vpop.f32.mrb[0].mxu0
      %v1524 = vadd.f32 0.0, %v1523
      %v1525 = vpop.f32.mrb[0].mxu0
      %v1526 = vpop.f32.mrb[0].mxu0
      %v1527 = vadd.f32 0.0, %v1526
      %v1528 = vpop.f32.mrb[0].mxu0
      %1529 = vmatprep.mubr.bf16.mxu0 0
      %1530 = vmatmul.mubr.bf16.gmra.mrb[0].mxu0 %v1379
      %v1531 = vpop.f32.mrb[0].mxu0
      %v1532 = vadd.f32 0.0, %v1531
      %v1533 = vpop.f32.mrb[0].mxu0
      %v1534 = vpop.f32.mrb[0].mxu0
      %v1535 = vadd.f32 0.0, %v1534
      %v1536 = vpop.f32.mrb[0].mxu0
      %1537 = vmatprep.mubr.bf16.mxu0 0
      %1538 = vmatmul.mubr.bf16.gmra.mrb[0].mxu0 %v1381
      %v1539 = vpop.f32.mrb[0].mxu0
      %v1540 = vadd.f32 0.0, %v1539
      %v1541 = vpop.f32.mrb[0].mxu0
      %v1542 = vpop.f32.mrb[0].mxu0
      %v1543 = vadd.f32 0.0, %v1542
      %v1544 = vpop.f32.mrb[0].mxu0
      %1545 = vmatprep.mubr.bf16.mxu0 0
      %1546 = vmatmul.mubr.bf16.gmra.mrb[0].mxu0 %v1383
      %v1547 = vpop.f32.mrb[0].mxu0
      %v1548 = vadd.f32 0.0, %v1547
      %v1549 = vpop.f32.mrb[0].mxu0
      %v1550 = vpop.f32.mrb[0].mxu0
      %v1551 = vadd.f32 0.0, %v1550
      %v1552 = vpop.f32.mrb[0].mxu0
      %1553 = vmatprep.mubr.bf16.mxu0 0
      %1554 = vmatmul.mubr.bf16.gmra.mrb[0].mxu0 %v1385
      %v1555 = vpop.f32.mrb[0].mxu0
      %v1556 = vadd.f32 0.0, %v1555
      %v1557 = vpop.f32.mrb[0].mxu0
      %v1558 = vpop.f32.mrb[0].mxu0
      %v1559 = vadd.f32 0.0, %v1558
      %v1560 = vpop.f32.mrb[0].mxu0
      %1561 = vmatprep.mubr.bf16.mxu0 0
      %1562 = vmatmul.mubr.bf16.gmra.mrb[0].mxu0 %v1387
      %v1563 = vpop.f32.mrb[0].mxu0
      %v1564 = vadd.f32 0.0, %v1563
      %v1565 = vpop.f32.mrb[0].mxu0
      %v1566 = vpop.f32.mrb[0].mxu0
      %v1567 = vadd.f32 0.0, %v1566
      %v1568 = vpop.f32.mrb[0].mxu0
      %1569 = vdwg.mxu0
      %v1572 = vunpack.c.l.b16 %v1342
      %v1573 = vunpack.c.l.b16 %v1343
      %v1574 = vpack.c.b16 %v1573, %v1572
      %v1575 = vsel %vm1352, %v1303, 0
      %v1578 = vsel %vm1389, %v1574, 0
      %1580 = vmatprep.subr.bf16.mxu0 0
      %1581 = vmatpush1.bf16.msra.mxu0 %v1578
      %1582 = vmatprep.subr.bf16.mxu0 0
      %1583 = vmatpush1.bf16.msra.mxu0 0
      %1584 = vmatprep.subr.bf16.mxu0 0
      %1585 = vmatpush1.bf16.msra.mxu0 0
      %1586 = vmatprep.subr.bf16.mxu0 0
      %1587 = vmatpush1.bf16.msra.mxu0 0
      %1588 = vmatprep.subr.bf16.mxu0 0
      %1589 = vmatpush1.bf16.msra.mxu0 0
      %1590 = vmatprep.subr.bf16.mxu0 0
      %1591 = vmatpush1.bf16.msra.mxu0 0
      %1592 = vmatprep.subr.bf16.mxu0 0
      %1593 = vmatpush1.bf16.msra.mxu0 0
      %1594 = vmatprep.subr.bf16.mxu0 0
      %1595 = vmatpush1.bf16.msra.mxu0 0
      %1596 = vmatprep.subr.bf16.mxu0 0
      %1597 = vmatpush1.bf16.msra.mxu0 0
      %1598 = vmatprep.subr.bf16.mxu0 0
      %1599 = vmatpush1.bf16.msra.mxu0 0
      %1600 = vmatprep.subr.bf16.mxu0 0
      %1601 = vmatpush1.bf16.msra.mxu0 0
      %1602 = vmatprep.subr.bf16.mxu0 0
      %1603 = vmatpush1.bf16.msra.mxu0 0
      %1604 = vmatprep.subr.bf16.mxu0 0
      %1605 = vmatpush1.bf16.msra.mxu0 0
      %1606 = vmatprep.subr.bf16.mxu0 0
      %1607 = vmatpush1.bf16.msra.mxu0 0
      %1608 = vmatprep.subr.bf16.mxu0 0
      %1609 = vmatpush1.bf16.msra.mxu0 0
      %1610 = vmatprep.subr.bf16.mxu0 0
      %1611 = vmatpush1.bf16.msra.mxu0 0
      %1612 = vmatprep.mubr.bf16.mxu0 0
      %1613 = vmatmul.mubr.bf16.gmra.mrb[0].mxu0 %v1575
      %v1614 = vpop.f32.mrb[0].mxu0
      %v1615 = vadd.f32 %v1428, %v1614
      %v1616 = vpop.f32.mrb[0].mxu0
      %v1617 = vpop.f32.mrb[0].mxu0
      %v1618 = vadd.f32 %v1431, %v1617
      %v1619 = vpop.f32.mrb[0].mxu0
      %1620 = vmatprep.mubr.bf16.mxu0 0
      %1621 = vmatmul.mubr.bf16.gmra.mrb[0].mxu0 %v1353
      %v1622 = vpop.f32.mrb[0].mxu0
      %v1623 = vadd.f32 %v1436, %v1622
      %v1624 = vpop.f32.mrb[0].mxu0
      %v1625 = vpop.f32.mrb[0].mxu0
      %v1626 = vadd.f32 %v1439, %v1625
      %v1627 = vpop.f32.mrb[0].mxu0
      %1628 = vmatprep.mubr.bf16.mxu0 0
      %1629 = vmatmul.mubr.bf16.gmra.mrb[0].mxu0 %v1355
      %v1630 = vpop.f32.mrb[0].mxu0
      %v1631 = vadd.f32 %v1444, %v1630
      %v1632 = vpop.f32.mrb[0].mxu0
      %v1633 = vpop.f32.mrb[0].mxu0
      %v1634 = vadd.f32 %v1447, %v1633
      %v1635 = vpop.f32.mrb[0].mxu0
      %1636 = vmatprep.mubr.bf16.mxu0 0
      %1637 = vmatmul.mubr.bf16.gmra.mrb[0].mxu0 %v1357
      %v1638 = vpop.f32.mrb[0].mxu0
      %v1639 = vadd.f32 %v1452, %v1638
      %v1640 = vpop.f32.mrb[0].mxu0
      %v1641 = vpop.f32.mrb[0].mxu0
      %v1642 = vadd.f32 %v1455, %v1641
      %v1643 = vpop.f32.mrb[0].mxu0
      %1644 = vmatprep.mubr.bf16.mxu0 0
      %1645 = vmatmul.mubr.bf16.gmra.mrb[0].mxu0 %v1359
      %v1646 = vpop.f32.mrb[0].mxu0
      %v1647 = vadd.f32 %v1460, %v1646
      %v1648 = vpop.f32.mrb[0].mxu0
      %v1649 = vpop.f32.mrb[0].mxu0
      %v1650 = vadd.f32 %v1463, %v1649
      %v1651 = vpop.f32.mrb[0].mxu0
      %1652 = vmatprep.mubr.bf16.mxu0 0
      %1653 = vmatmul.mubr.bf16.gmra.mrb[0].mxu0 %v1361
      %v1654 = vpop.f32.mrb[0].mxu0
      %v1655 = vadd.f32 %v1468, %v1654
      %v1656 = vpop.f32.mrb[0].mxu0
      %v1657 = vpop.f32.mrb[0].mxu0
      %v1658 = vadd.f32 %v1471, %v1657
      %v1659 = vpop.f32.mrb[0].mxu0
      %1660 = vmatprep.mubr.bf16.mxu0 0
      %1661 = vmatmul.mubr.bf16.gmra.mrb[0].mxu0 %v1363
      %v1662 = vpop.f32.mrb[0].mxu0
      %v1663 = vadd.f32 %v1476, %v1662
      %v1664 = vpop.f32.mrb[0].mxu0
      %v1665 = vpop.f32.mrb[0].mxu0
      %v1666 = vadd.f32 %v1479, %v1665
      %v1667 = vpop.f32.mrb[0].mxu0
      %1668 = vmatprep.mubr.bf16.mxu0 0
      %1669 = vmatmul.mubr.bf16.gmra.mrb[0].mxu0 %v1365
      %v1670 = vpop.f32.mrb[0].mxu0
      %v1671 = vadd.f32 %v1484, %v1670
      %v1672 = vpop.f32.mrb[0].mxu0
      %v1673 = vpop.f32.mrb[0].mxu0
      %v1674 = vadd.f32 %v1487, %v1673
      %v1675 = vpop.f32.mrb[0].mxu0
      %1676 = vmatprep.mubr.bf16.mxu0 0
      %1677 = vmatmul.mubr.bf16.gmra.mrb[0].mxu0 %v1367
      %v1678 = vpop.f32.mrb[0].mxu0
      %v1679 = vadd.f32 %v1492, %v1678
      %v1680 = vpop.f32.mrb[0].mxu0
      %v1681 = vpop.f32.mrb[0].mxu0
      %v1682 = vadd.f32 %v1495, %v1681
      %v1683 = vpop.f32.mrb[0].mxu0
      %1684 = vmatprep.mubr.bf16.mxu0 0
      %1685 = vmatmul.mubr.bf16.gmra.mrb[0].mxu0 %v1369
      %v1686 = vpop.f32.mrb[0].mxu0
      %v1687 = vadd.f32 %v1500, %v1686
      %v1688 = vpop.f32.mrb[0].mxu0
      %v1689 = vpop.f32.mrb[0].mxu0
      %v1690 = vadd.f32 %v1503, %v1689
      %v1691 = vpop.f32.mrb[0].mxu0
      %1692 = vmatprep.mubr.bf16.mxu0 0
      %1693 = vmatmul.mubr.bf16.gmra.mrb[0].mxu0 %v1371
      %v1694 = vpop.f32.mrb[0].mxu0
      %v1695 = vadd.f32 %v1508, %v1694
      %v1696 = vpop.f32.mrb[0].mxu0
      %v1697 = vpop.f32.mrb[0].mxu0
      %v1698 = vadd.f32 %v1511, %v1697
      %v1699 = vpop.f32.mrb[0].mxu0
      %1700 = vmatprep.mubr.bf16.mxu0 0
      %1701 = vmatmul.mubr.bf16.gmra.mrb[0].mxu0 %v1373
      %v1702 = vpop.f32.mrb[0].mxu0
      %v1703 = vadd.f32 %v1516, %v1702
      %v1704 = vpop.f32.mrb[0].mxu0
      %v1705 = vpop.f32.mrb[0].mxu0
      %v1706 = vadd.f32 %v1519, %v1705
      %v1707 = vpop.f32.mrb[0].mxu0
      %1708 = vmatprep.mubr.bf16.mxu0 0
      %1709 = vmatmul.mubr.bf16.gmra.mrb[0].mxu0 %v1375
      %v1710 = vpop.f32.mrb[0].mxu0
      %v1711 = vadd.f32 %v1524, %v1710
      %v1712 = vpop.f32.mrb[0].mxu0
      %v1713 = vpop.f32.mrb[0].mxu0
      %v1714 = vadd.f32 %v1527, %v1713
      %v1715 = vpop.f32.mrb[0].mxu0
      %1716 = vmatprep.mubr.bf16.mxu0 0
      %1717 = vmatmul.mubr.bf16.gmra.mrb[0].mxu0 %v1377
      %v1718 = vpop.f32.mrb[0].mxu0
      %v1719 = vadd.f32 %v1532, %v1718
      %v1720 = vpop.f32.mrb[0].mxu0
      %v1721 = vpop.f32.mrb[0].mxu0
      %v1722 = vadd.f32 %v1535, %v1721
      %v1723 = vpop.f32.mrb[0].mxu0
      %1724 = vmatprep.mubr.bf16.mxu0 0
      %1725 = vmatmul.mubr.bf16.gmra.mrb[0].mxu0 %v1379
      %v1726 = vpop.f32.mrb[0].mxu0
      %v1727 = vadd.f32 %v1540, %v1726
      %v1728 = vpop.f32.mrb[0].mxu0
      %v1729 = vpop.f32.mrb[0].mxu0
      %v1730 = vadd.f32 %v1543, %v1729
      %v1731 = vpop.f32.mrb[0].mxu0
      %1732 = vmatprep.mubr.bf16.mxu0 0
      %1733 = vmatmul.mubr.bf16.gmra.mrb[0].mxu0 %v1381
      %v1734 = vpop.f32.mrb[0].mxu0
      %v1735 = vadd.f32 %v1548, %v1734
      %v1736 = vpop.f32.mrb[0].mxu0
      %v1737 = vpop.f32.mrb[0].mxu0
      %v1738 = vadd.f32 %v1551, %v1737
      %v1739 = vpop.f32.mrb[0].mxu0
      %1740 = vmatprep.mubr.bf16.mxu0 0
      %1741 = vmatmul.mubr.bf16.gmra.mrb[0].mxu0 %v1383
      %v1742 = vpop.f32.mrb[0].mxu0
      %v1743 = vadd.f32 %v1556, %v1742
      %v1744 = vpop.f32.mrb[0].mxu0
      %v1745 = vpop.f32.mrb[0].mxu0
      %v1746 = vadd.f32 %v1559, %v1745
      %v1747 = vpop.f32.mrb[0].mxu0
      %1748 = vmatprep.mubr.bf16.mxu0 0
      %1749 = vmatmul.mubr.bf16.gmra.mrb[0].mxu0 %v1385
      %v1750 = vpop.f32.mrb[0].mxu0
      %v1751 = vadd.f32 %v1564, %v1750
      %v1752 = vpop.f32.mrb[0].mxu0
      %v1753 = vpop.f32.mrb[0].mxu0
      %v1754 = vadd.f32 %v1567, %v1753
      %v1755 = vpop.f32.mrb[0].mxu0
      %1756 = vdwg.mxu0
      %s1757 = scalar_lea.vmem %s3, 16
      %v1758 = vld [vmem:[%s1757] sm:$0xf]
      %v1759 = vld [vmem:[%s1757 + $0x4] sm:$0x3]
      %v1762 = vunpack.c.l.b16 %v1758
      %v1763 = vunpack.c.l.b16 %v1759
      %v1764 = vpack.c.b16 %v1763, %v1762
      %v1765 = vsel %vm1352, %v1341, 0
      %v1768 = vsel %vm1389, %v1764, 0
      %1770 = vmatprep.subr.bf16.mxu0 0
      %1771 = vmatpush1.bf16.msra.mxu0 %v1768
      %1772 = vmatprep.subr.bf16.mxu0 0
      %1773 = vmatpush1.bf16.msra.mxu0 0
      %1774 = vmatprep.subr.bf16.mxu0 0
      %1775 = vmatpush1.bf16.msra.mxu0 0
      %1776 = vmatprep.subr.bf16.mxu0 0
      %1777 = vmatpush1.bf16.msra.mxu0 0
      %1778 = vmatprep.subr.bf16.mxu0 0
      %1779 = vmatpush1.bf16.msra.mxu0 0
      %1780 = vmatprep.subr.bf16.mxu0 0
      %1781 = vmatpush1.bf16.msra.mxu0 0
      %1782 = vmatprep.subr.bf16.mxu0 0
      %1783 = vmatpush1.bf16.msra.mxu0 0
      %1784 = vmatprep.subr.bf16.mxu0 0
      %1785 = vmatpush1.bf16.msra.mxu0 0
      %1786 = vmatprep.subr.bf16.mxu0 0
      %1787 = vmatpush1.bf16.msra.mxu0 0
      %1788 = vmatprep.subr.bf16.mxu0 0
      %1789 = vmatpush1.bf16.msra.mxu0 0
      %1790 = vmatprep.subr.bf16.mxu0 0
      %1791 = vmatpush1.bf16.msra.mxu0 0
      %1792 = vmatprep.subr.bf16.mxu0 0
      %1793 = vmatpush1.bf16.msra.mxu0 0
      %1794 = vmatprep.subr.bf16.mxu0 0
      %1795 = vmatpush1.bf16.msra.mxu0 0
      %1796 = vmatprep.subr.bf16.mxu0 0
      %1797 = vmatpush1.bf16.msra.mxu0 0
      %1798 = vmatprep.subr.bf16.mxu0 0
      %1799 = vmatpush1.bf16.msra.mxu0 0
      %1800 = vmatprep.subr.bf16.mxu0 0
      %1801 = vmatpush1.bf16.msra.mxu0 0
      %1802 = vmatprep.mubr.bf16.mxu0 0
      %1803 = vmatmul.mubr.bf16.gmra.mrb[0].mxu0 %v1355
      %v1804 = vpop.f32.mrb[0].mxu0
      %v1805 = vadd.f32 0.0, %v1804
      %v1806 = vpop.f32.mrb[0].mxu0
      %v1807 = vpop.f32.mrb[0].mxu0
      %v1808 = vadd.f32 0.0, %v1807
      %v1809 = vpop.f32.mrb[0].mxu0
      %1810 = vmatprep.mubr.bf16.mxu0 0
      %1811 = vmatmul.mubr.bf16.gmra.mrb[0].mxu0 %v1357
      %v1812 = vpop.f32.mrb[0].mxu0
      %v1813 = vadd.f32 0.0, %v1812
      %v1814 = vpop.f32.mrb[0].mxu0
      %v1815 = vpop.f32.mrb[0].mxu0
      %v1816 = vadd.f32 0.0, %v1815
      %v1817 = vpop.f32.mrb[0].mxu0
      %1818 = vmatprep.mubr.bf16.mxu0 0
      %1819 = vmatmul.mubr.bf16.gmra.mrb[0].mxu0 %v1359
      %v1820 = vpop.f32.mrb[0].mxu0
      %v1821 = vadd.f32 0.0, %v1820
      %v1822 = vpop.f32.mrb[0].mxu0
      %v1823 = vpop.f32.mrb[0].mxu0
      %v1824 = vadd.f32 0.0, %v1823
      %v1825 = vpop.f32.mrb[0].mxu0
      %1826 = vmatprep.mubr.bf16.mxu0 0
      %1827 = vmatmul.mubr.bf16.gmra.mrb[0].mxu0 %v1361
      %v1828 = vpop.f32.mrb[0].mxu0
      %v1829 = vadd.f32 0.0, %v1828
      %v1830 = vpop.f32.mrb[0].mxu0
      %v1831 = vpop.f32.mrb[0].mxu0
      %v1832 = vadd.f32 0.0, %v1831
      %v1833 = vpop.f32.mrb[0].mxu0
      %1834 = vmatprep.mubr.bf16.mxu0 0
      %1835 = vmatmul.mubr.bf16.gmra.mrb[0].mxu0 %v1363
      %v1836 = vpop.f32.mrb[0].mxu0
      %v1837 = vadd.f32 0.0, %v1836
      %v1838 = vpop.f32.mrb[0].mxu0
      %v1839 = vpop.f32.mrb[0].mxu0
      %v1840 = vadd.f32 0.0, %v1839
      %v1841 = vpop.f32.mrb[0].mxu0
      %1842 = vmatprep.mubr.bf16.mxu0 0
      %1843 = vmatmul.mubr.bf16.gmra.mrb[0].mxu0 %v1365
      %v1844 = vpop.f32.mrb[0].mxu0
      %v1845 = vadd.f32 0.0, %v1844
      %v1846 = vpop.f32.mrb[0].mxu0
      %v1847 = vpop.f32.mrb[0].mxu0
      %v1848 = vadd.f32 0.0, %v1847
      %v1849 = vpop.f32.mrb[0].mxu0
      %1850 = vmatprep.mubr.bf16.mxu0 0
      %1851 = vmatmul.mubr.bf16.gmra.mrb[0].mxu0 %v1367
      %v1852 = vpop.f32.mrb[0].mxu0
      %v1853 = vadd.f32 0.0, %v1852
      %v1854 = vpop.f32.mrb[0].mxu0
      %v1855 = vpop.f32.mrb[0].mxu0
      %v1856 = vadd.f32 0.0, %v1855
      %v1857 = vpop.f32.mrb[0].mxu0
      %1858 = vmatprep.mubr.bf16.mxu0 0
      %1859 = vmatmul.mubr.bf16.gmra.mrb[0].mxu0 %v1369
      %v1860 = vpop.f32.mrb[0].mxu0
      %v1861 = vadd.f32 0.0, %v1860
      %v1862 = vpop.f32.mrb[0].mxu0
      %v1863 = vpop.f32.mrb[0].mxu0
      %v1864 = vadd.f32 0.0, %v1863
      %v1865 = vpop.f32.mrb[0].mxu0
      %1866 = vmatprep.mubr.bf16.mxu0 0
      %1867 = vmatmul.mubr.bf16.gmra.mrb[0].mxu0 %v1371
      %v1868 = vpop.f32.mrb[0].mxu0
      %v1869 = vadd.f32 0.0, %v1868
      %v1870 = vpop.f32.mrb[0].mxu0
      %v1871 = vpop.f32.mrb[0].mxu0
      %v1872 = vadd.f32 0.0, %v1871
      %v1873 = vpop.f32.mrb[0].mxu0
      %1874 = vmatprep.mubr.bf16.mxu0 0
      %1875 = vmatmul.mubr.bf16.gmra.mrb[0].mxu0 %v1373
      %v1876 = vpop.f32.mrb[0].mxu0
      %v1877 = vadd.f32 0.0, %v1876
      %v1878 = vpop.f32.mrb[0].mxu0
      %v1879 = vpop.f32.mrb[0].mxu0
      %v1880 = vadd.f32 0.0, %v1879
      %v1881 = vpop.f32.mrb[0].mxu0
      %1882 = vmatprep.mubr.bf16.mxu0 0
      %1883 = vmatmul.mubr.bf16.gmra.mrb[0].mxu0 %v1375
      %v1884 = vpop.f32.mrb[0].mxu0
      %v1885 = vadd.f32 0.0, %v1884
      %v1886 = vpop.f32.mrb[0].mxu0
      %v1887 = vpop.f32.mrb[0].mxu0
      %v1888 = vadd.f32 0.0, %v1887
      %v1889 = vpop.f32.mrb[0].mxu0
      %1890 = vmatprep.mubr.bf16.mxu0 0
      %1891 = vmatmul.mubr.bf16.gmra.mrb[0].mxu0 %v1377
      %v1892 = vpop.f32.mrb[0].mxu0
      %v1893 = vadd.f32 0.0, %v1892
      %v1894 = vpop.f32.mrb[0].mxu0
      %v1895 = vpop.f32.mrb[0].mxu0
      %v1896 = vadd.f32 0.0, %v1895
      %v1897 = vpop.f32.mrb[0].mxu0
      %1898 = vmatprep.mubr.bf16.mxu0 0
      %1899 = vmatmul.mubr.bf16.gmra.mrb[0].mxu0 %v1379
      %v1900 = vpop.f32.mrb[0].mxu0
      %v1901 = vadd.f32 0.0, %v1900
      %v1902 = vpop.f32.mrb[0].mxu0
      %v1903 = vpop.f32.mrb[0].mxu0
      %v1904 = vadd.f32 0.0, %v1903
      %v1905 = vpop.f32.mrb[0].mxu0
      %1906 = vmatprep.mubr.bf16.mxu0 0
      %1907 = vmatmul.mubr.bf16.gmra.mrb[0].mxu0 %v1381
      %v1908 = vpop.f32.mrb[0].mxu0
      %v1909 = vadd.f32 0.0, %v1908
      %v1910 = vpop.f32.mrb[0].mxu0
      %v1911 = vpop.f32.mrb[0].mxu0
      %v1912 = vadd.f32 0.0, %v1911
      %v1913 = vpop.f32.mrb[0].mxu0
      %1914 = vmatprep.mubr.bf16.mxu0 0
      %1915 = vmatmul.mubr.bf16.gmra.mrb[0].mxu0 %v1383
      %v1916 = vpop.f32.mrb[0].mxu0
      %v1917 = vadd.f32 0.0, %v1916
      %v1918 = vpop.f32.mrb[0].mxu0
      %v1919 = vpop.f32.mrb[0].mxu0
      %v1920 = vadd.f32 0.0, %v1919
      %v1921 = vpop.f32.mrb[0].mxu0
      %1922 = vmatprep.mubr.bf16.mxu0 0
      %1923 = vmatmul.mubr.bf16.gmra.mrb[0].mxu0 %v1385
      %v1924 = vpop.f32.mrb[0].mxu0
      %v1925 = vadd.f32 0.0, %v1924
      %v1926 = vpop.f32.mrb[0].mxu0
      %v1927 = vpop.f32.mrb[0].mxu0
      %v1928 = vadd.f32 0.0, %v1927
      %v1929 = vpop.f32.mrb[0].mxu0
      %1930 = vmatprep.mubr.bf16.mxu0 0
      %1931 = vmatmul.mubr.bf16.gmra.mrb[0].mxu0 %v1387
      %v1932 = vpop.f32.mrb[0].mxu0
      %v1933 = vadd.f32 0.0, %v1932
      %v1934 = vpop.f32.mrb[0].mxu0
      %v1935 = vpop.f32.mrb[0].mxu0
      %v1936 = vadd.f32 0.0, %v1935
      %v1937 = vpop.f32.mrb[0].mxu0
      %1938 = vmatprep.mubr.bf16.mxu0 0
      %1939 = vmatmul.mubr.bf16.gmra.mrb[0].mxu0 %v1765
      %v1940 = vpop.f32.mrb[0].mxu0
      %v1941 = vadd.f32 0.0, %v1940
      %v1942 = vpop.f32.mrb[0].mxu0
      %v1943 = vpop.f32.mrb[0].mxu0
      %v1944 = vadd.f32 0.0, %v1943
      %v1945 = vpop.f32.mrb[0].mxu0
      %1946 = vdwg.mxu0
      %v1947 = vadd.f32 %v1615, %v1805
      %v1948 = vadd.f32 %v1618, %v1808
      %v1949 = vadd.f32 %v1623, %v1813
      %v1950 = vadd.f32 %v1626, %v1816
      %v1951 = vadd.f32 %v1631, %v1821
      %v1952 = vadd.f32 %v1634, %v1824
      %v1953 = vadd.f32 %v1639, %v1829
      %v1954 = vadd.f32 %v1642, %v1832
      %v1955 = vadd.f32 %v1647, %v1837
      %v1956 = vadd.f32 %v1650, %v1840
      %v1957 = vadd.f32 %v1655, %v1845
      %v1958 = vadd.f32 %v1658, %v1848
      %v1959 = vadd.f32 %v1663, %v1853
      %v1960 = vadd.f32 %v1666, %v1856
      %v1961 = vadd.f32 %v1671, %v1861
      %v1962 = vadd.f32 %v1674, %v1864
      %v1963 = vadd.f32 %v1679, %v1869
      %v1964 = vadd.f32 %v1682, %v1872
      %v1965 = vadd.f32 %v1687, %v1877
      %v1966 = vadd.f32 %v1690, %v1880
      %v1967 = vadd.f32 %v1695, %v1885
      %v1968 = vadd.f32 %v1698, %v1888
      %v1969 = vadd.f32 %v1703, %v1893
      %v1970 = vadd.f32 %v1706, %v1896
      %v1971 = vadd.f32 %v1711, %v1901
      %v1972 = vadd.f32 %v1714, %v1904
      %v1973 = vadd.f32 %v1719, %v1909
      %v1974 = vadd.f32 %v1722, %v1912
      %v1975 = vadd.f32 %v1727, %v1917
      %v1976 = vadd.f32 %v1730, %v1920
      %v1977 = vadd.f32 %v1735, %v1925
      %v1978 = vadd.f32 %v1738, %v1928
      %v1979 = vadd.f32 %v1743, %v1933
      %v1980 = vadd.f32 %v1746, %v1936
      %v1981 = vadd.f32 %v1751, %v1941
      %v1982 = vadd.f32 %v1754, %v1944
      %v1983 = vld [vmem:[%s4] sm:$0x1]
      %v1985 = vlaneseq
      %v1986 = vshrl.u32 %v1985, 7
      %v1987 = vsub.s32 0, %v1986
      %v1988 = vrot.slane %v1983, %v1987
      %v1990 = vadd.f32 %v1947, %v1988
      %v1991 = vadd.f32 %v1948, %v1988
      %v1992 = vadd.f32 %v1949, %v1988
      %v1993 = vadd.f32 %v1950, %v1988
      %v1994 = vadd.f32 %v1951, %v1988
      %v1995 = vadd.f32 %v1952, %v1988
      %v1996 = vadd.f32 %v1953, %v1988
      %v1997 = vadd.f32 %v1954, %v1988
      %v1998 = vadd.f32 %v1955, %v1988
      %v1999 = vadd.f32 %v1956, %v1988
      %v2000 = vadd.f32 %v1957, %v1988
      %v2001 = vadd.f32 %v1958, %v1988
      %v2002 = vadd.f32 %v1959, %v1988
      %v2003 = vadd.f32 %v1960, %v1988
      %v2004 = vadd.f32 %v1961, %v1988
      %v2005 = vadd.f32 %v1962, %v1988
      %v2006 = vadd.f32 %v1963, %v1988
      %v2007 = vadd.f32 %v1964, %v1988
      %v2008 = vadd.f32 %v1965, %v1988
      %v2009 = vadd.f32 %v1966, %v1988
      %v2010 = vadd.f32 %v1967, %v1988
      %v2011 = vadd.f32 %v1968, %v1988
      %v2012 = vadd.f32 %v1969, %v1988
      %v2013 = vadd.f32 %v1970, %v1988
      %v2014 = vadd.f32 %v1971, %v1988
      %v2015 = vadd.f32 %v1972, %v1988
      %v2016 = vadd.f32 %v1973, %v1988
      %v2017 = vadd.f32 %v1974, %v1988
      %v2018 = vadd.f32 %v1975, %v1988
      %v2019 = vadd.f32 %v1976, %v1988
      %v2020 = vadd.f32 %v1977, %v1988
      %v2021 = vadd.f32 %v1978, %v1988
      %v2022 = vadd.f32 %v1979, %v1988
      %v2023 = vadd.f32 %v1980, %v1988
      %v2024 = vadd.f32 %v1981, %v1988
      %v2025 = vadd.f32 %v1982, %v1988
      %v2026 = vmax.f32 %v1990, 0.0
      %v2027 = vmax.f32 %v1991, 0.0
      %v2028 = vmax.f32 %v1992, 0.0
      %v2029 = vmax.f32 %v1993, 0.0
      %v2030 = vmax.f32 %v1994, 0.0
      %v2031 = vmax.f32 %v1995, 0.0
      %v2032 = vmax.f32 %v1996, 0.0
      %v2033 = vmax.f32 %v1997, 0.0
      %v2034 = vmax.f32 %v1998, 0.0
      %v2035 = vmax.f32 %v1999, 0.0
      %v2036 = vmax.f32 %v2000, 0.0
      %v2037 = vmax.f32 %v2001, 0.0
      %v2038 = vmax.f32 %v2002, 0.0
      %v2039 = vmax.f32 %v2003, 0.0
      %v2040 = vmax.f32 %v2004, 0.0
      %v2041 = vmax.f32 %v2005, 0.0
      %v2042 = vmax.f32 %v2006, 0.0
      %v2043 = vmax.f32 %v2007, 0.0
      %v2044 = vmax.f32 %v2008, 0.0
      %v2045 = vmax.f32 %v2009, 0.0
      %v2046 = vmax.f32 %v2010, 0.0
      %v2047 = vmax.f32 %v2011, 0.0
      %v2048 = vmax.f32 %v2012, 0.0
      %v2049 = vmax.f32 %v2013, 0.0
      %v2050 = vmax.f32 %v2014, 0.0
      %v2051 = vmax.f32 %v2015, 0.0
      %v2052 = vmax.f32 %v2016, 0.0
      %v2053 = vmax.f32 %v2017, 0.0
      %v2054 = vmax.f32 %v2018, 0.0
      %v2055 = vmax.f32 %v2019, 0.0
      %v2056 = vmax.f32 %v2020, 0.0
      %v2057 = vmax.f32 %v2021, 0.0
      %v2058 = vmax.f32 %v2022, 0.0
      %v2059 = vmax.f32 %v2023, 0.0
      %v2060 = vmax.f32 %v2024, 0.0
      %v2061 = vmax.f32 %v2025, 0.0
      %s2062 = ssub.s32 %s458, 1
      %v2063 = vstv %s2062
      %v2064 = vadd.s32 %v2063, 1
      %v2065 = vadd.s32 %v2063, 2
      %v2066 = vadd.s32 %v2063, 3
      %v2067 = vadd.s32 %v2063, 4
      %v2068 = vadd.s32 %v2063, 5
      %v2069 = vadd.s32 %v2063, 6
      %v2070 = vadd.s32 %v2063, 7
      %v2071 = vadd.s32 %v2063, 8
      %v2072 = vadd.s32 %v2063, 9
      %v2073 = vadd.s32 %v2063, 10
      %v2074 = vadd.s32 %v2063, 11
      %v2075 = vadd.s32 %v2063, 12
      %v2076 = vadd.s32 %v2063, 13
      %v2077 = vadd.s32 %v2063, 14
      %v2078 = vadd.s32 %v2063, 15
      %v2079 = vadd.s32 %v2063, 16
      %v2080 = vadd.s32 %v2063, 17
      %vm2081 = vcmp.ge.s32.totalorder %v2063, 0
      %vm2082 = vcmp.ge.s32.totalorder %v2064, 0
      %vm2083 = vcmp.ge.s32.totalorder %v2065, 0
      %vm2084 = vcmp.ge.s32.totalorder %v2066, 0
      %vm2085 = vcmp.ge.s32.totalorder %v2067, 0
      %vm2086 = vcmp.ge.s32.totalorder %v2068, 0
      %vm2087 = vcmp.ge.s32.totalorder %v2069, 0
      %vm2088 = vcmp.ge.s32.totalorder %v2070, 0
      %vm2089 = vcmp.ge.s32.totalorder %v2071, 0
      %vm2090 = vcmp.ge.s32.totalorder %v2072, 0
      %vm2091 = vcmp.ge.s32.totalorder %v2073, 0
      %vm2092 = vcmp.ge.s32.totalorder %v2074, 0
      %vm2093 = vcmp.ge.s32.totalorder %v2075, 0
      %vm2094 = vcmp.ge.s32.totalorder %v2076, 0
      %vm2095 = vcmp.ge.s32.totalorder %v2077, 0
      %vm2096 = vcmp.ge.s32.totalorder %v2078, 0
      %vm2097 = vcmp.ge.s32.totalorder %v2079, 0
      %vm2098 = vcmp.ge.s32.totalorder %v2080, 0
      %vm2099 = vcmp.lt.s32.totalorder %v2063, 16
      %vm2100 = vcmp.lt.s32.totalorder %v2064, 16
      %vm2101 = vcmp.lt.s32.totalorder %v2065, 16
      %vm2102 = vcmp.lt.s32.totalorder %v2066, 16
      %vm2103 = vcmp.lt.s32.totalorder %v2067, 16
      %vm2104 = vcmp.lt.s32.totalorder %v2068, 16
      %vm2105 = vcmp.lt.s32.totalorder %v2069, 16
      %vm2106 = vcmp.lt.s32.totalorder %v2070, 16
      %vm2107 = vcmp.lt.s32.totalorder %v2071, 16
      %vm2108 = vcmp.lt.s32.totalorder %v2072, 16
      %vm2109 = vcmp.lt.s32.totalorder %v2073, 16
      %vm2110 = vcmp.lt.s32.totalorder %v2074, 16
      %vm2111 = vcmp.lt.s32.totalorder %v2075, 16
      %vm2112 = vcmp.lt.s32.totalorder %v2076, 16
      %vm2113 = vcmp.lt.s32.totalorder %v2077, 16
      %vm2114 = vcmp.lt.s32.totalorder %v2078, 16
      %vm2115 = vcmp.lt.s32.totalorder %v2079, 16
      %vm2116 = vcmp.lt.s32.totalorder %v2080, 16
      %vm2117 = vmand %vm2081, %vm2099
      %vm2118 = vmand %vm2082, %vm2100
      %vm2119 = vmand %vm2083, %vm2101
      %vm2120 = vmand %vm2084, %vm2102
      %vm2121 = vmand %vm2085, %vm2103
      %vm2122 = vmand %vm2086, %vm2104
      %vm2123 = vmand %vm2087, %vm2105
      %vm2124 = vmand %vm2088, %vm2106
      %vm2125 = vmand %vm2089, %vm2107
      %vm2126 = vmand %vm2090, %vm2108
      %vm2127 = vmand %vm2091, %vm2109
      %vm2128 = vmand %vm2092, %vm2110
      %vm2129 = vmand %vm2093, %vm2111
      %vm2130 = vmand %vm2094, %vm2112
      %vm2131 = vmand %vm2095, %vm2113
      %vm2132 = vmand %vm2096, %vm2114
      %vm2133 = vmand %vm2097, %vm2115
      %vm2134 = vmand %vm2098, %vm2116
      %v2135 = vsel %vm2117, 1, 0
      %v2136 = vsel %vm2118, 1, 0
      %v2137 = vsel %vm2119, 1, 0
      %v2138 = vsel %vm2120, 1, 0
      %v2139 = vsel %vm2121, 1, 0
      %v2140 = vsel %vm2122, 1, 0
      %v2141 = vsel %vm2123, 1, 0
      %v2142 = vsel %vm2124, 1, 0
      %v2143 = vsel %vm2125, 1, 0
      %v2144 = vsel %vm2126, 1, 0
      %v2145 = vsel %vm2127, 1, 0
      %v2146 = vsel %vm2128, 1, 0
      %v2147 = vsel %vm2129, 1, 0
      %v2148 = vsel %vm2130, 1, 0
      %v2149 = vsel %vm2131, 1, 0
      %v2150 = vsel %vm2132, 1, 0
      %v2151 = vsel %vm2133, 1, 0
      %v2152 = vsel %vm2134, 1, 0
      %vm2153 = vcmp.eq.s32.totalorder %v2135, 1
      %vm2154 = vcmp.eq.s32.totalorder %v2136, 1
      %vm2155 = vcmp.eq.s32.totalorder %v2137, 1
      %vm2156 = vcmp.eq.s32.totalorder %v2138, 1
      %vm2157 = vcmp.eq.s32.totalorder %v2139, 1
      %vm2158 = vcmp.eq.s32.totalorder %v2140, 1
      %vm2159 = vcmp.eq.s32.totalorder %v2141, 1
      %vm2160 = vcmp.eq.s32.totalorder %v2142, 1
      %vm2161 = vcmp.eq.s32.totalorder %v2143, 1
      %vm2162 = vcmp.eq.s32.totalorder %v2144, 1
      %vm2163 = vcmp.eq.s32.totalorder %v2145, 1
      %vm2164 = vcmp.eq.s32.totalorder %v2146, 1
      %vm2165 = vcmp.eq.s32.totalorder %v2147, 1
      %vm2166 = vcmp.eq.s32.totalorder %v2148, 1
      %vm2167 = vcmp.eq.s32.totalorder %v2149, 1
      %vm2168 = vcmp.eq.s32.totalorder %v2150, 1
      %vm2169 = vcmp.eq.s32.totalorder %v2151, 1
      %vm2170 = vcmp.eq.s32.totalorder %v2152, 1
      %v2171 = vsel %vm2153, %v2026, 0.0
      %v2172 = vsel %vm2153, %v2027, 0.0
      %v2173 = vsel %vm2154, %v2028, 0.0
      %v2174 = vsel %vm2154, %v2029, 0.0
      %v2175 = vsel %vm2155, %v2030, 0.0
      %v2176 = vsel %vm2155, %v2031, 0.0
      %v2177 = vsel %vm2156, %v2032, 0.0
      %v2178 = vsel %vm2156, %v2033, 0.0
      %v2179 = vsel %vm2157, %v2034, 0.0
      %v2180 = vsel %vm2157, %v2035, 0.0
      %v2181 = vsel %vm2158, %v2036, 0.0
      %v2182 = vsel %vm2158, %v2037, 0.0
      %v2183 = vsel %vm2159, %v2038, 0.0
      %v2184 = vsel %vm2159, %v2039, 0.0
      %v2185 = vsel %vm2160, %v2040, 0.0
      %v2186 = vsel %vm2160, %v2041, 0.0
      %v2187 = vsel %vm2161, %v2042, 0.0
      %v2188 = vsel %vm2161, %v2043, 0.0
      %v2189 = vsel %vm2162, %v2044, 0.0
      %v2190 = vsel %vm2162, %v2045, 0.0
      %v2191 = vsel %vm2163, %v2046, 0.0
      %v2192 = vsel %vm2163, %v2047, 0.0
      %v2193 = vsel %vm2164, %v2048, 0.0
      %v2194 = vsel %vm2164, %v2049, 0.0
      %v2195 = vsel %vm2165, %v2050, 0.0
      %v2196 = vsel %vm2165, %v2051, 0.0
      %v2197 = vsel %vm2166, %v2052, 0.0
      %v2198 = vsel %vm2166, %v2053, 0.0
      %v2199 = vsel %vm2167, %v2054, 0.0
      %v2200 = vsel %vm2167, %v2055, 0.0
      %v2201 = vsel %vm2168, %v2056, 0.0
      %v2202 = vsel %vm2168, %v2057, 0.0
      %v2203 = vsel %vm2169, %v2058, 0.0
      %v2204 = vsel %vm2169, %v2059, 0.0
      %v2205 = vsel %vm2170, %v2060, 0.0
      %v2206 = vsel %vm2170, %v2061, 0.0
      %v2207 = vpack.c.bf16 %v2172, %v2171
      %v2208 = vpack.c.bf16 %v2174, %v2173
      %v2209 = vpack.c.bf16 %v2176, %v2175
      %v2210 = vpack.c.bf16 %v2178, %v2177
      %v2211 = vpack.c.bf16 %v2180, %v2179
      %v2212 = vpack.c.bf16 %v2182, %v2181
      %v2213 = vpack.c.bf16 %v2184, %v2183
      %v2214 = vpack.c.bf16 %v2186, %v2185
      %v2215 = vpack.c.bf16 %v2188, %v2187
      %v2216 = vpack.c.bf16 %v2190, %v2189
      %v2217 = vpack.c.bf16 %v2192, %v2191
      %v2218 = vpack.c.bf16 %v2194, %v2193
      %v2219 = vpack.c.bf16 %v2196, %v2195
      %v2220 = vpack.c.bf16 %v2198, %v2197
      %v2221 = vpack.c.bf16 %v2200, %v2199
      %v2222 = vpack.c.bf16 %v2202, %v2201
      %v2223 = vpack.c.bf16 %v2204, %v2203
      %v2224 = vpack.c.bf16 %v2206, %v2205
      %v2226 = vshrl.u32 %v2207, 16
      %v2228 = vrot.slane %v2226, 7
      %v2229 = vshll.u32 %v2207, 16
      %v2231 = vor.u32 %v2228, %v2229
      %v2233 = vshrl.u32 %v2208, 16
      %v2235 = vrot.slane %v2233, 7
      %v2236 = vshll.u32 %v2208, 16
      %v2238 = vor.u32 %v2235, %v2236
      %v2240 = vshrl.u32 %v2209, 16
      %v2242 = vrot.slane %v2240, 7
      %v2243 = vshll.u32 %v2209, 16
      %v2245 = vor.u32 %v2242, %v2243
      %v2247 = vshrl.u32 %v2210, 16
      %v2249 = vrot.slane %v2247, 7
      %v2250 = vshll.u32 %v2210, 16
      %v2252 = vor.u32 %v2249, %v2250
      %v2254 = vshrl.u32 %v2211, 16
      %v2256 = vrot.slane %v2254, 7
      %v2257 = vshll.u32 %v2211, 16
      %v2259 = vor.u32 %v2256, %v2257
      %v2261 = vshrl.u32 %v2212, 16
      %v2263 = vrot.slane %v2261, 7
      %v2264 = vshll.u32 %v2212, 16
      %v2266 = vor.u32 %v2263, %v2264
      %v2268 = vshrl.u32 %v2213, 16
      %v2270 = vrot.slane %v2268, 7
      %v2271 = vshll.u32 %v2213, 16
      %v2273 = vor.u32 %v2270, %v2271
      %v2275 = vshrl.u32 %v2214, 16
      %v2277 = vrot.slane %v2275, 7
      %v2278 = vshll.u32 %v2214, 16
      %v2280 = vor.u32 %v2277, %v2278
      %v2282 = vshrl.u32 %v2215, 16
      %v2284 = vrot.slane %v2282, 7
      %v2285 = vshll.u32 %v2215, 16
      %v2287 = vor.u32 %v2284, %v2285
      %v2289 = vshrl.u32 %v2216, 16
      %v2291 = vrot.slane %v2289, 7
      %v2292 = vshll.u32 %v2216, 16
      %v2294 = vor.u32 %v2291, %v2292
      %v2296 = vshrl.u32 %v2217, 16
      %v2298 = vrot.slane %v2296, 7
      %v2299 = vshll.u32 %v2217, 16
      %v2301 = vor.u32 %v2298, %v2299
      %v2303 = vshrl.u32 %v2218, 16
      %v2305 = vrot.slane %v2303, 7
      %v2306 = vshll.u32 %v2218, 16
      %v2308 = vor.u32 %v2305, %v2306
      %v2310 = vshrl.u32 %v2219, 16
      %v2312 = vrot.slane %v2310, 7
      %v2313 = vshll.u32 %v2219, 16
      %v2315 = vor.u32 %v2312, %v2313
      %v2317 = vshrl.u32 %v2220, 16
      %v2319 = vrot.slane %v2317, 7
      %v2320 = vshll.u32 %v2220, 16
      %v2322 = vor.u32 %v2319, %v2320
      %v2324 = vshrl.u32 %v2221, 16
      %v2326 = vrot.slane %v2324, 7
      %v2327 = vshll.u32 %v2221, 16
      %v2329 = vor.u32 %v2326, %v2327
      %v2331 = vshrl.u32 %v2222, 16
      %v2333 = vrot.slane %v2331, 7
      %v2334 = vshll.u32 %v2222, 16
      %v2336 = vor.u32 %v2333, %v2334
      %v2338 = vshrl.u32 %v2223, 16
      %v2340 = vrot.slane %v2338, 7
      %v2341 = vshll.u32 %v2223, 16
      %v2343 = vor.u32 %v2340, %v2341
      %v2345 = vshrl.u32 %v2224, 16
      %v2347 = vrot.slane %v2345, 7
      %v2348 = vshll.u32 %v2224, 16
      %v2350 = vor.u32 %v2347, %v2348
      %v2387 = vsel %vm797, 0, %v2231
      %v2388 = vsel %vm797, 0, %v2238
      %v2389 = vsel %vm797, 0, %v2245
      %v2390 = vsel %vm797, 0, %v2252
      %v2391 = vsel %vm797, 0, %v2259
      %v2392 = vsel %vm797, 0, %v2266
      %v2393 = vsel %vm797, 0, %v2273
      %v2394 = vsel %vm797, 0, %v2280
      %v2395 = vsel %vm797, 0, %v2287
      %v2396 = vsel %vm797, 0, %v2294
      %v2397 = vsel %vm797, 0, %v2301
      %v2398 = vsel %vm797, 0, %v2308
      %v2399 = vsel %vm797, 0, %v2315
      %v2400 = vsel %vm797, 0, %v2322
      %v2401 = vsel %vm797, 0, %v2329
      %v2402 = vsel %vm797, 0, %v2336
      %v2403 = vsel %vm797, 0, %v2343
      %v2404 = vsel %vm797, 0, %v2350
      %v2405 = vsel %vm797, %v2228, 0
      %v2406 = vsel %vm797, %v2235, 0
      %v2407 = vsel %vm797, %v2242, 0
      %v2408 = vsel %vm797, %v2249, 0
      %v2409 = vsel %vm797, %v2256, 0
      %v2410 = vsel %vm797, %v2263, 0
      %v2411 = vsel %vm797, %v2270, 0
      %v2412 = vsel %vm797, %v2277, 0
      %v2413 = vsel %vm797, %v2284, 0
      %v2414 = vsel %vm797, %v2291, 0
      %v2415 = vsel %vm797, %v2298, 0
      %v2416 = vsel %vm797, %v2305, 0
      %v2417 = vsel %vm797, %v2312, 0
      %v2418 = vsel %vm797, %v2319, 0
      %v2419 = vsel %vm797, %v2326, 0
      %v2420 = vsel %vm797, %v2333, 0
      %v2421 = vsel %vm797, %v2340, 0
      %v2422 = vsel %vm797, %v2347, 0
      %v2424 = vshrl.u32 %v2387, 16
      %v2426 = vshll.u32 %v2387, 16
      %v2428 = vrot.slane %v2426, 1
      %v2429 = vor.u32 %v2424, %v2428
      %v2431 = vshll.u32 %v2405, 16
      %v2433 = vrot.slane %v2431, 1
      %v2434 = vsel %vm838, %v2429, %v2433
      %v2436 = vshrl.u32 %v2388, 16
      %v2438 = vshll.u32 %v2388, 16
      %v2440 = vrot.slane %v2438, 1
      %v2441 = vor.u32 %v2436, %v2440
      %v2443 = vshll.u32 %v2406, 16
      %v2445 = vrot.slane %v2443, 1
      %v2446 = vsel %vm838, %v2441, %v2445
      %v2448 = vshrl.u32 %v2389, 16
      %v2450 = vshll.u32 %v2389, 16
      %v2452 = vrot.slane %v2450, 1
      %v2453 = vor.u32 %v2448, %v2452
      %v2455 = vshll.u32 %v2407, 16
      %v2457 = vrot.slane %v2455, 1
      %v2458 = vsel %vm838, %v2453, %v2457
      %v2460 = vshrl.u32 %v2390, 16
      %v2462 = vshll.u32 %v2390, 16
      %v2464 = vrot.slane %v2462, 1
      %v2465 = vor.u32 %v2460, %v2464
      %v2467 = vshll.u32 %v2408, 16
      %v2469 = vrot.slane %v2467, 1
      %v2470 = vsel %vm838, %v2465, %v2469
      %v2472 = vshrl.u32 %v2391, 16
      %v2474 = vshll.u32 %v2391, 16
      %v2476 = vrot.slane %v2474, 1
      %v2477 = vor.u32 %v2472, %v2476
      %v2479 = vshll.u32 %v2409, 16
      %v2481 = vrot.slane %v2479, 1
      %v2482 = vsel %vm838, %v2477, %v2481
      %v2484 = vshrl.u32 %v2392, 16
      %v2486 = vshll.u32 %v2392, 16
      %v2488 = vrot.slane %v2486, 1
      %v2489 = vor.u32 %v2484, %v2488
      %v2491 = vshll.u32 %v2410, 16
      %v2493 = vrot.slane %v2491, 1
      %v2494 = vsel %vm838, %v2489, %v2493
      %v2496 = vshrl.u32 %v2393, 16
      %v2498 = vshll.u32 %v2393, 16
      %v2500 = vrot.slane %v2498, 1
      %v2501 = vor.u32 %v2496, %v2500
      %v2503 = vshll.u32 %v2411, 16
      %v2505 = vrot.slane %v2503, 1
      %v2506 = vsel %vm838, %v2501, %v2505
      %v2508 = vshrl.u32 %v2394, 16
      %v2510 = vshll.u32 %v2394, 16
      %v2512 = vrot.slane %v2510, 1
      %v2513 = vor.u32 %v2508, %v2512
      %v2515 = vshll.u32 %v2412, 16
      %v2517 = vrot.slane %v2515, 1
      %v2518 = vsel %vm838, %v2513, %v2517
      %v2520 = vshrl.u32 %v2395, 16
      %v2522 = vshll.u32 %v2395, 16
      %v2524 = vrot.slane %v2522, 1
      %v2525 = vor.u32 %v2520, %v2524
      %v2527 = vshll.u32 %v2413, 16
      %v2529 = vrot.slane %v2527, 1
      %v2530 = vsel %vm838, %v2525, %v2529
      %v2532 = vshrl.u32 %v2396, 16
      %v2534 = vshll.u32 %v2396, 16
      %v2536 = vrot.slane %v2534, 1
      %v2537 = vor.u32 %v2532, %v2536
      %v2539 = vshll.u32 %v2414, 16
      %v2541 = vrot.slane %v2539, 1
      %v2542 = vsel %vm838, %v2537, %v2541
      %v2544 = vshrl.u32 %v2397, 16
      %v2546 = vshll.u32 %v2397, 16
      %v2548 = vrot.slane %v2546, 1
      %v2549 = vor.u32 %v2544, %v2548
      %v2551 = vshll.u32 %v2415, 16
      %v2553 = vrot.slane %v2551, 1
      %v2554 = vsel %vm838, %v2549, %v2553
      %v2556 = vshrl.u32 %v2398, 16
      %v2558 = vshll.u32 %v2398, 16
      %v2560 = vrot.slane %v2558, 1
      %v2561 = vor.u32 %v2556, %v2560
      %v2563 = vshll.u32 %v2416, 16
      %v2565 = vrot.slane %v2563, 1
      %v2566 = vsel %vm838, %v2561, %v2565
      %v2568 = vshrl.u32 %v2399, 16
      %v2570 = vshll.u32 %v2399, 16
      %v2572 = vrot.slane %v2570, 1
      %v2573 = vor.u32 %v2568, %v2572
      %v2575 = vshll.u32 %v2417, 16
      %v2577 = vrot.slane %v2575, 1
      %v2578 = vsel %vm838, %v2573, %v2577
      %v2580 = vshrl.u32 %v2400, 16
      %v2582 = vshll.u32 %v2400, 16
      %v2584 = vrot.slane %v2582, 1
      %v2585 = vor.u32 %v2580, %v2584
      %v2587 = vshll.u32 %v2418, 16
      %v2589 = vrot.slane %v2587, 1
      %v2590 = vsel %vm838, %v2585, %v2589
      %v2592 = vshrl.u32 %v2401, 16
      %v2594 = vshll.u32 %v2401, 16
      %v2596 = vrot.slane %v2594, 1
      %v2597 = vor.u32 %v2592, %v2596
      %v2599 = vshll.u32 %v2419, 16
      %v2601 = vrot.slane %v2599, 1
      %v2602 = vsel %vm838, %v2597, %v2601
      %v2604 = vshrl.u32 %v2402, 16
      %v2606 = vshll.u32 %v2402, 16
      %v2608 = vrot.slane %v2606, 1
      %v2609 = vor.u32 %v2604, %v2608
      %v2611 = vshll.u32 %v2420, 16
      %v2613 = vrot.slane %v2611, 1
      %v2614 = vsel %vm838, %v2609, %v2613
      %v2616 = vshrl.u32 %v2403, 16
      %v2618 = vshll.u32 %v2403, 16
      %v2620 = vrot.slane %v2618, 1
      %v2621 = vor.u32 %v2616, %v2620
      %v2623 = vshll.u32 %v2421, 16
      %v2625 = vrot.slane %v2623, 1
      %v2626 = vsel %vm838, %v2621, %v2625
      %v2628 = vshrl.u32 %v2404, 16
      %v2630 = vshll.u32 %v2404, 16
      %v2632 = vrot.slane %v2630, 1
      %v2633 = vor.u32 %v2628, %v2632
      %v2635 = vshll.u32 %v2422, 16
      %v2637 = vrot.slane %v2635, 1
      %v2638 = vsel %vm838, %v2633, %v2637
      %2639 = vrot.lane.b32.xlu0 %v2434, 64
      %v2640 = vpop.permute.xlu0 %2639
      %2641 = vrot.lane.b32.xlu0 %v2446, 64
      %v2642 = vpop.permute.xlu0 %2641
      %2643 = vrot.lane.b32.xlu0 %v2458, 64
      %v2644 = vpop.permute.xlu0 %2643
      %2645 = vrot.lane.b32.xlu0 %v2470, 64
      %v2646 = vpop.permute.xlu0 %2645
      %2647 = vrot.lane.b32.xlu0 %v2482, 64
      %v2648 = vpop.permute.xlu0 %2647
      %2649 = vrot.lane.b32.xlu0 %v2494, 64
      %v2650 = vpop.permute.xlu0 %2649
      %2651 = vrot.lane.b32.xlu0 %v2506, 64
      %v2652 = vpop.permute.xlu0 %2651
      %2653 = vrot.lane.b32.xlu0 %v2518, 64
      %v2654 = vpop.permute.xlu0 %2653
      %2655 = vrot.lane.b32.xlu0 %v2530, 64
      %v2656 = vpop.permute.xlu0 %2655
      %2657 = vrot.lane.b32.xlu0 %v2542, 64
      %v2658 = vpop.permute.xlu0 %2657
      %2659 = vrot.lane.b32.xlu0 %v2554, 64
      %v2660 = vpop.permute.xlu0 %2659
      %2661 = vrot.lane.b32.xlu0 %v2566, 64
      %v2662 = vpop.permute.xlu0 %2661
      %2663 = vrot.lane.b32.xlu0 %v2578, 64
      %v2664 = vpop.permute.xlu0 %2663
      %2665 = vrot.lane.b32.xlu0 %v2590, 64
      %v2666 = vpop.permute.xlu0 %2665
      %2667 = vrot.lane.b32.xlu0 %v2602, 64
      %v2668 = vpop.permute.xlu0 %2667
      %2669 = vrot.lane.b32.xlu0 %v2614, 64
      %v2670 = vpop.permute.xlu0 %2669
      %2671 = vrot.lane.b32.xlu0 %v2626, 64
      %v2672 = vpop.permute.xlu0 %2671
      %2673 = vrot.lane.b32.xlu0 %v2638, 64
      %v2674 = vpop.permute.xlu0 %2673
      %v2711 = vrot.slane %v2387, 1
      %v2712 = vrot.slane %v2405, 1
      %v2713 = vsel %vm1159, %v2711, %v2712
      %v2714 = vrot.slane %v2388, 1
      %v2715 = vrot.slane %v2406, 1
      %v2716 = vsel %vm1159, %v2714, %v2715
      %v2717 = vrot.slane %v2389, 1
      %v2718 = vrot.slane %v2407, 1
      %v2719 = vsel %vm1159, %v2717, %v2718
      %v2720 = vrot.slane %v2390, 1
      %v2721 = vrot.slane %v2408, 1
      %v2722 = vsel %vm1159, %v2720, %v2721
      %v2723 = vrot.slane %v2391, 1
      %v2724 = vrot.slane %v2409, 1
      %v2725 = vsel %vm1159, %v2723, %v2724
      %v2726 = vrot.slane %v2392, 1
      %v2727 = vrot.slane %v2410, 1
      %v2728 = vsel %vm1159, %v2726, %v2727
      %v2729 = vrot.slane %v2393, 1
      %v2730 = vrot.slane %v2411, 1
      %v2731 = vsel %vm1159, %v2729, %v2730
      %v2732 = vrot.slane %v2394, 1
      %v2733 = vrot.slane %v2412, 1
      %v2734 = vsel %vm1159, %v2732, %v2733
      %v2735 = vrot.slane %v2395, 1
      %v2736 = vrot.slane %v2413, 1
      %v2737 = vsel %vm1159, %v2735, %v2736
      %v2738 = vrot.slane %v2396, 1
      %v2739 = vrot.slane %v2414, 1
      %v2740 = vsel %vm1159, %v2738, %v2739
      %v2741 = vrot.slane %v2397, 1
      %v2742 = vrot.slane %v2415, 1
      %v2743 = vsel %vm1159, %v2741, %v2742
      %v2744 = vrot.slane %v2398, 1
      %v2745 = vrot.slane %v2416, 1
      %v2746 = vsel %vm1159, %v2744, %v2745
      %v2747 = vrot.slane %v2399, 1
      %v2748 = vrot.slane %v2417, 1
      %v2749 = vsel %vm1159, %v2747, %v2748
      %v2750 = vrot.slane %v2400, 1
      %v2751 = vrot.slane %v2418, 1
      %v2752 = vsel %vm1159, %v2750, %v2751
      %v2753 = vrot.slane %v2401, 1
      %v2754 = vrot.slane %v2419, 1
      %v2755 = vsel %vm1159, %v2753, %v2754
      %v2756 = vrot.slane %v2402, 1
      %v2757 = vrot.slane %v2420, 1
      %v2758 = vsel %vm1159, %v2756, %v2757
      %v2759 = vrot.slane %v2403, 1
      %v2760 = vrot.slane %v2421, 1
      %v2761 = vsel %vm1159, %v2759, %v2760
      %v2762 = vrot.slane %v2404, 1
      %v2763 = vrot.slane %v2422, 1
      %v2764 = vsel %vm1159, %v2762, %v2763
      %vm2765 = vcmask 523264
      %v2767 = vsel %vm2765, %v2387, %v2640
      %v2770 = vsel %vm2765, %v2388, %v2642
      %v2773 = vsel %vm2765, %v2389, %v2644
      %v2776 = vsel %vm2765, %v2390, %v2646
      %v2779 = vsel %vm2765, %v2391, %v2648
      %v2782 = vsel %vm2765, %v2392, %v2650
      %v2785 = vsel %vm2765, %v2393, %v2652
      %v2788 = vsel %vm2765, %v2394, %v2654
      %v2791 = vsel %vm2765, %v2395, %v2656
      %v2794 = vsel %vm2765, %v2396, %v2658
      %v2797 = vsel %vm2765, %v2397, %v2660
      %v2800 = vsel %vm2765, %v2398, %v2662
      %v2803 = vsel %vm2765, %v2399, %v2664
      %v2806 = vsel %vm2765, %v2400, %v2666
      %v2809 = vsel %vm2765, %v2401, %v2668
      %v2812 = vsel %vm2765, %v2402, %v2670
      %v2815 = vsel %vm2765, %v2403, %v2672
      %v2818 = vsel %vm2765, %v2404, %v2674
      %v2820 = vld [vmem:[%s5] sm:$0xf]
      %v2821 = vld [vmem:[%s5 + $0x4] sm:$0xf]
      %v2822 = vld [vmem:[%s5 + $0x8] sm:$0xf]
      %v2823 = vld [vmem:[%s5 + $0xc] sm:$0xf]
      %v2824 = vld [vmem:[%s5 + $0x10] sm:$0xf]
      %v2825 = vld [vmem:[%s5 + $0x14] sm:$0xf]
      %v2826 = vld [vmem:[%s5 + $0x18] sm:$0xf]
      %v2827 = vld [vmem:[%s5 + $0x1c] sm:$0xf]
      %v2828 = vld [vmem:[%s5 + $0x20] sm:$0xf]
      %v2829 = vld [vmem:[%s5 + $0x24] sm:$0xf]
      %v2830 = vld [vmem:[%s5 + $0x28] sm:$0xf]
      %v2831 = vld [vmem:[%s5 + $0x2c] sm:$0xf]
      %v2832 = vld [vmem:[%s5 + $0x30] sm:$0xf]
      %v2833 = vld [vmem:[%s5 + $0x34] sm:$0xf]
      %v2834 = vld [vmem:[%s5 + $0x38] sm:$0xf]
      %v2835 = vld [vmem:[%s5 + $0x3c] sm:$0xf]
      %v2836 = vld [vmem:[%s5 + $0x40] sm:$0xf]
      %v2837 = vld [vmem:[%s5 + $0x44] sm:$0xf]
      %v2838 = vld [vmem:[%s5 + $0x48] sm:$0xf]
      %v2839 = vld [vmem:[%s5 + $0x4c] sm:$0xf]
      %v2840 = vld [vmem:[%s5 + $0x50] sm:$0xf]
      %v2841 = vld [vmem:[%s5 + $0x54] sm:$0xf]
      %v2842 = vld [vmem:[%s5 + $0x58] sm:$0xf]
      %v2843 = vld [vmem:[%s5 + $0x5c] sm:$0xf]
      %s2844 = scalar_lea.vmem %s5, 96
      %v2845 = vld [vmem:[%s2844] sm:$0xf]
      %v2846 = vld [vmem:[%s2844 + $0x4] sm:$0xf]
      %v2847 = vld [vmem:[%s2844 + $0x8] sm:$0xf]
      %v2848 = vld [vmem:[%s2844 + $0xc] sm:$0xf]
      %v2849 = vld [vmem:[%s2844 + $0x10] sm:$0xf]
      %v2850 = vld [vmem:[%s2844 + $0x14] sm:$0xf]
      %v2851 = vld [vmem:[%s2844 + $0x18] sm:$0xf]
      %v2852 = vld [vmem:[%s2844 + $0x1c] sm:$0xf]
      %v2853 = vld [vmem:[%s2844 + $0x20] sm:$0xf]
      %v2854 = vld [vmem:[%s2844 + $0x24] sm:$0xf]
      %v2855 = vld [vmem:[%s2844 + $0x28] sm:$0xf]
      %v2856 = vld [vmem:[%s2844 + $0x2c] sm:$0xf]
      %v2857 = vld [vmem:[%s2844 + $0x30] sm:$0xf]
      %v2858 = vld [vmem:[%s2844 + $0x34] sm:$0xf]
      %v2859 = vld [vmem:[%s2844 + $0x38] sm:$0xf]
      %v2860 = vld [vmem:[%s2844 + $0x3c] sm:$0xf]
      %v2861 = vld [vmem:[%s2844 + $0x40] sm:$0xf]
      %v2862 = vld [vmem:[%s2844 + $0x44] sm:$0xf]
      %v2863 = vld [vmem:[%s2844 + $0x48] sm:$0xf]
      %v2864 = vld [vmem:[%s2844 + $0x4c] sm:$0xf]
      %v2865 = vld [vmem:[%s2844 + $0x50] sm:$0xf]
      %v2866 = vld [vmem:[%s2844 + $0x54] sm:$0xf]
      %v2867 = vld [vmem:[%s2844 + $0x58] sm:$0xf]
      %v2868 = vld [vmem:[%s2844 + $0x5c] sm:$0xf]
      %v2893 = vunpack.c.l.b16 %v2845
      %v2894 = vunpack.c.l.b16 %v2846
      %v2895 = vunpack.c.l.b16 %v2847
      %v2896 = vunpack.c.l.b16 %v2848
      %v2897 = vunpack.c.l.b16 %v2849
      %v2898 = vunpack.c.l.b16 %v2850
      %v2899 = vunpack.c.l.b16 %v2851
      %v2900 = vunpack.c.l.b16 %v2852
      %v2901 = vunpack.c.l.b16 %v2853
      %v2902 = vunpack.c.l.b16 %v2854
      %v2903 = vunpack.c.l.b16 %v2855
      %v2904 = vunpack.c.l.b16 %v2856
      %v2905 = vunpack.c.l.b16 %v2857
      %v2906 = vunpack.c.l.b16 %v2858
      %v2907 = vunpack.c.l.b16 %v2859
      %v2908 = vunpack.c.l.b16 %v2860
      %v2909 = vunpack.c.l.b16 %v2861
      %v2910 = vunpack.c.l.b16 %v2862
      %v2911 = vunpack.c.l.b16 %v2863
      %v2912 = vunpack.c.l.b16 %v2864
      %v2913 = vunpack.c.l.b16 %v2865
      %v2914 = vunpack.c.l.b16 %v2866
      %v2915 = vunpack.c.l.b16 %v2867
      %v2916 = vunpack.c.l.b16 %v2868
      %v2917 = vpack.c.b16 %v2894, %v2893
      %v2918 = vpack.c.b16 %v2896, %v2895
      %v2919 = vpack.c.b16 %v2898, %v2897
      %v2920 = vpack.c.b16 %v2900, %v2899
      %v2921 = vpack.c.b16 %v2902, %v2901
      %v2922 = vpack.c.b16 %v2904, %v2903
      %v2923 = vpack.c.b16 %v2906, %v2905
      %v2924 = vpack.c.b16 %v2908, %v2907
      %v2925 = vpack.c.b16 %v2910, %v2909
      %v2926 = vpack.c.b16 %v2912, %v2911
      %v2927 = vpack.c.b16 %v2914, %v2913
      %v2928 = vpack.c.b16 %v2916, %v2915
      %v2942 = vsel %vm2765, %v2716, 0
      %v2945 = vsel %vm2765, %v2719, 0
      %v2948 = vsel %vm2765, %v2722, 0
      %v2951 = vsel %vm2765, %v2725, 0
      %v2954 = vsel %vm2765, %v2728, 0
      %v2957 = vsel %vm2765, %v2731, 0
      %v2960 = vsel %vm2765, %v2734, 0
      %v2963 = vsel %vm2765, %v2737, 0
      %v2966 = vsel %vm2765, %v2740, 0
      %v2969 = vsel %vm2765, %v2743, 0
      %v2972 = vsel %vm2765, %v2746, 0
      %v2975 = vsel %vm2765, %v2749, 0
      %v2978 = vsel %vm2765, %v2752, 0
      %v2981 = vsel %vm2765, %v2755, 0
      %v2984 = vsel %vm2765, %v2758, 0
      %v2987 = vsel %vm2765, %v2761, 0
      %2989 = vmatprep.subr.bf16.mxu0 0
      %2990 = vmatpush1.bf16.msra.mxu0 %v2917
      %2991 = vmatprep.subr.bf16.mxu0 0
      %2992 = vmatpush1.bf16.msra.mxu0 %v2918
      %2993 = vmatprep.subr.bf16.mxu0 0
      %2994 = vmatpush1.bf16.msra.mxu0 %v2919
      %2995 = vmatprep.subr.bf16.mxu0 0
      %2996 = vmatpush1.bf16.msra.mxu0 %v2920
      %2997 = vmatprep.subr.bf16.mxu0 0
      %2998 = vmatpush1.bf16.msra.mxu0 %v2921
      %2999 = vmatprep.subr.bf16.mxu0 0
      %3000 = vmatpush1.bf16.msra.mxu0 %v2922
      %3001 = vmatprep.subr.bf16.mxu0 0
      %3002 = vmatpush1.bf16.msra.mxu0 %v2923
      %3003 = vmatprep.subr.bf16.mxu0 0
      %3004 = vmatpush1.bf16.msra.mxu0 %v2924
      %3005 = vmatprep.subr.bf16.mxu0 0
      %3006 = vmatpush1.bf16.msra.mxu0 %v2925
      %3007 = vmatprep.subr.bf16.mxu0 0
      %3008 = vmatpush1.bf16.msra.mxu0 %v2926
      %3009 = vmatprep.subr.bf16.mxu0 0
      %3010 = vmatpush1.bf16.msra.mxu0 %v2927
      %3011 = vmatprep.subr.bf16.mxu0 0
      %3012 = vmatpush1.bf16.msra.mxu0 %v2928
      %3013 = vmatprep.subr.bf16.mxu0 0
      %3014 = vmatpush1.bf16.msra.mxu0 0
      %3015 = vmatprep.subr.bf16.mxu0 0
      %3016 = vmatpush1.bf16.msra.mxu0 0
      %3017 = vmatprep.subr.bf16.mxu0 0
      %3018 = vmatpush1.bf16.msra.mxu0 0
      %3019 = vmatprep.subr.bf16.mxu0 0
      %3020 = vmatpush1.bf16.msra.mxu0 0
      %3021 = vmatprep.mubr.bf16.mxu0 %v2942
      %3022 = vmatmul.mubr.bf16.gmra.mrb[0].mxu0 %v2770
      %v3023 = vpop.f32.mrb[0].mxu0
      %v3024 = vadd.f32 0.0, %v3023
      %v3025 = vpop.f32.mrb[0].mxu0
      %v3026 = vpop.f32.mrb[0].mxu0
      %v3027 = vadd.f32 0.0, %v3026
      %v3028 = vpop.f32.mrb[0].mxu0
      %3029 = vmatprep.mubr.bf16.mxu0 %v2945
      %3030 = vmatmul.mubr.bf16.gmra.mrb[0].mxu0 %v2773
      %v3031 = vpop.f32.mrb[0].mxu0
      %v3032 = vadd.f32 0.0, %v3031
      %v3033 = vpop.f32.mrb[0].mxu0
      %v3034 = vpop.f32.mrb[0].mxu0
      %v3035 = vadd.f32 0.0, %v3034
      %v3036 = vpop.f32.mrb[0].mxu0
      %3037 = vmatprep.mubr.bf16.mxu0 %v2948
      %3038 = vmatmul.mubr.bf16.gmra.mrb[0].mxu0 %v2776
      %v3039 = vpop.f32.mrb[0].mxu0
      %v3040 = vadd.f32 0.0, %v3039
      %v3041 = vpop.f32.mrb[0].mxu0
      %v3042 = vpop.f32.mrb[0].mxu0
      %v3043 = vadd.f32 0.0, %v3042
      %v3044 = vpop.f32.mrb[0].mxu0
      %3045 = vmatprep.mubr.bf16.mxu0 %v2951
      %3046 = vmatmul.mubr.bf16.gmra.mrb[0].mxu0 %v2779
      %v3047 = vpop.f32.mrb[0].mxu0
      %v3048 = vadd.f32 0.0, %v3047
      %v3049 = vpop.f32.mrb[0].mxu0
      %v3050 = vpop.f32.mrb[0].mxu0
      %v3051 = vadd.f32 0.0, %v3050
      %v3052 = vpop.f32.mrb[0].mxu0
      %3053 = vmatprep.mubr.bf16.mxu0 %v2954
      %3054 = vmatmul.mubr.bf16.gmra.mrb[0].mxu0 %v2782
      %v3055 = vpop.f32.mrb[0].mxu0
      %v3056 = vadd.f32 0.0, %v3055
      %v3057 = vpop.f32.mrb[0].mxu0
      %v3058 = vpop.f32.mrb[0].mxu0
      %v3059 = vadd.f32 0.0, %v3058
      %v3060 = vpop.f32.mrb[0].mxu0
      %3061 = vmatprep.mubr.bf16.mxu0 %v2957
      %3062 = vmatmul.mubr.bf16.gmra.mrb[0].mxu0 %v2785
      %v3063 = vpop.f32.mrb[0].mxu0
      %v3064 = vadd.f32 0.0, %v3063
      %v3065 = vpop.f32.mrb[0].mxu0
      %v3066 = vpop.f32.mrb[0].mxu0
      %v3067 = vadd.f32 0.0, %v3066
      %v3068 = vpop.f32.mrb[0].mxu0
      %3069 = vmatprep.mubr.bf16.mxu0 %v2960
      %3070 = vmatmul.mubr.bf16.gmra.mrb[0].mxu0 %v2788
      %v3071 = vpop.f32.mrb[0].mxu0
      %v3072 = vadd.f32 0.0, %v3071
      %v3073 = vpop.f32.mrb[0].mxu0
      %v3074 = vpop.f32.mrb[0].mxu0
      %v3075 = vadd.f32 0.0, %v3074
      %v3076 = vpop.f32.mrb[0].mxu0
      %3077 = vmatprep.mubr.bf16.mxu0 %v2963
      %3078 = vmatmul.mubr.bf16.gmra.mrb[0].mxu0 %v2791
      %v3079 = vpop.f32.mrb[0].mxu0
      %v3080 = vadd.f32 0.0, %v3079
      %v3081 = vpop.f32.mrb[0].mxu0
      %v3082 = vpop.f32.mrb[0].mxu0
      %v3083 = vadd.f32 0.0, %v3082
      %v3084 = vpop.f32.mrb[0].mxu0
      %3085 = vmatprep.mubr.bf16.mxu0 %v2966
      %3086 = vmatmul.mubr.bf16.gmra.mrb[0].mxu0 %v2794
      %v3087 = vpop.f32.mrb[0].mxu0
      %v3088 = vadd.f32 0.0, %v3087
      %v3089 = vpop.f32.mrb[0].mxu0
      %v3090 = vpop.f32.mrb[0].mxu0
      %v3091 = vadd.f32 0.0, %v3090
      %v3092 = vpop.f32.mrb[0].mxu0
      %3093 = vmatprep.mubr.bf16.mxu0 %v2969
      %3094 = vmatmul.mubr.bf16.gmra.mrb[0].mxu0 %v2797
      %v3095 = vpop.f32.mrb[0].mxu0
      %v3096 = vadd.f32 0.0, %v3095
      %v3097 = vpop.f32.mrb[0].mxu0
      %v3098 = vpop.f32.mrb[0].mxu0
      %v3099 = vadd.f32 0.0, %v3098
      %v3100 = vpop.f32.mrb[0].mxu0
      %3101 = vmatprep.mubr.bf16.mxu0 %v2972
      %3102 = vmatmul.mubr.bf16.gmra.mrb[0].mxu0 %v2800
      %v3103 = vpop.f32.mrb[0].mxu0
      %v3104 = vadd.f32 0.0, %v3103
      %v3105 = vpop.f32.mrb[0].mxu0
      %v3106 = vpop.f32.mrb[0].mxu0
      %v3107 = vadd.f32 0.0, %v3106
      %v3108 = vpop.f32.mrb[0].mxu0
      %3109 = vmatprep.mubr.bf16.mxu0 %v2975
      %3110 = vmatmul.mubr.bf16.gmra.mrb[0].mxu0 %v2803
      %v3111 = vpop.f32.mrb[0].mxu0
      %v3112 = vadd.f32 0.0, %v3111
      %v3113 = vpop.f32.mrb[0].mxu0
      %v3114 = vpop.f32.mrb[0].mxu0
      %v3115 = vadd.f32 0.0, %v3114
      %v3116 = vpop.f32.mrb[0].mxu0
      %3117 = vmatprep.mubr.bf16.mxu0 %v2978
      %3118 = vmatmul.mubr.bf16.gmra.mrb[0].mxu0 %v2806
      %v3119 = vpop.f32.mrb[0].mxu0
      %v3120 = vadd.f32 0.0, %v3119
      %v3121 = vpop.f32.mrb[0].mxu0
      %v3122 = vpop.f32.mrb[0].mxu0
      %v3123 = vadd.f32 0.0, %v3122
      %v3124 = vpop.f32.mrb[0].mxu0
      %3125 = vmatprep.mubr.bf16.mxu0 %v2981
      %3126 = vmatmul.mubr.bf16.gmra.mrb[0].mxu0 %v2809
      %v3127 = vpop.f32.mrb[0].mxu0
      %v3128 = vadd.f32 0.0, %v3127
      %v3129 = vpop.f32.mrb[0].mxu0
      %v3130 = vpop.f32.mrb[0].mxu0
      %v3131 = vadd.f32 0.0, %v3130
      %v3132 = vpop.f32.mrb[0].mxu0
      %3133 = vmatprep.mubr.bf16.mxu0 %v2984
      %3134 = vmatmul.mubr.bf16.gmra.mrb[0].mxu0 %v2812
      %v3135 = vpop.f32.mrb[0].mxu0
      %v3136 = vadd.f32 0.0, %v3135
      %v3137 = vpop.f32.mrb[0].mxu0
      %v3138 = vpop.f32.mrb[0].mxu0
      %v3139 = vadd.f32 0.0, %v3138
      %v3140 = vpop.f32.mrb[0].mxu0
      %3141 = vmatprep.mubr.bf16.mxu0 %v2987
      %3142 = vmatmul.mubr.bf16.gmra.mrb[0].mxu0 %v2815
      %v3143 = vpop.f32.mrb[0].mxu0
      %v3144 = vadd.f32 0.0, %v3143
      %v3145 = vpop.f32.mrb[0].mxu0
      %v3146 = vpop.f32.mrb[0].mxu0
      %v3147 = vadd.f32 0.0, %v3146
      %v3148 = vpop.f32.mrb[0].mxu0
      %3149 = vdwg.mxu0
      %v3174 = vunpack.c.l.b16 %v2820
      %v3175 = vunpack.c.l.b16 %v2821
      %v3176 = vunpack.c.l.b16 %v2822
      %v3177 = vunpack.c.l.b16 %v2823
      %v3178 = vunpack.c.l.b16 %v2824
      %v3179 = vunpack.c.l.b16 %v2825
      %v3180 = vunpack.c.l.b16 %v2826
      %v3181 = vunpack.c.l.b16 %v2827
      %v3182 = vunpack.c.l.b16 %v2828
      %v3183 = vunpack.c.l.b16 %v2829
      %v3184 = vunpack.c.l.b16 %v2830
      %v3185 = vunpack.c.l.b16 %v2831
      %v3186 = vunpack.c.l.b16 %v2832
      %v3187 = vunpack.c.l.b16 %v2833
      %v3188 = vunpack.c.l.b16 %v2834
      %v3189 = vunpack.c.l.b16 %v2835
      %v3190 = vunpack.c.l.b16 %v2836
      %v3191 = vunpack.c.l.b16 %v2837
      %v3192 = vunpack.c.l.b16 %v2838
      %v3193 = vunpack.c.l.b16 %v2839
      %v3194 = vunpack.c.l.b16 %v2840
      %v3195 = vunpack.c.l.b16 %v2841
      %v3196 = vunpack.c.l.b16 %v2842
      %v3197 = vunpack.c.l.b16 %v2843
      %v3198 = vpack.c.b16 %v3175, %v3174
      %v3199 = vpack.c.b16 %v3177, %v3176
      %v3200 = vpack.c.b16 %v3179, %v3178
      %v3201 = vpack.c.b16 %v3181, %v3180
      %v3202 = vpack.c.b16 %v3183, %v3182
      %v3203 = vpack.c.b16 %v3185, %v3184
      %v3204 = vpack.c.b16 %v3187, %v3186
      %v3205 = vpack.c.b16 %v3189, %v3188
      %v3206 = vpack.c.b16 %v3191, %v3190
      %v3207 = vpack.c.b16 %v3193, %v3192
      %v3208 = vpack.c.b16 %v3195, %v3194
      %v3209 = vpack.c.b16 %v3197, %v3196
      %v3223 = vsel %vm2765, %v2713, 0
      %3225 = vmatprep.subr.bf16.mxu0 0
      %3226 = vmatpush1.bf16.msra.mxu0 %v3198
      %3227 = vmatprep.subr.bf16.mxu0 0
      %3228 = vmatpush1.bf16.msra.mxu0 %v3199
      %3229 = vmatprep.subr.bf16.mxu0 0
      %3230 = vmatpush1.bf16.msra.mxu0 %v3200
      %3231 = vmatprep.subr.bf16.mxu0 0
      %3232 = vmatpush1.bf16.msra.mxu0 %v3201
      %3233 = vmatprep.subr.bf16.mxu0 0
      %3234 = vmatpush1.bf16.msra.mxu0 %v3202
      %3235 = vmatprep.subr.bf16.mxu0 0
      %3236 = vmatpush1.bf16.msra.mxu0 %v3203
      %3237 = vmatprep.subr.bf16.mxu0 0
      %3238 = vmatpush1.bf16.msra.mxu0 %v3204
      %3239 = vmatprep.subr.bf16.mxu0 0
      %3240 = vmatpush1.bf16.msra.mxu0 %v3205
      %3241 = vmatprep.subr.bf16.mxu0 0
      %3242 = vmatpush1.bf16.msra.mxu0 %v3206
      %3243 = vmatprep.subr.bf16.mxu0 0
      %3244 = vmatpush1.bf16.msra.mxu0 %v3207
      %3245 = vmatprep.subr.bf16.mxu0 0
      %3246 = vmatpush1.bf16.msra.mxu0 %v3208
      %3247 = vmatprep.subr.bf16.mxu0 0
      %3248 = vmatpush1.bf16.msra.mxu0 %v3209
      %3249 = vmatprep.subr.bf16.mxu0 0
      %3250 = vmatpush1.bf16.msra.mxu0 0
      %3251 = vmatprep.subr.bf16.mxu0 0
      %3252 = vmatpush1.bf16.msra.mxu0 0
      %3253 = vmatprep.subr.bf16.mxu0 0
      %3254 = vmatpush1.bf16.msra.mxu0 0
      %3255 = vmatprep.subr.bf16.mxu0 0
      %3256 = vmatpush1.bf16.msra.mxu0 0
      %3257 = vmatprep.mubr.bf16.mxu0 %v3223
      %3258 = vmatmul.mubr.bf16.gmra.mrb[0].mxu0 %v2767
      %v3259 = vpop.f32.mrb[0].mxu0
      %v3260 = vadd.f32 %v3024, %v3259
      %v3261 = vpop.f32.mrb[0].mxu0
      %v3262 = vpop.f32.mrb[0].mxu0
      %v3263 = vadd.f32 %v3027, %v3262
      %v3264 = vpop.f32.mrb[0].mxu0
      %3265 = vmatprep.mubr.bf16.mxu0 %v2942
      %3266 = vmatmul.mubr.bf16.gmra.mrb[0].mxu0 %v2770
      %v3267 = vpop.f32.mrb[0].mxu0
      %v3268 = vadd.f32 %v3032, %v3267
      %v3269 = vpop.f32.mrb[0].mxu0
      %v3270 = vpop.f32.mrb[0].mxu0
      %v3271 = vadd.f32 %v3035, %v3270
      %v3272 = vpop.f32.mrb[0].mxu0
      %3273 = vmatprep.mubr.bf16.mxu0 %v2945
      %3274 = vmatmul.mubr.bf16.gmra.mrb[0].mxu0 %v2773
      %v3275 = vpop.f32.mrb[0].mxu0
      %v3276 = vadd.f32 %v3040, %v3275
      %v3277 = vpop.f32.mrb[0].mxu0
      %v3278 = vpop.f32.mrb[0].mxu0
      %v3279 = vadd.f32 %v3043, %v3278
      %v3280 = vpop.f32.mrb[0].mxu0
      %3281 = vmatprep.mubr.bf16.mxu0 %v2948
      %3282 = vmatmul.mubr.bf16.gmra.mrb[0].mxu0 %v2776
      %v3283 = vpop.f32.mrb[0].mxu0
      %v3284 = vadd.f32 %v3048, %v3283
      %v3285 = vpop.f32.mrb[0].mxu0
      %v3286 = vpop.f32.mrb[0].mxu0
      %v3287 = vadd.f32 %v3051, %v3286
      %v3288 = vpop.f32.mrb[0].mxu0
      %3289 = vmatprep.mubr.bf16.mxu0 %v2951
      %3290 = vmatmul.mubr.bf16.gmra.mrb[0].mxu0 %v2779
      %v3291 = vpop.f32.mrb[0].mxu0
      %v3292 = vadd.f32 %v3056, %v3291
      %v3293 = vpop.f32.mrb[0].mxu0
      %v3294 = vpop.f32.mrb[0].mxu0
      %v3295 = vadd.f32 %v3059, %v3294
      %v3296 = vpop.f32.mrb[0].mxu0
      %3297 = vmatprep.mubr.bf16.mxu0 %v2954
      %3298 = vmatmul.mubr.bf16.gmra.mrb[0].mxu0 %v2782
      %v3299 = vpop.f32.mrb[0].mxu0
      %v3300 = vadd.f32 %v3064, %v3299
      %v3301 = vpop.f32.mrb[0].mxu0
      %v3302 = vpop.f32.mrb[0].mxu0
      %v3303 = vadd.f32 %v3067, %v3302
      %v3304 = vpop.f32.mrb[0].mxu0
      %3305 = vmatprep.mubr.bf16.mxu0 %v2957
      %3306 = vmatmul.mubr.bf16.gmra.mrb[0].mxu0 %v2785
      %v3307 = vpop.f32.mrb[0].mxu0
      %v3308 = vadd.f32 %v3072, %v3307
      %v3309 = vpop.f32.mrb[0].mxu0
      %v3310 = vpop.f32.mrb[0].mxu0
      %v3311 = vadd.f32 %v3075, %v3310
      %v3312 = vpop.f32.mrb[0].mxu0
      %3313 = vmatprep.mubr.bf16.mxu0 %v2960
      %3314 = vmatmul.mubr.bf16.gmra.mrb[0].mxu0 %v2788
      %v3315 = vpop.f32.mrb[0].mxu0
      %v3316 = vadd.f32 %v3080, %v3315
      %v3317 = vpop.f32.mrb[0].mxu0
      %v3318 = vpop.f32.mrb[0].mxu0
      %v3319 = vadd.f32 %v3083, %v3318
      %v3320 = vpop.f32.mrb[0].mxu0
      %3321 = vmatprep.mubr.bf16.mxu0 %v2963
      %3322 = vmatmul.mubr.bf16.gmra.mrb[0].mxu0 %v2791
      %v3323 = vpop.f32.mrb[0].mxu0
      %v3324 = vadd.f32 %v3088, %v3323
      %v3325 = vpop.f32.mrb[0].mxu0
      %v3326 = vpop.f32.mrb[0].mxu0
      %v3327 = vadd.f32 %v3091, %v3326
      %v3328 = vpop.f32.mrb[0].mxu0
      %3329 = vmatprep.mubr.bf16.mxu0 %v2966
      %3330 = vmatmul.mubr.bf16.gmra.mrb[0].mxu0 %v2794
      %v3331 = vpop.f32.mrb[0].mxu0
      %v3332 = vadd.f32 %v3096, %v3331
      %v3333 = vpop.f32.mrb[0].mxu0
      %v3334 = vpop.f32.mrb[0].mxu0
      %v3335 = vadd.f32 %v3099, %v3334
      %v3336 = vpop.f32.mrb[0].mxu0
      %3337 = vmatprep.mubr.bf16.mxu0 %v2969
      %3338 = vmatmul.mubr.bf16.gmra.mrb[0].mxu0 %v2797
      %v3339 = vpop.f32.mrb[0].mxu0
      %v3340 = vadd.f32 %v3104, %v3339
      %v3341 = vpop.f32.mrb[0].mxu0
      %v3342 = vpop.f32.mrb[0].mxu0
      %v3343 = vadd.f32 %v3107, %v3342
      %v3344 = vpop.f32.mrb[0].mxu0
      %3345 = vmatprep.mubr.bf16.mxu0 %v2972
      %3346 = vmatmul.mubr.bf16.gmra.mrb[0].mxu0 %v2800
      %v3347 = vpop.f32.mrb[0].mxu0
      %v3348 = vadd.f32 %v3112, %v3347
      %v3349 = vpop.f32.mrb[0].mxu0
      %v3350 = vpop.f32.mrb[0].mxu0
      %v3351 = vadd.f32 %v3115, %v3350
      %v3352 = vpop.f32.mrb[0].mxu0
      %3353 = vmatprep.mubr.bf16.mxu0 %v2975
      %3354 = vmatmul.mubr.bf16.gmra.mrb[0].mxu0 %v2803
      %v3355 = vpop.f32.mrb[0].mxu0
      %v3356 = vadd.f32 %v3120, %v3355
      %v3357 = vpop.f32.mrb[0].mxu0
      %v3358 = vpop.f32.mrb[0].mxu0
      %v3359 = vadd.f32 %v3123, %v3358
      %v3360 = vpop.f32.mrb[0].mxu0
      %3361 = vmatprep.mubr.bf16.mxu0 %v2978
      %3362 = vmatmul.mubr.bf16.gmra.mrb[0].mxu0 %v2806
      %v3363 = vpop.f32.mrb[0].mxu0
      %v3364 = vadd.f32 %v3128, %v3363
      %v3365 = vpop.f32.mrb[0].mxu0
      %v3366 = vpop.f32.mrb[0].mxu0
      %v3367 = vadd.f32 %v3131, %v3366
      %v3368 = vpop.f32.mrb[0].mxu0
      %3369 = vmatprep.mubr.bf16.mxu0 %v2981
      %3370 = vmatmul.mubr.bf16.gmra.mrb[0].mxu0 %v2809
      %v3371 = vpop.f32.mrb[0].mxu0
      %v3372 = vadd.f32 %v3136, %v3371
      %v3373 = vpop.f32.mrb[0].mxu0
      %v3374 = vpop.f32.mrb[0].mxu0
      %v3375 = vadd.f32 %v3139, %v3374
      %v3376 = vpop.f32.mrb[0].mxu0
      %3377 = vmatprep.mubr.bf16.mxu0 %v2984
      %3378 = vmatmul.mubr.bf16.gmra.mrb[0].mxu0 %v2812
      %v3379 = vpop.f32.mrb[0].mxu0
      %v3380 = vadd.f32 %v3144, %v3379
      %v3381 = vpop.f32.mrb[0].mxu0
      %v3382 = vpop.f32.mrb[0].mxu0
      %v3383 = vadd.f32 %v3147, %v3382
      %v3384 = vpop.f32.mrb[0].mxu0
      %3385 = vdwg.mxu0
      %s3386 = scalar_lea.vmem %s5, 192
      %v3387 = vld [vmem:[%s3386] sm:$0xf]
      %v3388 = vld [vmem:[%s3386 + $0x4] sm:$0xf]
      %v3389 = vld [vmem:[%s3386 + $0x8] sm:$0xf]
      %v3390 = vld [vmem:[%s3386 + $0xc] sm:$0xf]
      %v3391 = vld [vmem:[%s3386 + $0x10] sm:$0xf]
      %v3392 = vld [vmem:[%s3386 + $0x14] sm:$0xf]
      %v3393 = vld [vmem:[%s3386 + $0x18] sm:$0xf]
      %v3394 = vld [vmem:[%s3386 + $0x1c] sm:$0xf]
      %v3395 = vld [vmem:[%s3386 + $0x20] sm:$0xf]
      %v3396 = vld [vmem:[%s3386 + $0x24] sm:$0xf]
      %v3397 = vld [vmem:[%s3386 + $0x28] sm:$0xf]
      %v3398 = vld [vmem:[%s3386 + $0x2c] sm:$0xf]
      %v3399 = vld [vmem:[%s3386 + $0x30] sm:$0xf]
      %v3400 = vld [vmem:[%s3386 + $0x34] sm:$0xf]
      %v3401 = vld [vmem:[%s3386 + $0x38] sm:$0xf]
      %v3402 = vld [vmem:[%s3386 + $0x3c] sm:$0xf]
      %v3403 = vld [vmem:[%s3386 + $0x40] sm:$0xf]
      %v3404 = vld [vmem:[%s3386 + $0x44] sm:$0xf]
      %v3405 = vld [vmem:[%s3386 + $0x48] sm:$0xf]
      %v3406 = vld [vmem:[%s3386 + $0x4c] sm:$0xf]
      %v3407 = vld [vmem:[%s3386 + $0x50] sm:$0xf]
      %v3408 = vld [vmem:[%s3386 + $0x54] sm:$0xf]
      %v3409 = vld [vmem:[%s3386 + $0x58] sm:$0xf]
      %v3410 = vld [vmem:[%s3386 + $0x5c] sm:$0xf]
      %v3435 = vunpack.c.l.b16 %v3387
      %v3436 = vunpack.c.l.b16 %v3388
      %v3437 = vunpack.c.l.b16 %v3389
      %v3438 = vunpack.c.l.b16 %v3390
      %v3439 = vunpack.c.l.b16 %v3391
      %v3440 = vunpack.c.l.b16 %v3392
      %v3441 = vunpack.c.l.b16 %v3393
      %v3442 = vunpack.c.l.b16 %v3394
      %v3443 = vunpack.c.l.b16 %v3395
      %v3444 = vunpack.c.l.b16 %v3396
      %v3445 = vunpack.c.l.b16 %v3397
      %v3446 = vunpack.c.l.b16 %v3398
      %v3447 = vunpack.c.l.b16 %v3399
      %v3448 = vunpack.c.l.b16 %v3400
      %v3449 = vunpack.c.l.b16 %v3401
      %v3450 = vunpack.c.l.b16 %v3402
      %v3451 = vunpack.c.l.b16 %v3403
      %v3452 = vunpack.c.l.b16 %v3404
      %v3453 = vunpack.c.l.b16 %v3405
      %v3454 = vunpack.c.l.b16 %v3406
      %v3455 = vunpack.c.l.b16 %v3407
      %v3456 = vunpack.c.l.b16 %v3408
      %v3457 = vunpack.c.l.b16 %v3409
      %v3458 = vunpack.c.l.b16 %v3410
      %v3459 = vpack.c.b16 %v3436, %v3435
      %v3460 = vpack.c.b16 %v3438, %v3437
      %v3461 = vpack.c.b16 %v3440, %v3439
      %v3462 = vpack.c.b16 %v3442, %v3441
      %v3463 = vpack.c.b16 %v3444, %v3443
      %v3464 = vpack.c.b16 %v3446, %v3445
      %v3465 = vpack.c.b16 %v3448, %v3447
      %v3466 = vpack.c.b16 %v3450, %v3449
      %v3467 = vpack.c.b16 %v3452, %v3451
      %v3468 = vpack.c.b16 %v3454, %v3453
      %v3469 = vpack.c.b16 %v3456, %v3455
      %v3470 = vpack.c.b16 %v3458, %v3457
      %v3484 = vsel %vm2765, %v2764, 0
      %3486 = vmatprep.subr.bf16.mxu0 0
      %3487 = vmatpush1.bf16.msra.mxu0 %v3459
      %3488 = vmatprep.subr.bf16.mxu0 0
      %3489 = vmatpush1.bf16.msra.mxu0 %v3460
      %3490 = vmatprep.subr.bf16.mxu0 0
      %3491 = vmatpush1.bf16.msra.mxu0 %v3461
      %3492 = vmatprep.subr.bf16.mxu0 0
      %3493 = vmatpush1.bf16.msra.mxu0 %v3462
      %3494 = vmatprep.subr.bf16.mxu0 0
      %3495 = vmatpush1.bf16.msra.mxu0 %v3463
      %3496 = vmatprep.subr.bf16.mxu0 0
      %3497 = vmatpush1.bf16.msra.mxu0 %v3464
      %3498 = vmatprep.subr.bf16.mxu0 0
      %3499 = vmatpush1.bf16.msra.mxu0 %v3465
      %3500 = vmatprep.subr.bf16.mxu0 0
      %3501 = vmatpush1.bf16.msra.mxu0 %v3466
      %3502 = vmatprep.subr.bf16.mxu0 0
      %3503 = vmatpush1.bf16.msra.mxu0 %v3467
      %3504 = vmatprep.subr.bf16.mxu0 0
      %3505 = vmatpush1.bf16.msra.mxu0 %v3468
      %3506 = vmatprep.subr.bf16.mxu0 0
      %3507 = vmatpush1.bf16.msra.mxu0 %v3469
      %3508 = vmatprep.subr.bf16.mxu0 0
      %3509 = vmatpush1.bf16.msra.mxu0 %v3470
      %3510 = vmatprep.subr.bf16.mxu0 0
      %3511 = vmatpush1.bf16.msra.mxu0 0
      %3512 = vmatprep.subr.bf16.mxu0 0
      %3513 = vmatpush1.bf16.msra.mxu0 0
      %3514 = vmatprep.subr.bf16.mxu0 0
      %3515 = vmatpush1.bf16.msra.mxu0 0
      %3516 = vmatprep.subr.bf16.mxu0 0
      %3517 = vmatpush1.bf16.msra.mxu0 0
      %3518 = vmatprep.mubr.bf16.mxu0 %v2945
      %3519 = vmatmul.mubr.bf16.gmra.mrb[0].mxu0 %v2773
      %v3520 = vpop.f32.mrb[0].mxu0
      %v3521 = vadd.f32 0.0, %v3520
      %v3522 = vpop.f32.mrb[0].mxu0
      %v3523 = vpop.f32.mrb[0].mxu0
      %v3524 = vadd.f32 0.0, %v3523
      %v3525 = vpop.f32.mrb[0].mxu0
      %3526 = vmatprep.mubr.bf16.mxu0 %v2948
      %3527 = vmatmul.mubr.bf16.gmra.mrb[0].mxu0 %v2776
      %v3528 = vpop.f32.mrb[0].mxu0
      %v3529 = vadd.f32 0.0, %v3528
      %v3530 = vpop.f32.mrb[0].mxu0
      %v3531 = vpop.f32.mrb[0].mxu0
      %v3532 = vadd.f32 0.0, %v3531
      %v3533 = vpop.f32.mrb[0].mxu0
      %3534 = vmatprep.mubr.bf16.mxu0 %v2951
      %3535 = vmatmul.mubr.bf16.gmra.mrb[0].mxu0 %v2779
      %v3536 = vpop.f32.mrb[0].mxu0
      %v3537 = vadd.f32 0.0, %v3536
      %v3538 = vpop.f32.mrb[0].mxu0
      %v3539 = vpop.f32.mrb[0].mxu0
      %v3540 = vadd.f32 0.0, %v3539
      %v3541 = vpop.f32.mrb[0].mxu0
      %3542 = vmatprep.mubr.bf16.mxu0 %v2954
      %3543 = vmatmul.mubr.bf16.gmra.mrb[0].mxu0 %v2782
      %v3544 = vpop.f32.mrb[0].mxu0
      %v3545 = vadd.f32 0.0, %v3544
      %v3546 = vpop.f32.mrb[0].mxu0
      %v3547 = vpop.f32.mrb[0].mxu0
      %v3548 = vadd.f32 0.0, %v3547
      %v3549 = vpop.f32.mrb[0].mxu0
      %3550 = vmatprep.mubr.bf16.mxu0 %v2957
      %3551 = vmatmul.mubr.bf16.gmra.mrb[0].mxu0 %v2785
      %v3552 = vpop.f32.mrb[0].mxu0
      %v3553 = vadd.f32 0.0, %v3552
      %v3554 = vpop.f32.mrb[0].mxu0
      %v3555 = vpop.f32.mrb[0].mxu0
      %v3556 = vadd.f32 0.0, %v3555
      %v3557 = vpop.f32.mrb[0].mxu0
      %3558 = vmatprep.mubr.bf16.mxu0 %v2960
      %3559 = vmatmul.mubr.bf16.gmra.mrb[0].mxu0 %v2788
      %v3560 = vpop.f32.mrb[0].mxu0
      %v3561 = vadd.f32 0.0, %v3560
      %v3562 = vpop.f32.mrb[0].mxu0
      %v3563 = vpop.f32.mrb[0].mxu0
      %v3564 = vadd.f32 0.0, %v3563
      %v3565 = vpop.f32.mrb[0].mxu0
      %3566 = vmatprep.mubr.bf16.mxu0 %v2963
      %3567 = vmatmul.mubr.bf16.gmra.mrb[0].mxu0 %v2791
      %v3568 = vpop.f32.mrb[0].mxu0
      %v3569 = vadd.f32 0.0, %v3568
      %v3570 = vpop.f32.mrb[0].mxu0
      %v3571 = vpop.f32.mrb[0].mxu0
      %v3572 = vadd.f32 0.0, %v3571
      %v3573 = vpop.f32.mrb[0].mxu0
      %3574 = vmatprep.mubr.bf16.mxu0 %v2966
      %3575 = vmatmul.mubr.bf16.gmra.mrb[0].mxu0 %v2794
      %v3576 = vpop.f32.mrb[0].mxu0
      %v3577 = vadd.f32 0.0, %v3576
      %v3578 = vpop.f32.mrb[0].mxu0
      %v3579 = vpop.f32.mrb[0].mxu0
      %v3580 = vadd.f32 0.0, %v3579
      %v3581 = vpop.f32.mrb[0].mxu0
      %3582 = vmatprep.mubr.bf16.mxu0 %v2969
      %3583 = vmatmul.mubr.bf16.gmra.mrb[0].mxu0 %v2797
      %v3584 = vpop.f32.mrb[0].mxu0
      %v3585 = vadd.f32 0.0, %v3584
      %v3586 = vpop.f32.mrb[0].mxu0
      %v3587 = vpop.f32.mrb[0].mxu0
      %v3588 = vadd.f32 0.0, %v3587
      %v3589 = vpop.f32.mrb[0].mxu0
      %3590 = vmatprep.mubr.bf16.mxu0 %v2972
      %3591 = vmatmul.mubr.bf16.gmra.mrb[0].mxu0 %v2800
      %v3592 = vpop.f32.mrb[0].mxu0
      %v3593 = vadd.f32 0.0, %v3592
      %v3594 = vpop.f32.mrb[0].mxu0
      %v3595 = vpop.f32.mrb[0].mxu0
      %v3596 = vadd.f32 0.0, %v3595
      %v3597 = vpop.f32.mrb[0].mxu0
      %3598 = vmatprep.mubr.bf16.mxu0 %v2975
      %3599 = vmatmul.mubr.bf16.gmra.mrb[0].mxu0 %v2803
      %v3600 = vpop.f32.mrb[0].mxu0
      %v3601 = vadd.f32 0.0, %v3600
      %v3602 = vpop.f32.mrb[0].mxu0
      %v3603 = vpop.f32.mrb[0].mxu0
      %v3604 = vadd.f32 0.0, %v3603
      %v3605 = vpop.f32.mrb[0].mxu0
      %3606 = vmatprep.mubr.bf16.mxu0 %v2978
      %3607 = vmatmul.mubr.bf16.gmra.mrb[0].mxu0 %v2806
      %v3608 = vpop.f32.mrb[0].mxu0
      %v3609 = vadd.f32 0.0, %v3608
      %v3610 = vpop.f32.mrb[0].mxu0
      %v3611 = vpop.f32.mrb[0].mxu0
      %v3612 = vadd.f32 0.0, %v3611
      %v3613 = vpop.f32.mrb[0].mxu0
      %3614 = vmatprep.mubr.bf16.mxu0 %v2981
      %3615 = vmatmul.mubr.bf16.gmra.mrb[0].mxu0 %v2809
      %v3616 = vpop.f32.mrb[0].mxu0
      %v3617 = vadd.f32 0.0, %v3616
      %v3618 = vpop.f32.mrb[0].mxu0
      %v3619 = vpop.f32.mrb[0].mxu0
      %v3620 = vadd.f32 0.0, %v3619
      %v3621 = vpop.f32.mrb[0].mxu0
      %3622 = vmatprep.mubr.bf16.mxu0 %v2984
      %3623 = vmatmul.mubr.bf16.gmra.mrb[0].mxu0 %v2812
      %v3624 = vpop.f32.mrb[0].mxu0
      %v3625 = vadd.f32 0.0, %v3624
      %v3626 = vpop.f32.mrb[0].mxu0
      %v3627 = vpop.f32.mrb[0].mxu0
      %v3628 = vadd.f32 0.0, %v3627
      %v3629 = vpop.f32.mrb[0].mxu0
      %3630 = vmatprep.mubr.bf16.mxu0 %v2987
      %3631 = vmatmul.mubr.bf16.gmra.mrb[0].mxu0 %v2815
      %v3632 = vpop.f32.mrb[0].mxu0
      %v3633 = vadd.f32 0.0, %v3632
      %v3634 = vpop.f32.mrb[0].mxu0
      %v3635 = vpop.f32.mrb[0].mxu0
      %v3636 = vadd.f32 0.0, %v3635
      %v3637 = vpop.f32.mrb[0].mxu0
      %3638 = vmatprep.mubr.bf16.mxu0 %v3484
      %3639 = vmatmul.mubr.bf16.gmra.mrb[0].mxu0 %v2818
      %v3640 = vpop.f32.mrb[0].mxu0
      %v3641 = vadd.f32 0.0, %v3640
      %v3642 = vpop.f32.mrb[0].mxu0
      %v3643 = vpop.f32.mrb[0].mxu0
      %v3644 = vadd.f32 0.0, %v3643
      %v3645 = vpop.f32.mrb[0].mxu0
      %3646 = vdwg.mxu0
      %v3647 = vadd.f32 %v3260, %v3521
      %v3648 = vadd.f32 %v3263, %v3524
      %v3649 = vadd.f32 %v3268, %v3529
      %v3650 = vadd.f32 %v3271, %v3532
      %v3651 = vadd.f32 %v3276, %v3537
      %v3652 = vadd.f32 %v3279, %v3540
      %v3653 = vadd.f32 %v3284, %v3545
      %v3654 = vadd.f32 %v3287, %v3548
      %v3655 = vadd.f32 %v3292, %v3553
      %v3656 = vadd.f32 %v3295, %v3556
      %v3657 = vadd.f32 %v3300, %v3561
      %v3658 = vadd.f32 %v3303, %v3564
      %v3659 = vadd.f32 %v3308, %v3569
      %v3660 = vadd.f32 %v3311, %v3572
      %v3661 = vadd.f32 %v3316, %v3577
      %v3662 = vadd.f32 %v3319, %v3580
      %v3663 = vadd.f32 %v3324, %v3585
      %v3664 = vadd.f32 %v3327, %v3588
      %v3665 = vadd.f32 %v3332, %v3593
      %v3666 = vadd.f32 %v3335, %v3596
      %v3667 = vadd.f32 %v3340, %v3601
      %v3668 = vadd.f32 %v3343, %v3604
      %v3669 = vadd.f32 %v3348, %v3609
      %v3670 = vadd.f32 %v3351, %v3612
      %v3671 = vadd.f32 %v3356, %v3617
      %v3672 = vadd.f32 %v3359, %v3620
      %v3673 = vadd.f32 %v3364, %v3625
      %v3674 = vadd.f32 %v3367, %v3628
      %v3675 = vadd.f32 %v3372, %v3633
      %v3676 = vadd.f32 %v3375, %v3636
      %v3677 = vadd.f32 %v3380, %v3641
      %v3678 = vadd.f32 %v3383, %v3644
      %v3679 = vld [vmem:[%s6] sm:$0x1]
      %v3681 = vlaneseq
      %v3682 = vshrl.u32 %v3681, 7
      %v3683 = vsub.s32 0, %v3682
      %v3684 = vrot.slane %v3679, %v3683
      %v3686 = vadd.f32 %v3647, %v3684
      %v3687 = vadd.f32 %v3648, %v3684
      %v3688 = vadd.f32 %v3649, %v3684
      %v3689 = vadd.f32 %v3650, %v3684
      %v3690 = vadd.f32 %v3651, %v3684
      %v3691 = vadd.f32 %v3652, %v3684
      %v3692 = vadd.f32 %v3653, %v3684
      %v3693 = vadd.f32 %v3654, %v3684
      %v3694 = vadd.f32 %v3655, %v3684
      %v3695 = vadd.f32 %v3656, %v3684
      %v3696 = vadd.f32 %v3657, %v3684
      %v3697 = vadd.f32 %v3658, %v3684
      %v3698 = vadd.f32 %v3659, %v3684
      %v3699 = vadd.f32 %v3660, %v3684
      %v3700 = vadd.f32 %v3661, %v3684
      %v3701 = vadd.f32 %v3662, %v3684
      %v3702 = vadd.f32 %v3663, %v3684
      %v3703 = vadd.f32 %v3664, %v3684
      %v3704 = vadd.f32 %v3665, %v3684
      %v3705 = vadd.f32 %v3666, %v3684
      %v3706 = vadd.f32 %v3667, %v3684
      %v3707 = vadd.f32 %v3668, %v3684
      %v3708 = vadd.f32 %v3669, %v3684
      %v3709 = vadd.f32 %v3670, %v3684
      %v3710 = vadd.f32 %v3671, %v3684
      %v3711 = vadd.f32 %v3672, %v3684
      %v3712 = vadd.f32 %v3673, %v3684
      %v3713 = vadd.f32 %v3674, %v3684
      %v3714 = vadd.f32 %v3675, %v3684
      %v3715 = vadd.f32 %v3676, %v3684
      %v3716 = vadd.f32 %v3677, %v3684
      %v3717 = vadd.f32 %v3678, %v3684
      %v3718 = vmax.f32 %v3686, 0.0
      %v3719 = vmax.f32 %v3687, 0.0
      %v3720 = vmax.f32 %v3688, 0.0
      %v3721 = vmax.f32 %v3689, 0.0
      %v3722 = vmax.f32 %v3690, 0.0
      %v3723 = vmax.f32 %v3691, 0.0
      %v3724 = vmax.f32 %v3692, 0.0
      %v3725 = vmax.f32 %v3693, 0.0
      %v3726 = vmax.f32 %v3694, 0.0
      %v3727 = vmax.f32 %v3695, 0.0
      %v3728 = vmax.f32 %v3696, 0.0
      %v3729 = vmax.f32 %v3697, 0.0
      %v3730 = vmax.f32 %v3698, 0.0
      %v3731 = vmax.f32 %v3699, 0.0
      %v3732 = vmax.f32 %v3700, 0.0
      %v3733 = vmax.f32 %v3701, 0.0
      %v3734 = vmax.f32 %v3702, 0.0
      %v3735 = vmax.f32 %v3703, 0.0
      %v3736 = vmax.f32 %v3704, 0.0
      %v3737 = vmax.f32 %v3705, 0.0
      %v3738 = vmax.f32 %v3706, 0.0
      %v3739 = vmax.f32 %v3707, 0.0
      %v3740 = vmax.f32 %v3708, 0.0
      %v3741 = vmax.f32 %v3709, 0.0
      %v3742 = vmax.f32 %v3710, 0.0
      %v3743 = vmax.f32 %v3711, 0.0
      %v3744 = vmax.f32 %v3712, 0.0
      %v3745 = vmax.f32 %v3713, 0.0
      %v3746 = vmax.f32 %v3714, 0.0
      %v3747 = vmax.f32 %v3715, 0.0
      %v3748 = vmax.f32 %v3716, 0.0
      %v3749 = vmax.f32 %v3717, 0.0
      %v3750 = vpack.c.bf16 %v3719, %v3718
      %v3751 = vpack.c.bf16 %v3721, %v3720
      %v3752 = vpack.c.bf16 %v3723, %v3722
      %v3753 = vpack.c.bf16 %v3725, %v3724
      %v3754 = vpack.c.bf16 %v3727, %v3726
      %v3755 = vpack.c.bf16 %v3729, %v3728
      %v3756 = vpack.c.bf16 %v3731, %v3730
      %v3757 = vpack.c.bf16 %v3733, %v3732
      %v3758 = vpack.c.bf16 %v3735, %v3734
      %v3759 = vpack.c.bf16 %v3737, %v3736
      %v3760 = vpack.c.bf16 %v3739, %v3738
      %v3761 = vpack.c.bf16 %v3741, %v3740
      %v3762 = vpack.c.bf16 %v3743, %v3742
      %v3763 = vpack.c.bf16 %v3745, %v3744
      %v3764 = vpack.c.bf16 %v3747, %v3746
      %v3765 = vpack.c.bf16 %v3749, %v3748
      %v3782 = vunpack.c.l.b16 %v3750
      %v3783 = vunpack.c.h.b16 %v3750
      %v3784 = vunpack.c.l.b16 %v3751
      %v3785 = vunpack.c.h.b16 %v3751
      %v3786 = vunpack.c.l.b16 %v3752
      %v3787 = vunpack.c.h.b16 %v3752
      %v3788 = vunpack.c.l.b16 %v3753
      %v3789 = vunpack.c.h.b16 %v3753
      %v3790 = vunpack.c.l.b16 %v3754
      %v3791 = vunpack.c.h.b16 %v3754
      %v3792 = vunpack.c.l.b16 %v3755
      %v3793 = vunpack.c.h.b16 %v3755
      %v3794 = vunpack.c.l.b16 %v3756
      %v3795 = vunpack.c.h.b16 %v3756
      %v3796 = vunpack.c.l.b16 %v3757
      %v3797 = vunpack.c.h.b16 %v3757
      %v3798 = vunpack.c.l.b16 %v3758
      %v3799 = vunpack.c.h.b16 %v3758
      %v3800 = vunpack.c.l.b16 %v3759
      %v3801 = vunpack.c.h.b16 %v3759
      %v3802 = vunpack.c.l.b16 %v3760
      %v3803 = vunpack.c.h.b16 %v3760
      %v3804 = vunpack.c.l.b16 %v3761
      %v3805 = vunpack.c.h.b16 %v3761
      %v3806 = vunpack.c.l.b16 %v3762
      %v3807 = vunpack.c.h.b16 %v3762
      %v3808 = vunpack.c.l.b16 %v3763
      %v3809 = vunpack.c.h.b16 %v3763
      %v3810 = vunpack.c.l.b16 %v3764
      %v3811 = vunpack.c.h.b16 %v3764
      %v3812 = vunpack.c.l.b16 %v3765
      %v3813 = vunpack.c.h.b16 %v3765
      %v3814 = vpack.c.b16 %v3782, %v3782
      %v3815 = vpack.c.b16 %v3783, %v3783
      %v3816 = vpack.c.b16 %v3784, %v3784
      %v3817 = vpack.c.b16 %v3785, %v3785
      %v3818 = vpack.c.b16 %v3786, %v3786
      %v3819 = vpack.c.b16 %v3787, %v3787
      %v3820 = vpack.c.b16 %v3788, %v3788
      %v3821 = vpack.c.b16 %v3789, %v3789
      %v3822 = vpack.c.b16 %v3790, %v3790
      %v3823 = vpack.c.b16 %v3791, %v3791
      %v3824 = vpack.c.b16 %v3792, %v3792
      %v3825 = vpack.c.b16 %v3793, %v3793
      %v3826 = vpack.c.b16 %v3794, %v3794
      %v3827 = vpack.c.b16 %v3795, %v3795
      %v3828 = vpack.c.b16 %v3796, %v3796
      %v3829 = vpack.c.b16 %v3797, %v3797
      %v3830 = vpack.c.b16 %v3798, %v3798
      %v3831 = vpack.c.b16 %v3799, %v3799
      %v3832 = vpack.c.b16 %v3800, %v3800
      %v3833 = vpack.c.b16 %v3801, %v3801
      %v3834 = vpack.c.b16 %v3802, %v3802
      %v3835 = vpack.c.b16 %v3803, %v3803
      %v3836 = vpack.c.b16 %v3804, %v3804
      %v3837 = vpack.c.b16 %v3805, %v3805
      %v3838 = vpack.c.b16 %v3806, %v3806
      %v3839 = vpack.c.b16 %v3807, %v3807
      %v3840 = vpack.c.b16 %v3808, %v3808
      %v3841 = vpack.c.b16 %v3809, %v3809
      %v3842 = vpack.c.b16 %v3810, %v3810
      %v3843 = vpack.c.b16 %v3811, %v3811
      %v3844 = vpack.c.b16 %v3812, %v3812
      %v3845 = vpack.c.b16 %v3813, %v3813
      %vm3878 = vcmask 519168
      %3879 = vst.msk [vmem:[%s455] sm:$0xf] %vm3878, %v3814
      %3880 = vst.msk [vmem:[%s455 + $0x4] sm:$0xf] %vm3878, %v3815
      %3881 = vst.msk [vmem:[%s455 + $0x8] sm:$0xf] %vm3878, %v3816
      %3882 = vst.msk [vmem:[%s455 + $0xc] sm:$0xf] %vm3878, %v3817
      %3883 = vst.msk [vmem:[%s455 + $0x10] sm:$0xf] %vm3878, %v3818
      %3884 = vst.msk [vmem:[%s455 + $0x14] sm:$0xf] %vm3878, %v3819
      %3885 = vst.msk [vmem:[%s455 + $0x18] sm:$0xf] %vm3878, %v3820
      %3886 = vst.msk [vmem:[%s455 + $0x1c] sm:$0xf] %vm3878, %v3821
      %3887 = vst.msk [vmem:[%s455 + $0x20] sm:$0xf] %vm3878, %v3822
      %3888 = vst.msk [vmem:[%s455 + $0x24] sm:$0xf] %vm3878, %v3823
      %3889 = vst.msk [vmem:[%s455 + $0x28] sm:$0xf] %vm3878, %v3824
      %3890 = vst.msk [vmem:[%s455 + $0x2c] sm:$0xf] %vm3878, %v3825
      %3891 = vst.msk [vmem:[%s455 + $0x30] sm:$0xf] %vm3878, %v3826
      %3892 = vst.msk [vmem:[%s455 + $0x34] sm:$0xf] %vm3878, %v3827
      %3893 = vst.msk [vmem:[%s455 + $0x38] sm:$0xf] %vm3878, %v3828
      %3894 = vst.msk [vmem:[%s455 + $0x3c] sm:$0xf] %vm3878, %v3829
      %3895 = vst.msk [vmem:[%s455 + $0x40] sm:$0xf] %vm3878, %v3830
      %3896 = vst.msk [vmem:[%s455 + $0x44] sm:$0xf] %vm3878, %v3831
      %3897 = vst.msk [vmem:[%s455 + $0x48] sm:$0xf] %vm3878, %v3832
      %3898 = vst.msk [vmem:[%s455 + $0x4c] sm:$0xf] %vm3878, %v3833
      %3899 = vst.msk [vmem:[%s455 + $0x50] sm:$0xf] %vm3878, %v3834
      %3900 = vst.msk [vmem:[%s455 + $0x54] sm:$0xf] %vm3878, %v3835
      %3901 = vst.msk [vmem:[%s455 + $0x58] sm:$0xf] %vm3878, %v3836
      %3902 = vst.msk [vmem:[%s455 + $0x5c] sm:$0xf] %vm3878, %v3837
      %3903 = vst.msk [vmem:[%s455 + $0x60] sm:$0xf] %vm3878, %v3838
      %3904 = vst.msk [vmem:[%s455 + $0x64] sm:$0xf] %vm3878, %v3839
      %3905 = vst.msk [vmem:[%s455 + $0x68] sm:$0xf] %vm3878, %v3840
      %3906 = vst.msk [vmem:[%s455 + $0x6c] sm:$0xf] %vm3878, %v3841
      %3907 = vst.msk [vmem:[%s455 + $0x70] sm:$0xf] %vm3878, %v3842
      %3908 = vst.msk [vmem:[%s455 + $0x74] sm:$0xf] %vm3878, %v3843
      %3909 = vst.msk [vmem:[%s455 + $0x78] sm:$0xf] %vm3878, %v3844
      %3910 = vst.msk [vmem:[%s455 + $0x7c] sm:$0xf] %vm3878, %v3845
      %s3911 = smul.u32 16, %s23
      %p3912 = scmp.lt.s32.totalorder %s22, 1
      %s3913 = scalar_select %p3912, %s22, 1
      %p3914 = scmp.lt.s32.totalorder %s3911, 15
      %s3915 = scalar_select %p3914, %s3911, 15
      %s3916 = smul.addr %s3915, 2
      %s3917 = smul.addr %s3913, 32
      %s3918 = sadd.s32 %s3916, %s3917
      %s3919 = smul.addr %s3918, 4
      %s3920 = scalar_lea.vmem %s7, %s3919
      // Predicated region
      $region49: #{a_call__.3} parent=47 // pred_check
        %p3921 = pneg %p234
      $region50: #{a_call__.3} parent=47 // pred_check_branch
        %3923 = sbr.rel (%p3921) target = $region52
      $region51: #{a_call__.3} parent=47 // pred_region
        %s3924 = smul.u32 16, %s23
      $region52: #{a_call__.3} parent=47 // pred_fallthru
        _
    $region48: #{a_call__.3} parent=5 // pred_fallthru
      _
    %p3925 = scmp.le.s32.totalorder 2, %s13
    // Predicated region
    $region53: #{a_call__.3} parent=5 // pred_check
      %p3926 = pneg %p3925
    $region54: #{a_call__.3} parent=5 // pred_check_branch
      %3928 = sbr.rel (%p3926) target = $region56
    $region55: #{a_call__.3} parent=5 // pred_region
      %s3929 = ssub.s32 %s13, 2
      // Predicated region
      $region57: #{a_call__.3} parent=55 // pred_check
        %p3930 = pneg %p240
      $region58: #{a_call__.3} parent=55 // pred_check_branch
        %3932 = sbr.rel (%p3930) target = $region60
      $region59: #{a_call__.3} parent=55 // pred_region
        %s3933 = smul.u32 16, %s25
        %p3934 = scmp.lt.s32.totalorder %s24, 1
        %s3935 = scalar_select %p3934, %s24, 1
        %p3936 = scmp.lt.s32.totalorder %s3933, 15
        %s3937 = scalar_select %p3936, %s3933, 15
        %s3938 = smul.addr %s3937, 2
        %s3939 = smul.addr %s3935, 32
        %s3940 = sadd.s32 %s3938, %s3939
        %s3941 = smul.addr %s3940, 4
        %s3942 = scalar_lea.vmem %s7, %s3941
      $region60: #{a_call__.3} parent=55 // pred_fallthru
        _
    $region56: #{a_call__.3} parent=5 // pred_fallthru
      _
  $region6: #{a_call__.3} parent=0 // loop_footer
    %s17 = sadd.s32 1, %s13
  $region7: #{a_call__.3} parent=0 // loop_footer_branch
    %12 = sbr.rel target = $region3
  $region8: #{a_call__.3} parent=0 // loop_exit
    _

// kernel: a_call__.4
$region0: #{a_call__.4}
  #allocation0 [shape = 'u32[]', space=smem, size = 0x4, offset = 0x4, fixed_abs, tag = 'smem constant byte address 0x4 - core index']
  #allocation1 [shape = 'u32[144,128]{1,0:T(1,128)}', space=vmem, size = 0x12000, scoped, tag = 'internal scratch']
  %s0 = inlined_call_operand.vmem [shape: bf16[2,16,16,64], index: 0, kind: input, shape index: {}, may-alias: {0,1,2}]
  %s1 = inlined_call_operand.vmem [shape: bf16[2,16,16,64], index: 1, kind: input, shape index: {}, may-alias: {0,1,2}]
  %s2 = inlined_call_operand.vmem [shape: bf16[2,16,16,64], index: 2, kind: input, shape index: {}, may-alias: {0,1,2}]
  %s3 = inlined_call_operand.vmem [shape: bf16[3,192,64], index: 3, kind: input, shape index: {}]
  %s4 = inlined_call_operand.vmem [shape: f32[1,64], index: 4, kind: input, shape index: {}, may-alias: {4,6}]
  %s5 = inlined_call_operand.vmem [shape: bf16[3,192,64], index: 5, kind: input, shape index: {}]
  %s6 = inlined_call_operand.vmem [shape: f32[1,64], index: 6, kind: input, shape index: {}, may-alias: {4,6}]
  %s7 = inlined_call_operand.vmem [shape: bf16[2,16,16,64], index: 7, kind: output, shape index: {}]
  %s8 = sld [smem:[#allocation0]]
  $region61: #{a_call__.4} parent=0
    _
  %s10 = ssub.s32 1, %s8
  %s11 = scalar_select 0, %s10, %s8
  loop: start=0, step=1, limit=4
  $region2: #{a_call__.4} parent=0 // loop_pre_header
    _
  $region3: #{a_call__.4} parent=0 // loop_header
    %s13 = sphi 0, %s17
    %p14 = scmp.ge.s32.totalorder %s13, 4
    %s20 = sphi 0, %s32
    %s21 = sphi 0, %s28
    %s22 = sphi 0, %s20
    %s23 = sphi 0, %s21
    %s24 = sphi 0, %s22
    %s25 = sphi 0, %s23
    %s37 = sphi 0, %s39
    %s40 = sphi 0, %s37
    %s41 = sphi 0, %s40
    %s57 = sphi 0, %s41
    %s73 = sphi 0, %s75
    %s76 = sphi 0, %s73
    %s77 = sphi 0, %s76
    %s93 = sphi 0, %s77
    %s109 = sphi 0, %s111
    %s112 = sphi 0, %s109
    %s113 = sphi 0, %s112
    %s129 = sphi 0, %s113
    %s133 = sphi 0, %s133
    %s135 = sphi 0, %s133
    %s136 = sphi 0, %s135
    %s150 = sphi 0, %s136
    %s154 = sphi 0, %s154
    %s156 = sphi 0, %s154
    %s157 = sphi 0, %s156
    %s171 = sphi 0, %s157
    %s175 = sphi 0, %s175
    %s177 = sphi 0, %s175
    %s178 = sphi 0, %s177
    %s192 = sphi 0, %s178
    %s196 = sphi 0, %s196
    %s198 = sphi 0, %s196
    %s199 = sphi 0, %s198
    %s213 = sphi 0, %s199
    %s221 = sphi 0, %s223
    %s224 = sphi 0, %s221
    %s225 = sphi 0, %s224
    %s241 = sphi 0, %s225
  $region4: #{a_call__.4} parent=0 // loop_header_branch
    %16 = sbr.rel (%p14) target = $region8
  $region5: #{a_call__.4} parent=0 // loop_body
    %s18 = ssub.s32 %s13, 1
    %s19 = ssub.s32 %s13, 2
    %s26 = sadd.s32 1, %s21
    %p27 = scmp.ge.s32.totalorder %s26, 1
    %s28 = scalar_select %p27, 0, %s26
    %s29 = sadd.s32 1, %s20
    %s30 = scalar_select %p27, %s29, %s20
    %p31 = scmp.ge.s32.totalorder %s30, 2
    %s32 = scalar_select %p31, 0, %s30
    %s33 = ssub.s32 %s20, %s32
    %s34 = ssub.s32 %s21, %s28
    %s35 = sor.u32 %s33, %s34
    %p36 = scmp.eq.s32.totalorder %s35, 0
    %s38 = sadd.s32 %s37, 1
    %s39 = scalar_select %p36, %s37, %s38
    %p42 = pneg %p36
    %p43 = scmp.eq.s32.totalorder %s13, 1
    %p44 = por %p42, %p43
    %p45 = scmp.ne.s32.totalorder %s37, %s40
    %p46 = scmp.eq.s32.totalorder %s13, 0
    %p47 = por %p45, %p46
    %p48 = scmp.ne.s32.totalorder %s37, %s40
    %p49 = scmp.eq.s32.totalorder %s18, 1
    %p50 = por %p48, %p49
    %p51 = scmp.ne.s32.totalorder %s40, %s41
    %p52 = scmp.eq.s32.totalorder %s18, 0
    %p53 = por %p51, %p52
    %p54 = scmp.ne.s32.totalorder %s40, %s41
    %p55 = scmp.eq.s32.totalorder %s19, 1
    %p56 = por %p54, %p55
    %p58 = scmp.ne.s32.totalorder %s41, %s57
    %p59 = scmp.eq.s32.totalorder %s19, 0
    %p60 = por %p58, %p59
    %s61 = smul.u32 %s21, 8
    %s62 = ssub.s32 %s61, 1
    %p63 = scmp.gt.s32.totalorder %s62, 0
    %s64 = scalar_select %p63, %s62, 0
    %s65 = smul.u32 %s28, 8
    %s66 = ssub.s32 %s65, 1
    %p67 = scmp.gt.s32.totalorder %s66, 0
    %s68 = scalar_select %p67, %s66, 0
    %s69 = ssub.s32 %s20, %s32
    %s70 = ssub.s32 %s64, %s68
    %s71 = sor.u32 %s69, %s70
    %p72 = scmp.eq.s32.totalorder %s71, 0
    %s74 = sadd.s32 %s73, 1
    %s75 = scalar_select %p72, %s73, %s74
    %p78 = pneg %p72
    %p79 = scmp.eq.s32.totalorder %s13, 1
    %p80 = por %p78, %p79
    %p81 = scmp.ne.s32.totalorder %s73, %s76
    %p82 = scmp.eq.s32.totalorder %s13, 0
    %p83 = por %p81, %p82
    %p84 = scmp.ne.s32.totalorder %s73, %s76
    %p85 = scmp.eq.s32.totalorder %s18, 1
    %p86 = por %p84, %p85
    %p87 = scmp.ne.s32.totalorder %s76, %s77
    %p88 = scmp.eq.s32.totalorder %s18, 0
    %p89 = por %p87, %p88
    %p90 = scmp.ne.s32.totalorder %s76, %s77
    %p91 = scmp.eq.s32.totalorder %s19, 1
    %p92 = por %p90, %p91
    %p94 = scmp.ne.s32.totalorder %s77, %s93
    %p95 = scmp.eq.s32.totalorder %s19, 0
    %p96 = por %p94, %p95
    %s97 = sadd.s32 %s21, 1
    %s98 = smul.u32 %s97, 8
    %p99 = scmp.lt.s32.totalorder %s98, 7
    %s100 = scalar_select %p99, %s98, 7
    %s101 = sadd.s32 %s28, 1
    %s102 = smul.u32 %s101, 8
    %p103 = scmp.lt.s32.totalorder %s102, 7
    %s104 = scalar_select %p103, %s102, 7
    %s105 = ssub.s32 %s20, %s32
    %s106 = ssub.s32 %s100, %s104
    %s107 = sor.u32 %s105, %s106
    %p108 = scmp.eq.s32.totalorder %s107, 0
    %s110 = sadd.s32 %s109, 1
    %s111 = scalar_select %p108, %s109, %s110
    %p114 = pneg %p108
    %p115 = scmp.eq.s32.totalorder %s13, 1
    %p116 = por %p114, %p115
    %p117 = scmp.ne.s32.totalorder %s109, %s112
    %p118 = scmp.eq.s32.totalorder %s13, 0
    %p119 = por %p117, %p118
    %p120 = scmp.ne.s32.totalorder %s109, %s112
    %p121 = scmp.eq.s32.totalorder %s18, 1
    %p122 = por %p120, %p121
    %p123 = scmp.ne.s32.totalorder %s112, %s113
    %p124 = scmp.eq.s32.totalorder %s18, 0
    %p125 = por %p123, %p124
    %p126 = scmp.ne.s32.totalorder %s112, %s113
    %p127 = scmp.eq.s32.totalorder %s19, 1
    %p128 = por %p126, %p127
    %p130 = scmp.ne.s32.totalorder %s113, %s129
    %p131 = scmp.eq.s32.totalorder %s19, 0
    %p132 = por %p130, %p131
    %s134 = sadd.s32 %s133, 1
    %p137 = scmp.eq.s32.totalorder %s13, 1
    %p138 = scmp.ne.s32.totalorder %s133, %s135
    %p139 = scmp.eq.s32.totalorder %s13, 0
    %p140 = por %p138, %p139
    %p141 = scmp.ne.s32.totalorder %s133, %s135
    %p142 = scmp.eq.s32.totalorder %s18, 1
    %p143 = por %p141, %p142
    %p144 = scmp.ne.s32.totalorder %s135, %s136
    %p145 = scmp.eq.s32.totalorder %s18, 0
    %p146 = por %p144, %p145
    %p147 = scmp.ne.s32.totalorder %s135, %s136
    %p148 = scmp.eq.s32.totalorder %s19, 1
    %p149 = por %p147, %p148
    %p151 = scmp.ne.s32.totalorder %s136, %s150
    %p152 = scmp.eq.s32.totalorder %s19, 0
    %p153 = por %p151, %p152
    %s155 = sadd.s32 %s154, 1
    %p158 = scmp.eq.s32.totalorder %s13, 1
    %p159 = scmp.ne.s32.totalorder %s154, %s156
    %p160 = scmp.eq.s32.totalorder %s13, 0
    %p161 = por %p159, %p160
    %p162 = scmp.ne.s32.totalorder %s154, %s156
    %p163 = scmp.eq.s32.totalorder %s18, 1
    %p164 = por %p162, %p163
    %p165 = scmp.ne.s32.totalorder %s156, %s157
    %p166 = scmp.eq.s32.totalorder %s18, 0
    %p167 = por %p165, %p166
    %p168 = scmp.ne.s32.totalorder %s156, %s157
    %p169 = scmp.eq.s32.totalorder %s19, 1
    %p170 = por %p168, %p169
    %p172 = scmp.ne.s32.totalorder %s157, %s171
    %p173 = scmp.eq.s32.totalorder %s19, 0
    %p174 = por %p172, %p173
    %s176 = sadd.s32 %s175, 1
    %p179 = scmp.eq.s32.totalorder %s13, 1
    %p180 = scmp.ne.s32.totalorder %s175, %s177
    %p181 = scmp.eq.s32.totalorder %s13, 0
    %p182 = por %p180, %p181
    %p183 = scmp.ne.s32.totalorder %s175, %s177
    %p184 = scmp.eq.s32.totalorder %s18, 1
    %p185 = por %p183, %p184
    %p186 = scmp.ne.s32.totalorder %s177, %s178
    %p187 = scmp.eq.s32.totalorder %s18, 0
    %p188 = por %p186, %p187
    %p189 = scmp.ne.s32.totalorder %s177, %s178
    %p190 = scmp.eq.s32.totalorder %s19, 1
    %p191 = por %p189, %p190
    %p193 = scmp.ne.s32.totalorder %s178, %s192
    %p194 = scmp.eq.s32.totalorder %s19, 0
    %p195 = por %p193, %p194
    %s197 = sadd.s32 %s196, 1
    %p200 = scmp.eq.s32.totalorder %s13, 1
    %p201 = scmp.ne.s32.totalorder %s196, %s198
    %p202 = scmp.eq.s32.totalorder %s13, 0
    %p203 = por %p201, %p202
    %p204 = scmp.ne.s32.totalorder %s196, %s198
    %p205 = scmp.eq.s32.totalorder %s18, 1
    %p206 = por %p204, %p205
    %p207 = scmp.ne.s32.totalorder %s198, %s199
    %p208 = scmp.eq.s32.totalorder %s18, 0
    %p209 = por %p207, %p208
    %p210 = scmp.ne.s32.totalorder %s198, %s199
    %p211 = scmp.eq.s32.totalorder %s19, 1
    %p212 = por %p210, %p211
    %p214 = scmp.ne.s32.totalorder %s199, %s213
    %p215 = scmp.eq.s32.totalorder %s19, 0
    %p216 = por %p214, %p215
    %s217 = ssub.s32 %s20, %s32
    %s218 = ssub.s32 %s21, %s28
    %s219 = sor.u32 %s217, %s218
    %p220 = scmp.eq.s32.totalorder %s219, 0
    %s222 = sadd.s32 %s221, 1
    %s223 = scalar_select %p220, %s221, %s222
    %p226 = pneg %p220
    %p227 = scmp.eq.s32.totalorder %s13, 1
    %p228 = por %p226, %p227
    %p229 = scmp.ne.s32.totalorder %s221, %s224
    %p230 = scmp.eq.s32.totalorder %s13, 0
    %p231 = por %p229, %p230
    %p232 = scmp.ne.s32.totalorder %s221, %s224
    %p233 = scmp.eq.s32.totalorder %s18, 1
    %p234 = por %p232, %p233
    %p235 = scmp.ne.s32.totalorder %s224, %s225
    %p236 = scmp.eq.s32.totalorder %s18, 0
    %p237 = por %p235, %p236
    %p238 = scmp.ne.s32.totalorder %s224, %s225
    %p239 = scmp.eq.s32.totalorder %s19, 1
    %p240 = por %p238, %p239
    %p242 = scmp.ne.s32.totalorder %s225, %s241
    %p243 = scmp.eq.s32.totalorder %s19, 0
    %p244 = por %p242, %p243
    %p245 = scmp.le.s32.totalorder 1, %s13
    %p246 = scmp.lt.s32.totalorder %s13, 3
    %p247 = pnand %p245, %p246
    %p248 = pneg %p247
    // Predicated region
    $region9: #{a_call__.4} parent=5 // pred_check
      _
    $region10: #{a_call__.4} parent=5 // pred_check_branch
      %250 = sbr.rel (%p247) target = $region12
    $region11: #{a_call__.4} parent=5 // pred_region
      %s251 = ssub.s32 %s13, 1
      // Predicated region
      $region13: #{a_call__.4} parent=11 // pred_check
        %p252 = pneg %p146
      $region14: #{a_call__.4} parent=11 // pred_check_branch
        %254 = sbr.rel (%p252) target = $region16
      $region15: #{a_call__.4} parent=11 // pred_region
        _
      $region16: #{a_call__.4} parent=11 // pred_fallthru
        _
      // Predicated region
      $region17: #{a_call__.4} parent=11 // pred_check
        %p255 = pneg %p167
      $region18: #{a_call__.4} parent=11 // pred_check_branch
        %257 = sbr.rel (%p255) target = $region20
      $region19: #{a_call__.4} parent=11 // pred_region
        _
      $region20: #{a_call__.4} parent=11 // pred_fallthru
        _
      // Predicated region
      $region21: #{a_call__.4} parent=11 // pred_check
        %p258 = pneg %p188
      $region22: #{a_call__.4} parent=11 // pred_check_branch
        %260 = sbr.rel (%p258) target = $region24
      $region23: #{a_call__.4} parent=11 // pred_region
        _
      $region24: #{a_call__.4} parent=11 // pred_fallthru
        _
      // Predicated region
      $region25: #{a_call__.4} parent=11 // pred_check
        %p261 = pneg %p209
      $region26: #{a_call__.4} parent=11 // pred_check_branch
        %263 = sbr.rel (%p261) target = $region28
      $region27: #{a_call__.4} parent=11 // pred_region
        _
      $region28: #{a_call__.4} parent=11 // pred_fallthru
        _
    $region12: #{a_call__.4} parent=5 // pred_fallthru
      _
    %p264 = scmp.lt.s32.totalorder %s13, 2
    // Predicated region
    $region29: #{a_call__.4} parent=5 // pred_check
      %p265 = pneg %p264
    $region30: #{a_call__.4} parent=5 // pred_check_branch
      %267 = sbr.rel (%p265) target = $region32
    $region31: #{a_call__.4} parent=5 // pred_region
      // Predicated region
      $region33: #{a_call__.4} parent=31 // pred_check
        %p268 = pneg %p47
      $region34: #{a_call__.4} parent=31 // pred_check_branch
        %270 = sbr.rel (%p268) target = $region36
      $region35: #{a_call__.4} parent=31 // pred_region
        %s271 = smul.u32 16, %s21
        %p272 = scmp.lt.s32.totalorder %s20, 1
        %s273 = scalar_select %p272, %s20, 1
        %p274 = scmp.lt.s32.totalorder %s271, 15
        %s275 = scalar_select %p274, %s271, 15
        %s276 = smul.addr %s275, 2
        %s277 = smul.addr %s273, 32
        %s278 = sadd.s32 %s276, %s277
        %s279 = smul.addr %s278, 4
        %s280 = scalar_lea.vmem %s0, %s279
        %s281 = smul.u32 16, %s21
      $region36: #{a_call__.4} parent=31 // pred_fallthru
        _
      // Predicated region
      $region37: #{a_call__.4} parent=31 // pred_check
        %p282 = pneg %p83
      $region38: #{a_call__.4} parent=31 // pred_check_branch
        %284 = sbr.rel (%p282) target = $region40
      $region39: #{a_call__.4} parent=31 // pred_region
        %s285 = smul.u32 %s21, 8
        %s286 = ssub.s32 %s285, 1
        %p287 = scmp.gt.s32.totalorder %s286, 0
        %s288 = scalar_select %p287, %s286, 0
        %s289 = smul.u32 2, %s288
        %p290 = scmp.lt.s32.totalorder %s20, 1
        %s291 = scalar_select %p290, %s20, 1
        %p292 = scmp.lt.s32.totalorder %s289, 15
        %s293 = scalar_select %p292, %s289, 15
        %s294 = smul.addr %s293, 2
        %s295 = smul.addr %s291, 32
        %s296 = sadd.s32 %s294, %s295
        %s297 = smul.addr %s296, 4
        %s298 = scalar_lea.vmem %s1, %s297
        %s299 = smul.u32 %s21, 8
        %s300 = ssub.s32 %s299, 1
        %p301 = scmp.gt.s32.totalorder %s300, 0
        %s302 = scalar_select %p301, %s300, 0
        %s303 = smul.u32 2, %s302
      $region40: #{a_call__.4} parent=31 // pred_fallthru
        _
      // Predicated region
      $region41: #{a_call__.4} parent=31 // pred_check
        %p304 = pneg %p119
      $region42: #{a_call__.4} parent=31 // pred_check_branch
        %306 = sbr.rel (%p304) target = $region44
      $region43: #{a_call__.4} parent=31 // pred_region
        %s307 = sadd.s32 %s21, 1
        %s308 = smul.u32 %s307, 8
        %p309 = scmp.lt.s32.totalorder %s308, 7
        %s310 = scalar_select %p309, %s308, 7
        %s311 = smul.u32 2, %s310
        %p312 = scmp.lt.s32.totalorder %s20, 1
        %s313 = scalar_select %p312, %s20, 1
        %p314 = scmp.lt.s32.totalorder %s311, 15
        %s315 = scalar_select %p314, %s311, 15
        %s316 = smul.addr %s315, 2
        %s317 = smul.addr %s313, 32
        %s318 = sadd.s32 %s316, %s317
        %s319 = smul.addr %s318, 4
        %s320 = scalar_lea.vmem %s2, %s319
        %s321 = sadd.s32 %s21, 1
        %s322 = smul.u32 %s321, 8
        %p323 = scmp.lt.s32.totalorder %s322, 7
        %s324 = scalar_select %p323, %s322, 7
        %s325 = smul.u32 2, %s324
      $region44: #{a_call__.4} parent=31 // pred_fallthru
        _
    $region32: #{a_call__.4} parent=5 // pred_fallthru
      _
    %p326 = scmp.le.s32.totalorder 1, %s13
    %p327 = scmp.lt.s32.totalorder %s13, 3
    %p328 = pnand %p326, %p327
    %p329 = pneg %p328
    // Predicated region
    $region45: #{a_call__.4} parent=5 // pred_check
      _
    $region46: #{a_call__.4} parent=5 // pred_check_branch
      %331 = sbr.rel (%p328) target = $region48
    $region47: #{a_call__.4} parent=5 // pred_region
      %s332 = ssub.s32 %s13, 1
      %s333 = smul.u32 16, %s23
      %p334 = scmp.lt.s32.totalorder %s22, 1
      %s335 = scalar_select %p334, %s22, 1
      %p336 = scmp.lt.s32.totalorder %s333, 15
      %s337 = scalar_select %p336, %s333, 15
      %s338 = smul.addr %s337, 2
      %s339 = smul.addr %s335, 32
      %s340 = sadd.s32 %s338, %s339
      %s341 = smul.addr %s340, 4
      %s342 = scalar_lea.vmem %s0, %s341
      %p343 = pneg %p53
      %p344 = pneg %p50
      %s345 = smul.u32 %s23, 8
      %s346 = ssub.s32 %s345, 1
      %p347 = scmp.gt.s32.totalorder %s346, 0
      %s348 = scalar_select %p347, %s346, 0
      %s349 = smul.u32 2, %s348
      %p350 = scmp.lt.s32.totalorder %s22, 1
      %s351 = scalar_select %p350, %s22, 1
      %p352 = scmp.lt.s32.totalorder %s349, 15
      %s353 = scalar_select %p352, %s349, 15
      %s354 = smul.addr %s353, 2
      %s355 = smul.addr %s351, 32
      %s356 = sadd.s32 %s354, %s355
      %s357 = smul.addr %s356, 4
      %s358 = scalar_lea.vmem %s1, %s357
      %p359 = pneg %p89
      %p360 = pneg %p86
      %s361 = sadd.s32 %s23, 1
      %s362 = smul.u32 %s361, 8
      %p363 = scmp.lt.s32.totalorder %s362, 7
      %s364 = scalar_select %p363, %s362, 7
      %s365 = smul.u32 2, %s364
      %p366 = scmp.lt.s32.totalorder %s22, 1
      %s367 = scalar_select %p366, %s22, 1
      %p368 = scmp.lt.s32.totalorder %s365, 15
      %s369 = scalar_select %p368, %s365, 15
      %s370 = smul.addr %s369, 2
      %s371 = smul.addr %s367, 32
      %s372 = sadd.s32 %s370, %s371
      %s373 = smul.addr %s372, 4
      %s374 = scalar_lea.vmem %s2, %s373
      %p375 = pneg %p125
      %p376 = pneg %p122
      %p377 = pneg %p146
      %p378 = pneg %p143
      %p379 = pneg %p167
      %p380 = pneg %p164
      %p381 = pneg %p188
      %p382 = pneg %p185
      %p383 = pneg %p209
      %p384 = pneg %p206
      %p385 = pneg %p237
      %p386 = pneg %p234
      %s387 = smul.u32 16, %s23
      %p388 = scmp.lt.s32.totalorder %s22, 1
      %s389 = scalar_select %p388, %s22, 1
      %p390 = scmp.lt.s32.totalorder %s387, 15
      %s391 = scalar_select %p390, %s387, 15
      %s392 = smul.addr %s391, 2
      %s393 = smul.addr %s389, 32
      %s394 = sadd.s32 %s392, %s393
      %s395 = smul.addr %s394, 4
      %s396 = scalar_lea.vmem %s7, %s395
      %s397 = smul.u32 16, %s23
      %p398 = scmp.lt.s32.totalorder %s22, 1
      %s399 = scalar_select %p398, %s22, 1
      %p400 = scmp.lt.s32.totalorder %s397, 15
      %s401 = scalar_select %p400, %s397, 15
      %s402 = smul.addr %s401, 2
      %s403 = smul.addr %s399, 32
      %s404 = sadd.s32 %s402, %s403
      %s405 = smul.addr %s404, 4
      %s406 = scalar_lea.vmem %s0, %s405
      %s407 = smul.u32 16, %s23
      %s408 = smul.u32 %s23, 8
      %s409 = ssub.s32 %s408, 1
      %p410 = scmp.gt.s32.totalorder %s409, 0
      %s411 = scalar_select %p410, %s409, 0
      %s412 = smul.u32 2, %s411
      %p413 = scmp.lt.s32.totalorder %s22, 1
      %s414 = scalar_select %p413, %s22, 1
      %p415 = scmp.lt.s32.totalorder %s412, 15
      %s416 = scalar_select %p415, %s412, 15
      %s417 = smul.addr %s416, 2
      %s418 = smul.addr %s414, 32
      %s419 = sadd.s32 %s417, %s418
      %s420 = smul.addr %s419, 4
      %s421 = scalar_lea.vmem %s1, %s420
      %s422 = smul.u32 %s23, 8
      %s423 = ssub.s32 %s422, 1
      %p424 = scmp.gt.s32.totalorder %s423, 0
      %s425 = scalar_select %p424, %s423, 0
      %s426 = smul.u32 2, %s425
      %s427 = sadd.s32 %s23, 1
      %s428 = smul.u32 %s427, 8
      %p429 = scmp.lt.s32.totalorder %s428, 7
      %s430 = scalar_select %p429, %s428, 7
      %s431 = smul.u32 2, %s430
      %p432 = scmp.lt.s32.totalorder %s22, 1
      %s433 = scalar_select %p432, %s22, 1
      %p434 = scmp.lt.s32.totalorder %s431, 15
      %s435 = scalar_select %p434, %s431, 15
      %s436 = smul.addr %s435, 2
      %s437 = smul.addr %s433, 32
      %s438 = sadd.s32 %s436, %s437
      %s439 = smul.addr %s438, 4
      %s440 = scalar_lea.vmem %s2, %s439
      %s441 = sadd.s32 %s23, 1
      %s442 = smul.u32 %s441, 8
      %p443 = scmp.lt.s32.totalorder %s442, 7
      %s444 = scalar_select %p443, %s442, 7
      %s445 = smul.u32 2, %s444
      %s446 = smul.u32 16, %s23
      %p447 = scmp.lt.s32.totalorder %s22, 1
      %s448 = scalar_select %p447, %s22, 1
      %p449 = scmp.lt.s32.totalorder %s446, 15
      %s450 = scalar_select %p449, %s446, 15
      %s451 = smul.addr %s450, 2
      %s452 = smul.addr %s448, 32
      %s453 = sadd.s32 %s451, %s452
      %s454 = smul.addr %s453, 4
      %s455 = scalar_lea.vmem %s7, %s454
      %s456 = smul.u32 16, %s23
      %s458 = smul.u32 %s23, 16
      %v459 = vld [vmem:[%s406] sm:$0xf]
      %v460 = vld [vmem:[%s406 + $0x4] sm:$0xf]
      %v461 = vld [vmem:[%s406 + $0x8] sm:$0xf]
      %v462 = vld [vmem:[%s406 + $0xc] sm:$0xf]
      %v463 = vld [vmem:[%s406 + $0x10] sm:$0xf]
      %v464 = vld [vmem:[%s406 + $0x14] sm:$0xf]
      %v465 = vld [vmem:[%s406 + $0x18] sm:$0xf]
      %v466 = vld [vmem:[%s406 + $0x1c] sm:$0xf]
      %v467 = vld [vmem:[%s406 + $0x20] sm:$0xf]
      %v468 = vld [vmem:[%s406 + $0x24] sm:$0xf]
      %v469 = vld [vmem:[%s406 + $0x28] sm:$0xf]
      %v470 = vld [vmem:[%s406 + $0x2c] sm:$0xf]
      %v471 = vld [vmem:[%s406 + $0x30] sm:$0xf]
      %v472 = vld [vmem:[%s406 + $0x34] sm:$0xf]
      %v473 = vld [vmem:[%s406 + $0x38] sm:$0xf]
      %v474 = vld [vmem:[%s406 + $0x3c] sm:$0xf]
      %v475 = vld [vmem:[%s406 + $0x40] sm:$0xf]
      %v476 = vld [vmem:[%s406 + $0x44] sm:$0xf]
      %v477 = vld [vmem:[%s406 + $0x48] sm:$0xf]
      %v478 = vld [vmem:[%s406 + $0x4c] sm:$0xf]
      %v479 = vld [vmem:[%s406 + $0x50] sm:$0xf]
      %v480 = vld [vmem:[%s406 + $0x54] sm:$0xf]
      %v481 = vld [vmem:[%s406 + $0x58] sm:$0xf]
      %v482 = vld [vmem:[%s406 + $0x5c] sm:$0xf]
      %v483 = vld [vmem:[%s406 + $0x60] sm:$0xf]
      %v484 = vld [vmem:[%s406 + $0x64] sm:$0xf]
      %v485 = vld [vmem:[%s406 + $0x68] sm:$0xf]
      %v486 = vld [vmem:[%s406 + $0x6c] sm:$0xf]
      %v487 = vld [vmem:[%s406 + $0x70] sm:$0xf]
      %v488 = vld [vmem:[%s406 + $0x74] sm:$0xf]
      %v489 = vld [vmem:[%s406 + $0x78] sm:$0xf]
      %v490 = vld [vmem:[%s406 + $0x7c] sm:$0xf]
      %p491 = scmp.gt.s32.totalorder %s23, 0
      %v492 = vld [vmem:[%s421] sm:$0xf]
      %v493 = vld [vmem:[%s421 + $0x4] sm:$0xf]
      %v494 = vld [vmem:[%s421 + $0x8] sm:$0xf]
      %v495 = vld [vmem:[%s421 + $0xc] sm:$0xf]
      %s496 = scalar_select %p491, 1, 0
      %v497 = vstv %s496
      %vm498 = vcmp.eq.s32.totalorder %v497, 1
      %v499 = vsel %vm498, %v492, 0
      %v500 = vsel %vm498, %v493, 0
      %v501 = vsel %vm498, %v494, 0
      %v502 = vsel %vm498, %v495, 0
      %p503 = scmp.lt.s32.totalorder %s23, 0
      %v504 = vld [vmem:[%s440] sm:$0xf]
      %v505 = vld [vmem:[%s440 + $0x4] sm:$0xf]
      %v506 = vld [vmem:[%s440 + $0x8] sm:$0xf]
      %v507 = vld [vmem:[%s440 + $0xc] sm:$0xf]
      %s508 = scalar_select %p503, 1, 0
      %v509 = vstv %s508
      %vm510 = vcmp.eq.s32.totalorder %v509, 1
      %v511 = vsel %vm510, %v504, 0
      %v512 = vsel %vm510, %v505, 0
      %v513 = vsel %vm510, %v506, 0
      %v514 = vsel %vm510, %v507, 0
      %v555 = vunpack.c.l.b16 %v499
      %v556 = vunpack.c.l.b16 %v500
      %v557 = vunpack.c.l.b16 %v501
      %v558 = vunpack.c.l.b16 %v502
      %v559 = vunpack.c.l.b16 %v459
      %v560 = vunpack.c.l.b16 %v460
      %v561 = vunpack.c.l.b16 %v461
      %v562 = vunpack.c.l.b16 %v462
      %v563 = vunpack.c.l.b16 %v463
      %v564 = vunpack.c.l.b16 %v464
      %v565 = vunpack.c.l.b16 %v465
      %v566 = vunpack.c.l.b16 %v466
      %v567 = vunpack.c.l.b16 %v467
      %v568 = vunpack.c.l.b16 %v468
      %v569 = vunpack.c.l.b16 %v469
      %v570 = vunpack.c.l.b16 %v470
      %v571 = vunpack.c.l.b16 %v471
      %v572 = vunpack.c.l.b16 %v472
      %v573 = vunpack.c.l.b16 %v473
      %v574 = vunpack.c.l.b16 %v474
      %v575 = vunpack.c.l.b16 %v475
      %v576 = vunpack.c.l.b16 %v476
      %v577 = vunpack.c.l.b16 %v477
      %v578 = vunpack.c.l.b16 %v478
      %v579 = vunpack.c.l.b16 %v479
      %v580 = vunpack.c.l.b16 %v480
      %v581 = vunpack.c.l.b16 %v481
      %v582 = vunpack.c.l.b16 %v482
      %v583 = vunpack.c.l.b16 %v483
      %v584 = vunpack.c.l.b16 %v484
      %v585 = vunpack.c.l.b16 %v485
      %v586 = vunpack.c.l.b16 %v486
      %v587 = vunpack.c.l.b16 %v487
      %v588 = vunpack.c.l.b16 %v488
      %v589 = vunpack.c.l.b16 %v489
      %v590 = vunpack.c.l.b16 %v490
      %v591 = vunpack.c.l.b16 %v511
      %v592 = vunpack.c.l.b16 %v512
      %v593 = vunpack.c.l.b16 %v513
      %v594 = vunpack.c.l.b16 %v514
      %v595 = vpack.c.b16 %v556, %v555
      %v596 = vpack.c.b16 %v558, %v557
      %v597 = vpack.c.b16 %v560, %v559
      %v598 = vpack.c.b16 %v562, %v561
      %v599 = vpack.c.b16 %v564, %v563
      %v600 = vpack.c.b16 %v566, %v565
      %v601 = vpack.c.b16 %v568, %v567
      %v602 = vpack.c.b16 %v570, %v569
      %v603 = vpack.c.b16 %v572, %v571
      %v604 = vpack.c.b16 %v574, %v573
      %v605 = vpack.c.b16 %v576, %v575
      %v606 = vpack.c.b16 %v578, %v577
      %v607 = vpack.c.b16 %v580, %v579
      %v608 = vpack.c.b16 %v582, %v581
      %v609 = vpack.c.b16 %v584, %v583
      %v610 = vpack.c.b16 %v586, %v585
      %v611 = vpack.c.b16 %v588, %v587
      %v612 = vpack.c.b16 %v590, %v589
      %v613 = vpack.c.b16 %v592, %v591
      %v614 = vpack.c.b16 %v594, %v593
      %v616 = vshrl.u32 %v595, 16
      %v618 = vrot.slane %v616, 7
      %v619 = vshll.u32 %v595, 16
      %v621 = vor.u32 %v618, %v619
      %v623 = vshrl.u32 %v596, 16
      %v625 = vrot.slane %v623, 7
      %v626 = vshll.u32 %v596, 16
      %v628 = vor.u32 %v625, %v626
      %v630 = vshrl.u32 %v597, 16
      %v632 = vrot.slane %v630, 7
      %v633 = vshll.u32 %v597, 16
      %v635 = vor.u32 %v632, %v633
      %v637 = vshrl.u32 %v598, 16
      %v639 = vrot.slane %v637, 7
      %v640 = vshll.u32 %v598, 16
      %v642 = vor.u32 %v639, %v640
      %v644 = vshrl.u32 %v599, 16
      %v646 = vrot.slane %v644, 7
      %v647 = vshll.u32 %v599, 16
      %v649 = vor.u32 %v646, %v647
      %v651 = vshrl.u32 %v600, 16
      %v653 = vrot.slane %v651, 7
      %v654 = vshll.u32 %v600, 16
      %v656 = vor.u32 %v653, %v654
      %v658 = vshrl.u32 %v601, 16
      %v660 = vrot.slane %v658, 7
      %v661 = vshll.u32 %v601, 16
      %v663 = vor.u32 %v660, %v661
      %v665 = vshrl.u32 %v602, 16
      %v667 = vrot.slane %v665, 7
      %v668 = vshll.u32 %v602, 16
      %v670 = vor.u32 %v667, %v668
      %v672 = vshrl.u32 %v603, 16
      %v674 = vrot.slane %v672, 7
      %v675 = vshll.u32 %v603, 16
      %v677 = vor.u32 %v674, %v675
      %v679 = vshrl.u32 %v604, 16
      %v681 = vrot.slane %v679, 7
      %v682 = vshll.u32 %v604, 16
      %v684 = vor.u32 %v681, %v682
      %v686 = vshrl.u32 %v605, 16
      %v688 = vrot.slane %v686, 7
      %v689 = vshll.u32 %v605, 16
      %v691 = vor.u32 %v688, %v689
      %v693 = vshrl.u32 %v606, 16
      %v695 = vrot.slane %v693, 7
      %v696 = vshll.u32 %v606, 16
      %v698 = vor.u32 %v695, %v696
      %v700 = vshrl.u32 %v607, 16
      %v702 = vrot.slane %v700, 7
      %v703 = vshll.u32 %v607, 16
      %v705 = vor.u32 %v702, %v703
      %v707 = vshrl.u32 %v608, 16
      %v709 = vrot.slane %v707, 7
      %v710 = vshll.u32 %v608, 16
      %v712 = vor.u32 %v709, %v710
      %v714 = vshrl.u32 %v609, 16
      %v716 = vrot.slane %v714, 7
      %v717 = vshll.u32 %v609, 16
      %v719 = vor.u32 %v716, %v717
      %v721 = vshrl.u32 %v610, 16
      %v723 = vrot.slane %v721, 7
      %v724 = vshll.u32 %v610, 16
      %v726 = vor.u32 %v723, %v724
      %v728 = vshrl.u32 %v611, 16
      %v730 = vrot.slane %v728, 7
      %v731 = vshll.u32 %v611, 16
      %v733 = vor.u32 %v730, %v731
      %v735 = vshrl.u32 %v612, 16
      %v737 = vrot.slane %v735, 7
      %v738 = vshll.u32 %v612, 16
      %v740 = vor.u32 %v737, %v738
      %v742 = vshrl.u32 %v613, 16
      %v744 = vrot.slane %v742, 7
      %v745 = vshll.u32 %v613, 16
      %v747 = vor.u32 %v744, %v745
      %v749 = vshrl.u32 %v614, 16
      %v751 = vrot.slane %v749, 7
      %v752 = vshll.u32 %v614, 16
      %v754 = vor.u32 %v751, %v752
      %vm795 = vcmask 1040384
      %vm796 = vsmask.f32 256
      %vm797 = vmand %vm795, %vm796
      %v798 = vsel %vm797, 0, %v621
      %v799 = vsel %vm797, 0, %v628
      %v800 = vsel %vm797, 0, %v635
      %v801 = vsel %vm797, 0, %v642
      %v802 = vsel %vm797, 0, %v649
      %v803 = vsel %vm797, 0, %v656
      %v804 = vsel %vm797, 0, %v663
      %v805 = vsel %vm797, 0, %v670
      %v806 = vsel %vm797, 0, %v677
      %v807 = vsel %vm797, 0, %v684
      %v808 = vsel %vm797, 0, %v691
      %v809 = vsel %vm797, 0, %v698
      %v810 = vsel %vm797, 0, %v705
      %v811 = vsel %vm797, 0, %v712
      %v812 = vsel %vm797, 0, %v719
      %v813 = vsel %vm797, 0, %v726
      %v814 = vsel %vm797, 0, %v733
      %v815 = vsel %vm797, 0, %v740
      %v816 = vsel %vm797, 0, %v747
      %v817 = vsel %vm797, 0, %v754
      %v818 = vsel %vm797, %v618, 0
      %v819 = vsel %vm797, %v625, 0
      %v820 = vsel %vm797, %v632, 0
      %v821 = vsel %vm797, %v639, 0
      %v822 = vsel %vm797, %v646, 0
      %v823 = vsel %vm797, %v653, 0
      %v824 = vsel %vm797, %v660, 0
      %v825 = vsel %vm797, %v667, 0
      %v826 = vsel %vm797, %v674, 0
      %v827 = vsel %vm797, %v681, 0
      %v828 = vsel %vm797, %v688, 0
      %v829 = vsel %vm797, %v695, 0
      %v830 = vsel %vm797, %v702, 0
      %v831 = vsel %vm797, %v709, 0
      %v832 = vsel %vm797, %v716, 0
      %v833 = vsel %vm797, %v723, 0
      %v834 = vsel %vm797, %v730, 0
      %v835 = vsel %vm797, %v737, 0
      %v836 = vsel %vm797, %v744, 0
      %v837 = vsel %vm797, %v751, 0
      %vm838 = vsmask.f32 7424
      %v840 = vshrl.u32 %v798, 16
      %v842 = vshll.u32 %v798, 16
      %v844 = vrot.slane %v842, 1
      %v845 = vor.u32 %v840, %v844
      %v847 = vshll.u32 %v818, 16
      %v849 = vrot.slane %v847, 1
      %v850 = vsel %vm838, %v845, %v849
      %v852 = vshrl.u32 %v799, 16
      %v854 = vshll.u32 %v799, 16
      %v856 = vrot.slane %v854, 1
      %v857 = vor.u32 %v852, %v856
      %v859 = vshll.u32 %v819, 16
      %v861 = vrot.slane %v859, 1
      %v862 = vsel %vm838, %v857, %v861
      %v864 = vshrl.u32 %v800, 16
      %v866 = vshll.u32 %v800, 16
      %v868 = vrot.slane %v866, 1
      %v869 = vor.u32 %v864, %v868
      %v871 = vshll.u32 %v820, 16
      %v873 = vrot.slane %v871, 1
      %v874 = vsel %vm838, %v869, %v873
      %v876 = vshrl.u32 %v801, 16
      %v878 = vshll.u32 %v801, 16
      %v880 = vrot.slane %v878, 1
      %v881 = vor.u32 %v876, %v880
      %v883 = vshll.u32 %v821, 16
      %v885 = vrot.slane %v883, 1
      %v886 = vsel %vm838, %v881, %v885
      %v888 = vshrl.u32 %v802, 16
      %v890 = vshll.u32 %v802, 16
      %v892 = vrot.slane %v890, 1
      %v893 = vor.u32 %v888, %v892
      %v895 = vshll.u32 %v822, 16
      %v897 = vrot.slane %v895, 1
      %v898 = vsel %vm838, %v893, %v897
      %v900 = vshrl.u32 %v803, 16
      %v902 = vshll.u32 %v803, 16
      %v904 = vrot.slane %v902, 1
      %v905 = vor.u32 %v900, %v904
      %v907 = vshll.u32 %v823, 16
      %v909 = vrot.slane %v907, 1
      %v910 = vsel %vm838, %v905, %v909
      %v912 = vshrl.u32 %v804, 16
      %v914 = vshll.u32 %v804, 16
      %v916 = vrot.slane %v914, 1
      %v917 = vor.u32 %v912, %v916
      %v919 = vshll.u32 %v824, 16
      %v921 = vrot.slane %v919, 1
      %v922 = vsel %vm838, %v917, %v921
      %v924 = vshrl.u32 %v805, 16
      %v926 = vshll.u32 %v805, 16
      %v928 = vrot.slane %v926, 1
      %v929 = vor.u32 %v924, %v928
      %v931 = vshll.u32 %v825, 16
      %v933 = vrot.slane %v931, 1
      %v934 = vsel %vm838, %v929, %v933
      %v936 = vshrl.u32 %v806, 16
      %v938 = vshll.u32 %v806, 16
      %v940 = vrot.slane %v938, 1
      %v941 = vor.u32 %v936, %v940
      %v943 = vshll.u32 %v826, 16
      %v945 = vrot.slane %v943, 1
      %v946 = vsel %vm838, %v941, %v945
      %v948 = vshrl.u32 %v807, 16
      %v950 = vshll.u32 %v807, 16
      %v952 = vrot.slane %v950, 1
      %v953 = vor.u32 %v948, %v952
      %v955 = vshll.u32 %v827, 16
      %v957 = vrot.slane %v955, 1
      %v958 = vsel %vm838, %v953, %v957
      %v960 = vshrl.u32 %v808, 16
      %v962 = vshll.u32 %v808, 16
      %v964 = vrot.slane %v962, 1
      %v965 = vor.u32 %v960, %v964
      %v967 = vshll.u32 %v828, 16
      %v969 = vrot.slane %v967, 1
      %v970 = vsel %vm838, %v965, %v969
      %v972 = vshrl.u32 %v809, 16
      %v974 = vshll.u32 %v809, 16
      %v976 = vrot.slane %v974, 1
      %v977 = vor.u32 %v972, %v976
      %v979 = vshll.u32 %v829, 16
      %v981 = vrot.slane %v979, 1
      %v982 = vsel %vm838, %v977, %v981
      %v984 = vshrl.u32 %v810, 16
      %v986 = vshll.u32 %v810, 16
      %v988 = vrot.slane %v986, 1
      %v989 = vor.u32 %v984, %v988
      %v991 = vshll.u32 %v830, 16
      %v993 = vrot.slane %v991, 1
      %v994 = vsel %vm838, %v989, %v993
      %v996 = vshrl.u32 %v811, 16
      %v998 = vshll.u32 %v811, 16
      %v1000 = vrot.slane %v998, 1
      %v1001 = vor.u32 %v996, %v1000
      %v1003 = vshll.u32 %v831, 16
      %v1005 = vrot.slane %v1003, 1
      %v1006 = vsel %vm838, %v1001, %v1005
      %v1008 = vshrl.u32 %v812, 16
      %v1010 = vshll.u32 %v812, 16
      %v1012 = vrot.slane %v1010, 1
      %v1013 = vor.u32 %v1008, %v1012
      %v1015 = vshll.u32 %v832, 16
      %v1017 = vrot.slane %v1015, 1
      %v1018 = vsel %vm838, %v1013, %v1017
      %v1020 = vshrl.u32 %v813, 16
      %v1022 = vshll.u32 %v813, 16
      %v1024 = vrot.slane %v1022, 1
      %v1025 = vor.u32 %v1020, %v1024
      %v1027 = vshll.u32 %v833, 16
      %v1029 = vrot.slane %v1027, 1
      %v1030 = vsel %vm838, %v1025, %v1029
      %v1032 = vshrl.u32 %v814, 16
      %v1034 = vshll.u32 %v814, 16
      %v1036 = vrot.slane %v1034, 1
      %v1037 = vor.u32 %v1032, %v1036
      %v1039 = vshll.u32 %v834, 16
      %v1041 = vrot.slane %v1039, 1
      %v1042 = vsel %vm838, %v1037, %v1041
      %v1044 = vshrl.u32 %v815, 16
      %v1046 = vshll.u32 %v815, 16
      %v1048 = vrot.slane %v1046, 1
      %v1049 = vor.u32 %v1044, %v1048
      %v1051 = vshll.u32 %v835, 16
      %v1053 = vrot.slane %v1051, 1
      %v1054 = vsel %vm838, %v1049, %v1053
      %v1056 = vshrl.u32 %v816, 16
      %v1058 = vshll.u32 %v816, 16
      %v1060 = vrot.slane %v1058, 1
      %v1061 = vor.u32 %v1056, %v1060
      %v1063 = vshll.u32 %v836, 16
      %v1065 = vrot.slane %v1063, 1
      %v1066 = vsel %vm838, %v1061, %v1065
      %v1068 = vshrl.u32 %v817, 16
      %v1070 = vshll.u32 %v817, 16
      %v1072 = vrot.slane %v1070, 1
      %v1073 = vor.u32 %v1068, %v1072
      %v1075 = vshll.u32 %v837, 16
      %v1077 = vrot.slane %v1075, 1
      %v1078 = vsel %vm838, %v1073, %v1077
      %1079 = vrot.lane.b32.xlu0 %v850, 64
      %v1080 = vpop.permute.xlu0 %1079
      %1081 = vrot.lane.b32.xlu0 %v862, 64
      %v1082 = vpop.permute.xlu0 %1081
      %1083 = vrot.lane.b32.xlu0 %v874, 64
      %v1084 = vpop.permute.xlu0 %1083
      %1085 = vrot.lane.b32.xlu0 %v886, 64
      %v1086 = vpop.permute.xlu0 %1085
      %1087 = vrot.lane.b32.xlu0 %v898, 64
      %v1088 = vpop.permute.xlu0 %1087
      %1089 = vrot.lane.b32.xlu0 %v910, 64
      %v1090 = vpop.permute.xlu0 %1089
      %1091 = vrot.lane.b32.xlu0 %v922, 64
      %v1092 = vpop.permute.xlu0 %1091
      %1093 = vrot.lane.b32.xlu0 %v934, 64
      %v1094 = vpop.permute.xlu0 %1093
      %1095 = vrot.lane.b32.xlu0 %v946, 64
      %v1096 = vpop.permute.xlu0 %1095
      %1097 = vrot.lane.b32.xlu0 %v958, 64
      %v1098 = vpop.permute.xlu0 %1097
      %1099 = vrot.lane.b32.xlu0 %v970, 64
      %v1100 = vpop.permute.xlu0 %1099
      %1101 = vrot.lane.b32.xlu0 %v982, 64
      %v1102 = vpop.permute.xlu0 %1101
      %1103 = vrot.lane.b32.xlu0 %v994, 64
      %v1104 = vpop.permute.xlu0 %1103
      %1105 = vrot.lane.b32.xlu0 %v1006, 64
      %v1106 = vpop.permute.xlu0 %1105
      %1107 = vrot.lane.b32.xlu0 %v1018, 64
      %v1108 = vpop.permute.xlu0 %1107
      %1109 = vrot.lane.b32.xlu0 %v1030, 64
      %v1110 = vpop.permute.xlu0 %1109
      %1111 = vrot.lane.b32.xlu0 %v1042, 64
      %v1112 = vpop.permute.xlu0 %1111
      %1113 = vrot.lane.b32.xlu0 %v1054, 64
      %v1114 = vpop.permute.xlu0 %1113
      %1115 = vrot.lane.b32.xlu0 %v1066, 64
      %v1116 = vpop.permute.xlu0 %1115
      %1117 = vrot.lane.b32.xlu0 %v1078, 64
      %v1118 = vpop.permute.xlu0 %1117
      %vm1159 = vcmask 1046528
      %v1160 = vrot.slane %v798, 1
      %v1161 = vrot.slane %v818, 1
      %v1162 = vsel %vm1159, %v1160, %v1161
      %v1163 = vrot.slane %v799, 1
      %v1164 = vrot.slane %v819, 1
      %v1165 = vsel %vm1159, %v1163, %v1164
      %v1166 = vrot.slane %v800, 1
      %v1167 = vrot.slane %v820, 1
      %v1168 = vsel %vm1159, %v1166, %v1167
      %v1169 = vrot.slane %v801, 1
      %v1170 = vrot.slane %v821, 1
      %v1171 = vsel %vm1159, %v1169, %v1170
      %v1172 = vrot.slane %v802, 1
      %v1173 = vrot.slane %v822, 1
      %v1174 = vsel %vm1159, %v1172, %v1173
      %v1175 = vrot.slane %v803, 1
      %v1176 = vrot.slane %v823, 1
      %v1177 = vsel %vm1159, %v1175, %v1176
      %v1178 = vrot.slane %v804, 1
      %v1179 = vrot.slane %v824, 1
      %v1180 = vsel %vm1159, %v1178, %v1179
      %v1181 = vrot.slane %v805, 1
      %v1182 = vrot.slane %v825, 1
      %v1183 = vsel %vm1159, %v1181, %v1182
      %v1184 = vrot.slane %v806, 1
      %v1185 = vrot.slane %v826, 1
      %v1186 = vsel %vm1159, %v1184, %v1185
      %v1187 = vrot.slane %v807, 1
      %v1188 = vrot.slane %v827, 1
      %v1189 = vsel %vm1159, %v1187, %v1188
      %v1190 = vrot.slane %v808, 1
      %v1191 = vrot.slane %v828, 1
      %v1192 = vsel %vm1159, %v1190, %v1191
      %v1193 = vrot.slane %v809, 1
      %v1194 = vrot.slane %v829, 1
      %v1195 = vsel %vm1159, %v1193, %v1194
      %v1196 = vrot.slane %v810, 1
      %v1197 = vrot.slane %v830, 1
      %v1198 = vsel %vm1159, %v1196, %v1197
      %v1199 = vrot.slane %v811, 1
      %v1200 = vrot.slane %v831, 1
      %v1201 = vsel %vm1159, %v1199, %v1200
      %v1202 = vrot.slane %v812, 1
      %v1203 = vrot.slane %v832, 1
      %v1204 = vsel %vm1159, %v1202, %v1203
      %v1205 = vrot.slane %v813, 1
      %v1206 = vrot.slane %v833, 1
      %v1207 = vsel %vm1159, %v1205, %v1206
      %v1208 = vrot.slane %v814, 1
      %v1209 = vrot.slane %v834, 1
      %v1210 = vsel %vm1159, %v1208, %v1209
      %v1211 = vrot.slane %v815, 1
      %v1212 = vrot.slane %v835, 1
      %v1213 = vsel %vm1159, %v1211, %v1212
      %v1214 = vrot.slane %v816, 1
      %v1215 = vrot.slane %v836, 1
      %v1216 = vsel %vm1159, %v1214, %v1215
      %v1217 = vrot.slane %v817, 1
      %v1218 = vrot.slane %v837, 1
      %v1219 = vsel %vm1159, %v1217, %v1218
      %vm1220 = vcmask 523264
      %v1222 = vsel %vm1220, %v798, %v1080
      %v1225 = vsel %vm1220, %v799, %v1082
      %v1228 = vsel %vm1220, %v800, %v1084
      %v1231 = vsel %vm1220, %v801, %v1086
      %v1234 = vsel %vm1220, %v802, %v1088
      %v1237 = vsel %vm1220, %v803, %v1090
      %v1240 = vsel %vm1220, %v804, %v1092
      %v1243 = vsel %vm1220, %v805, %v1094
      %v1246 = vsel %vm1220, %v806, %v1096
      %v1249 = vsel %vm1220, %v807, %v1098
      %v1252 = vsel %vm1220, %v808, %v1100
      %v1255 = vsel %vm1220, %v809, %v1102
      %v1258 = vsel %vm1220, %v810, %v1104
      %v1261 = vsel %vm1220, %v811, %v1106
      %v1264 = vsel %vm1220, %v812, %v1108
      %v1267 = vsel %vm1220, %v813, %v1110
      %v1270 = vsel %vm1220, %v814, %v1112
      %v1273 = vsel %vm1220, %v815, %v1114
      %v1276 = vsel %vm1220, %v816, %v1116
      %v1279 = vsel %vm1220, %v817, %v1118
      %v1281 = vld [vmem:[%s3] sm:$0xf]
      %v1282 = vld [vmem:[%s3 + $0x4] sm:$0xf]
      %v1283 = vld [vmem:[%s3 + $0x8] sm:$0xf]
      %v1284 = vld [vmem:[%s3 + $0xc] sm:$0xf]
      %v1285 = vld [vmem:[%s3 + $0x10] sm:$0xf]
      %v1286 = vld [vmem:[%s3 + $0x14] sm:$0xf]
      %v1287 = vld [vmem:[%s3 + $0x18] sm:$0xf]
      %v1288 = vld [vmem:[%s3 + $0x1c] sm:$0xf]
      %v1289 = vld [vmem:[%s3 + $0x20] sm:$0xf]
      %v1290 = vld [vmem:[%s3 + $0x24] sm:$0xf]
      %v1291 = vld [vmem:[%s3 + $0x28] sm:$0xf]
      %v1292 = vld [vmem:[%s3 + $0x2c] sm:$0xf]
      %v1293 = vld [vmem:[%s3 + $0x30] sm:$0xf]
      %v1294 = vld [vmem:[%s3 + $0x34] sm:$0xf]
      %v1295 = vld [vmem:[%s3 + $0x38] sm:$0xf]
      %v1296 = vld [vmem:[%s3 + $0x3c] sm:$0xf]
      %v1297 = vld [vmem:[%s3 + $0x40] sm:$0xf]
      %v1298 = vld [vmem:[%s3 + $0x44] sm:$0xf]
      %v1299 = vld [vmem:[%s3 + $0x48] sm:$0xf]
      %v1300 = vld [vmem:[%s3 + $0x4c] sm:$0xf]
      %v1301 = vld [vmem:[%s3 + $0x50] sm:$0xf]
      %v1302 = vld [vmem:[%s3 + $0x54] sm:$0xf]
      %v1303 = vld [vmem:[%s3 + $0x58] sm:$0xf]
      %v1304 = vld [vmem:[%s3 + $0x5c] sm:$0xf]
      %s1305 = scalar_lea.vmem %s3, 96
      %v1306 = vld [vmem:[%s1305] sm:$0xf]
      %v1307 = vld [vmem:[%s1305 + $0x4] sm:$0xf]
      %v1308 = vld [vmem:[%s1305 + $0x8] sm:$0xf]
      %v1309 = vld [vmem:[%s1305 + $0xc] sm:$0xf]
      %v1310 = vld [vmem:[%s1305 + $0x10] sm:$0xf]
      %v1311 = vld [vmem:[%s1305 + $0x14] sm:$0xf]
      %v1312 = vld [vmem:[%s1305 + $0x18] sm:$0xf]
      %v1313 = vld [vmem:[%s1305 + $0x1c] sm:$0xf]
      %v1314 = vld [vmem:[%s1305 + $0x20] sm:$0xf]
      %v1315 = vld [vmem:[%s1305 + $0x24] sm:$0xf]
      %v1316 = vld [vmem:[%s1305 + $0x28] sm:$0xf]
      %v1317 = vld [vmem:[%s1305 + $0x2c] sm:$0xf]
      %v1318 = vld [vmem:[%s1305 + $0x30] sm:$0xf]
      %v1319 = vld [vmem:[%s1305 + $0x34] sm:$0xf]
      %v1320 = vld [vmem:[%s1305 + $0x38] sm:$0xf]
      %v1321 = vld [vmem:[%s1305 + $0x3c] sm:$0xf]
      %v1322 = vld [vmem:[%s1305 + $0x40] sm:$0xf]
      %v1323 = vld [vmem:[%s1305 + $0x44] sm:$0xf]
      %v1324 = vld [vmem:[%s1305 + $0x48] sm:$0xf]
      %v1325 = vld [vmem:[%s1305 + $0x4c] sm:$0xf]
      %v1326 = vld [vmem:[%s1305 + $0x50] sm:$0xf]
      %v1327 = vld [vmem:[%s1305 + $0x54] sm:$0xf]
      %v1328 = vld [vmem:[%s1305 + $0x58] sm:$0xf]
      %v1329 = vld [vmem:[%s1305 + $0x5c] sm:$0xf]
      %v1354 = vunpack.c.l.b16 %v1306
      %v1355 = vunpack.c.l.b16 %v1307
      %v1356 = vunpack.c.l.b16 %v1308
      %v1357 = vunpack.c.l.b16 %v1309
      %v1358 = vunpack.c.l.b16 %v1310
      %v1359 = vunpack.c.l.b16 %v1311
      %v1360 = vunpack.c.l.b16 %v1312
      %v1361 = vunpack.c.l.b16 %v1313
      %v1362 = vunpack.c.l.b16 %v1314
      %v1363 = vunpack.c.l.b16 %v1315
      %v1364 = vunpack.c.l.b16 %v1316
      %v1365 = vunpack.c.l.b16 %v1317
      %v1366 = vunpack.c.l.b16 %v1318
      %v1367 = vunpack.c.l.b16 %v1319
      %v1368 = vunpack.c.l.b16 %v1320
      %v1369 = vunpack.c.l.b16 %v1321
      %v1370 = vunpack.c.l.b16 %v1322
      %v1371 = vunpack.c.l.b16 %v1323
      %v1372 = vunpack.c.l.b16 %v1324
      %v1373 = vunpack.c.l.b16 %v1325
      %v1374 = vunpack.c.l.b16 %v1326
      %v1375 = vunpack.c.l.b16 %v1327
      %v1376 = vunpack.c.l.b16 %v1328
      %v1377 = vunpack.c.l.b16 %v1329
      %v1378 = vpack.c.b16 %v1355, %v1354
      %v1379 = vpack.c.b16 %v1357, %v1356
      %v1380 = vpack.c.b16 %v1359, %v1358
      %v1381 = vpack.c.b16 %v1361, %v1360
      %v1382 = vpack.c.b16 %v1363, %v1362
      %v1383 = vpack.c.b16 %v1365, %v1364
      %v1384 = vpack.c.b16 %v1367, %v1366
      %v1385 = vpack.c.b16 %v1369, %v1368
      %v1386 = vpack.c.b16 %v1371, %v1370
      %v1387 = vpack.c.b16 %v1373, %v1372
      %v1388 = vpack.c.b16 %v1375, %v1374
      %v1389 = vpack.c.b16 %v1377, %v1376
      %v1403 = vsel %vm1220, %v1165, 0
      %v1406 = vsel %vm1220, %v1168, 0
      %v1409 = vsel %vm1220, %v1171, 0
      %v1412 = vsel %vm1220, %v1174, 0
      %v1415 = vsel %vm1220, %v1177, 0
      %v1418 = vsel %vm1220, %v1180, 0
      %v1421 = vsel %vm1220, %v1183, 0
      %v1424 = vsel %vm1220, %v1186, 0
      %v1427 = vsel %vm1220, %v1189, 0
      %v1430 = vsel %vm1220, %v1192, 0
      %v1433 = vsel %vm1220, %v1195, 0
      %v1436 = vsel %vm1220, %v1198, 0
      %v1439 = vsel %vm1220, %v1201, 0
      %v1442 = vsel %vm1220, %v1204, 0
      %v1445 = vsel %vm1220, %v1207, 0
      %v1448 = vsel %vm1220, %v1210, 0
      %v1451 = vsel %vm1220, %v1213, 0
      %v1454 = vsel %vm1220, %v1216, 0
      %1456 = vmatprep.subr.bf16.mxu0 0
      %1457 = vmatpush1.bf16.msra.mxu0 %v1378
      %1458 = vmatprep.subr.bf16.mxu0 0
      %1459 = vmatpush1.bf16.msra.mxu0 %v1379
      %1460 = vmatprep.subr.bf16.mxu0 0
      %1461 = vmatpush1.bf16.msra.mxu0 %v1380
      %1462 = vmatprep.subr.bf16.mxu0 0
      %1463 = vmatpush1.bf16.msra.mxu0 %v1381
      %1464 = vmatprep.subr.bf16.mxu0 0
      %1465 = vmatpush1.bf16.msra.mxu0 %v1382
      %1466 = vmatprep.subr.bf16.mxu0 0
      %1467 = vmatpush1.bf16.msra.mxu0 %v1383
      %1468 = vmatprep.subr.bf16.mxu0 0
      %1469 = vmatpush1.bf16.msra.mxu0 %v1384
      %1470 = vmatprep.subr.bf16.mxu0 0
      %1471 = vmatpush1.bf16.msra.mxu0 %v1385
      %1472 = vmatprep.subr.bf16.mxu0 0
      %1473 = vmatpush1.bf16.msra.mxu0 %v1386
      %1474 = vmatprep.subr.bf16.mxu0 0
      %1475 = vmatpush1.bf16.msra.mxu0 %v1387
      %1476 = vmatprep.subr.bf16.mxu0 0
      %1477 = vmatpush1.bf16.msra.mxu0 %v1388
      %1478 = vmatprep.subr.bf16.mxu0 0
      %1479 = vmatpush1.bf16.msra.mxu0 %v1389
      %1480 = vmatprep.subr.bf16.mxu0 0
      %1481 = vmatpush1.bf16.msra.mxu0 0
      %1482 = vmatprep.subr.bf16.mxu0 0
      %1483 = vmatpush1.bf16.msra.mxu0 0
      %1484 = vmatprep.subr.bf16.mxu0 0
      %1485 = vmatpush1.bf16.msra.mxu0 0
      %1486 = vmatprep.subr.bf16.mxu0 0
      %1487 = vmatpush1.bf16.msra.mxu0 0
      %1488 = vmatprep.mubr.bf16.mxu0 %v1403
      %1489 = vmatmul.mubr.bf16.gmra.mrb[0].mxu0 %v1225
      %v1490 = vpop.f32.mrb[0].mxu0
      %v1491 = vadd.f32 0.0, %v1490
      %v1492 = vpop.f32.mrb[0].mxu0
      %v1493 = vpop.f32.mrb[0].mxu0
      %v1494 = vadd.f32 0.0, %v1493
      %v1495 = vpop.f32.mrb[0].mxu0
      %1496 = vmatprep.mubr.bf16.mxu0 %v1406
      %1497 = vmatmul.mubr.bf16.gmra.mrb[0].mxu0 %v1228
      %v1498 = vpop.f32.mrb[0].mxu0
      %v1499 = vadd.f32 0.0, %v1498
      %v1500 = vpop.f32.mrb[0].mxu0
      %v1501 = vpop.f32.mrb[0].mxu0
      %v1502 = vadd.f32 0.0, %v1501
      %v1503 = vpop.f32.mrb[0].mxu0
      %1504 = vmatprep.mubr.bf16.mxu0 %v1409
      %1505 = vmatmul.mubr.bf16.gmra.mrb[0].mxu0 %v1231
      %v1506 = vpop.f32.mrb[0].mxu0
      %v1507 = vadd.f32 0.0, %v1506
      %v1508 = vpop.f32.mrb[0].mxu0
      %v1509 = vpop.f32.mrb[0].mxu0
      %v1510 = vadd.f32 0.0, %v1509
      %v1511 = vpop.f32.mrb[0].mxu0
      %1512 = vmatprep.mubr.bf16.mxu0 %v1412
      %1513 = vmatmul.mubr.bf16.gmra.mrb[0].mxu0 %v1234
      %v1514 = vpop.f32.mrb[0].mxu0
      %v1515 = vadd.f32 0.0, %v1514
      %v1516 = vpop.f32.mrb[0].mxu0
      %v1517 = vpop.f32.mrb[0].mxu0
      %v1518 = vadd.f32 0.0, %v1517
      %v1519 = vpop.f32.mrb[0].mxu0
      %1520 = vmatprep.mubr.bf16.mxu0 %v1415
      %1521 = vmatmul.mubr.bf16.gmra.mrb[0].mxu0 %v1237
      %v1522 = vpop.f32.mrb[0].mxu0
      %v1523 = vadd.f32 0.0, %v1522
      %v1524 = vpop.f32.mrb[0].mxu0
      %v1525 = vpop.f32.mrb[0].mxu0
      %v1526 = vadd.f32 0.0, %v1525
      %v1527 = vpop.f32.mrb[0].mxu0
      %1528 = vmatprep.mubr.bf16.mxu0 %v1418
      %1529 = vmatmul.mubr.bf16.gmra.mrb[0].mxu0 %v1240
      %v1530 = vpop.f32.mrb[0].mxu0
      %v1531 = vadd.f32 0.0, %v1530
      %v1532 = vpop.f32.mrb[0].mxu0
      %v1533 = vpop.f32.mrb[0].mxu0
      %v1534 = vadd.f32 0.0, %v1533
      %v1535 = vpop.f32.mrb[0].mxu0
      %1536 = vmatprep.mubr.bf16.mxu0 %v1421
      %1537 = vmatmul.mubr.bf16.gmra.mrb[0].mxu0 %v1243
      %v1538 = vpop.f32.mrb[0].mxu0
      %v1539 = vadd.f32 0.0, %v1538
      %v1540 = vpop.f32.mrb[0].mxu0
      %v1541 = vpop.f32.mrb[0].mxu0
      %v1542 = vadd.f32 0.0, %v1541
      %v1543 = vpop.f32.mrb[0].mxu0
      %1544 = vmatprep.mubr.bf16.mxu0 %v1424
      %1545 = vmatmul.mubr.bf16.gmra.mrb[0].mxu0 %v1246
      %v1546 = vpop.f32.mrb[0].mxu0
      %v1547 = vadd.f32 0.0, %v1546
      %v1548 = vpop.f32.mrb[0].mxu0
      %v1549 = vpop.f32.mrb[0].mxu0
      %v1550 = vadd.f32 0.0, %v1549
      %v1551 = vpop.f32.mrb[0].mxu0
      %1552 = vmatprep.mubr.bf16.mxu0 %v1427
      %1553 = vmatmul.mubr.bf16.gmra.mrb[0].mxu0 %v1249
      %v1554 = vpop.f32.mrb[0].mxu0
      %v1555 = vadd.f32 0.0, %v1554
      %v1556 = vpop.f32.mrb[0].mxu0
      %v1557 = vpop.f32.mrb[0].mxu0
      %v1558 = vadd.f32 0.0, %v1557
      %v1559 = vpop.f32.mrb[0].mxu0
      %1560 = vmatprep.mubr.bf16.mxu0 %v1430
      %1561 = vmatmul.mubr.bf16.gmra.mrb[0].mxu0 %v1252
      %v1562 = vpop.f32.mrb[0].mxu0
      %v1563 = vadd.f32 0.0, %v1562
      %v1564 = vpop.f32.mrb[0].mxu0
      %v1565 = vpop.f32.mrb[0].mxu0
      %v1566 = vadd.f32 0.0, %v1565
      %v1567 = vpop.f32.mrb[0].mxu0
      %1568 = vmatprep.mubr.bf16.mxu0 %v1433
      %1569 = vmatmul.mubr.bf16.gmra.mrb[0].mxu0 %v1255
      %v1570 = vpop.f32.mrb[0].mxu0
      %v1571 = vadd.f32 0.0, %v1570
      %v1572 = vpop.f32.mrb[0].mxu0
      %v1573 = vpop.f32.mrb[0].mxu0
      %v1574 = vadd.f32 0.0, %v1573
      %v1575 = vpop.f32.mrb[0].mxu0
      %1576 = vmatprep.mubr.bf16.mxu0 %v1436
      %1577 = vmatmul.mubr.bf16.gmra.mrb[0].mxu0 %v1258
      %v1578 = vpop.f32.mrb[0].mxu0
      %v1579 = vadd.f32 0.0, %v1578
      %v1580 = vpop.f32.mrb[0].mxu0
      %v1581 = vpop.f32.mrb[0].mxu0
      %v1582 = vadd.f32 0.0, %v1581
      %v1583 = vpop.f32.mrb[0].mxu0
      %1584 = vmatprep.mubr.bf16.mxu0 %v1439
      %1585 = vmatmul.mubr.bf16.gmra.mrb[0].mxu0 %v1261
      %v1586 = vpop.f32.mrb[0].mxu0
      %v1587 = vadd.f32 0.0, %v1586
      %v1588 = vpop.f32.mrb[0].mxu0
      %v1589 = vpop.f32.mrb[0].mxu0
      %v1590 = vadd.f32 0.0, %v1589
      %v1591 = vpop.f32.mrb[0].mxu0
      %1592 = vmatprep.mubr.bf16.mxu0 %v1442
      %1593 = vmatmul.mubr.bf16.gmra.mrb[0].mxu0 %v1264
      %v1594 = vpop.f32.mrb[0].mxu0
      %v1595 = vadd.f32 0.0, %v1594
      %v1596 = vpop.f32.mrb[0].mxu0
      %v1597 = vpop.f32.mrb[0].mxu0
      %v1598 = vadd.f32 0.0, %v1597
      %v1599 = vpop.f32.mrb[0].mxu0
      %1600 = vmatprep.mubr.bf16.mxu0 %v1445
      %1601 = vmatmul.mubr.bf16.gmra.mrb[0].mxu0 %v1267
      %v1602 = vpop.f32.mrb[0].mxu0
      %v1603 = vadd.f32 0.0, %v1602
      %v1604 = vpop.f32.mrb[0].mxu0
      %v1605 = vpop.f32.mrb[0].mxu0
      %v1606 = vadd.f32 0.0, %v1605
      %v1607 = vpop.f32.mrb[0].mxu0
      %1608 = vmatprep.mubr.bf16.mxu0 %v1448
      %1609 = vmatmul.mubr.bf16.gmra.mrb[0].mxu0 %v1270
      %v1610 = vpop.f32.mrb[0].mxu0
      %v1611 = vadd.f32 0.0, %v1610
      %v1612 = vpop.f32.mrb[0].mxu0
      %v1613 = vpop.f32.mrb[0].mxu0
      %v1614 = vadd.f32 0.0, %v1613
      %v1615 = vpop.f32.mrb[0].mxu0
      %1616 = vmatprep.mubr.bf16.mxu0 %v1451
      %1617 = vmatmul.mubr.bf16.gmra.mrb[0].mxu0 %v1273
      %v1618 = vpop.f32.mrb[0].mxu0
      %v1619 = vadd.f32 0.0, %v1618
      %v1620 = vpop.f32.mrb[0].mxu0
      %v1621 = vpop.f32.mrb[0].mxu0
      %v1622 = vadd.f32 0.0, %v1621
      %v1623 = vpop.f32.mrb[0].mxu0
      %1624 = vmatprep.mubr.bf16.mxu0 %v1454
      %1625 = vmatmul.mubr.bf16.gmra.mrb[0].mxu0 %v1276
      %v1626 = vpop.f32.mrb[0].mxu0
      %v1627 = vadd.f32 0.0, %v1626
      %v1628 = vpop.f32.mrb[0].mxu0
      %v1629 = vpop.f32.mrb[0].mxu0
      %v1630 = vadd.f32 0.0, %v1629
      %v1631 = vpop.f32.mrb[0].mxu0
      %1632 = vdwg.mxu0
      %v1657 = vunpack.c.l.b16 %v1281
      %v1658 = vunpack.c.l.b16 %v1282
      %v1659 = vunpack.c.l.b16 %v1283
      %v1660 = vunpack.c.l.b16 %v1284
      %v1661 = vunpack.c.l.b16 %v1285
      %v1662 = vunpack.c.l.b16 %v1286
      %v1663 = vunpack.c.l.b16 %v1287
      %v1664 = vunpack.c.l.b16 %v1288
      %v1665 = vunpack.c.l.b16 %v1289
      %v1666 = vunpack.c.l.b16 %v1290
      %v1667 = vunpack.c.l.b16 %v1291
      %v1668 = vunpack.c.l.b16 %v1292
      %v1669 = vunpack.c.l.b16 %v1293
      %v1670 = vunpack.c.l.b16 %v1294
      %v1671 = vunpack.c.l.b16 %v1295
      %v1672 = vunpack.c.l.b16 %v1296
      %v1673 = vunpack.c.l.b16 %v1297
      %v1674 = vunpack.c.l.b16 %v1298
      %v1675 = vunpack.c.l.b16 %v1299
      %v1676 = vunpack.c.l.b16 %v1300
      %v1677 = vunpack.c.l.b16 %v1301
      %v1678 = vunpack.c.l.b16 %v1302
      %v1679 = vunpack.c.l.b16 %v1303
      %v1680 = vunpack.c.l.b16 %v1304
      %v1681 = vpack.c.b16 %v1658, %v1657
      %v1682 = vpack.c.b16 %v1660, %v1659
      %v1683 = vpack.c.b16 %v1662, %v1661
      %v1684 = vpack.c.b16 %v1664, %v1663
      %v1685 = vpack.c.b16 %v1666, %v1665
      %v1686 = vpack.c.b16 %v1668, %v1667
      %v1687 = vpack.c.b16 %v1670, %v1669
      %v1688 = vpack.c.b16 %v1672, %v1671
      %v1689 = vpack.c.b16 %v1674, %v1673
      %v1690 = vpack.c.b16 %v1676, %v1675
      %v1691 = vpack.c.b16 %v1678, %v1677
      %v1692 = vpack.c.b16 %v1680, %v1679
      %v1706 = vsel %vm1220, %v1162, 0
      %1708 = vmatprep.subr.bf16.mxu0 0
      %1709 = vmatpush1.bf16.msra.mxu0 %v1681
      %1710 = vmatprep.subr.bf16.mxu0 0
      %1711 = vmatpush1.bf16.msra.mxu0 %v1682
      %1712 = vmatprep.subr.bf16.mxu0 0
      %1713 = vmatpush1.bf16.msra.mxu0 %v1683
      %1714 = vmatprep.subr.bf16.mxu0 0
      %1715 = vmatpush1.bf16.msra.mxu0 %v1684
      %1716 = vmatprep.subr.bf16.mxu0 0
      %1717 = vmatpush1.bf16.msra.mxu0 %v1685
      %1718 = vmatprep.subr.bf16.mxu0 0
      %1719 = vmatpush1.bf16.msra.mxu0 %v1686
      %1720 = vmatprep.subr.bf16.mxu0 0
      %1721 = vmatpush1.bf16.msra.mxu0 %v1687
      %1722 = vmatprep.subr.bf16.mxu0 0
      %1723 = vmatpush1.bf16.msra.mxu0 %v1688
      %1724 = vmatprep.subr.bf16.mxu0 0
      %1725 = vmatpush1.bf16.msra.mxu0 %v1689
      %1726 = vmatprep.subr.bf16.mxu0 0
      %1727 = vmatpush1.bf16.msra.mxu0 %v1690
      %1728 = vmatprep.subr.bf16.mxu0 0
      %1729 = vmatpush1.bf16.msra.mxu0 %v1691
      %1730 = vmatprep.subr.bf16.mxu0 0
      %1731 = vmatpush1.bf16.msra.mxu0 %v1692
      %1732 = vmatprep.subr.bf16.mxu0 0
      %1733 = vmatpush1.bf16.msra.mxu0 0
      %1734 = vmatprep.subr.bf16.mxu0 0
      %1735 = vmatpush1.bf16.msra.mxu0 0
      %1736 = vmatprep.subr.bf16.mxu0 0
      %1737 = vmatpush1.bf16.msra.mxu0 0
      %1738 = vmatprep.subr.bf16.mxu0 0
      %1739 = vmatpush1.bf16.msra.mxu0 0
      %1740 = vmatprep.mubr.bf16.mxu0 %v1706
      %1741 = vmatmul.mubr.bf16.gmra.mrb[0].mxu0 %v1222
      %v1742 = vpop.f32.mrb[0].mxu0
      %v1743 = vadd.f32 %v1491, %v1742
      %v1744 = vpop.f32.mrb[0].mxu0
      %v1745 = vpop.f32.mrb[0].mxu0
      %v1746 = vadd.f32 %v1494, %v1745
      %v1747 = vpop.f32.mrb[0].mxu0
      %1748 = vmatprep.mubr.bf16.mxu0 %v1403
      %1749 = vmatmul.mubr.bf16.gmra.mrb[0].mxu0 %v1225
      %v1750 = vpop.f32.mrb[0].mxu0
      %v1751 = vadd.f32 %v1499, %v1750
      %v1752 = vpop.f32.mrb[0].mxu0
      %v1753 = vpop.f32.mrb[0].mxu0
      %v1754 = vadd.f32 %v1502, %v1753
      %v1755 = vpop.f32.mrb[0].mxu0
      %1756 = vmatprep.mubr.bf16.mxu0 %v1406
      %1757 = vmatmul.mubr.bf16.gmra.mrb[0].mxu0 %v1228
      %v1758 = vpop.f32.mrb[0].mxu0
      %v1759 = vadd.f32 %v1507, %v1758
      %v1760 = vpop.f32.mrb[0].mxu0
      %v1761 = vpop.f32.mrb[0].mxu0
      %v1762 = vadd.f32 %v1510, %v1761
      %v1763 = vpop.f32.mrb[0].mxu0
      %1764 = vmatprep.mubr.bf16.mxu0 %v1409
      %1765 = vmatmul.mubr.bf16.gmra.mrb[0].mxu0 %v1231
      %v1766 = vpop.f32.mrb[0].mxu0
      %v1767 = vadd.f32 %v1515, %v1766
      %v1768 = vpop.f32.mrb[0].mxu0
      %v1769 = vpop.f32.mrb[0].mxu0
      %v1770 = vadd.f32 %v1518, %v1769
      %v1771 = vpop.f32.mrb[0].mxu0
      %1772 = vmatprep.mubr.bf16.mxu0 %v1412
      %1773 = vmatmul.mubr.bf16.gmra.mrb[0].mxu0 %v1234
      %v1774 = vpop.f32.mrb[0].mxu0
      %v1775 = vadd.f32 %v1523, %v1774
      %v1776 = vpop.f32.mrb[0].mxu0
      %v1777 = vpop.f32.mrb[0].mxu0
      %v1778 = vadd.f32 %v1526, %v1777
      %v1779 = vpop.f32.mrb[0].mxu0
      %1780 = vmatprep.mubr.bf16.mxu0 %v1415
      %1781 = vmatmul.mubr.bf16.gmra.mrb[0].mxu0 %v1237
      %v1782 = vpop.f32.mrb[0].mxu0
      %v1783 = vadd.f32 %v1531, %v1782
      %v1784 = vpop.f32.mrb[0].mxu0
      %v1785 = vpop.f32.mrb[0].mxu0
      %v1786 = vadd.f32 %v1534, %v1785
      %v1787 = vpop.f32.mrb[0].mxu0
      %1788 = vmatprep.mubr.bf16.mxu0 %v1418
      %1789 = vmatmul.mubr.bf16.gmra.mrb[0].mxu0 %v1240
      %v1790 = vpop.f32.mrb[0].mxu0
      %v1791 = vadd.f32 %v1539, %v1790
      %v1792 = vpop.f32.mrb[0].mxu0
      %v1793 = vpop.f32.mrb[0].mxu0
      %v1794 = vadd.f32 %v1542, %v1793
      %v1795 = vpop.f32.mrb[0].mxu0
      %1796 = vmatprep.mubr.bf16.mxu0 %v1421
      %1797 = vmatmul.mubr.bf16.gmra.mrb[0].mxu0 %v1243
      %v1798 = vpop.f32.mrb[0].mxu0
      %v1799 = vadd.f32 %v1547, %v1798
      %v1800 = vpop.f32.mrb[0].mxu0
      %v1801 = vpop.f32.mrb[0].mxu0
      %v1802 = vadd.f32 %v1550, %v1801
      %v1803 = vpop.f32.mrb[0].mxu0
      %1804 = vmatprep.mubr.bf16.mxu0 %v1424
      %1805 = vmatmul.mubr.bf16.gmra.mrb[0].mxu0 %v1246
      %v1806 = vpop.f32.mrb[0].mxu0
      %v1807 = vadd.f32 %v1555, %v1806
      %v1808 = vpop.f32.mrb[0].mxu0
      %v1809 = vpop.f32.mrb[0].mxu0
      %v1810 = vadd.f32 %v1558, %v1809
      %v1811 = vpop.f32.mrb[0].mxu0
      %1812 = vmatprep.mubr.bf16.mxu0 %v1427
      %1813 = vmatmul.mubr.bf16.gmra.mrb[0].mxu0 %v1249
      %v1814 = vpop.f32.mrb[0].mxu0
      %v1815 = vadd.f32 %v1563, %v1814
      %v1816 = vpop.f32.mrb[0].mxu0
      %v1817 = vpop.f32.mrb[0].mxu0
      %v1818 = vadd.f32 %v1566, %v1817
      %v1819 = vpop.f32.mrb[0].mxu0
      %1820 = vmatprep.mubr.bf16.mxu0 %v1430
      %1821 = vmatmul.mubr.bf16.gmra.mrb[0].mxu0 %v1252
      %v1822 = vpop.f32.mrb[0].mxu0
      %v1823 = vadd.f32 %v1571, %v1822
      %v1824 = vpop.f32.mrb[0].mxu0
      %v1825 = vpop.f32.mrb[0].mxu0
      %v1826 = vadd.f32 %v1574, %v1825
      %v1827 = vpop.f32.mrb[0].mxu0
      %1828 = vmatprep.mubr.bf16.mxu0 %v1433
      %1829 = vmatmul.mubr.bf16.gmra.mrb[0].mxu0 %v1255
      %v1830 = vpop.f32.mrb[0].mxu0
      %v1831 = vadd.f32 %v1579, %v1830
      %v1832 = vpop.f32.mrb[0].mxu0
      %v1833 = vpop.f32.mrb[0].mxu0
      %v1834 = vadd.f32 %v1582, %v1833
      %v1835 = vpop.f32.mrb[0].mxu0
      %1836 = vmatprep.mubr.bf16.mxu0 %v1436
      %1837 = vmatmul.mubr.bf16.gmra.mrb[0].mxu0 %v1258
      %v1838 = vpop.f32.mrb[0].mxu0
      %v1839 = vadd.f32 %v1587, %v1838
      %v1840 = vpop.f32.mrb[0].mxu0
      %v1841 = vpop.f32.mrb[0].mxu0
      %v1842 = vadd.f32 %v1590, %v1841
      %v1843 = vpop.f32.mrb[0].mxu0
      %1844 = vmatprep.mubr.bf16.mxu0 %v1439
      %1845 = vmatmul.mubr.bf16.gmra.mrb[0].mxu0 %v1261
      %v1846 = vpop.f32.mrb[0].mxu0
      %v1847 = vadd.f32 %v1595, %v1846
      %v1848 = vpop.f32.mrb[0].mxu0
      %v1849 = vpop.f32.mrb[0].mxu0
      %v1850 = vadd.f32 %v1598, %v1849
      %v1851 = vpop.f32.mrb[0].mxu0
      %1852 = vmatprep.mubr.bf16.mxu0 %v1442
      %1853 = vmatmul.mubr.bf16.gmra.mrb[0].mxu0 %v1264
      %v1854 = vpop.f32.mrb[0].mxu0
      %v1855 = vadd.f32 %v1603, %v1854
      %v1856 = vpop.f32.mrb[0].mxu0
      %v1857 = vpop.f32.mrb[0].mxu0
      %v1858 = vadd.f32 %v1606, %v1857
      %v1859 = vpop.f32.mrb[0].mxu0
      %1860 = vmatprep.mubr.bf16.mxu0 %v1445
      %1861 = vmatmul.mubr.bf16.gmra.mrb[0].mxu0 %v1267
      %v1862 = vpop.f32.mrb[0].mxu0
      %v1863 = vadd.f32 %v1611, %v1862
      %v1864 = vpop.f32.mrb[0].mxu0
      %v1865 = vpop.f32.mrb[0].mxu0
      %v1866 = vadd.f32 %v1614, %v1865
      %v1867 = vpop.f32.mrb[0].mxu0
      %1868 = vmatprep.mubr.bf16.mxu0 %v1448
      %1869 = vmatmul.mubr.bf16.gmra.mrb[0].mxu0 %v1270
      %v1870 = vpop.f32.mrb[0].mxu0
      %v1871 = vadd.f32 %v1619, %v1870
      %v1872 = vpop.f32.mrb[0].mxu0
      %v1873 = vpop.f32.mrb[0].mxu0
      %v1874 = vadd.f32 %v1622, %v1873
      %v1875 = vpop.f32.mrb[0].mxu0
      %1876 = vmatprep.mubr.bf16.mxu0 %v1451
      %1877 = vmatmul.mubr.bf16.gmra.mrb[0].mxu0 %v1273
      %v1878 = vpop.f32.mrb[0].mxu0
      %v1879 = vadd.f32 %v1627, %v1878
      %v1880 = vpop.f32.mrb[0].mxu0
      %v1881 = vpop.f32.mrb[0].mxu0
      %v1882 = vadd.f32 %v1630, %v1881
      %v1883 = vpop.f32.mrb[0].mxu0
      %1884 = vdwg.mxu0
      %s1885 = scalar_lea.vmem %s3, 192
      %v1886 = vld [vmem:[%s1885] sm:$0xf]
      %v1887 = vld [vmem:[%s1885 + $0x4] sm:$0xf]
      %v1888 = vld [vmem:[%s1885 + $0x8] sm:$0xf]
      %v1889 = vld [vmem:[%s1885 + $0xc] sm:$0xf]
      %v1890 = vld [vmem:[%s1885 + $0x10] sm:$0xf]
      %v1891 = vld [vmem:[%s1885 + $0x14] sm:$0xf]
      %v1892 = vld [vmem:[%s1885 + $0x18] sm:$0xf]
      %v1893 = vld [vmem:[%s1885 + $0x1c] sm:$0xf]
      %v1894 = vld [vmem:[%s1885 + $0x20] sm:$0xf]
      %v1895 = vld [vmem:[%s1885 + $0x24] sm:$0xf]
      %v1896 = vld [vmem:[%s1885 + $0x28] sm:$0xf]
      %v1897 = vld [vmem:[%s1885 + $0x2c] sm:$0xf]
      %v1898 = vld [vmem:[%s1885 + $0x30] sm:$0xf]
      %v1899 = vld [vmem:[%s1885 + $0x34] sm:$0xf]
      %v1900 = vld [vmem:[%s1885 + $0x38] sm:$0xf]
      %v1901 = vld [vmem:[%s1885 + $0x3c] sm:$0xf]
      %v1902 = vld [vmem:[%s1885 + $0x40] sm:$0xf]
      %v1903 = vld [vmem:[%s1885 + $0x44] sm:$0xf]
      %v1904 = vld [vmem:[%s1885 + $0x48] sm:$0xf]
      %v1905 = vld [vmem:[%s1885 + $0x4c] sm:$0xf]
      %v1906 = vld [vmem:[%s1885 + $0x50] sm:$0xf]
      %v1907 = vld [vmem:[%s1885 + $0x54] sm:$0xf]
      %v1908 = vld [vmem:[%s1885 + $0x58] sm:$0xf]
      %v1909 = vld [vmem:[%s1885 + $0x5c] sm:$0xf]
      %v1934 = vunpack.c.l.b16 %v1886
      %v1935 = vunpack.c.l.b16 %v1887
      %v1936 = vunpack.c.l.b16 %v1888
      %v1937 = vunpack.c.l.b16 %v1889
      %v1938 = vunpack.c.l.b16 %v1890
      %v1939 = vunpack.c.l.b16 %v1891
      %v1940 = vunpack.c.l.b16 %v1892
      %v1941 = vunpack.c.l.b16 %v1893
      %v1942 = vunpack.c.l.b16 %v1894
      %v1943 = vunpack.c.l.b16 %v1895
      %v1944 = vunpack.c.l.b16 %v1896
      %v1945 = vunpack.c.l.b16 %v1897
      %v1946 = vunpack.c.l.b16 %v1898
      %v1947 = vunpack.c.l.b16 %v1899
      %v1948 = vunpack.c.l.b16 %v1900
      %v1949 = vunpack.c.l.b16 %v1901
      %v1950 = vunpack.c.l.b16 %v1902
      %v1951 = vunpack.c.l.b16 %v1903
      %v1952 = vunpack.c.l.b16 %v1904
      %v1953 = vunpack.c.l.b16 %v1905
      %v1954 = vunpack.c.l.b16 %v1906
      %v1955 = vunpack.c.l.b16 %v1907
      %v1956 = vunpack.c.l.b16 %v1908
      %v1957 = vunpack.c.l.b16 %v1909
      %v1958 = vpack.c.b16 %v1935, %v1934
      %v1959 = vpack.c.b16 %v1937, %v1936
      %v1960 = vpack.c.b16 %v1939, %v1938
      %v1961 = vpack.c.b16 %v1941, %v1940
      %v1962 = vpack.c.b16 %v1943, %v1942
      %v1963 = vpack.c.b16 %v1945, %v1944
      %v1964 = vpack.c.b16 %v1947, %v1946
      %v1965 = vpack.c.b16 %v1949, %v1948
      %v1966 = vpack.c.b16 %v1951, %v1950
      %v1967 = vpack.c.b16 %v1953, %v1952
      %v1968 = vpack.c.b16 %v1955, %v1954
      %v1969 = vpack.c.b16 %v1957, %v1956
      %v1983 = vsel %vm1220, %v1219, 0
      %1985 = vmatprep.subr.bf16.mxu0 0
      %1986 = vmatpush1.bf16.msra.mxu0 %v1958
      %1987 = vmatprep.subr.bf16.mxu0 0
      %1988 = vmatpush1.bf16.msra.mxu0 %v1959
      %1989 = vmatprep.subr.bf16.mxu0 0
      %1990 = vmatpush1.bf16.msra.mxu0 %v1960
      %1991 = vmatprep.subr.bf16.mxu0 0
      %1992 = vmatpush1.bf16.msra.mxu0 %v1961
      %1993 = vmatprep.subr.bf16.mxu0 0
      %1994 = vmatpush1.bf16.msra.mxu0 %v1962
      %1995 = vmatprep.subr.bf16.mxu0 0
      %1996 = vmatpush1.bf16.msra.mxu0 %v1963
      %1997 = vmatprep.subr.bf16.mxu0 0
      %1998 = vmatpush1.bf16.msra.mxu0 %v1964
      %1999 = vmatprep.subr.bf16.mxu0 0
      %2000 = vmatpush1.bf16.msra.mxu0 %v1965
      %2001 = vmatprep.subr.bf16.mxu0 0
      %2002 = vmatpush1.bf16.msra.mxu0 %v1966
      %2003 = vmatprep.subr.bf16.mxu0 0
      %2004 = vmatpush1.bf16.msra.mxu0 %v1967
      %2005 = vmatprep.subr.bf16.mxu0 0
      %2006 = vmatpush1.bf16.msra.mxu0 %v1968
      %2007 = vmatprep.subr.bf16.mxu0 0
      %2008 = vmatpush1.bf16.msra.mxu0 %v1969
      %2009 = vmatprep.subr.bf16.mxu0 0
      %2010 = vmatpush1.bf16.msra.mxu0 0
      %2011 = vmatprep.subr.bf16.mxu0 0
      %2012 = vmatpush1.bf16.msra.mxu0 0
      %2013 = vmatprep.subr.bf16.mxu0 0
      %2014 = vmatpush1.bf16.msra.mxu0 0
      %2015 = vmatprep.subr.bf16.mxu0 0
      %2016 = vmatpush1.bf16.msra.mxu0 0
      %2017 = vmatprep.mubr.bf16.mxu0 %v1406
      %2018 = vmatmul.mubr.bf16.gmra.mrb[0].mxu0 %v1228
      %v2019 = vpop.f32.mrb[0].mxu0
      %v2020 = vadd.f32 0.0, %v2019
      %v2021 = vpop.f32.mrb[0].mxu0
      %v2022 = vpop.f32.mrb[0].mxu0
      %v2023 = vadd.f32 0.0, %v2022
      %v2024 = vpop.f32.mrb[0].mxu0
      %2025 = vmatprep.mubr.bf16.mxu0 %v1409
      %2026 = vmatmul.mubr.bf16.gmra.mrb[0].mxu0 %v1231
      %v2027 = vpop.f32.mrb[0].mxu0
      %v2028 = vadd.f32 0.0, %v2027
      %v2029 = vpop.f32.mrb[0].mxu0
      %v2030 = vpop.f32.mrb[0].mxu0
      %v2031 = vadd.f32 0.0, %v2030
      %v2032 = vpop.f32.mrb[0].mxu0
      %2033 = vmatprep.mubr.bf16.mxu0 %v1412
      %2034 = vmatmul.mubr.bf16.gmra.mrb[0].mxu0 %v1234
      %v2035 = vpop.f32.mrb[0].mxu0
      %v2036 = vadd.f32 0.0, %v2035
      %v2037 = vpop.f32.mrb[0].mxu0
      %v2038 = vpop.f32.mrb[0].mxu0
      %v2039 = vadd.f32 0.0, %v2038
      %v2040 = vpop.f32.mrb[0].mxu0
      %2041 = vmatprep.mubr.bf16.mxu0 %v1415
      %2042 = vmatmul.mubr.bf16.gmra.mrb[0].mxu0 %v1237
      %v2043 = vpop.f32.mrb[0].mxu0
      %v2044 = vadd.f32 0.0, %v2043
      %v2045 = vpop.f32.mrb[0].mxu0
      %v2046 = vpop.f32.mrb[0].mxu0
      %v2047 = vadd.f32 0.0, %v2046
      %v2048 = vpop.f32.mrb[0].mxu0
      %2049 = vmatprep.mubr.bf16.mxu0 %v1418
      %2050 = vmatmul.mubr.bf16.gmra.mrb[0].mxu0 %v1240
      %v2051 = vpop.f32.mrb[0].mxu0
      %v2052 = vadd.f32 0.0, %v2051
      %v2053 = vpop.f32.mrb[0].mxu0
      %v2054 = vpop.f32.mrb[0].mxu0
      %v2055 = vadd.f32 0.0, %v2054
      %v2056 = vpop.f32.mrb[0].mxu0
      %2057 = vmatprep.mubr.bf16.mxu0 %v1421
      %2058 = vmatmul.mubr.bf16.gmra.mrb[0].mxu0 %v1243
      %v2059 = vpop.f32.mrb[0].mxu0
      %v2060 = vadd.f32 0.0, %v2059
      %v2061 = vpop.f32.mrb[0].mxu0
      %v2062 = vpop.f32.mrb[0].mxu0
      %v2063 = vadd.f32 0.0, %v2062
      %v2064 = vpop.f32.mrb[0].mxu0
      %2065 = vmatprep.mubr.bf16.mxu0 %v1424
      %2066 = vmatmul.mubr.bf16.gmra.mrb[0].mxu0 %v1246
      %v2067 = vpop.f32.mrb[0].mxu0
      %v2068 = vadd.f32 0.0, %v2067
      %v2069 = vpop.f32.mrb[0].mxu0
      %v2070 = vpop.f32.mrb[0].mxu0
      %v2071 = vadd.f32 0.0, %v2070
      %v2072 = vpop.f32.mrb[0].mxu0
      %2073 = vmatprep.mubr.bf16.mxu0 %v1427
      %2074 = vmatmul.mubr.bf16.gmra.mrb[0].mxu0 %v1249
      %v2075 = vpop.f32.mrb[0].mxu0
      %v2076 = vadd.f32 0.0, %v2075
      %v2077 = vpop.f32.mrb[0].mxu0
      %v2078 = vpop.f32.mrb[0].mxu0
      %v2079 = vadd.f32 0.0, %v2078
      %v2080 = vpop.f32.mrb[0].mxu0
      %2081 = vmatprep.mubr.bf16.mxu0 %v1430
      %2082 = vmatmul.mubr.bf16.gmra.mrb[0].mxu0 %v1252
      %v2083 = vpop.f32.mrb[0].mxu0
      %v2084 = vadd.f32 0.0, %v2083
      %v2085 = vpop.f32.mrb[0].mxu0
      %v2086 = vpop.f32.mrb[0].mxu0
      %v2087 = vadd.f32 0.0, %v2086
      %v2088 = vpop.f32.mrb[0].mxu0
      %2089 = vmatprep.mubr.bf16.mxu0 %v1433
      %2090 = vmatmul.mubr.bf16.gmra.mrb[0].mxu0 %v1255
      %v2091 = vpop.f32.mrb[0].mxu0
      %v2092 = vadd.f32 0.0, %v2091
      %v2093 = vpop.f32.mrb[0].mxu0
      %v2094 = vpop.f32.mrb[0].mxu0
      %v2095 = vadd.f32 0.0, %v2094
      %v2096 = vpop.f32.mrb[0].mxu0
      %2097 = vmatprep.mubr.bf16.mxu0 %v1436
      %2098 = vmatmul.mubr.bf16.gmra.mrb[0].mxu0 %v1258
      %v2099 = vpop.f32.mrb[0].mxu0
      %v2100 = vadd.f32 0.0, %v2099
      %v2101 = vpop.f32.mrb[0].mxu0
      %v2102 = vpop.f32.mrb[0].mxu0
      %v2103 = vadd.f32 0.0, %v2102
      %v2104 = vpop.f32.mrb[0].mxu0
      %2105 = vmatprep.mubr.bf16.mxu0 %v1439
      %2106 = vmatmul.mubr.bf16.gmra.mrb[0].mxu0 %v1261
      %v2107 = vpop.f32.mrb[0].mxu0
      %v2108 = vadd.f32 0.0, %v2107
      %v2109 = vpop.f32.mrb[0].mxu0
      %v2110 = vpop.f32.mrb[0].mxu0
      %v2111 = vadd.f32 0.0, %v2110
      %v2112 = vpop.f32.mrb[0].mxu0
      %2113 = vmatprep.mubr.bf16.mxu0 %v1442
      %2114 = vmatmul.mubr.bf16.gmra.mrb[0].mxu0 %v1264
      %v2115 = vpop.f32.mrb[0].mxu0
      %v2116 = vadd.f32 0.0, %v2115
      %v2117 = vpop.f32.mrb[0].mxu0
      %v2118 = vpop.f32.mrb[0].mxu0
      %v2119 = vadd.f32 0.0, %v2118
      %v2120 = vpop.f32.mrb[0].mxu0
      %2121 = vmatprep.mubr.bf16.mxu0 %v1445
      %2122 = vmatmul.mubr.bf16.gmra.mrb[0].mxu0 %v1267
      %v2123 = vpop.f32.mrb[0].mxu0
      %v2124 = vadd.f32 0.0, %v2123
      %v2125 = vpop.f32.mrb[0].mxu0
      %v2126 = vpop.f32.mrb[0].mxu0
      %v2127 = vadd.f32 0.0, %v2126
      %v2128 = vpop.f32.mrb[0].mxu0
      %2129 = vmatprep.mubr.bf16.mxu0 %v1448
      %2130 = vmatmul.mubr.bf16.gmra.mrb[0].mxu0 %v1270
      %v2131 = vpop.f32.mrb[0].mxu0
      %v2132 = vadd.f32 0.0, %v2131
      %v2133 = vpop.f32.mrb[0].mxu0
      %v2134 = vpop.f32.mrb[0].mxu0
      %v2135 = vadd.f32 0.0, %v2134
      %v2136 = vpop.f32.mrb[0].mxu0
      %2137 = vmatprep.mubr.bf16.mxu0 %v1451
      %2138 = vmatmul.mubr.bf16.gmra.mrb[0].mxu0 %v1273
      %v2139 = vpop.f32.mrb[0].mxu0
      %v2140 = vadd.f32 0.0, %v2139
      %v2141 = vpop.f32.mrb[0].mxu0
      %v2142 = vpop.f32.mrb[0].mxu0
      %v2143 = vadd.f32 0.0, %v2142
      %v2144 = vpop.f32.mrb[0].mxu0
      %2145 = vmatprep.mubr.bf16.mxu0 %v1454
      %2146 = vmatmul.mubr.bf16.gmra.mrb[0].mxu0 %v1276
      %v2147 = vpop.f32.mrb[0].mxu0
      %v2148 = vadd.f32 0.0, %v2147
      %v2149 = vpop.f32.mrb[0].mxu0
      %v2150 = vpop.f32.mrb[0].mxu0
      %v2151 = vadd.f32 0.0, %v2150
      %v2152 = vpop.f32.mrb[0].mxu0
      %2153 = vmatprep.mubr.bf16.mxu0 %v1983
      %2154 = vmatmul.mubr.bf16.gmra.mrb[0].mxu0 %v1279
      %v2155 = vpop.f32.mrb[0].mxu0
      %v2156 = vadd.f32 0.0, %v2155
      %v2157 = vpop.f32.mrb[0].mxu0
      %v2158 = vpop.f32.mrb[0].mxu0
      %v2159 = vadd.f32 0.0, %v2158
      %v2160 = vpop.f32.mrb[0].mxu0
      %2161 = vdwg.mxu0
      %v2162 = vadd.f32 %v1743, %v2020
      %v2163 = vadd.f32 %v1746, %v2023
      %v2164 = vadd.f32 %v1751, %v2028
      %v2165 = vadd.f32 %v1754, %v2031
      %v2166 = vadd.f32 %v1759, %v2036
      %v2167 = vadd.f32 %v1762, %v2039
      %v2168 = vadd.f32 %v1767, %v2044
      %v2169 = vadd.f32 %v1770, %v2047
      %v2170 = vadd.f32 %v1775, %v2052
      %v2171 = vadd.f32 %v1778, %v2055
      %v2172 = vadd.f32 %v1783, %v2060
      %v2173 = vadd.f32 %v1786, %v2063
      %v2174 = vadd.f32 %v1791, %v2068
      %v2175 = vadd.f32 %v1794, %v2071
      %v2176 = vadd.f32 %v1799, %v2076
      %v2177 = vadd.f32 %v1802, %v2079
      %v2178 = vadd.f32 %v1807, %v2084
      %v2179 = vadd.f32 %v1810, %v2087
      %v2180 = vadd.f32 %v1815, %v2092
      %v2181 = vadd.f32 %v1818, %v2095
      %v2182 = vadd.f32 %v1823, %v2100
      %v2183 = vadd.f32 %v1826, %v2103
      %v2184 = vadd.f32 %v1831, %v2108
      %v2185 = vadd.f32 %v1834, %v2111
      %v2186 = vadd.f32 %v1839, %v2116
      %v2187 = vadd.f32 %v1842, %v2119
      %v2188 = vadd.f32 %v1847, %v2124
      %v2189 = vadd.f32 %v1850, %v2127
      %v2190 = vadd.f32 %v1855, %v2132
      %v2191 = vadd.f32 %v1858, %v2135
      %v2192 = vadd.f32 %v1863, %v2140
      %v2193 = vadd.f32 %v1866, %v2143
      %v2194 = vadd.f32 %v1871, %v2148
      %v2195 = vadd.f32 %v1874, %v2151
      %v2196 = vadd.f32 %v1879, %v2156
      %v2197 = vadd.f32 %v1882, %v2159
      %v2198 = vld [vmem:[%s4] sm:$0x1]
      %v2200 = vlaneseq
      %v2201 = vshrl.u32 %v2200, 7
      %v2202 = vsub.s32 0, %v2201
      %v2203 = vrot.slane %v2198, %v2202
      %v2205 = vadd.f32 %v2162, %v2203
      %v2206 = vadd.f32 %v2163, %v2203
      %v2207 = vadd.f32 %v2164, %v2203
      %v2208 = vadd.f32 %v2165, %v2203
      %v2209 = vadd.f32 %v2166, %v2203
      %v2210 = vadd.f32 %v2167, %v2203
      %v2211 = vadd.f32 %v2168, %v2203
      %v2212 = vadd.f32 %v2169, %v2203
      %v2213 = vadd.f32 %v2170, %v2203
      %v2214 = vadd.f32 %v2171, %v2203
      %v2215 = vadd.f32 %v2172, %v2203
      %v2216 = vadd.f32 %v2173, %v2203
      %v2217 = vadd.f32 %v2174, %v2203
      %v2218 = vadd.f32 %v2175, %v2203
      %v2219 = vadd.f32 %v2176, %v2203
      %v2220 = vadd.f32 %v2177, %v2203
      %v2221 = vadd.f32 %v2178, %v2203
      %v2222 = vadd.f32 %v2179, %v2203
      %v2223 = vadd.f32 %v2180, %v2203
      %v2224 = vadd.f32 %v2181, %v2203
      %v2225 = vadd.f32 %v2182, %v2203
      %v2226 = vadd.f32 %v2183, %v2203
      %v2227 = vadd.f32 %v2184, %v2203
      %v2228 = vadd.f32 %v2185, %v2203
      %v2229 = vadd.f32 %v2186, %v2203
      %v2230 = vadd.f32 %v2187, %v2203
      %v2231 = vadd.f32 %v2188, %v2203
      %v2232 = vadd.f32 %v2189, %v2203
      %v2233 = vadd.f32 %v2190, %v2203
      %v2234 = vadd.f32 %v2191, %v2203
      %v2235 = vadd.f32 %v2192, %v2203
      %v2236 = vadd.f32 %v2193, %v2203
      %v2237 = vadd.f32 %v2194, %v2203
      %v2238 = vadd.f32 %v2195, %v2203
      %v2239 = vadd.f32 %v2196, %v2203
      %v2240 = vadd.f32 %v2197, %v2203
      %v2241 = vmax.f32 %v2205, 0.0
      %v2242 = vmax.f32 %v2206, 0.0
      %v2243 = vmax.f32 %v2207, 0.0
      %v2244 = vmax.f32 %v2208, 0.0
      %v2245 = vmax.f32 %v2209, 0.0
      %v2246 = vmax.f32 %v2210, 0.0
      %v2247 = vmax.f32 %v2211, 0.0
      %v2248 = vmax.f32 %v2212, 0.0
      %v2249 = vmax.f32 %v2213, 0.0
      %v2250 = vmax.f32 %v2214, 0.0
      %v2251 = vmax.f32 %v2215, 0.0
      %v2252 = vmax.f32 %v2216, 0.0
      %v2253 = vmax.f32 %v2217, 0.0
      %v2254 = vmax.f32 %v2218, 0.0
      %v2255 = vmax.f32 %v2219, 0.0
      %v2256 = vmax.f32 %v2220, 0.0
      %v2257 = vmax.f32 %v2221, 0.0
      %v2258 = vmax.f32 %v2222, 0.0
      %v2259 = vmax.f32 %v2223, 0.0
      %v2260 = vmax.f32 %v2224, 0.0
      %v2261 = vmax.f32 %v2225, 0.0
      %v2262 = vmax.f32 %v2226, 0.0
      %v2263 = vmax.f32 %v2227, 0.0
      %v2264 = vmax.f32 %v2228, 0.0
      %v2265 = vmax.f32 %v2229, 0.0
      %v2266 = vmax.f32 %v2230, 0.0
      %v2267 = vmax.f32 %v2231, 0.0
      %v2268 = vmax.f32 %v2232, 0.0
      %v2269 = vmax.f32 %v2233, 0.0
      %v2270 = vmax.f32 %v2234, 0.0
      %v2271 = vmax.f32 %v2235, 0.0
      %v2272 = vmax.f32 %v2236, 0.0
      %v2273 = vmax.f32 %v2237, 0.0
      %v2274 = vmax.f32 %v2238, 0.0
      %v2275 = vmax.f32 %v2239, 0.0
      %v2276 = vmax.f32 %v2240, 0.0
      %s2277 = ssub.s32 %s458, 1
      %v2278 = vstv %s2277
      %v2279 = vadd.s32 %v2278, 1
      %v2280 = vadd.s32 %v2278, 2
      %v2281 = vadd.s32 %v2278, 3
      %v2282 = vadd.s32 %v2278, 4
      %v2283 = vadd.s32 %v2278, 5
      %v2284 = vadd.s32 %v2278, 6
      %v2285 = vadd.s32 %v2278, 7
      %v2286 = vadd.s32 %v2278, 8
      %v2287 = vadd.s32 %v2278, 9
      %v2288 = vadd.s32 %v2278, 10
      %v2289 = vadd.s32 %v2278, 11
      %v2290 = vadd.s32 %v2278, 12
      %v2291 = vadd.s32 %v2278, 13
      %v2292 = vadd.s32 %v2278, 14
      %v2293 = vadd.s32 %v2278, 15
      %v2294 = vadd.s32 %v2278, 16
      %v2295 = vadd.s32 %v2278, 17
      %vm2296 = vcmp.ge.s32.totalorder %v2278, 0
      %vm2297 = vcmp.ge.s32.totalorder %v2279, 0
      %vm2298 = vcmp.ge.s32.totalorder %v2280, 0
      %vm2299 = vcmp.ge.s32.totalorder %v2281, 0
      %vm2300 = vcmp.ge.s32.totalorder %v2282, 0
      %vm2301 = vcmp.ge.s32.totalorder %v2283, 0
      %vm2302 = vcmp.ge.s32.totalorder %v2284, 0
      %vm2303 = vcmp.ge.s32.totalorder %v2285, 0
      %vm2304 = vcmp.ge.s32.totalorder %v2286, 0
      %vm2305 = vcmp.ge.s32.totalorder %v2287, 0
      %vm2306 = vcmp.ge.s32.totalorder %v2288, 0
      %vm2307 = vcmp.ge.s32.totalorder %v2289, 0
      %vm2308 = vcmp.ge.s32.totalorder %v2290, 0
      %vm2309 = vcmp.ge.s32.totalorder %v2291, 0
      %vm2310 = vcmp.ge.s32.totalorder %v2292, 0
      %vm2311 = vcmp.ge.s32.totalorder %v2293, 0
      %vm2312 = vcmp.ge.s32.totalorder %v2294, 0
      %vm2313 = vcmp.ge.s32.totalorder %v2295, 0
      %vm2314 = vcmp.lt.s32.totalorder %v2278, 16
      %vm2315 = vcmp.lt.s32.totalorder %v2279, 16
      %vm2316 = vcmp.lt.s32.totalorder %v2280, 16
      %vm2317 = vcmp.lt.s32.totalorder %v2281, 16
      %vm2318 = vcmp.lt.s32.totalorder %v2282, 16
      %vm2319 = vcmp.lt.s32.totalorder %v2283, 16
      %vm2320 = vcmp.lt.s32.totalorder %v2284, 16
      %vm2321 = vcmp.lt.s32.totalorder %v2285, 16
      %vm2322 = vcmp.lt.s32.totalorder %v2286, 16
      %vm2323 = vcmp.lt.s32.totalorder %v2287, 16
      %vm2324 = vcmp.lt.s32.totalorder %v2288, 16
      %vm2325 = vcmp.lt.s32.totalorder %v2289, 16
      %vm2326 = vcmp.lt.s32.totalorder %v2290, 16
      %vm2327 = vcmp.lt.s32.totalorder %v2291, 16
      %vm2328 = vcmp.lt.s32.totalorder %v2292, 16
      %vm2329 = vcmp.lt.s32.totalorder %v2293, 16
      %vm2330 = vcmp.lt.s32.totalorder %v2294, 16
      %vm2331 = vcmp.lt.s32.totalorder %v2295, 16
      %vm2332 = vmand %vm2296, %vm2314
      %vm2333 = vmand %vm2297, %vm2315
      %vm2334 = vmand %vm2298, %vm2316
      %vm2335 = vmand %vm2299, %vm2317
      %vm2336 = vmand %vm2300, %vm2318
      %vm2337 = vmand %vm2301, %vm2319
      %vm2338 = vmand %vm2302, %vm2320
      %vm2339 = vmand %vm2303, %vm2321
      %vm2340 = vmand %vm2304, %vm2322
      %vm2341 = vmand %vm2305, %vm2323
      %vm2342 = vmand %vm2306, %vm2324
      %vm2343 = vmand %vm2307, %vm2325
      %vm2344 = vmand %vm2308, %vm2326
      %vm2345 = vmand %vm2309, %vm2327
      %vm2346 = vmand %vm2310, %vm2328
      %vm2347 = vmand %vm2311, %vm2329
      %vm2348 = vmand %vm2312, %vm2330
      %vm2349 = vmand %vm2313, %vm2331
      %v2350 = vsel %vm2332, 1, 0
      %v2351 = vsel %vm2333, 1, 0
      %v2352 = vsel %vm2334, 1, 0
      %v2353 = vsel %vm2335, 1, 0
      %v2354 = vsel %vm2336, 1, 0
      %v2355 = vsel %vm2337, 1, 0
      %v2356 = vsel %vm2338, 1, 0
      %v2357 = vsel %vm2339, 1, 0
      %v2358 = vsel %vm2340, 1, 0
      %v2359 = vsel %vm2341, 1, 0
      %v2360 = vsel %vm2342, 1, 0
      %v2361 = vsel %vm2343, 1, 0
      %v2362 = vsel %vm2344, 1, 0
      %v2363 = vsel %vm2345, 1, 0
      %v2364 = vsel %vm2346, 1, 0
      %v2365 = vsel %vm2347, 1, 0
      %v2366 = vsel %vm2348, 1, 0
      %v2367 = vsel %vm2349, 1, 0
      %vm2368 = vcmp.eq.s32.totalorder %v2350, 1
      %vm2369 = vcmp.eq.s32.totalorder %v2351, 1
      %vm2370 = vcmp.eq.s32.totalorder %v2352, 1
      %vm2371 = vcmp.eq.s32.totalorder %v2353, 1
      %vm2372 = vcmp.eq.s32.totalorder %v2354, 1
      %vm2373 = vcmp.eq.s32.totalorder %v2355, 1
      %vm2374 = vcmp.eq.s32.totalorder %v2356, 1
      %vm2375 = vcmp.eq.s32.totalorder %v2357, 1
      %vm2376 = vcmp.eq.s32.totalorder %v2358, 1
      %vm2377 = vcmp.eq.s32.totalorder %v2359, 1
      %vm2378 = vcmp.eq.s32.totalorder %v2360, 1
      %vm2379 = vcmp.eq.s32.totalorder %v2361, 1
      %vm2380 = vcmp.eq.s32.totalorder %v2362, 1
      %vm2381 = vcmp.eq.s32.totalorder %v2363, 1
      %vm2382 = vcmp.eq.s32.totalorder %v2364, 1
      %vm2383 = vcmp.eq.s32.totalorder %v2365, 1
      %vm2384 = vcmp.eq.s32.totalorder %v2366, 1
      %vm2385 = vcmp.eq.s32.totalorder %v2367, 1
      %v2386 = vsel %vm2368, %v2241, 0.0
      %v2387 = vsel %vm2368, %v2242, 0.0
      %v2388 = vsel %vm2369, %v2243, 0.0
      %v2389 = vsel %vm2369, %v2244, 0.0
      %v2390 = vsel %vm2370, %v2245, 0.0
      %v2391 = vsel %vm2370, %v2246, 0.0
      %v2392 = vsel %vm2371, %v2247, 0.0
      %v2393 = vsel %vm2371, %v2248, 0.0
      %v2394 = vsel %vm2372, %v2249, 0.0
      %v2395 = vsel %vm2372, %v2250, 0.0
      %v2396 = vsel %vm2373, %v2251, 0.0
      %v2397 = vsel %vm2373, %v2252, 0.0
      %v2398 = vsel %vm2374, %v2253, 0.0
      %v2399 = vsel %vm2374, %v2254, 0.0
      %v2400 = vsel %vm2375, %v2255, 0.0
      %v2401 = vsel %vm2375, %v2256, 0.0
      %v2402 = vsel %vm2376, %v2257, 0.0
      %v2403 = vsel %vm2376, %v2258, 0.0
      %v2404 = vsel %vm2377, %v2259, 0.0
      %v2405 = vsel %vm2377, %v2260, 0.0
      %v2406 = vsel %vm2378, %v2261, 0.0
      %v2407 = vsel %vm2378, %v2262, 0.0
      %v2408 = vsel %vm2379, %v2263, 0.0
      %v2409 = vsel %vm2379, %v2264, 0.0
      %v2410 = vsel %vm2380, %v2265, 0.0
      %v2411 = vsel %vm2380, %v2266, 0.0
      %v2412 = vsel %vm2381, %v2267, 0.0
      %v2413 = vsel %vm2381, %v2268, 0.0
      %v2414 = vsel %vm2382, %v2269, 0.0
      %v2415 = vsel %vm2382, %v2270, 0.0
      %v2416 = vsel %vm2383, %v2271, 0.0
      %v2417 = vsel %vm2383, %v2272, 0.0
      %v2418 = vsel %vm2384, %v2273, 0.0
      %v2419 = vsel %vm2384, %v2274, 0.0
      %v2420 = vsel %vm2385, %v2275, 0.0
      %v2421 = vsel %vm2385, %v2276, 0.0
      %v2422 = vpack.c.bf16 %v2387, %v2386
      %v2423 = vpack.c.bf16 %v2389, %v2388
      %v2424 = vpack.c.bf16 %v2391, %v2390
      %v2425 = vpack.c.bf16 %v2393, %v2392
      %v2426 = vpack.c.bf16 %v2395, %v2394
      %v2427 = vpack.c.bf16 %v2397, %v2396
      %v2428 = vpack.c.bf16 %v2399, %v2398
      %v2429 = vpack.c.bf16 %v2401, %v2400
      %v2430 = vpack.c.bf16 %v2403, %v2402
      %v2431 = vpack.c.bf16 %v2405, %v2404
      %v2432 = vpack.c.bf16 %v2407, %v2406
      %v2433 = vpack.c.bf16 %v2409, %v2408
      %v2434 = vpack.c.bf16 %v2411, %v2410
      %v2435 = vpack.c.bf16 %v2413, %v2412
      %v2436 = vpack.c.bf16 %v2415, %v2414
      %v2437 = vpack.c.bf16 %v2417, %v2416
      %v2438 = vpack.c.bf16 %v2419, %v2418
      %v2439 = vpack.c.bf16 %v2421, %v2420
      %v2441 = vshrl.u32 %v2422, 16
      %v2443 = vrot.slane %v2441, 7
      %v2444 = vshll.u32 %v2422, 16
      %v2446 = vor.u32 %v2443, %v2444
      %v2448 = vshrl.u32 %v2423, 16
      %v2450 = vrot.slane %v2448, 7
      %v2451 = vshll.u32 %v2423, 16
      %v2453 = vor.u32 %v2450, %v2451
      %v2455 = vshrl.u32 %v2424, 16
      %v2457 = vrot.slane %v2455, 7
      %v2458 = vshll.u32 %v2424, 16
      %v2460 = vor.u32 %v2457, %v2458
      %v2462 = vshrl.u32 %v2425, 16
      %v2464 = vrot.slane %v2462, 7
      %v2465 = vshll.u32 %v2425, 16
      %v2467 = vor.u32 %v2464, %v2465
      %v2469 = vshrl.u32 %v2426, 16
      %v2471 = vrot.slane %v2469, 7
      %v2472 = vshll.u32 %v2426, 16
      %v2474 = vor.u32 %v2471, %v2472
      %v2476 = vshrl.u32 %v2427, 16
      %v2478 = vrot.slane %v2476, 7
      %v2479 = vshll.u32 %v2427, 16
      %v2481 = vor.u32 %v2478, %v2479
      %v2483 = vshrl.u32 %v2428, 16
      %v2485 = vrot.slane %v2483, 7
      %v2486 = vshll.u32 %v2428, 16
      %v2488 = vor.u32 %v2485, %v2486
      %v2490 = vshrl.u32 %v2429, 16
      %v2492 = vrot.slane %v2490, 7
      %v2493 = vshll.u32 %v2429, 16
      %v2495 = vor.u32 %v2492, %v2493
      %v2497 = vshrl.u32 %v2430, 16
      %v2499 = vrot.slane %v2497, 7
      %v2500 = vshll.u32 %v2430, 16
      %v2502 = vor.u32 %v2499, %v2500
      %v2504 = vshrl.u32 %v2431, 16
      %v2506 = vrot.slane %v2504, 7
      %v2507 = vshll.u32 %v2431, 16
      %v2509 = vor.u32 %v2506, %v2507
      %v2511 = vshrl.u32 %v2432, 16
      %v2513 = vrot.slane %v2511, 7
      %v2514 = vshll.u32 %v2432, 16
      %v2516 = vor.u32 %v2513, %v2514
      %v2518 = vshrl.u32 %v2433, 16
      %v2520 = vrot.slane %v2518, 7
      %v2521 = vshll.u32 %v2433, 16
      %v2523 = vor.u32 %v2520, %v2521
      %v2525 = vshrl.u32 %v2434, 16
      %v2527 = vrot.slane %v2525, 7
      %v2528 = vshll.u32 %v2434, 16
      %v2530 = vor.u32 %v2527, %v2528
      %v2532 = vshrl.u32 %v2435, 16
      %v2534 = vrot.slane %v2532, 7
      %v2535 = vshll.u32 %v2435, 16
      %v2537 = vor.u32 %v2534, %v2535
      %v2539 = vshrl.u32 %v2436, 16
      %v2541 = vrot.slane %v2539, 7
      %v2542 = vshll.u32 %v2436, 16
      %v2544 = vor.u32 %v2541, %v2542
      %v2546 = vshrl.u32 %v2437, 16
      %v2548 = vrot.slane %v2546, 7
      %v2549 = vshll.u32 %v2437, 16
      %v2551 = vor.u32 %v2548, %v2549
      %v2553 = vshrl.u32 %v2438, 16
      %v2555 = vrot.slane %v2553, 7
      %v2556 = vshll.u32 %v2438, 16
      %v2558 = vor.u32 %v2555, %v2556
      %v2560 = vshrl.u32 %v2439, 16
      %v2562 = vrot.slane %v2560, 7
      %v2563 = vshll.u32 %v2439, 16
      %v2565 = vor.u32 %v2562, %v2563
      %v2602 = vsel %vm797, 0, %v2446
      %v2603 = vsel %vm797, 0, %v2453
      %v2604 = vsel %vm797, 0, %v2460
      %v2605 = vsel %vm797, 0, %v2467
      %v2606 = vsel %vm797, 0, %v2474
      %v2607 = vsel %vm797, 0, %v2481
      %v2608 = vsel %vm797, 0, %v2488
      %v2609 = vsel %vm797, 0, %v2495
      %v2610 = vsel %vm797, 0, %v2502
      %v2611 = vsel %vm797, 0, %v2509
      %v2612 = vsel %vm797, 0, %v2516
      %v2613 = vsel %vm797, 0, %v2523
      %v2614 = vsel %vm797, 0, %v2530
      %v2615 = vsel %vm797, 0, %v2537
      %v2616 = vsel %vm797, 0, %v2544
      %v2617 = vsel %vm797, 0, %v2551
      %v2618 = vsel %vm797, 0, %v2558
      %v2619 = vsel %vm797, 0, %v2565
      %v2620 = vsel %vm797, %v2443, 0
      %v2621 = vsel %vm797, %v2450, 0
      %v2622 = vsel %vm797, %v2457, 0
      %v2623 = vsel %vm797, %v2464, 0
      %v2624 = vsel %vm797, %v2471, 0
      %v2625 = vsel %vm797, %v2478, 0
      %v2626 = vsel %vm797, %v2485, 0
      %v2627 = vsel %vm797, %v2492, 0
      %v2628 = vsel %vm797, %v2499, 0
      %v2629 = vsel %vm797, %v2506, 0
      %v2630 = vsel %vm797, %v2513, 0
      %v2631 = vsel %vm797, %v2520, 0
      %v2632 = vsel %vm797, %v2527, 0
      %v2633 = vsel %vm797, %v2534, 0
      %v2634 = vsel %vm797, %v2541, 0
      %v2635 = vsel %vm797, %v2548, 0
      %v2636 = vsel %vm797, %v2555, 0
      %v2637 = vsel %vm797, %v2562, 0
      %v2639 = vshrl.u32 %v2602, 16
      %v2641 = vshll.u32 %v2602, 16
      %v2643 = vrot.slane %v2641, 1
      %v2644 = vor.u32 %v2639, %v2643
      %v2646 = vshll.u32 %v2620, 16
      %v2648 = vrot.slane %v2646, 1
      %v2649 = vsel %vm838, %v2644, %v2648
      %v2651 = vshrl.u32 %v2603, 16
      %v2653 = vshll.u32 %v2603, 16
      %v2655 = vrot.slane %v2653, 1
      %v2656 = vor.u32 %v2651, %v2655
      %v2658 = vshll.u32 %v2621, 16
      %v2660 = vrot.slane %v2658, 1
      %v2661 = vsel %vm838, %v2656, %v2660
      %v2663 = vshrl.u32 %v2604, 16
      %v2665 = vshll.u32 %v2604, 16
      %v2667 = vrot.slane %v2665, 1
      %v2668 = vor.u32 %v2663, %v2667
      %v2670 = vshll.u32 %v2622, 16
      %v2672 = vrot.slane %v2670, 1
      %v2673 = vsel %vm838, %v2668, %v2672
      %v2675 = vshrl.u32 %v2605, 16
      %v2677 = vshll.u32 %v2605, 16
      %v2679 = vrot.slane %v2677, 1
      %v2680 = vor.u32 %v2675, %v2679
      %v2682 = vshll.u32 %v2623, 16
      %v2684 = vrot.slane %v2682, 1
      %v2685 = vsel %vm838, %v2680, %v2684
      %v2687 = vshrl.u32 %v2606, 16
      %v2689 = vshll.u32 %v2606, 16
      %v2691 = vrot.slane %v2689, 1
      %v2692 = vor.u32 %v2687, %v2691
      %v2694 = vshll.u32 %v2624, 16
      %v2696 = vrot.slane %v2694, 1
      %v2697 = vsel %vm838, %v2692, %v2696
      %v2699 = vshrl.u32 %v2607, 16
      %v2701 = vshll.u32 %v2607, 16
      %v2703 = vrot.slane %v2701, 1
      %v2704 = vor.u32 %v2699, %v2703
      %v2706 = vshll.u32 %v2625, 16
      %v2708 = vrot.slane %v2706, 1
      %v2709 = vsel %vm838, %v2704, %v2708
      %v2711 = vshrl.u32 %v2608, 16
      %v2713 = vshll.u32 %v2608, 16
      %v2715 = vrot.slane %v2713, 1
      %v2716 = vor.u32 %v2711, %v2715
      %v2718 = vshll.u32 %v2626, 16
      %v2720 = vrot.slane %v2718, 1
      %v2721 = vsel %vm838, %v2716, %v2720
      %v2723 = vshrl.u32 %v2609, 16
      %v2725 = vshll.u32 %v2609, 16
      %v2727 = vrot.slane %v2725, 1
      %v2728 = vor.u32 %v2723, %v2727
      %v2730 = vshll.u32 %v2627, 16
      %v2732 = vrot.slane %v2730, 1
      %v2733 = vsel %vm838, %v2728, %v2732
      %v2735 = vshrl.u32 %v2610, 16
      %v2737 = vshll.u32 %v2610, 16
      %v2739 = vrot.slane %v2737, 1
      %v2740 = vor.u32 %v2735, %v2739
      %v2742 = vshll.u32 %v2628, 16
      %v2744 = vrot.slane %v2742, 1
      %v2745 = vsel %vm838, %v2740, %v2744
      %v2747 = vshrl.u32 %v2611, 16
      %v2749 = vshll.u32 %v2611, 16
      %v2751 = vrot.slane %v2749, 1
      %v2752 = vor.u32 %v2747, %v2751
      %v2754 = vshll.u32 %v2629, 16
      %v2756 = vrot.slane %v2754, 1
      %v2757 = vsel %vm838, %v2752, %v2756
      %v2759 = vshrl.u32 %v2612, 16
      %v2761 = vshll.u32 %v2612, 16
      %v2763 = vrot.slane %v2761, 1
      %v2764 = vor.u32 %v2759, %v2763
      %v2766 = vshll.u32 %v2630, 16
      %v2768 = vrot.slane %v2766, 1
      %v2769 = vsel %vm838, %v2764, %v2768
      %v2771 = vshrl.u32 %v2613, 16
      %v2773 = vshll.u32 %v2613, 16
      %v2775 = vrot.slane %v2773, 1
      %v2776 = vor.u32 %v2771, %v2775
      %v2778 = vshll.u32 %v2631, 16
      %v2780 = vrot.slane %v2778, 1
      %v2781 = vsel %vm838, %v2776, %v2780
      %v2783 = vshrl.u32 %v2614, 16
      %v2785 = vshll.u32 %v2614, 16
      %v2787 = vrot.slane %v2785, 1
      %v2788 = vor.u32 %v2783, %v2787
      %v2790 = vshll.u32 %v2632, 16
      %v2792 = vrot.slane %v2790, 1
      %v2793 = vsel %vm838, %v2788, %v2792
      %v2795 = vshrl.u32 %v2615, 16
      %v2797 = vshll.u32 %v2615, 16
      %v2799 = vrot.slane %v2797, 1
      %v2800 = vor.u32 %v2795, %v2799
      %v2802 = vshll.u32 %v2633, 16
      %v2804 = vrot.slane %v2802, 1
      %v2805 = vsel %vm838, %v2800, %v2804
      %v2807 = vshrl.u32 %v2616, 16
      %v2809 = vshll.u32 %v2616, 16
      %v2811 = vrot.slane %v2809, 1
      %v2812 = vor.u32 %v2807, %v2811
      %v2814 = vshll.u32 %v2634, 16
      %v2816 = vrot.slane %v2814, 1
      %v2817 = vsel %vm838, %v2812, %v2816
      %v2819 = vshrl.u32 %v2617, 16
      %v2821 = vshll.u32 %v2617, 16
      %v2823 = vrot.slane %v2821, 1
      %v2824 = vor.u32 %v2819, %v2823
      %v2826 = vshll.u32 %v2635, 16
      %v2828 = vrot.slane %v2826, 1
      %v2829 = vsel %vm838, %v2824, %v2828
      %v2831 = vshrl.u32 %v2618, 16
      %v2833 = vshll.u32 %v2618, 16
      %v2835 = vrot.slane %v2833, 1
      %v2836 = vor.u32 %v2831, %v2835
      %v2838 = vshll.u32 %v2636, 16
      %v2840 = vrot.slane %v2838, 1
      %v2841 = vsel %vm838, %v2836, %v2840
      %v2843 = vshrl.u32 %v2619, 16
      %v2845 = vshll.u32 %v2619, 16
      %v2847 = vrot.slane %v2845, 1
      %v2848 = vor.u32 %v2843, %v2847
      %v2850 = vshll.u32 %v2637, 16
      %v2852 = vrot.slane %v2850, 1
      %v2853 = vsel %vm838, %v2848, %v2852
      %2854 = vrot.lane.b32.xlu0 %v2649, 64
      %v2855 = vpop.permute.xlu0 %2854
      %2856 = vrot.lane.b32.xlu0 %v2661, 64
      %v2857 = vpop.permute.xlu0 %2856
      %2858 = vrot.lane.b32.xlu0 %v2673, 64
      %v2859 = vpop.permute.xlu0 %2858
      %2860 = vrot.lane.b32.xlu0 %v2685, 64
      %v2861 = vpop.permute.xlu0 %2860
      %2862 = vrot.lane.b32.xlu0 %v2697, 64
      %v2863 = vpop.permute.xlu0 %2862
      %2864 = vrot.lane.b32.xlu0 %v2709, 64
      %v2865 = vpop.permute.xlu0 %2864
      %2866 = vrot.lane.b32.xlu0 %v2721, 64
      %v2867 = vpop.permute.xlu0 %2866
      %2868 = vrot.lane.b32.xlu0 %v2733, 64
      %v2869 = vpop.permute.xlu0 %2868
      %2870 = vrot.lane.b32.xlu0 %v2745, 64
      %v2871 = vpop.permute.xlu0 %2870
      %2872 = vrot.lane.b32.xlu0 %v2757, 64
      %v2873 = vpop.permute.xlu0 %2872
      %2874 = vrot.lane.b32.xlu0 %v2769, 64
      %v2875 = vpop.permute.xlu0 %2874
      %2876 = vrot.lane.b32.xlu0 %v2781, 64
      %v2877 = vpop.permute.xlu0 %2876
      %2878 = vrot.lane.b32.xlu0 %v2793, 64
      %v2879 = vpop.permute.xlu0 %2878
      %2880 = vrot.lane.b32.xlu0 %v2805, 64
      %v2881 = vpop.permute.xlu0 %2880
      %2882 = vrot.lane.b32.xlu0 %v2817, 64
      %v2883 = vpop.permute.xlu0 %2882
      %2884 = vrot.lane.b32.xlu0 %v2829, 64
      %v2885 = vpop.permute.xlu0 %2884
      %2886 = vrot.lane.b32.xlu0 %v2841, 64
      %v2887 = vpop.permute.xlu0 %2886
      %2888 = vrot.lane.b32.xlu0 %v2853, 64
      %v2889 = vpop.permute.xlu0 %2888
      %v2926 = vrot.slane %v2602, 1
      %v2927 = vrot.slane %v2620, 1
      %v2928 = vsel %vm1159, %v2926, %v2927
      %v2929 = vrot.slane %v2603, 1
      %v2930 = vrot.slane %v2621, 1
      %v2931 = vsel %vm1159, %v2929, %v2930
      %v2932 = vrot.slane %v2604, 1
      %v2933 = vrot.slane %v2622, 1
      %v2934 = vsel %vm1159, %v2932, %v2933
      %v2935 = vrot.slane %v2605, 1
      %v2936 = vrot.slane %v2623, 1
      %v2937 = vsel %vm1159, %v2935, %v2936
      %v2938 = vrot.slane %v2606, 1
      %v2939 = vrot.slane %v2624, 1
      %v2940 = vsel %vm1159, %v2938, %v2939
      %v2941 = vrot.slane %v2607, 1
      %v2942 = vrot.slane %v2625, 1
      %v2943 = vsel %vm1159, %v2941, %v2942
      %v2944 = vrot.slane %v2608, 1
      %v2945 = vrot.slane %v2626, 1
      %v2946 = vsel %vm1159, %v2944, %v2945
      %v2947 = vrot.slane %v2609, 1
      %v2948 = vrot.slane %v2627, 1
      %v2949 = vsel %vm1159, %v2947, %v2948
      %v2950 = vrot.slane %v2610, 1
      %v2951 = vrot.slane %v2628, 1
      %v2952 = vsel %vm1159, %v2950, %v2951
      %v2953 = vrot.slane %v2611, 1
      %v2954 = vrot.slane %v2629, 1
      %v2955 = vsel %vm1159, %v2953, %v2954
      %v2956 = vrot.slane %v2612, 1
      %v2957 = vrot.slane %v2630, 1
      %v2958 = vsel %vm1159, %v2956, %v2957
      %v2959 = vrot.slane %v2613, 1
      %v2960 = vrot.slane %v2631, 1
      %v2961 = vsel %vm1159, %v2959, %v2960
      %v2962 = vrot.slane %v2614, 1
      %v2963 = vrot.slane %v2632, 1
      %v2964 = vsel %vm1159, %v2962, %v2963
      %v2965 = vrot.slane %v2615, 1
      %v2966 = vrot.slane %v2633, 1
      %v2967 = vsel %vm1159, %v2965, %v2966
      %v2968 = vrot.slane %v2616, 1
      %v2969 = vrot.slane %v2634, 1
      %v2970 = vsel %vm1159, %v2968, %v2969
      %v2971 = vrot.slane %v2617, 1
      %v2972 = vrot.slane %v2635, 1
      %v2973 = vsel %vm1159, %v2971, %v2972
      %v2974 = vrot.slane %v2618, 1
      %v2975 = vrot.slane %v2636, 1
      %v2976 = vsel %vm1159, %v2974, %v2975
      %v2977 = vrot.slane %v2619, 1
      %v2978 = vrot.slane %v2637, 1
      %v2979 = vsel %vm1159, %v2977, %v2978
      %v2981 = vsel %vm1220, %v2602, %v2855
      %v2984 = vsel %vm1220, %v2603, %v2857
      %v2987 = vsel %vm1220, %v2604, %v2859
      %v2990 = vsel %vm1220, %v2605, %v2861
      %v2993 = vsel %vm1220, %v2606, %v2863
      %v2996 = vsel %vm1220, %v2607, %v2865
      %v2999 = vsel %vm1220, %v2608, %v2867
      %v3002 = vsel %vm1220, %v2609, %v2869
      %v3005 = vsel %vm1220, %v2610, %v2871
      %v3008 = vsel %vm1220, %v2611, %v2873
      %v3011 = vsel %vm1220, %v2612, %v2875
      %v3014 = vsel %vm1220, %v2613, %v2877
      %v3017 = vsel %vm1220, %v2614, %v2879
      %v3020 = vsel %vm1220, %v2615, %v2881
      %v3023 = vsel %vm1220, %v2616, %v2883
      %v3026 = vsel %vm1220, %v2617, %v2885
      %v3029 = vsel %vm1220, %v2618, %v2887
      %v3032 = vsel %vm1220, %v2619, %v2889
      %v3034 = vld [vmem:[%s5] sm:$0xf]
      %v3035 = vld [vmem:[%s5 + $0x4] sm:$0xf]
      %v3036 = vld [vmem:[%s5 + $0x8] sm:$0xf]
      %v3037 = vld [vmem:[%s5 + $0xc] sm:$0xf]
      %v3038 = vld [vmem:[%s5 + $0x10] sm:$0xf]
      %v3039 = vld [vmem:[%s5 + $0x14] sm:$0xf]
      %v3040 = vld [vmem:[%s5 + $0x18] sm:$0xf]
      %v3041 = vld [vmem:[%s5 + $0x1c] sm:$0xf]
      %v3042 = vld [vmem:[%s5 + $0x20] sm:$0xf]
      %v3043 = vld [vmem:[%s5 + $0x24] sm:$0xf]
      %v3044 = vld [vmem:[%s5 + $0x28] sm:$0xf]
      %v3045 = vld [vmem:[%s5 + $0x2c] sm:$0xf]
      %v3046 = vld [vmem:[%s5 + $0x30] sm:$0xf]
      %v3047 = vld [vmem:[%s5 + $0x34] sm:$0xf]
      %v3048 = vld [vmem:[%s5 + $0x38] sm:$0xf]
      %v3049 = vld [vmem:[%s5 + $0x3c] sm:$0xf]
      %v3050 = vld [vmem:[%s5 + $0x40] sm:$0xf]
      %v3051 = vld [vmem:[%s5 + $0x44] sm:$0xf]
      %v3052 = vld [vmem:[%s5 + $0x48] sm:$0xf]
      %v3053 = vld [vmem:[%s5 + $0x4c] sm:$0xf]
      %v3054 = vld [vmem:[%s5 + $0x50] sm:$0xf]
      %v3055 = vld [vmem:[%s5 + $0x54] sm:$0xf]
      %v3056 = vld [vmem:[%s5 + $0x58] sm:$0xf]
      %v3057 = vld [vmem:[%s5 + $0x5c] sm:$0xf]
      %s3058 = scalar_lea.vmem %s5, 96
      %v3059 = vld [vmem:[%s3058] sm:$0xf]
      %v3060 = vld [vmem:[%s3058 + $0x4] sm:$0xf]
      %v3061 = vld [vmem:[%s3058 + $0x8] sm:$0xf]
      %v3062 = vld [vmem:[%s3058 + $0xc] sm:$0xf]
      %v3063 = vld [vmem:[%s3058 + $0x10] sm:$0xf]
      %v3064 = vld [vmem:[%s3058 + $0x14] sm:$0xf]
      %v3065 = vld [vmem:[%s3058 + $0x18] sm:$0xf]
      %v3066 = vld [vmem:[%s3058 + $0x1c] sm:$0xf]
      %v3067 = vld [vmem:[%s3058 + $0x20] sm:$0xf]
      %v3068 = vld [vmem:[%s3058 + $0x24] sm:$0xf]
      %v3069 = vld [vmem:[%s3058 + $0x28] sm:$0xf]
      %v3070 = vld [vmem:[%s3058 + $0x2c] sm:$0xf]
      %v3071 = vld [vmem:[%s3058 + $0x30] sm:$0xf]
      %v3072 = vld [vmem:[%s3058 + $0x34] sm:$0xf]
      %v3073 = vld [vmem:[%s3058 + $0x38] sm:$0xf]
      %v3074 = vld [vmem:[%s3058 + $0x3c] sm:$0xf]
      %v3075 = vld [vmem:[%s3058 + $0x40] sm:$0xf]
      %v3076 = vld [vmem:[%s3058 + $0x44] sm:$0xf]
      %v3077 = vld [vmem:[%s3058 + $0x48] sm:$0xf]
      %v3078 = vld [vmem:[%s3058 + $0x4c] sm:$0xf]
      %v3079 = vld [vmem:[%s3058 + $0x50] sm:$0xf]
      %v3080 = vld [vmem:[%s3058 + $0x54] sm:$0xf]
      %v3081 = vld [vmem:[%s3058 + $0x58] sm:$0xf]
      %v3082 = vld [vmem:[%s3058 + $0x5c] sm:$0xf]
      %v3107 = vunpack.c.l.b16 %v3059
      %v3108 = vunpack.c.l.b16 %v3060
      %v3109 = vunpack.c.l.b16 %v3061
      %v3110 = vunpack.c.l.b16 %v3062
      %v3111 = vunpack.c.l.b16 %v3063
      %v3112 = vunpack.c.l.b16 %v3064
      %v3113 = vunpack.c.l.b16 %v3065
      %v3114 = vunpack.c.l.b16 %v3066
      %v3115 = vunpack.c.l.b16 %v3067
      %v3116 = vunpack.c.l.b16 %v3068
      %v3117 = vunpack.c.l.b16 %v3069
      %v3118 = vunpack.c.l.b16 %v3070
      %v3119 = vunpack.c.l.b16 %v3071
      %v3120 = vunpack.c.l.b16 %v3072
      %v3121 = vunpack.c.l.b16 %v3073
      %v3122 = vunpack.c.l.b16 %v3074
      %v3123 = vunpack.c.l.b16 %v3075
      %v3124 = vunpack.c.l.b16 %v3076
      %v3125 = vunpack.c.l.b16 %v3077
      %v3126 = vunpack.c.l.b16 %v3078
      %v3127 = vunpack.c.l.b16 %v3079
      %v3128 = vunpack.c.l.b16 %v3080
      %v3129 = vunpack.c.l.b16 %v3081
      %v3130 = vunpack.c.l.b16 %v3082
      %v3131 = vpack.c.b16 %v3108, %v3107
      %v3132 = vpack.c.b16 %v3110, %v3109
      %v3133 = vpack.c.b16 %v3112, %v3111
      %v3134 = vpack.c.b16 %v3114, %v3113
      %v3135 = vpack.c.b16 %v3116, %v3115
      %v3136 = vpack.c.b16 %v3118, %v3117
      %v3137 = vpack.c.b16 %v3120, %v3119
      %v3138 = vpack.c.b16 %v3122, %v3121
      %v3139 = vpack.c.b16 %v3124, %v3123
      %v3140 = vpack.c.b16 %v3126, %v3125
      %v3141 = vpack.c.b16 %v3128, %v3127
      %v3142 = vpack.c.b16 %v3130, %v3129
      %v3156 = vsel %vm1220, %v2931, 0
      %v3159 = vsel %vm1220, %v2934, 0
      %v3162 = vsel %vm1220, %v2937, 0
      %v3165 = vsel %vm1220, %v2940, 0
      %v3168 = vsel %vm1220, %v2943, 0
      %v3171 = vsel %vm1220, %v2946, 0
      %v3174 = vsel %vm1220, %v2949, 0
      %v3177 = vsel %vm1220, %v2952, 0
      %v3180 = vsel %vm1220, %v2955, 0
      %v3183 = vsel %vm1220, %v2958, 0
      %v3186 = vsel %vm1220, %v2961, 0
      %v3189 = vsel %vm1220, %v2964, 0
      %v3192 = vsel %vm1220, %v2967, 0
      %v3195 = vsel %vm1220, %v2970, 0
      %v3198 = vsel %vm1220, %v2973, 0
      %v3201 = vsel %vm1220, %v2976, 0
      %3203 = vmatprep.subr.bf16.mxu0 0
      %3204 = vmatpush1.bf16.msra.mxu0 %v3131
      %3205 = vmatprep.subr.bf16.mxu0 0
      %3206 = vmatpush1.bf16.msra.mxu0 %v3132
      %3207 = vmatprep.subr.bf16.mxu0 0
      %3208 = vmatpush1.bf16.msra.mxu0 %v3133
      %3209 = vmatprep.subr.bf16.mxu0 0
      %3210 = vmatpush1.bf16.msra.mxu0 %v3134
      %3211 = vmatprep.subr.bf16.mxu0 0
      %3212 = vmatpush1.bf16.msra.mxu0 %v3135
      %3213 = vmatprep.subr.bf16.mxu0 0
      %3214 = vmatpush1.bf16.msra.mxu0 %v3136
      %3215 = vmatprep.subr.bf16.mxu0 0
      %3216 = vmatpush1.bf16.msra.mxu0 %v3137
      %3217 = vmatprep.subr.bf16.mxu0 0
      %3218 = vmatpush1.bf16.msra.mxu0 %v3138
      %3219 = vmatprep.subr.bf16.mxu0 0
      %3220 = vmatpush1.bf16.msra.mxu0 %v3139
      %3221 = vmatprep.subr.bf16.mxu0 0
      %3222 = vmatpush1.bf16.msra.mxu0 %v3140
      %3223 = vmatprep.subr.bf16.mxu0 0
      %3224 = vmatpush1.bf16.msra.mxu0 %v3141
      %3225 = vmatprep.subr.bf16.mxu0 0
      %3226 = vmatpush1.bf16.msra.mxu0 %v3142
      %3227 = vmatprep.subr.bf16.mxu0 0
      %3228 = vmatpush1.bf16.msra.mxu0 0
      %3229 = vmatprep.subr.bf16.mxu0 0
      %3230 = vmatpush1.bf16.msra.mxu0 0
      %3231 = vmatprep.subr.bf16.mxu0 0
      %3232 = vmatpush1.bf16.msra.mxu0 0
      %3233 = vmatprep.subr.bf16.mxu0 0
      %3234 = vmatpush1.bf16.msra.mxu0 0
      %3235 = vmatprep.mubr.bf16.mxu0 %v3156
      %3236 = vmatmul.mubr.bf16.gmra.mrb[0].mxu0 %v2984
      %v3237 = vpop.f32.mrb[0].mxu0
      %v3238 = vadd.f32 0.0, %v3237
      %v3239 = vpop.f32.mrb[0].mxu0
      %v3240 = vpop.f32.mrb[0].mxu0
      %v3241 = vadd.f32 0.0, %v3240
      %v3242 = vpop.f32.mrb[0].mxu0
      %3243 = vmatprep.mubr.bf16.mxu0 %v3159
      %3244 = vmatmul.mubr.bf16.gmra.mrb[0].mxu0 %v2987
      %v3245 = vpop.f32.mrb[0].mxu0
      %v3246 = vadd.f32 0.0, %v3245
      %v3247 = vpop.f32.mrb[0].mxu0
      %v3248 = vpop.f32.mrb[0].mxu0
      %v3249 = vadd.f32 0.0, %v3248
      %v3250 = vpop.f32.mrb[0].mxu0
      %3251 = vmatprep.mubr.bf16.mxu0 %v3162
      %3252 = vmatmul.mubr.bf16.gmra.mrb[0].mxu0 %v2990
      %v3253 = vpop.f32.mrb[0].mxu0
      %v3254 = vadd.f32 0.0, %v3253
      %v3255 = vpop.f32.mrb[0].mxu0
      %v3256 = vpop.f32.mrb[0].mxu0
      %v3257 = vadd.f32 0.0, %v3256
      %v3258 = vpop.f32.mrb[0].mxu0
      %3259 = vmatprep.mubr.bf16.mxu0 %v3165
      %3260 = vmatmul.mubr.bf16.gmra.mrb[0].mxu0 %v2993
      %v3261 = vpop.f32.mrb[0].mxu0
      %v3262 = vadd.f32 0.0, %v3261
      %v3263 = vpop.f32.mrb[0].mxu0
      %v3264 = vpop.f32.mrb[0].mxu0
      %v3265 = vadd.f32 0.0, %v3264
      %v3266 = vpop.f32.mrb[0].mxu0
      %3267 = vmatprep.mubr.bf16.mxu0 %v3168
      %3268 = vmatmul.mubr.bf16.gmra.mrb[0].mxu0 %v2996
      %v3269 = vpop.f32.mrb[0].mxu0
      %v3270 = vadd.f32 0.0, %v3269
      %v3271 = vpop.f32.mrb[0].mxu0
      %v3272 = vpop.f32.mrb[0].mxu0
      %v3273 = vadd.f32 0.0, %v3272
      %v3274 = vpop.f32.mrb[0].mxu0
      %3275 = vmatprep.mubr.bf16.mxu0 %v3171
      %3276 = vmatmul.mubr.bf16.gmra.mrb[0].mxu0 %v2999
      %v3277 = vpop.f32.mrb[0].mxu0
      %v3278 = vadd.f32 0.0, %v3277
      %v3279 = vpop.f32.mrb[0].mxu0
      %v3280 = vpop.f32.mrb[0].mxu0
      %v3281 = vadd.f32 0.0, %v3280
      %v3282 = vpop.f32.mrb[0].mxu0
      %3283 = vmatprep.mubr.bf16.mxu0 %v3174
      %3284 = vmatmul.mubr.bf16.gmra.mrb[0].mxu0 %v3002
      %v3285 = vpop.f32.mrb[0].mxu0
      %v3286 = vadd.f32 0.0, %v3285
      %v3287 = vpop.f32.mrb[0].mxu0
      %v3288 = vpop.f32.mrb[0].mxu0
      %v3289 = vadd.f32 0.0, %v3288
      %v3290 = vpop.f32.mrb[0].mxu0
      %3291 = vmatprep.mubr.bf16.mxu0 %v3177
      %3292 = vmatmul.mubr.bf16.gmra.mrb[0].mxu0 %v3005
      %v3293 = vpop.f32.mrb[0].mxu0
      %v3294 = vadd.f32 0.0, %v3293
      %v3295 = vpop.f32.mrb[0].mxu0
      %v3296 = vpop.f32.mrb[0].mxu0
      %v3297 = vadd.f32 0.0, %v3296
      %v3298 = vpop.f32.mrb[0].mxu0
      %3299 = vmatprep.mubr.bf16.mxu0 %v3180
      %3300 = vmatmul.mubr.bf16.gmra.mrb[0].mxu0 %v3008
      %v3301 = vpop.f32.mrb[0].mxu0
      %v3302 = vadd.f32 0.0, %v3301
      %v3303 = vpop.f32.mrb[0].mxu0
      %v3304 = vpop.f32.mrb[0].mxu0
      %v3305 = vadd.f32 0.0, %v3304
      %v3306 = vpop.f32.mrb[0].mxu0
      %3307 = vmatprep.mubr.bf16.mxu0 %v3183
      %3308 = vmatmul.mubr.bf16.gmra.mrb[0].mxu0 %v3011
      %v3309 = vpop.f32.mrb[0].mxu0
      %v3310 = vadd.f32 0.0, %v3309
      %v3311 = vpop.f32.mrb[0].mxu0
      %v3312 = vpop.f32.mrb[0].mxu0
      %v3313 = vadd.f32 0.0, %v3312
      %v3314 = vpop.f32.mrb[0].mxu0
      %3315 = vmatprep.mubr.bf16.mxu0 %v3186
      %3316 = vmatmul.mubr.bf16.gmra.mrb[0].mxu0 %v3014
      %v3317 = vpop.f32.mrb[0].mxu0
      %v3318 = vadd.f32 0.0, %v3317
      %v3319 = vpop.f32.mrb[0].mxu0
      %v3320 = vpop.f32.mrb[0].mxu0
      %v3321 = vadd.f32 0.0, %v3320
      %v3322 = vpop.f32.mrb[0].mxu0
      %3323 = vmatprep.mubr.bf16.mxu0 %v3189
      %3324 = vmatmul.mubr.bf16.gmra.mrb[0].mxu0 %v3017
      %v3325 = vpop.f32.mrb[0].mxu0
      %v3326 = vadd.f32 0.0, %v3325
      %v3327 = vpop.f32.mrb[0].mxu0
      %v3328 = vpop.f32.mrb[0].mxu0
      %v3329 = vadd.f32 0.0, %v3328
      %v3330 = vpop.f32.mrb[0].mxu0
      %3331 = vmatprep.mubr.bf16.mxu0 %v3192
      %3332 = vmatmul.mubr.bf16.gmra.mrb[0].mxu0 %v3020
      %v3333 = vpop.f32.mrb[0].mxu0
      %v3334 = vadd.f32 0.0, %v3333
      %v3335 = vpop.f32.mrb[0].mxu0
      %v3336 = vpop.f32.mrb[0].mxu0
      %v3337 = vadd.f32 0.0, %v3336
      %v3338 = vpop.f32.mrb[0].mxu0
      %3339 = vmatprep.mubr.bf16.mxu0 %v3195
      %3340 = vmatmul.mubr.bf16.gmra.mrb[0].mxu0 %v3023
      %v3341 = vpop.f32.mrb[0].mxu0
      %v3342 = vadd.f32 0.0, %v3341
      %v3343 = vpop.f32.mrb[0].mxu0
      %v3344 = vpop.f32.mrb[0].mxu0
      %v3345 = vadd.f32 0.0, %v3344
      %v3346 = vpop.f32.mrb[0].mxu0
      %3347 = vmatprep.mubr.bf16.mxu0 %v3198
      %3348 = vmatmul.mubr.bf16.gmra.mrb[0].mxu0 %v3026
      %v3349 = vpop.f32.mrb[0].mxu0
      %v3350 = vadd.f32 0.0, %v3349
      %v3351 = vpop.f32.mrb[0].mxu0
      %v3352 = vpop.f32.mrb[0].mxu0
      %v3353 = vadd.f32 0.0, %v3352
      %v3354 = vpop.f32.mrb[0].mxu0
      %3355 = vmatprep.mubr.bf16.mxu0 %v3201
      %3356 = vmatmul.mubr.bf16.gmra.mrb[0].mxu0 %v3029
      %v3357 = vpop.f32.mrb[0].mxu0
      %v3358 = vadd.f32 0.0, %v3357
      %v3359 = vpop.f32.mrb[0].mxu0
      %v3360 = vpop.f32.mrb[0].mxu0
      %v3361 = vadd.f32 0.0, %v3360
      %v3362 = vpop.f32.mrb[0].mxu0
      %3363 = vdwg.mxu0
      %v3388 = vunpack.c.l.b16 %v3034
      %v3389 = vunpack.c.l.b16 %v3035
      %v3390 = vunpack.c.l.b16 %v3036
      %v3391 = vunpack.c.l.b16 %v3037
      %v3392 = vunpack.c.l.b16 %v3038
      %v3393 = vunpack.c.l.b16 %v3039
      %v3394 = vunpack.c.l.b16 %v3040
      %v3395 = vunpack.c.l.b16 %v3041
      %v3396 = vunpack.c.l.b16 %v3042
      %v3397 = vunpack.c.l.b16 %v3043
      %v3398 = vunpack.c.l.b16 %v3044
      %v3399 = vunpack.c.l.b16 %v3045
      %v3400 = vunpack.c.l.b16 %v3046
      %v3401 = vunpack.c.l.b16 %v3047
      %v3402 = vunpack.c.l.b16 %v3048
      %v3403 = vunpack.c.l.b16 %v3049
      %v3404 = vunpack.c.l.b16 %v3050
      %v3405 = vunpack.c.l.b16 %v3051
      %v3406 = vunpack.c.l.b16 %v3052
      %v3407 = vunpack.c.l.b16 %v3053
      %v3408 = vunpack.c.l.b16 %v3054
      %v3409 = vunpack.c.l.b16 %v3055
      %v3410 = vunpack.c.l.b16 %v3056
      %v3411 = vunpack.c.l.b16 %v3057
      %v3412 = vpack.c.b16 %v3389, %v3388
      %v3413 = vpack.c.b16 %v3391, %v3390
      %v3414 = vpack.c.b16 %v3393, %v3392
      %v3415 = vpack.c.b16 %v3395, %v3394
      %v3416 = vpack.c.b16 %v3397, %v3396
      %v3417 = vpack.c.b16 %v3399, %v3398
      %v3418 = vpack.c.b16 %v3401, %v3400
      %v3419 = vpack.c.b16 %v3403, %v3402
      %v3420 = vpack.c.b16 %v3405, %v3404
      %v3421 = vpack.c.b16 %v3407, %v3406
      %v3422 = vpack.c.b16 %v3409, %v3408
      %v3423 = vpack.c.b16 %v3411, %v3410
      %v3437 = vsel %vm1220, %v2928, 0
      %3439 = vmatprep.subr.bf16.mxu0 0
      %3440 = vmatpush1.bf16.msra.mxu0 %v3412
      %3441 = vmatprep.subr.bf16.mxu0 0
      %3442 = vmatpush1.bf16.msra.mxu0 %v3413
      %3443 = vmatprep.subr.bf16.mxu0 0
      %3444 = vmatpush1.bf16.msra.mxu0 %v3414
      %3445 = vmatprep.subr.bf16.mxu0 0
      %3446 = vmatpush1.bf16.msra.mxu0 %v3415
      %3447 = vmatprep.subr.bf16.mxu0 0
      %3448 = vmatpush1.bf16.msra.mxu0 %v3416
      %3449 = vmatprep.subr.bf16.mxu0 0
      %3450 = vmatpush1.bf16.msra.mxu0 %v3417
      %3451 = vmatprep.subr.bf16.mxu0 0
      %3452 = vmatpush1.bf16.msra.mxu0 %v3418
      %3453 = vmatprep.subr.bf16.mxu0 0
      %3454 = vmatpush1.bf16.msra.mxu0 %v3419
      %3455 = vmatprep.subr.bf16.mxu0 0
      %3456 = vmatpush1.bf16.msra.mxu0 %v3420
      %3457 = vmatprep.subr.bf16.mxu0 0
      %3458 = vmatpush1.bf16.msra.mxu0 %v3421
      %3459 = vmatprep.subr.bf16.mxu0 0
      %3460 = vmatpush1.bf16.msra.mxu0 %v3422
      %3461 = vmatprep.subr.bf16.mxu0 0
      %3462 = vmatpush1.bf16.msra.mxu0 %v3423
      %3463 = vmatprep.subr.bf16.mxu0 0
      %3464 = vmatpush1.bf16.msra.mxu0 0
      %3465 = vmatprep.subr.bf16.mxu0 0
      %3466 = vmatpush1.bf16.msra.mxu0 0
      %3467 = vmatprep.subr.bf16.mxu0 0
      %3468 = vmatpush1.bf16.msra.mxu0 0
      %3469 = vmatprep.subr.bf16.mxu0 0
      %3470 = vmatpush1.bf16.msra.mxu0 0
      %3471 = vmatprep.mubr.bf16.mxu0 %v3437
      %3472 = vmatmul.mubr.bf16.gmra.mrb[0].mxu0 %v2981
      %v3473 = vpop.f32.mrb[0].mxu0
      %v3474 = vadd.f32 %v3238, %v3473
      %v3475 = vpop.f32.mrb[0].mxu0
      %v3476 = vpop.f32.mrb[0].mxu0
      %v3477 = vadd.f32 %v3241, %v3476
      %v3478 = vpop.f32.mrb[0].mxu0
      %3479 = vmatprep.mubr.bf16.mxu0 %v3156
      %3480 = vmatmul.mubr.bf16.gmra.mrb[0].mxu0 %v2984
      %v3481 = vpop.f32.mrb[0].mxu0
      %v3482 = vadd.f32 %v3246, %v3481
      %v3483 = vpop.f32.mrb[0].mxu0
      %v3484 = vpop.f32.mrb[0].mxu0
      %v3485 = vadd.f32 %v3249, %v3484
      %v3486 = vpop.f32.mrb[0].mxu0
      %3487 = vmatprep.mubr.bf16.mxu0 %v3159
      %3488 = vmatmul.mubr.bf16.gmra.mrb[0].mxu0 %v2987
      %v3489 = vpop.f32.mrb[0].mxu0
      %v3490 = vadd.f32 %v3254, %v3489
      %v3491 = vpop.f32.mrb[0].mxu0
      %v3492 = vpop.f32.mrb[0].mxu0
      %v3493 = vadd.f32 %v3257, %v3492
      %v3494 = vpop.f32.mrb[0].mxu0
      %3495 = vmatprep.mubr.bf16.mxu0 %v3162
      %3496 = vmatmul.mubr.bf16.gmra.mrb[0].mxu0 %v2990
      %v3497 = vpop.f32.mrb[0].mxu0
      %v3498 = vadd.f32 %v3262, %v3497
      %v3499 = vpop.f32.mrb[0].mxu0
      %v3500 = vpop.f32.mrb[0].mxu0
      %v3501 = vadd.f32 %v3265, %v3500
      %v3502 = vpop.f32.mrb[0].mxu0
      %3503 = vmatprep.mubr.bf16.mxu0 %v3165
      %3504 = vmatmul.mubr.bf16.gmra.mrb[0].mxu0 %v2993
      %v3505 = vpop.f32.mrb[0].mxu0
      %v3506 = vadd.f32 %v3270, %v3505
      %v3507 = vpop.f32.mrb[0].mxu0
      %v3508 = vpop.f32.mrb[0].mxu0
      %v3509 = vadd.f32 %v3273, %v3508
      %v3510 = vpop.f32.mrb[0].mxu0
      %3511 = vmatprep.mubr.bf16.mxu0 %v3168
      %3512 = vmatmul.mubr.bf16.gmra.mrb[0].mxu0 %v2996
      %v3513 = vpop.f32.mrb[0].mxu0
      %v3514 = vadd.f32 %v3278, %v3513
      %v3515 = vpop.f32.mrb[0].mxu0
      %v3516 = vpop.f32.mrb[0].mxu0
      %v3517 = vadd.f32 %v3281, %v3516
      %v3518 = vpop.f32.mrb[0].mxu0
      %3519 = vmatprep.mubr.bf16.mxu0 %v3171
      %3520 = vmatmul.mubr.bf16.gmra.mrb[0].mxu0 %v2999
      %v3521 = vpop.f32.mrb[0].mxu0
      %v3522 = vadd.f32 %v3286, %v3521
      %v3523 = vpop.f32.mrb[0].mxu0
      %v3524 = vpop.f32.mrb[0].mxu0
      %v3525 = vadd.f32 %v3289, %v3524
      %v3526 = vpop.f32.mrb[0].mxu0
      %3527 = vmatprep.mubr.bf16.mxu0 %v3174
      %3528 = vmatmul.mubr.bf16.gmra.mrb[0].mxu0 %v3002
      %v3529 = vpop.f32.mrb[0].mxu0
      %v3530 = vadd.f32 %v3294, %v3529
      %v3531 = vpop.f32.mrb[0].mxu0
      %v3532 = vpop.f32.mrb[0].mxu0
      %v3533 = vadd.f32 %v3297, %v3532
      %v3534 = vpop.f32.mrb[0].mxu0
      %3535 = vmatprep.mubr.bf16.mxu0 %v3177
      %3536 = vmatmul.mubr.bf16.gmra.mrb[0].mxu0 %v3005
      %v3537 = vpop.f32.mrb[0].mxu0
      %v3538 = vadd.f32 %v3302, %v3537
      %v3539 = vpop.f32.mrb[0].mxu0
      %v3540 = vpop.f32.mrb[0].mxu0
      %v3541 = vadd.f32 %v3305, %v3540
      %v3542 = vpop.f32.mrb[0].mxu0
      %3543 = vmatprep.mubr.bf16.mxu0 %v3180
      %3544 = vmatmul.mubr.bf16.gmra.mrb[0].mxu0 %v3008
      %v3545 = vpop.f32.mrb[0].mxu0
      %v3546 = vadd.f32 %v3310, %v3545
      %v3547 = vpop.f32.mrb[0].mxu0
      %v3548 = vpop.f32.mrb[0].mxu0
      %v3549 = vadd.f32 %v3313, %v3548
      %v3550 = vpop.f32.mrb[0].mxu0
      %3551 = vmatprep.mubr.bf16.mxu0 %v3183
      %3552 = vmatmul.mubr.bf16.gmra.mrb[0].mxu0 %v3011
      %v3553 = vpop.f32.mrb[0].mxu0
      %v3554 = vadd.f32 %v3318, %v3553
      %v3555 = vpop.f32.mrb[0].mxu0
      %v3556 = vpop.f32.mrb[0].mxu0
      %v3557 = vadd.f32 %v3321, %v3556
      %v3558 = vpop.f32.mrb[0].mxu0
      %3559 = vmatprep.mubr.bf16.mxu0 %v3186
      %3560 = vmatmul.mubr.bf16.gmra.mrb[0].mxu0 %v3014
      %v3561 = vpop.f32.mrb[0].mxu0
      %v3562 = vadd.f32 %v3326, %v3561
      %v3563 = vpop.f32.mrb[0].mxu0
      %v3564 = vpop.f32.mrb[0].mxu0
      %v3565 = vadd.f32 %v3329, %v3564
      %v3566 = vpop.f32.mrb[0].mxu0
      %3567 = vmatprep.mubr.bf16.mxu0 %v3189
      %3568 = vmatmul.mubr.bf16.gmra.mrb[0].mxu0 %v3017
      %v3569 = vpop.f32.mrb[0].mxu0
      %v3570 = vadd.f32 %v3334, %v3569
      %v3571 = vpop.f32.mrb[0].mxu0
      %v3572 = vpop.f32.mrb[0].mxu0
      %v3573 = vadd.f32 %v3337, %v3572
      %v3574 = vpop.f32.mrb[0].mxu0
      %3575 = vmatprep.mubr.bf16.mxu0 %v3192
      %3576 = vmatmul.mubr.bf16.gmra.mrb[0].mxu0 %v3020
      %v3577 = vpop.f32.mrb[0].mxu0
      %v3578 = vadd.f32 %v3342, %v3577
      %v3579 = vpop.f32.mrb[0].mxu0
      %v3580 = vpop.f32.mrb[0].mxu0
      %v3581 = vadd.f32 %v3345, %v3580
      %v3582 = vpop.f32.mrb[0].mxu0
      %3583 = vmatprep.mubr.bf16.mxu0 %v3195
      %3584 = vmatmul.mubr.bf16.gmra.mrb[0].mxu0 %v3023
      %v3585 = vpop.f32.mrb[0].mxu0
      %v3586 = vadd.f32 %v3350, %v3585
      %v3587 = vpop.f32.mrb[0].mxu0
      %v3588 = vpop.f32.mrb[0].mxu0
      %v3589 = vadd.f32 %v3353, %v3588
      %v3590 = vpop.f32.mrb[0].mxu0
      %3591 = vmatprep.mubr.bf16.mxu0 %v3198
      %3592 = vmatmul.mubr.bf16.gmra.mrb[0].mxu0 %v3026
      %v3593 = vpop.f32.mrb[0].mxu0
      %v3594 = vadd.f32 %v3358, %v3593
      %v3595 = vpop.f32.mrb[0].mxu0
      %v3596 = vpop.f32.mrb[0].mxu0
      %v3597 = vadd.f32 %v3361, %v3596
      %v3598 = vpop.f32.mrb[0].mxu0
      %3599 = vdwg.mxu0
      %s3600 = scalar_lea.vmem %s5, 192
      %v3601 = vld [vmem:[%s3600] sm:$0xf]
      %v3602 = vld [vmem:[%s3600 + $0x4] sm:$0xf]
      %v3603 = vld [vmem:[%s3600 + $0x8] sm:$0xf]
      %v3604 = vld [vmem:[%s3600 + $0xc] sm:$0xf]
      %v3605 = vld [vmem:[%s3600 + $0x10] sm:$0xf]
      %v3606 = vld [vmem:[%s3600 + $0x14] sm:$0xf]
      %v3607 = vld [vmem:[%s3600 + $0x18] sm:$0xf]
      %v3608 = vld [vmem:[%s3600 + $0x1c] sm:$0xf]
      %v3609 = vld [vmem:[%s3600 + $0x20] sm:$0xf]
      %v3610 = vld [vmem:[%s3600 + $0x24] sm:$0xf]
      %v3611 = vld [vmem:[%s3600 + $0x28] sm:$0xf]
      %v3612 = vld [vmem:[%s3600 + $0x2c] sm:$0xf]
      %v3613 = vld [vmem:[%s3600 + $0x30] sm:$0xf]
      %v3614 = vld [vmem:[%s3600 + $0x34] sm:$0xf]
      %v3615 = vld [vmem:[%s3600 + $0x38] sm:$0xf]
      %v3616 = vld [vmem:[%s3600 + $0x3c] sm:$0xf]
      %v3617 = vld [vmem:[%s3600 + $0x40] sm:$0xf]
      %v3618 = vld [vmem:[%s3600 + $0x44] sm:$0xf]
      %v3619 = vld [vmem:[%s3600 + $0x48] sm:$0xf]
      %v3620 = vld [vmem:[%s3600 + $0x4c] sm:$0xf]
      %v3621 = vld [vmem:[%s3600 + $0x50] sm:$0xf]
      %v3622 = vld [vmem:[%s3600 + $0x54] sm:$0xf]
      %v3623 = vld [vmem:[%s3600 + $0x58] sm:$0xf]
      %v3624 = vld [vmem:[%s3600 + $0x5c] sm:$0xf]
      %v3649 = vunpack.c.l.b16 %v3601
      %v3650 = vunpack.c.l.b16 %v3602
      %v3651 = vunpack.c.l.b16 %v3603
      %v3652 = vunpack.c.l.b16 %v3604
      %v3653 = vunpack.c.l.b16 %v3605
      %v3654 = vunpack.c.l.b16 %v3606
      %v3655 = vunpack.c.l.b16 %v3607
      %v3656 = vunpack.c.l.b16 %v3608
      %v3657 = vunpack.c.l.b16 %v3609
      %v3658 = vunpack.c.l.b16 %v3610
      %v3659 = vunpack.c.l.b16 %v3611
      %v3660 = vunpack.c.l.b16 %v3612
      %v3661 = vunpack.c.l.b16 %v3613
      %v3662 = vunpack.c.l.b16 %v3614
      %v3663 = vunpack.c.l.b16 %v3615
      %v3664 = vunpack.c.l.b16 %v3616
      %v3665 = vunpack.c.l.b16 %v3617
      %v3666 = vunpack.c.l.b16 %v3618
      %v3667 = vunpack.c.l.b16 %v3619
      %v3668 = vunpack.c.l.b16 %v3620
      %v3669 = vunpack.c.l.b16 %v3621
      %v3670 = vunpack.c.l.b16 %v3622
      %v3671 = vunpack.c.l.b16 %v3623
      %v3672 = vunpack.c.l.b16 %v3624
      %v3673 = vpack.c.b16 %v3650, %v3649
      %v3674 = vpack.c.b16 %v3652, %v3651
      %v3675 = vpack.c.b16 %v3654, %v3653
      %v3676 = vpack.c.b16 %v3656, %v3655
      %v3677 = vpack.c.b16 %v3658, %v3657
      %v3678 = vpack.c.b16 %v3660, %v3659
      %v3679 = vpack.c.b16 %v3662, %v3661
      %v3680 = vpack.c.b16 %v3664, %v3663
      %v3681 = vpack.c.b16 %v3666, %v3665
      %v3682 = vpack.c.b16 %v3668, %v3667
      %v3683 = vpack.c.b16 %v3670, %v3669
      %v3684 = vpack.c.b16 %v3672, %v3671
      %v3698 = vsel %vm1220, %v2979, 0
      %3700 = vmatprep.subr.bf16.mxu0 0
      %3701 = vmatpush1.bf16.msra.mxu0 %v3673
      %3702 = vmatprep.subr.bf16.mxu0 0
      %3703 = vmatpush1.bf16.msra.mxu0 %v3674
      %3704 = vmatprep.subr.bf16.mxu0 0
      %3705 = vmatpush1.bf16.msra.mxu0 %v3675
      %3706 = vmatprep.subr.bf16.mxu0 0
      %3707 = vmatpush1.bf16.msra.mxu0 %v3676
      %3708 = vmatprep.subr.bf16.mxu0 0
      %3709 = vmatpush1.bf16.msra.mxu0 %v3677
      %3710 = vmatprep.subr.bf16.mxu0 0
      %3711 = vmatpush1.bf16.msra.mxu0 %v3678
      %3712 = vmatprep.subr.bf16.mxu0 0
      %3713 = vmatpush1.bf16.msra.mxu0 %v3679
      %3714 = vmatprep.subr.bf16.mxu0 0
      %3715 = vmatpush1.bf16.msra.mxu0 %v3680
      %3716 = vmatprep.subr.bf16.mxu0 0
      %3717 = vmatpush1.bf16.msra.mxu0 %v3681
      %3718 = vmatprep.subr.bf16.mxu0 0
      %3719 = vmatpush1.bf16.msra.mxu0 %v3682
      %3720 = vmatprep.subr.bf16.mxu0 0
      %3721 = vmatpush1.bf16.msra.mxu0 %v3683
      %3722 = vmatprep.subr.bf16.mxu0 0
      %3723 = vmatpush1.bf16.msra.mxu0 %v3684
      %3724 = vmatprep.subr.bf16.mxu0 0
      %3725 = vmatpush1.bf16.msra.mxu0 0
      %3726 = vmatprep.subr.bf16.mxu0 0
      %3727 = vmatpush1.bf16.msra.mxu0 0
      %3728 = vmatprep.subr.bf16.mxu0 0
      %3729 = vmatpush1.bf16.msra.mxu0 0
      %3730 = vmatprep.subr.bf16.mxu0 0
      %3731 = vmatpush1.bf16.msra.mxu0 0
      %3732 = vmatprep.mubr.bf16.mxu0 %v3159
      %3733 = vmatmul.mubr.bf16.gmra.mrb[0].mxu0 %v2987
      %v3734 = vpop.f32.mrb[0].mxu0
      %v3735 = vadd.f32 0.0, %v3734
      %v3736 = vpop.f32.mrb[0].mxu0
      %v3737 = vpop.f32.mrb[0].mxu0
      %v3738 = vadd.f32 0.0, %v3737
      %v3739 = vpop.f32.mrb[0].mxu0
      %3740 = vmatprep.mubr.bf16.mxu0 %v3162
      %3741 = vmatmul.mubr.bf16.gmra.mrb[0].mxu0 %v2990
      %v3742 = vpop.f32.mrb[0].mxu0
      %v3743 = vadd.f32 0.0, %v3742
      %v3744 = vpop.f32.mrb[0].mxu0
      %v3745 = vpop.f32.mrb[0].mxu0
      %v3746 = vadd.f32 0.0, %v3745
      %v3747 = vpop.f32.mrb[0].mxu0
      %3748 = vmatprep.mubr.bf16.mxu0 %v3165
      %3749 = vmatmul.mubr.bf16.gmra.mrb[0].mxu0 %v2993
      %v3750 = vpop.f32.mrb[0].mxu0
      %v3751 = vadd.f32 0.0, %v3750
      %v3752 = vpop.f32.mrb[0].mxu0
      %v3753 = vpop.f32.mrb[0].mxu0
      %v3754 = vadd.f32 0.0, %v3753
      %v3755 = vpop.f32.mrb[0].mxu0
      %3756 = vmatprep.mubr.bf16.mxu0 %v3168
      %3757 = vmatmul.mubr.bf16.gmra.mrb[0].mxu0 %v2996
      %v3758 = vpop.f32.mrb[0].mxu0
      %v3759 = vadd.f32 0.0, %v3758
      %v3760 = vpop.f32.mrb[0].mxu0
      %v3761 = vpop.f32.mrb[0].mxu0
      %v3762 = vadd.f32 0.0, %v3761
      %v3763 = vpop.f32.mrb[0].mxu0
      %3764 = vmatprep.mubr.bf16.mxu0 %v3171
      %3765 = vmatmul.mubr.bf16.gmra.mrb[0].mxu0 %v2999
      %v3766 = vpop.f32.mrb[0].mxu0
      %v3767 = vadd.f32 0.0, %v3766
      %v3768 = vpop.f32.mrb[0].mxu0
      %v3769 = vpop.f32.mrb[0].mxu0
      %v3770 = vadd.f32 0.0, %v3769
      %v3771 = vpop.f32.mrb[0].mxu0
      %3772 = vmatprep.mubr.bf16.mxu0 %v3174
      %3773 = vmatmul.mubr.bf16.gmra.mrb[0].mxu0 %v3002
      %v3774 = vpop.f32.mrb[0].mxu0
      %v3775 = vadd.f32 0.0, %v3774
      %v3776 = vpop.f32.mrb[0].mxu0
      %v3777 = vpop.f32.mrb[0].mxu0
      %v3778 = vadd.f32 0.0, %v3777
      %v3779 = vpop.f32.mrb[0].mxu0
      %3780 = vmatprep.mubr.bf16.mxu0 %v3177
      %3781 = vmatmul.mubr.bf16.gmra.mrb[0].mxu0 %v3005
      %v3782 = vpop.f32.mrb[0].mxu0
      %v3783 = vadd.f32 0.0, %v3782
      %v3784 = vpop.f32.mrb[0].mxu0
      %v3785 = vpop.f32.mrb[0].mxu0
      %v3786 = vadd.f32 0.0, %v3785
      %v3787 = vpop.f32.mrb[0].mxu0
      %3788 = vmatprep.mubr.bf16.mxu0 %v3180
      %3789 = vmatmul.mubr.bf16.gmra.mrb[0].mxu0 %v3008
      %v3790 = vpop.f32.mrb[0].mxu0
      %v3791 = vadd.f32 0.0, %v3790
      %v3792 = vpop.f32.mrb[0].mxu0
      %v3793 = vpop.f32.mrb[0].mxu0
      %v3794 = vadd.f32 0.0, %v3793
      %v3795 = vpop.f32.mrb[0].mxu0
      %3796 = vmatprep.mubr.bf16.mxu0 %v3183
      %3797 = vmatmul.mubr.bf16.gmra.mrb[0].mxu0 %v3011
      %v3798 = vpop.f32.mrb[0].mxu0
      %v3799 = vadd.f32 0.0, %v3798
      %v3800 = vpop.f32.mrb[0].mxu0
      %v3801 = vpop.f32.mrb[0].mxu0
      %v3802 = vadd.f32 0.0, %v3801
      %v3803 = vpop.f32.mrb[0].mxu0
      %3804 = vmatprep.mubr.bf16.mxu0 %v3186
      %3805 = vmatmul.mubr.bf16.gmra.mrb[0].mxu0 %v3014
      %v3806 = vpop.f32.mrb[0].mxu0
      %v3807 = vadd.f32 0.0, %v3806
      %v3808 = vpop.f32.mrb[0].mxu0
      %v3809 = vpop.f32.mrb[0].mxu0
      %v3810 = vadd.f32 0.0, %v3809
      %v3811 = vpop.f32.mrb[0].mxu0
      %3812 = vmatprep.mubr.bf16.mxu0 %v3189
      %3813 = vmatmul.mubr.bf16.gmra.mrb[0].mxu0 %v3017
      %v3814 = vpop.f32.mrb[0].mxu0
      %v3815 = vadd.f32 0.0, %v3814
      %v3816 = vpop.f32.mrb[0].mxu0
      %v3817 = vpop.f32.mrb[0].mxu0
      %v3818 = vadd.f32 0.0, %v3817
      %v3819 = vpop.f32.mrb[0].mxu0
      %3820 = vmatprep.mubr.bf16.mxu0 %v3192
      %3821 = vmatmul.mubr.bf16.gmra.mrb[0].mxu0 %v3020
      %v3822 = vpop.f32.mrb[0].mxu0
      %v3823 = vadd.f32 0.0, %v3822
      %v3824 = vpop.f32.mrb[0].mxu0
      %v3825 = vpop.f32.mrb[0].mxu0
      %v3826 = vadd.f32 0.0, %v3825
      %v3827 = vpop.f32.mrb[0].mxu0
      %3828 = vmatprep.mubr.bf16.mxu0 %v3195
      %3829 = vmatmul.mubr.bf16.gmra.mrb[0].mxu0 %v3023
      %v3830 = vpop.f32.mrb[0].mxu0
      %v3831 = vadd.f32 0.0, %v3830
      %v3832 = vpop.f32.mrb[0].mxu0
      %v3833 = vpop.f32.mrb[0].mxu0
      %v3834 = vadd.f32 0.0, %v3833
      %v3835 = vpop.f32.mrb[0].mxu0
      %3836 = vmatprep.mubr.bf16.mxu0 %v3198
      %3837 = vmatmul.mubr.bf16.gmra.mrb[0].mxu0 %v3026
      %v3838 = vpop.f32.mrb[0].mxu0
      %v3839 = vadd.f32 0.0, %v3838
      %v3840 = vpop.f32.mrb[0].mxu0
      %v3841 = vpop.f32.mrb[0].mxu0
      %v3842 = vadd.f32 0.0, %v3841
      %v3843 = vpop.f32.mrb[0].mxu0
      %3844 = vmatprep.mubr.bf16.mxu0 %v3201
      %3845 = vmatmul.mubr.bf16.gmra.mrb[0].mxu0 %v3029
      %v3846 = vpop.f32.mrb[0].mxu0
      %v3847 = vadd.f32 0.0, %v3846
      %v3848 = vpop.f32.mrb[0].mxu0
      %v3849 = vpop.f32.mrb[0].mxu0
      %v3850 = vadd.f32 0.0, %v3849
      %v3851 = vpop.f32.mrb[0].mxu0
      %3852 = vmatprep.mubr.bf16.mxu0 %v3698
      %3853 = vmatmul.mubr.bf16.gmra.mrb[0].mxu0 %v3032
      %v3854 = vpop.f32.mrb[0].mxu0
      %v3855 = vadd.f32 0.0, %v3854
      %v3856 = vpop.f32.mrb[0].mxu0
      %v3857 = vpop.f32.mrb[0].mxu0
      %v3858 = vadd.f32 0.0, %v3857
      %v3859 = vpop.f32.mrb[0].mxu0
      %3860 = vdwg.mxu0
      %v3861 = vadd.f32 %v3474, %v3735
      %v3862 = vadd.f32 %v3477, %v3738
      %v3863 = vadd.f32 %v3482, %v3743
      %v3864 = vadd.f32 %v3485, %v3746
      %v3865 = vadd.f32 %v3490, %v3751
      %v3866 = vadd.f32 %v3493, %v3754
      %v3867 = vadd.f32 %v3498, %v3759
      %v3868 = vadd.f32 %v3501, %v3762
      %v3869 = vadd.f32 %v3506, %v3767
      %v3870 = vadd.f32 %v3509, %v3770
      %v3871 = vadd.f32 %v3514, %v3775
      %v3872 = vadd.f32 %v3517, %v3778
      %v3873 = vadd.f32 %v3522, %v3783
      %v3874 = vadd.f32 %v3525, %v3786
      %v3875 = vadd.f32 %v3530, %v3791
      %v3876 = vadd.f32 %v3533, %v3794
      %v3877 = vadd.f32 %v3538, %v3799
      %v3878 = vadd.f32 %v3541, %v3802
      %v3879 = vadd.f32 %v3546, %v3807
      %v3880 = vadd.f32 %v3549, %v3810
      %v3881 = vadd.f32 %v3554, %v3815
      %v3882 = vadd.f32 %v3557, %v3818
      %v3883 = vadd.f32 %v3562, %v3823
      %v3884 = vadd.f32 %v3565, %v3826
      %v3885 = vadd.f32 %v3570, %v3831
      %v3886 = vadd.f32 %v3573, %v3834
      %v3887 = vadd.f32 %v3578, %v3839
      %v3888 = vadd.f32 %v3581, %v3842
      %v3889 = vadd.f32 %v3586, %v3847
      %v3890 = vadd.f32 %v3589, %v3850
      %v3891 = vadd.f32 %v3594, %v3855
      %v3892 = vadd.f32 %v3597, %v3858
      %v3893 = vld [vmem:[%s6] sm:$0x1]
      %v3895 = vlaneseq
      %v3896 = vshrl.u32 %v3895, 7
      %v3897 = vsub.s32 0, %v3896
      %v3898 = vrot.slane %v3893, %v3897
      %v3900 = vadd.f32 %v3861, %v3898
      %v3901 = vadd.f32 %v3862, %v3898
      %v3902 = vadd.f32 %v3863, %v3898
      %v3903 = vadd.f32 %v3864, %v3898
      %v3904 = vadd.f32 %v3865, %v3898
      %v3905 = vadd.f32 %v3866, %v3898
      %v3906 = vadd.f32 %v3867, %v3898
      %v3907 = vadd.f32 %v3868, %v3898
      %v3908 = vadd.f32 %v3869, %v3898
      %v3909 = vadd.f32 %v3870, %v3898
      %v3910 = vadd.f32 %v3871, %v3898
      %v3911 = vadd.f32 %v3872, %v3898
      %v3912 = vadd.f32 %v3873, %v3898
      %v3913 = vadd.f32 %v3874, %v3898
      %v3914 = vadd.f32 %v3875, %v3898
      %v3915 = vadd.f32 %v3876, %v3898
      %v3916 = vadd.f32 %v3877, %v3898
      %v3917 = vadd.f32 %v3878, %v3898
      %v3918 = vadd.f32 %v3879, %v3898
      %v3919 = vadd.f32 %v3880, %v3898
      %v3920 = vadd.f32 %v3881, %v3898
      %v3921 = vadd.f32 %v3882, %v3898
      %v3922 = vadd.f32 %v3883, %v3898
      %v3923 = vadd.f32 %v3884, %v3898
      %v3924 = vadd.f32 %v3885, %v3898
      %v3925 = vadd.f32 %v3886, %v3898
      %v3926 = vadd.f32 %v3887, %v3898
      %v3927 = vadd.f32 %v3888, %v3898
      %v3928 = vadd.f32 %v3889, %v3898
      %v3929 = vadd.f32 %v3890, %v3898
      %v3930 = vadd.f32 %v3891, %v3898
      %v3931 = vadd.f32 %v3892, %v3898
      %v3932 = vmax.f32 %v3900, 0.0
      %v3933 = vmax.f32 %v3901, 0.0
      %v3934 = vmax.f32 %v3902, 0.0
      %v3935 = vmax.f32 %v3903, 0.0
      %v3936 = vmax.f32 %v3904, 0.0
      %v3937 = vmax.f32 %v3905, 0.0
      %v3938 = vmax.f32 %v3906, 0.0
      %v3939 = vmax.f32 %v3907, 0.0
      %v3940 = vmax.f32 %v3908, 0.0
      %v3941 = vmax.f32 %v3909, 0.0
      %v3942 = vmax.f32 %v3910, 0.0
      %v3943 = vmax.f32 %v3911, 0.0
      %v3944 = vmax.f32 %v3912, 0.0
      %v3945 = vmax.f32 %v3913, 0.0
      %v3946 = vmax.f32 %v3914, 0.0
      %v3947 = vmax.f32 %v3915, 0.0
      %v3948 = vmax.f32 %v3916, 0.0
      %v3949 = vmax.f32 %v3917, 0.0
      %v3950 = vmax.f32 %v3918, 0.0
      %v3951 = vmax.f32 %v3919, 0.0
      %v3952 = vmax.f32 %v3920, 0.0
      %v3953 = vmax.f32 %v3921, 0.0
      %v3954 = vmax.f32 %v3922, 0.0
      %v3955 = vmax.f32 %v3923, 0.0
      %v3956 = vmax.f32 %v3924, 0.0
      %v3957 = vmax.f32 %v3925, 0.0
      %v3958 = vmax.f32 %v3926, 0.0
      %v3959 = vmax.f32 %v3927, 0.0
      %v3960 = vmax.f32 %v3928, 0.0
      %v3961 = vmax.f32 %v3929, 0.0
      %v3962 = vmax.f32 %v3930, 0.0
      %v3963 = vmax.f32 %v3931, 0.0
      %v3964 = vpack.c.bf16 %v3933, %v3932
      %v3965 = vpack.c.bf16 %v3935, %v3934
      %v3966 = vpack.c.bf16 %v3937, %v3936
      %v3967 = vpack.c.bf16 %v3939, %v3938
      %v3968 = vpack.c.bf16 %v3941, %v3940
      %v3969 = vpack.c.bf16 %v3943, %v3942
      %v3970 = vpack.c.bf16 %v3945, %v3944
      %v3971 = vpack.c.bf16 %v3947, %v3946
      %v3972 = vpack.c.bf16 %v3949, %v3948
      %v3973 = vpack.c.bf16 %v3951, %v3950
      %v3974 = vpack.c.bf16 %v3953, %v3952
      %v3975 = vpack.c.bf16 %v3955, %v3954
      %v3976 = vpack.c.bf16 %v3957, %v3956
      %v3977 = vpack.c.bf16 %v3959, %v3958
      %v3978 = vpack.c.bf16 %v3961, %v3960
      %v3979 = vpack.c.bf16 %v3963, %v3962
      %v3996 = vunpack.c.l.b16 %v3964
      %v3997 = vunpack.c.h.b16 %v3964
      %v3998 = vunpack.c.l.b16 %v3965
      %v3999 = vunpack.c.h.b16 %v3965
      %v4000 = vunpack.c.l.b16 %v3966
      %v4001 = vunpack.c.h.b16 %v3966
      %v4002 = vunpack.c.l.b16 %v3967
      %v4003 = vunpack.c.h.b16 %v3967
      %v4004 = vunpack.c.l.b16 %v3968
      %v4005 = vunpack.c.h.b16 %v3968
      %v4006 = vunpack.c.l.b16 %v3969
      %v4007 = vunpack.c.h.b16 %v3969
      %v4008 = vunpack.c.l.b16 %v3970
      %v4009 = vunpack.c.h.b16 %v3970
      %v4010 = vunpack.c.l.b16 %v3971
      %v4011 = vunpack.c.h.b16 %v3971
      %v4012 = vunpack.c.l.b16 %v3972
      %v4013 = vunpack.c.h.b16 %v3972
      %v4014 = vunpack.c.l.b16 %v3973
      %v4015 = vunpack.c.h.b16 %v3973
      %v4016 = vunpack.c.l.b16 %v3974
      %v4017 = vunpack.c.h.b16 %v3974
      %v4018 = vunpack.c.l.b16 %v3975
      %v4019 = vunpack.c.h.b16 %v3975
      %v4020 = vunpack.c.l.b16 %v3976
      %v4021 = vunpack.c.h.b16 %v3976
      %v4022 = vunpack.c.l.b16 %v3977
      %v4023 = vunpack.c.h.b16 %v3977
      %v4024 = vunpack.c.l.b16 %v3978
      %v4025 = vunpack.c.h.b16 %v3978
      %v4026 = vunpack.c.l.b16 %v3979
      %v4027 = vunpack.c.h.b16 %v3979
      %v4028 = vpack.c.b16 %v3996, %v3996
      %v4029 = vpack.c.b16 %v3997, %v3997
      %v4030 = vpack.c.b16 %v3998, %v3998
      %v4031 = vpack.c.b16 %v3999, %v3999
      %v4032 = vpack.c.b16 %v4000, %v4000
      %v4033 = vpack.c.b16 %v4001, %v4001
      %v4034 = vpack.c.b16 %v4002, %v4002
      %v4035 = vpack.c.b16 %v4003, %v4003
      %v4036 = vpack.c.b16 %v4004, %v4004
      %v4037 = vpack.c.b16 %v4005, %v4005
      %v4038 = vpack.c.b16 %v4006, %v4006
      %v4039 = vpack.c.b16 %v4007, %v4007
      %v4040 = vpack.c.b16 %v4008, %v4008
      %v4041 = vpack.c.b16 %v4009, %v4009
      %v4042 = vpack.c.b16 %v4010, %v4010
      %v4043 = vpack.c.b16 %v4011, %v4011
      %v4044 = vpack.c.b16 %v4012, %v4012
      %v4045 = vpack.c.b16 %v4013, %v4013
      %v4046 = vpack.c.b16 %v4014, %v4014
      %v4047 = vpack.c.b16 %v4015, %v4015
      %v4048 = vpack.c.b16 %v4016, %v4016
      %v4049 = vpack.c.b16 %v4017, %v4017
      %v4050 = vpack.c.b16 %v4018, %v4018
      %v4051 = vpack.c.b16 %v4019, %v4019
      %v4052 = vpack.c.b16 %v4020, %v4020
      %v4053 = vpack.c.b16 %v4021, %v4021
      %v4054 = vpack.c.b16 %v4022, %v4022
      %v4055 = vpack.c.b16 %v4023, %v4023
      %v4056 = vpack.c.b16 %v4024, %v4024
      %v4057 = vpack.c.b16 %v4025, %v4025
      %v4058 = vpack.c.b16 %v4026, %v4026
      %v4059 = vpack.c.b16 %v4027, %v4027
      %vm4092 = vcmask 519168
      %4093 = vst.msk [vmem:[%s455] sm:$0xf] %vm4092, %v4028
      %4094 = vst.msk [vmem:[%s455 + $0x4] sm:$0xf] %vm4092, %v4029
      %4095 = vst.msk [vmem:[%s455 + $0x8] sm:$0xf] %vm4092, %v4030
      %4096 = vst.msk [vmem:[%s455 + $0xc] sm:$0xf] %vm4092, %v4031
      %4097 = vst.msk [vmem:[%s455 + $0x10] sm:$0xf] %vm4092, %v4032
      %4098 = vst.msk [vmem:[%s455 + $0x14] sm:$0xf] %vm4092, %v4033
      %4099 = vst.msk [vmem:[%s455 + $0x18] sm:$0xf] %vm4092, %v4034
      %4100 = vst.msk [vmem:[%s455 + $0x1c] sm:$0xf] %vm4092, %v4035
      %4101 = vst.msk [vmem:[%s455 + $0x20] sm:$0xf] %vm4092, %v4036
      %4102 = vst.msk [vmem:[%s455 + $0x24] sm:$0xf] %vm4092, %v4037
      %4103 = vst.msk [vmem:[%s455 + $0x28] sm:$0xf] %vm4092, %v4038
      %4104 = vst.msk [vmem:[%s455 + $0x2c] sm:$0xf] %vm4092, %v4039
      %4105 = vst.msk [vmem:[%s455 + $0x30] sm:$0xf] %vm4092, %v4040
      %4106 = vst.msk [vmem:[%s455 + $0x34] sm:$0xf] %vm4092, %v4041
      %4107 = vst.msk [vmem:[%s455 + $0x38] sm:$0xf] %vm4092, %v4042
      %4108 = vst.msk [vmem:[%s455 + $0x3c] sm:$0xf] %vm4092, %v4043
      %4109 = vst.msk [vmem:[%s455 + $0x40] sm:$0xf] %vm4092, %v4044
      %4110 = vst.msk [vmem:[%s455 + $0x44] sm:$0xf] %vm4092, %v4045
      %4111 = vst.msk [vmem:[%s455 + $0x48] sm:$0xf] %vm4092, %v4046
      %4112 = vst.msk [vmem:[%s455 + $0x4c] sm:$0xf] %vm4092, %v4047
      %4113 = vst.msk [vmem:[%s455 + $0x50] sm:$0xf] %vm4092, %v4048
      %4114 = vst.msk [vmem:[%s455 + $0x54] sm:$0xf] %vm4092, %v4049
      %4115 = vst.msk [vmem:[%s455 + $0x58] sm:$0xf] %vm4092, %v4050
      %4116 = vst.msk [vmem:[%s455 + $0x5c] sm:$0xf] %vm4092, %v4051
      %4117 = vst.msk [vmem:[%s455 + $0x60] sm:$0xf] %vm4092, %v4052
      %4118 = vst.msk [vmem:[%s455 + $0x64] sm:$0xf] %vm4092, %v4053
      %4119 = vst.msk [vmem:[%s455 + $0x68] sm:$0xf] %vm4092, %v4054
      %4120 = vst.msk [vmem:[%s455 + $0x6c] sm:$0xf] %vm4092, %v4055
      %4121 = vst.msk [vmem:[%s455 + $0x70] sm:$0xf] %vm4092, %v4056
      %4122 = vst.msk [vmem:[%s455 + $0x74] sm:$0xf] %vm4092, %v4057
      %4123 = vst.msk [vmem:[%s455 + $0x78] sm:$0xf] %vm4092, %v4058
      %4124 = vst.msk [vmem:[%s455 + $0x7c] sm:$0xf] %vm4092, %v4059
      %s4125 = smul.u32 16, %s23
      %p4126 = scmp.lt.s32.totalorder %s22, 1
      %s4127 = scalar_select %p4126, %s22, 1
      %p4128 = scmp.lt.s32.totalorder %s4125, 15
      %s4129 = scalar_select %p4128, %s4125, 15
      %s4130 = smul.addr %s4129, 2
      %s4131 = smul.addr %s4127, 32
      %s4132 = sadd.s32 %s4130, %s4131
      %s4133 = smul.addr %s4132, 4
      %s4134 = scalar_lea.vmem %s7, %s4133
      // Predicated region
      $region49: #{a_call__.4} parent=47 // pred_check
        %p4135 = pneg %p234
      $region50: #{a_call__.4} parent=47 // pred_check_branch
        %4137 = sbr.rel (%p4135) target = $region52
      $region51: #{a_call__.4} parent=47 // pred_region
        %s4138 = smul.u32 16, %s23
      $region52: #{a_call__.4} parent=47 // pred_fallthru
        _
    $region48: #{a_call__.4} parent=5 // pred_fallthru
      _
    %p4139 = scmp.le.s32.totalorder 2, %s13
    // Predicated region
    $region53: #{a_call__.4} parent=5 // pred_check
      %p4140 = pneg %p4139
    $region54: #{a_call__.4} parent=5 // pred_check_branch
      %4142 = sbr.rel (%p4140) target = $region56
    $region55: #{a_call__.4} parent=5 // pred_region
      %s4143 = ssub.s32 %s13, 2
      // Predicated region
      $region57: #{a_call__.4} parent=55 // pred_check
        %p4144 = pneg %p240
      $region58: #{a_call__.4} parent=55 // pred_check_branch
        %4146 = sbr.rel (%p4144) target = $region60
      $region59: #{a_call__.4} parent=55 // pred_region
        %s4147 = smul.u32 16, %s25
        %p4148 = scmp.lt.s32.totalorder %s24, 1
        %s4149 = scalar_select %p4148, %s24, 1
        %p4150 = scmp.lt.s32.totalorder %s4147, 15
        %s4151 = scalar_select %p4150, %s4147, 15
        %s4152 = smul.addr %s4151, 2
        %s4153 = smul.addr %s4149, 32
        %s4154 = sadd.s32 %s4152, %s4153
        %s4155 = smul.addr %s4154, 4
        %s4156 = scalar_lea.vmem %s7, %s4155
      $region60: #{a_call__.4} parent=55 // pred_fallthru
        _
    $region56: #{a_call__.4} parent=5 // pred_fallthru
      _
  $region6: #{a_call__.4} parent=0 // loop_footer
    %s17 = sadd.s32 1, %s13
  $region7: #{a_call__.4} parent=0 // loop_footer_branch
    %12 = sbr.rel target = $region3
  $region8: #{a_call__.4} parent=0 // loop_exit
    _

</llo_original>
